<compile_context>
chip_gen: v7x
topology: tpu7x:2x2x1
jax: 0.10.0
libtpu: 0.0.40
codegen_flags: <defaults>
</compile_context>

<pallas_src>
import functools

import jax
import jax.numpy as jnp
from jax.experimental import pallas as pl
from jax.experimental.pallas import tpu as pltpu


# ----------------------------------------------------------------------------
# Kernel A1: conv_reduce (K-tiled over C) + attention[0] for both branches.
# grid = (N, HW // tm, C // tk)
# ----------------------------------------------------------------------------
def _reduce_kernel(x_ref, wred_ref, bred_ref, wa1_ref, ba1_ref,
                   rx_ref, a1_ref, acc_ref):
    k = pl.program_id(2)

    @pl.when(k == 0)
    def _():
        acc_ref[...] = jnp.zeros_like(acc_ref)

    xb = x_ref[0]                                              # (tm, tk) bf16
    for g in range(2):                                         # collect / distribute
        acc_ref[g] += jnp.dot(xb, wred_ref[g],
                              preferred_element_type=jnp.float32)

    @pl.when(k == pl.num_programs(2) - 1)
    def _():
        for g in range(2):
            rx = jnp.maximum(acc_ref[g] + bred_ref[g], 0.0)    # (tm, R) f32
            rxb = rx.astype(jnp.bfloat16)
            a1 = jnp.dot(rxb, wa1_ref[g],
                         preferred_element_type=jnp.float32) + ba1_ref[g]
            rx_ref[0, g] = rxb
            a1_ref[0, g] = jnp.maximum(a1, 0.0).astype(jnp.bfloat16)


# ----------------------------------------------------------------------------
# Kernel A2: attention[1] (1x1, no bias) + channel softmax + bmm, one query
# tile / one branch per grid step.  grid = (N, 2, HW // tq)
# ----------------------------------------------------------------------------
def _attention_kernel(a1_ref, rx_ref, wa2_ref, psa_ref):
    a1 = a1_ref[0, 0]                                          # (tq, R)  bf16
    rx = rx_ref[0, 0]                                          # (HW, R)  bf16 (resident)
    wa2 = wa2_ref[0]                                           # (R, HW)  bf16

    att = jnp.dot(a1, wa2, preferred_element_type=jnp.float32)   # (tq, HW) f32
    att = att - jnp.max(att, axis=-1, keepdims=True)
    e = jnp.exp(att)                                             # f32 (EUP)
    s = jnp.sum(e, axis=-1, keepdims=True)                       # (tq, 1)

    # torch.bmm(reduce_x, softmax(att)); normalisation fused after the matmul.
    fm = jnp.dot(e.astype(jnp.bfloat16), rx,
                 preferred_element_type=jnp.float32)             # (tq, R)
    fm = fm * pl.reciprocal(s, approx=True)
    psa_ref[0] = fm.astype(psa_ref.dtype)


# ----------------------------------------------------------------------------
# Kernel B: conv_post -> cat([x, out]) -> 3x3 conv + BN + ReLU -> classifier.
# grid = (N, 2C // tkc): one tile of tkc input channels of the 3x3 conv per
# step; wproj is streamed one (9, tkc, M) block at a time.
# ----------------------------------------------------------------------------
def _psa_head_kernel(H, W, C, TKC, x_ref, psa_ref, wpost_ref, bpost_ref,
                     wproj_ref, bproj_ref, wcls_ref, bcls_ref,
                     out_ref, pad_ref, acc_ref):
    c = pl.program_id(1)
    n_ct = pad_ref.shape[0]              # number of tkc-wide channel tiles (2C/TKC)
    n_x = C // TKC                       # tiles coming from x; the rest from conv_post
    HW = H * W

    @pl.when(c == 0)
    def _():
        # conv_post: 1x1 conv + folded BN + ReLU  (2R -> C), f32 accumulation.
        post = jnp.dot(psa_ref[0], wpost_ref[...],
                       preferred_element_type=jnp.float32)       # (HW, C)
        post = jnp.maximum(post + bpost_ref[...], 0.0)
        post = post.astype(pad_ref.dtype).reshape(H, W, C)
        x = x_ref[0].reshape(H, W, C)                            # bf16

        # torch.cat([x, out], dim=1): write both halves straight into the
        # channel-tiled zero-padded scratch.  Only the 1-pixel halo is zeroed
        # (the interior is fully overwritten for every batch).
        zr = jnp.zeros((1, W + 2, TKC), pad_ref.dtype)
        zc = jnp.zeros((H + 2, 1, TKC), pad_ref.dtype)
        for ci in range(n_ct):
            pad_ref[ci, 0:1, :, :] = zr
            pad_ref[ci, H + 1:H + 2, :, :] = zr
            pad_ref[ci, :, 0:1, :] = zc
            pad_ref[ci, :, W + 1:W + 2, :] = zc
            if ci < n_x:
                src, off = x, ci * TKC
            else:
                src, off = post, (ci - n_x) * TKC
            pad_ref[ci, 1:1 + H, 1:1 + W, :] = src[:, :, off:off + TKC]

        acc_ref[...] = jnp.zeros_like(acc_ref)

    # project[0] (3x3 conv, padding=1): this step's tkc input channels,
    # static unroll over the 9 taps, accumulate into the f32 scratch.
    win = pad_ref[c]                                             # (H+2, W+2, TKC)
    acc = acc_ref[...]
    for t in range(9):
        ky, kx = t // 3, t % 3
        tap = win[ky:ky + H, kx:kx + W, :].reshape(HW, TKC)
        acc = acc + jnp.dot(tap, wproj_ref[t],
                            preferred_element_type=jnp.float32)  # (HW, M)
    acc_ref[...] = acc

    @pl.when(c == n_ct - 1)
    def _():
        proj = jnp.maximum(acc_ref[...] + bproj_ref[...], 0.0)   # (HW, M) f32
        # TODO(synk): Dropout2d(0.1, False) only acts in training; eval-mode identity.
        logits = jnp.dot(proj.astype(jnp.bfloat16), wcls_ref[...],
                         preferred_element_type=jnp.float32)     # (HW, Kp) lane-dense
        out_ref[0] = logits + bcls_ref[...]


# ----------------------------------------------------------------------------
# Wrapper
# ----------------------------------------------------------------------------
def _pick_tile(dim, target, align):
    """Largest multiple of `align` <= target that divides `dim`, else `dim`."""
    if dim <= target:
        return dim
    t = (target // align) * align
    while t >= align:
        if dim % t == 0:
            return t
        t -= align
    return dim


def psa_head_forward(x_nchw, p, *, tm=None, tq=None, tk=None, tkc=None):
    N, C, H, W = x_nchw.shape
    HW = H * W
    R = p["wred"].shape[-1]
    M = p["wproj"].shape[-1]
    K = p["wcls"].shape[-1]
    Kp = ((K + 127) // 128) * 128                  # lane-dense classifier width
    f32, b16 = jnp.float32, jnp.bfloat16

    # Tile sizes: defaults target production scale (tq/tm ~256 for the
    # 2x256^2 MXU on v6e/v7x); override for tests.
    tm = _pick_tile(HW, 256, 8) if tm is None else tm
    tq = _pick_tile(HW, 256, 8) if tq is None else tq
    tk = _pick_tile(C, 256, 128) if tk is None else tk
    tkc = _pick_tile(C, 256, 128) if tkc is None else tkc
    assert HW % tm == 0 and HW % tq == 0 and tm % 8 == 0 and tq % 8 == 0
    assert C % tk == 0 and C % tkc == 0
    n_ct = (2 * C) // tkc

    # bf16 matmul operands (f32 accumulation inside the kernels); biases f32.
    xb = jnp.transpose(x_nchw, (0, 2, 3, 1)).reshape(N, HW, C).astype(b16)
    wred = p["wred"].astype(b16)
    wa1 = p["wa1"].astype(b16)
    wa2 = p["wa2"].astype(b16)
    wpost = p["wpost"].astype(b16)
    wproj = p["wproj"].astype(b16)
    wcls = jnp.zeros((M, Kp), f32).at[:, :K].set(p["wcls"]).astype(b16)
    bcls = jnp.zeros((1, Kp), f32).at[:, :K].set(p["bcls"])

    vmem_lim = 48 * 1024 * 1024   # raise (~100 MiB) on 128-MiB parts at full scale

    # --- kernel A1: conv_reduce + attention[0] for both branches -------------
    rx, a1 = pl.pallas_call(
        _reduce_kernel,
        out_shape=(jax.ShapeDtypeStruct((N, 2, HW, R), b16),
                   jax.ShapeDtypeStruct((N, 2, HW, R), b16)),
        grid=(N, HW // tm, C // tk),
        in_specs=[
            pl.BlockSpec((1, tm, tk), lambda b, m, k: (b, m, k)),
            pl.BlockSpec((2, tk, R), lambda b, m, k: (0, k, 0)),
            pl.BlockSpec((2, 1, R), lambda b, m, k: (0, 0, 0)),
            pl.BlockSpec((2, R, R), lambda b, m, k: (0, 0, 0)),
            pl.BlockSpec((2, 1, R), lambda b, m, k: (0, 0, 0)),
        ],
        out_specs=(pl.BlockSpec((1, 2, tm, R), lambda b, m, k: (b, 0, m, 0)),
                   pl.BlockSpec((1, 2, tm, R), lambda b, m, k: (b, 0, m, 0))),
        scratch_shapes=[pltpu.VMEM((2, tm, R), jnp.float32)],
        compiler_params=pltpu.CompilerParams(
            dimension_semantics=("parallel", "parallel", "arbitrary"),
            vmem_limit_bytes=vmem_lim),
    )(xb, wred, p["bred"], wa1, p["ba1"])

    # --- kernel A2: attention + softmax + bmm, output in concat layout -------
    psa = pl.pallas_call(
        _attention_kernel,
        out_shape=jax.ShapeDtypeStruct((N, HW, 2 * R), b16),
        grid=(N, 2, HW // tq),
        in_specs=[
            pl.BlockSpec((1, 1, tq, R), lambda b, g, q: (b, g, q, 0)),
            pl.BlockSpec((1, 1, HW, R), lambda b, g, q: (b, g, 0, 0)),
            pl.BlockSpec((1, R, HW), lambda b, g, q: (g, 0, 0)),
        ],
        out_specs=pl.BlockSpec((1, tq, R), lambda b, g, q: (b, q, g)),
        compiler_params=pltpu.CompilerParams(
            dimension_semantics=("parallel", "parallel", "parallel"),
            vmem_limit_bytes=vmem_lim),
    )(a1, rx, wa2)

    # --- kernel B: conv_post + cat + 3x3 project + classifier ----------------
    out = pl.pallas_call(
        functools.partial(_psa_head_kernel, H, W, C, tkc),
        out_shape=jax.ShapeDtypeStruct((N, HW, Kp), jnp.float32),
        grid=(N, n_ct),
        in_specs=[
            pl.BlockSpec((1, HW, C), lambda b, c: (b, 0, 0)),
            pl.BlockSpec((1, HW, 2 * R), lambda b, c: (b, 0, 0)),
            pl.BlockSpec((2 * R, C), lambda b, c: (0, 0)),
            pl.BlockSpec((1, C), lambda b, c: (0, 0)),
            pl.BlockSpec((9, tkc, M), lambda b, c: (0, c, 0)),
            pl.BlockSpec((1, M), lambda b, c: (0, 0)),
            pl.BlockSpec((M, Kp), lambda b, c: (0, 0)),
            pl.BlockSpec((1, Kp), lambda b, c: (0, 0)),
        ],
        out_specs=pl.BlockSpec((1, HW, Kp), lambda b, c: (b, 0, 0)),
        scratch_shapes=[pltpu.VMEM((n_ct, H + 2, W + 2, tkc), b16),
                        pltpu.VMEM((HW, M), jnp.float32)],
        compiler_params=pltpu.CompilerParams(
            dimension_semantics=("parallel", "arbitrary"),
            vmem_limit_bytes=vmem_lim),
    )(xb, psa, wpost, p["bpost"], wproj, p["bproj"], wcls, bcls)

    out = out[..., :K].reshape(N, H, W, K)
    return jnp.transpose(out, (0, 3, 1, 2))        # NCHW


# ----------------------------------------------------------------------------
# Deterministic synthetic parameters (Conv + folded eval-mode BatchNorm)
# ----------------------------------------------------------------------------
def _init_conv_bn(key, cin, cout, k, eps=1e-5):
    kw, kg, kb, km, kv = jax.random.split(key, 5)
    w = jax.random.normal(kw, (cout, cin, k, k), jnp.float32) / jnp.sqrt(cin * k * k)
    gamma = 1.0 + 0.1 * jax.random.normal(kg, (cout,), jnp.float32)
    beta = 0.1 * jax.random.normal(kb, (cout,), jnp.float32)
    mean = 0.1 * jax.random.normal(km, (cout,), jnp.float32)
    var = 0.5 + jax.random.uniform(kv, (cout,), jnp.float32)
    scale = gamma / jnp.sqrt(var + eps)
    return w * scale[:, None, None, None], beta - mean * scale


def _init_attention_branch(key, C, R, HW):
    k1, k2, k3 = jax.random.split(key, 3)
    wred4, bred = _init_conv_bn(k1, C, R, 1)
    wa14, ba1 = _init_conv_bn(k2, R, R, 1)
    wa24 = jax.random.normal(k3, (HW, R, 1, 1), jnp.float32) / jnp.sqrt(R)
    return (wred4[:, :, 0, 0].T, bred.reshape(1, R),
            wa14[:, :, 0, 0].T, ba1.reshape(1, R),
            wa24[:, :, 0, 0].T)


def init_params(key, C, R, M, K, HW):
    kc, kd, kp, kq, kw, kb = jax.random.split(key, 6)
    c = _init_attention_branch(kc, C, R, HW)   # collect
    d = _init_attention_branch(kd, C, R, HW)   # distribute
    wpost4, bpost = _init_conv_bn(kp, 2 * R, C, 1)
    wproj4, bproj = _init_conv_bn(kq, 2 * C, M, 3)
    wcls4 = jax.random.normal(kw, (K, M, 1, 1), jnp.float32) / jnp.sqrt(M)
    bcls = 0.1 * jax.random.normal(kb, (K,), jnp.float32)
    return {
        "wred": jnp.stack([c[0], d[0]]), "bred": jnp.stack([c[1], d[1]]),
        "wa1": jnp.stack([c[2], d[2]]), "ba1": jnp.stack([c[3], d[3]]),
        "wa2": jnp.stack([c[4], d[4]]),
        "wpost": wpost4[:, :, 0, 0].T, "bpost": bpost.reshape(1, C),
        "wproj": jnp.transpose(wproj4, (2, 3, 1, 0)).reshape(9, 2 * C, M),
        "bproj": bproj.reshape(1, M),
        "wcls": wcls4[:, :, 0, 0].T, "bcls": bcls.reshape(1, K),
    }


# ----------------------------------------------------------------------------
# Pure-JAX reference (same math and same bf16-operand / f32-accumulation
# precision convention as the kernels) for validation.
# ----------------------------------------------------------------------------
def reference_forward(x_nchw, p):
    b16 = lambda a: a.astype(jnp.bfloat16)
    f32 = jnp.float32
    N, C, H, W = x_nchw.shape
    HW = H * W
    xb = b16(jnp.transpose(x_nchw, (0, 2, 3, 1)).reshape(N, HW, C))

    def branch(i):
        rx = jnp.maximum(jnp.einsum("bpc,cr->bpr", xb, b16(p["wred"][i]),
                                    preferred_element_type=f32) + p["bred"][i], 0.0)
        rxb = b16(rx)
        a1 = jnp.maximum(jnp.einsum("bpr,rq->bpq", rxb, b16(p["wa1"][i]),
                                    preferred_element_type=f32) + p["ba1"][i], 0.0)
        att = jnp.einsum("bpr,rq->bpq", b16(a1), b16(p["wa2"][i]),
                         preferred_element_type=f32)
        att = att - jnp.max(att, axis=-1, keepdims=True)
        e = jnp.exp(att)
        s = jnp.sum(e, axis=-1, keepdims=True)
        fm = jnp.einsum("bpq,bqr->bpr", b16(e), rxb,
                        preferred_element_type=f32) / s
        return b16(fm)

    psa = jnp.concatenate([branch(0), branch(1)], axis=-1)      # (N, HW, 2R) bf16
    post = jnp.maximum(jnp.einsum("bpc,cd->bpd", psa, b16(p["wpost"]),
                                  preferred_element_type=f32) + p["bpost"], 0.0)
    feat = jnp.concatenate([xb, b16(post)], axis=-1).reshape(N, H, W, 2 * C)
    M = p["wproj"].shape[-1]
    w_hwio = b16(p["wproj"]).reshape(3, 3, 2 * C, M)
    proj = jax.lax.conv_general_dilated(
        feat, w_hwio, (1, 1), "SAME",
        dimension_numbers=("NHWC", "HWIO", "NHWC"),
        preferred_element_type=f32)
    proj = jnp.maximum(proj + p["bproj"].reshape(1, 1, 1, M), 0.0)
    K = p["wcls"].shape[-1]
    logits = jnp.einsum("bhwm,mk->bhwk", b16(proj), b16(p["wcls"]),
                        preferred_element_type=f32) + p["bcls"].reshape(1, 1, 1, K)
    return jnp.transpose(logits, (0, 3, 1, 2))                  # NCHW


if __name__ == "__main__":
    # Small-but-representative shapes (real PSANet head: C=2048, R=512, M=512,
    # H=W=input_size//8, attention out_channels = H*W).
    N, C, R, M, K = 2, 256, 128, 128, 5
    input_size = 64
    H = W = input_size // 8
    HW = H * W

    kx_, kp_ = jax.random.split(jax.random.PRNGKey(0))
    x = jax.random.normal(kx_, (N, C, H, W), jnp.float32)       # NCHW like PyTorch
    params = init_params(kp_, C, R, M, K, HW)

    # Small explicit tiles so the toy run exercises every grid axis:
    # row tiles, C K-steps, query tiles and channel-tile accumulation.
    fwd = jax.jit(functools.partial(psa_head_forward, tm=32, tq=32, tk=128, tkc=128))
    out = jax.block_until_ready(fwd(x, params))
    assert out.shape == (N, K, H, W), out.shape
    assert not bool(jnp.any(jnp.isnan(out)))

    ref = reference_forward(x, params)
    err = float(jnp.max(jnp.abs(out - ref)))
    assert jnp.allclose(out, ref, rtol=2e-2, atol=2e-2), err

    print("KERNEL_OK")
</pallas_src>

<mosaic_0001>
module attributes {stable_mosaic.version = 11 : i64} {
  func.func @_attention_kernel(%arg0: i32, %arg1: i32, %arg2: i32, %arg3: memref<1x1x32x128xbf16, #tpu.memory_space<vmem>>, %arg4: memref<1x1x64x128xbf16, #tpu.memory_space<vmem>>, %arg5: memref<1x128x64xbf16, #tpu.memory_space<vmem>>, %arg6: memref<1x32x128xbf16, #tpu.memory_space<vmem>>) attributes {dimension_semantics = [#tpu.dimension_semantics<parallel>, #tpu.dimension_semantics<parallel>, #tpu.dimension_semantics<parallel>], iteration_bounds = array<i64: 2, 2, 2>, scalar_prefetch = 0 : i64, scratch_operands = 0 : i64, tpu.core_type = #tpu.core_type<tc>, window_params = [{transform_indices = @transform_0, window_bounds = array<i64: 1, 1, 32, 128>}, {transform_indices = @transform_1, window_bounds = array<i64: 1, 1, 64, 128>}, {transform_indices = @transform_2, window_bounds = array<i64: 1, 128, 64>}, {transform_indices = @transform_3, window_bounds = array<i64: 1, 32, 128>}]} {
    %c0 = arith.constant 0 : index
    %c0_0 = arith.constant 0 : index
    %c0_1 = arith.constant 0 : index
    %c0_2 = arith.constant 0 : index
    %0 = vector.load %arg3[%c0, %c0_0, %c0_1, %c0_2] : memref<1x1x32x128xbf16, #tpu.memory_space<vmem>>, vector<1x1x32x128xbf16>
    %1 = vector.shape_cast %0 : vector<1x1x32x128xbf16> to vector<32x128xbf16>
    %c0_3 = arith.constant 0 : index
    %c0_4 = arith.constant 0 : index
    %c0_5 = arith.constant 0 : index
    %c0_6 = arith.constant 0 : index
    %2 = vector.load %arg4[%c0_3, %c0_4, %c0_5, %c0_6] : memref<1x1x64x128xbf16, #tpu.memory_space<vmem>>, vector<1x1x64x128xbf16>
    %3 = vector.shape_cast %2 : vector<1x1x64x128xbf16> to vector<64x128xbf16>
    %c0_7 = arith.constant 0 : index
    %c0_8 = arith.constant 0 : index
    %c0_9 = arith.constant 0 : index
    %4 = vector.load %arg5[%c0_7, %c0_8, %c0_9] : memref<1x128x64xbf16, #tpu.memory_space<vmem>>, vector<1x128x64xbf16>
    %5 = vector.shape_cast %4 : vector<1x128x64xbf16> to vector<128x64xbf16>
    %cst = arith.constant dense<0.000000e+00> : vector<32x64xf32>
    %6 = tpu.matmul %1, %5, %cst {dimension_numbers = #tpu.dot_dimension_numbers<[1], [0], [0], [1], [0, 0, 1, 1], [], []>} : vector<32x128xbf16>, vector<128x64xbf16>, vector<32x64xf32> -> vector<32x64xf32>
    %cst_10 = arith.constant dense<0xFF800000> : vector<32xf32>
    %7 = vector.multi_reduction <maximumf>, %6, %cst_10 [1] : vector<32x64xf32> to vector<32xf32>
    %8 = vector.shape_cast %7 : vector<32xf32> to vector<32x1xf32>
    %9 = vector.broadcast %8 : vector<32x1xf32> to vector<32x64xf32>
    %10 = arith.subf %6, %9 : vector<32x64xf32>
    %11 = math.exp %10 : vector<32x64xf32>
    %cst_11 = arith.constant dense<0.000000e+00> : vector<32xf32>
    %12 = vector.multi_reduction <add>, %11, %cst_11 [1] : vector<32x64xf32> to vector<32xf32>
    %13 = vector.shape_cast %12 : vector<32xf32> to vector<32x1xf32>
    %14 = arith.truncf %11 : vector<32x64xf32> to vector<32x64xbf16>
    %cst_12 = arith.constant dense<0.000000e+00> : vector<32x128xf32>
    %15 = tpu.matmul %14, %3, %cst_12 {dimension_numbers = #tpu.dot_dimension_numbers<[1], [0], [0], [1], [0, 0, 1, 1], [], []>} : vector<32x64xbf16>, vector<64x128xbf16>, vector<32x128xf32> -> vector<32x128xf32>
    %16 = tpu.reciprocal %13 {approx = true} : vector<32x1xf32> -> vector<32x1xf32>
    %17 = vector.broadcast %16 : vector<32x1xf32> to vector<32x128xf32>
    %18 = arith.mulf %15, %17 : vector<32x128xf32>
    %19 = arith.truncf %18 : vector<32x128xf32> to vector<32x128xbf16>
    %c0_13 = arith.constant 0 : index
    %c0_14 = arith.constant 0 : index
    %c0_15 = arith.constant 0 : index
    %20 = vector.load %arg6[%c0_13, %c0_14, %c0_15] : memref<1x32x128xbf16, #tpu.memory_space<vmem>>, vector<1x32x128xbf16>
    %21 = vector.shape_cast %20 : vector<1x32x128xbf16> to vector<32x128xbf16>
    %22 = vector.shape_cast %19 : vector<32x128xbf16> to vector<1x32x128xbf16>
    tpu.vector_store %arg6[%c0_13, %c0_14, %c0_15], %22 {strides = array<i32>} : memref<1x32x128xbf16, #tpu.memory_space<vmem>>, vector<1x32x128xbf16>,
    return
  }
  func.func @transform_0(%arg0: i32, %arg1: i32, %arg2: i32) -> (i32, i32, i32, i32) {
    %c0_i32 = arith.constant 0 : i32
    %c0_i32_0 = arith.constant 0 : i32
    return %arg0, %arg1, %arg2, %c0_i32 : i32, i32, i32, i32
  }
  func.func @transform_1(%arg0: i32, %arg1: i32, %arg2: i32) -> (i32, i32, i32, i32) {
    %c0_i32 = arith.constant 0 : i32
    %c0_i32_0 = arith.constant 0 : i32
    %c0_i32_1 = arith.constant 0 : i32
    return %arg0, %arg1, %c0_i32, %c0_i32_0 : i32, i32, i32, i32
  }
  func.func @transform_2(%arg0: i32, %arg1: i32, %arg2: i32) -> (i32, i32, i32) {
    %c0_i32 = arith.constant 0 : i32
    %c0_i32_0 = arith.constant 0 : i32
    %c0_i32_1 = arith.constant 0 : i32
    return %arg1, %c0_i32, %c0_i32_0 : i32, i32, i32
  }
  func.func @transform_3(%arg0: i32, %arg1: i32, %arg2: i32) -> (i32, i32, i32) {
    %c0_i32 = arith.constant 0 : i32
    return %arg0, %arg2, %arg1 : i32, i32, i32
  }
}

module attributes {stable_mosaic.version = 11 : i64} {
  func.func @_reduce_kernel(%arg0: i32, %arg1: i32, %arg2: i32, %arg3: memref<1x32x128xbf16, #tpu.memory_space<vmem>>, %arg4: memref<2x128x128xbf16, #tpu.memory_space<vmem>>, %arg5: memref<2x1x128xf32, #tpu.memory_space<vmem>>, %arg6: memref<2x128x128xbf16, #tpu.memory_space<vmem>>, %arg7: memref<2x1x128xf32, #tpu.memory_space<vmem>>, %arg8: memref<1x2x32x128xbf16, #tpu.memory_space<vmem>>, %arg9: memref<1x2x32x128xbf16, #tpu.memory_space<vmem>>, %arg10: memref<2x32x128xf32, #tpu.memory_space<vmem>>) attributes {dimension_semantics = [#tpu.dimension_semantics<parallel>, #tpu.dimension_semantics<parallel>, #tpu.dimension_semantics<arbitrary>], iteration_bounds = array<i64: 2, 2, 2>, scalar_prefetch = 0 : i64, scratch_operands = 1 : i64, tpu.core_type = #tpu.core_type<tc>, window_params = [{transform_indices = @transform_0, window_bounds = array<i64: 1, 32, 128>}, {transform_indices = @transform_1, window_bounds = array<i64: 2, 128, 128>}, {pipeline_mode = #tpu.pipeline_mode<synchronous>, transform_indices = @transform_2, window_bounds = array<i64: 2, 1, 128>}, {pipeline_mode = #tpu.pipeline_mode<synchronous>, transform_indices = @transform_3, window_bounds = array<i64: 2, 128, 128>}, {pipeline_mode = #tpu.pipeline_mode<synchronous>, transform_indices = @transform_4, window_bounds = array<i64: 2, 1, 128>}, {transform_indices = @transform_5, window_bounds = array<i64: 1, 2, 32, 128>}, {transform_indices = @transform_6, window_bounds = array<i64: 1, 2, 32, 128>}]} {
    %c0_i32 = arith.constant 0 : i32
    %0 = arith.cmpi eq, %arg2, %c0_i32 : i32
    %1 = arith.extui %0 : i1 to i32
    %c0_i32_0 = arith.constant 0 : i32
    %2 = arith.cmpi ne, %1, %c0_i32_0 : i32
    scf.if %2 {
      %cst_22 = arith.constant 0.000000e+00 : f32
      %26 = vector.broadcast %cst_22 : f32 to vector<2x32x128xf32>
      %c0_23 = arith.constant 0 : index
      %c0_24 = arith.constant 0 : index
      %c0_25 = arith.constant 0 : index
      %27 = vector.load %arg10[%c0_23, %c0_24, %c0_25] : memref<2x32x128xf32, #tpu.memory_space<vmem>>, vector<2x32x128xf32>
      tpu.vector_store %arg10[%c0_23, %c0_24, %c0_25], %26 {strides = array<i32>} : memref<2x32x128xf32, #tpu.memory_space<vmem>>, vector<2x32x128xf32>,
    } else {
    }
    %c0 = arith.constant 0 : index
    %c0_1 = arith.constant 0 : index
    %c0_2 = arith.constant 0 : index
    %3 = vector.load %arg3[%c0, %c0_1, %c0_2] : memref<1x32x128xbf16, #tpu.memory_space<vmem>>, vector<1x32x128xbf16>
    %4 = vector.shape_cast %3 : vector<1x32x128xbf16> to vector<32x128xbf16>
    %c0_3 = arith.constant 0 : index
    %c0_4 = arith.constant 0 : index
    %c0_5 = arith.constant 0 : index
    %5 = vector.load %arg10[%c0_3, %c0_4, %c0_5] : memref<2x32x128xf32, #tpu.memory_space<vmem>>, vector<1x32x128xf32>
    %6 = vector.shape_cast %5 : vector<1x32x128xf32> to vector<32x128xf32>
    %c0_6 = arith.constant 0 : index
    %c0_7 = arith.constant 0 : index
    %c0_8 = arith.constant 0 : index
    %7 = vector.load %arg4[%c0_6, %c0_7, %c0_8] : memref<2x128x128xbf16, #tpu.memory_space<vmem>>, vector<1x128x128xbf16>
    %8 = vector.shape_cast %7 : vector<1x128x128xbf16> to vector<128x128xbf16>
    %cst = arith.constant dense<0.000000e+00> : vector<32x128xf32>
    %9 = tpu.matmul %4, %8, %cst {dimension_numbers = #tpu.dot_dimension_numbers<[1], [0], [0], [1], [0, 0, 1, 1], [], []>} : vector<32x128xbf16>, vector<128x128xbf16>, vector<32x128xf32> -> vector<32x128xf32>
    %10 = arith.addf %6, %9 : vector<32x128xf32>
    %c0_9 = arith.constant 0 : index
    %c0_10 = arith.constant 0 : index
    %c0_11 = arith.constant 0 : index
    %11 = vector.load %arg10[%c0_9, %c0_10, %c0_11] : memref<2x32x128xf32, #tpu.memory_space<vmem>>, vector<1x32x128xf32>
    %12 = vector.shape_cast %11 : vector<1x32x128xf32> to vector<32x128xf32>
    %13 = vector.shape_cast %10 : vector<32x128xf32> to vector<1x32x128xf32>
    tpu.vector_store %arg10[%c0_9, %c0_10, %c0_11], %13 {strides = array<i32>} : memref<2x32x128xf32, #tpu.memory_space<vmem>>, vector<1x32x128xf32>,
    %c1 = arith.constant 1 : index
    %c0_12 = arith.constant 0 : index
    %c0_13 = arith.constant 0 : index
    %14 = vector.load %arg10[%c1, %c0_12, %c0_13] : memref<2x32x128xf32, #tpu.memory_space<vmem>>, vector<1x32x128xf32>
    %15 = vector.shape_cast %14 : vector<1x32x128xf32> to vector<32x128xf32>
    %c1_14 = arith.constant 1 : index
    %c0_15 = arith.constant 0 : index
    %c0_16 = arith.constant 0 : index
    %16 = vector.load %arg4[%c1_14, %c0_15, %c0_16] : memref<2x128x128xbf16, #tpu.memory_space<vmem>>, vector<1x128x128xbf16>
    %17 = vector.shape_cast %16 : vector<1x128x128xbf16> to vector<128x128xbf16>
    %cst_17 = arith.constant dense<0.000000e+00> : vector<32x128xf32>
    %18 = tpu.matmul %4, %17, %cst_17 {dimension_numbers = #tpu.dot_dimension_numbers<[1], [0], [0], [1], [0, 0, 1, 1], [], []>} : vector<32x128xbf16>, vector<128x128xbf16>, vector<32x128xf32> -> vector<32x128xf32>
    %19 = arith.addf %15, %18 : vector<32x128xf32>
    %c1_18 = arith.constant 1 : index
    %c0_19 = arith.constant 0 : index
    %c0_20 = arith.constant 0 : index
    %20 = vector.load %arg10[%c1_18, %c0_19, %c0_20] : memref<2x32x128xf32, #tpu.memory_space<vmem>>, vector<1x32x128xf32>
    %21 = vector.shape_cast %20 : vector<1x32x128xf32> to vector<32x128xf32>
    %22 = vector.shape_cast %19 : vector<32x128xf32> to vector<1x32x128xf32>
    tpu.vector_store %arg10[%c1_18, %c0_19, %c0_20], %22 {strides = array<i32>} : memref<2x32x128xf32, #tpu.memory_space<vmem>>, vector<1x32x128xf32>,
    %c1_i32 = arith.constant 1 : i32
    %23 = arith.cmpi eq, %arg2, %c1_i32 : i32
    %24 = arith.extui %23 : i1 to i32
    %c0_i32_21 = arith.constant 0 : i32
    %25 = arith.cmpi ne, %24, %c0_i32_21 : i32
    scf.if %25 {
      %c0_22 = arith.constant 0 : index
      %c0_23 = arith.constant 0 : index
      %c0_24 = arith.constant 0 : index
      %26 = vector.load %arg10[%c0_22, %c0_23, %c0_24] : memref<2x32x128xf32, #tpu.memory_space<vmem>>, vector<1x32x128xf32>
      %27 = vector.shape_cast %26 : vector<1x32x128xf32> to vector<32x128xf32>
      %c0_25 = arith.constant 0 : index
      %c0_26 = arith.constant 0 : index
      %c0_27 = arith.constant 0 : index
      %28 = vector.load %arg5[%c0_25, %c0_26, %c0_27] : memref<2x1x128xf32, #tpu.memory_space<vmem>>, vector<1x1x128xf32>
      %29 = vector.shape_cast %28 : vector<1x1x128xf32> to vector<1x128xf32>
      %30 = vector.broadcast %29 : vector<1x128xf32> to vector<32x128xf32>
      %31 = arith.addf %27, %30 : vector<32x128xf32>
      %cst_28 = arith.constant 0.000000e+00 : f32
      %32 = vector.broadcast %cst_28 : f32 to vector<32x128xf32>
      %33 = arith.maximumf %31, %32 : vector<32x128xf32>
      %34 = arith.truncf %33 : vector<32x128xf32> to vector<32x128xbf16>
      %c0_29 = arith.constant 0 : index
      %c0_30 = arith.constant 0 : index
      %c0_31 = arith.constant 0 : index
      %35 = vector.load %arg6[%c0_29, %c0_30, %c0_31] : memref<2x128x128xbf16, #tpu.memory_space<vmem>>, vector<1x128x128xbf16>
      %36 = vector.shape_cast %35 : vector<1x128x128xbf16> to vector<128x128xbf16>
      %cst_32 = arith.constant dense<0.000000e+00> : vector<32x128xf32>
      %37 = tpu.matmul %34, %36, %cst_32 {dimension_numbers = #tpu.dot_dimension_numbers<[1], [0], [0], [1], [0, 0, 1, 1], [], []>} : vector<32x128xbf16>, vector<128x128xbf16>, vector<32x128xf32> -> vector<32x128xf32>
      %c0_33 = arith.constant 0 : index
      %c0_34 = arith.constant 0 : index
      %c0_35 = arith.constant 0 : index
      %38 = vector.load %arg7[%c0_33, %c0_34, %c0_35] : memref<2x1x128xf32, #tpu.memory_space<vmem>>, vector<1x1x128xf32>
      %39 = vector.shape_cast %38 : vector<1x1x128xf32> to vector<1x128xf32>
      %40 = vector.broadcast %39 : vector<1x128xf32> to vector<32x128xf32>
      %41 = arith.addf %37, %40 : vector<32x128xf32>
      %c0_36 = arith.constant 0 : index
      %c0_37 = arith.constant 0 : index
      %c0_38 = arith.constant 0 : index
      %c0_39 = arith.constant 0 : index
      %42 = vector.load %arg8[%c0_36, %c0_37, %c0_38, %c0_39] : memref<1x2x32x128xbf16, #tpu.memory_space<vmem>>, vector<1x1x32x128xbf16>
      %43 = vector.shape_cast %42 : vector<1x1x32x128xbf16> to vector<32x128xbf16>
      %44 = vector.shape_cast %34 : vector<32x128xbf16> to vector<1x1x32x128xbf16>
      tpu.vector_store %arg8[%c0_36, %c0_37, %c0_38, %c0_39], %44 {strides = array<i32>} : memref<1x2x32x128xbf16, #tpu.memory_space<vmem>>, vector<1x1x32x128xbf16>,
      %cst_40 = arith.constant 0.000000e+00 : f32
      %45 = vector.broadcast %cst_40 : f32 to vector<32x128xf32>
      %46 = arith.maximumf %41, %45 : vector<32x128xf32>
      %47 = arith.truncf %46 : vector<32x128xf32> to vector<32x128xbf16>
      %c0_41 = arith.constant 0 : index
      %c0_42 = arith.constant 0 : index
      %c0_43 = arith.constant 0 : index
      %c0_44 = arith.constant 0 : index
      %48 = vector.load %arg9[%c0_41, %c0_42, %c0_43, %c0_44] : memref<1x2x32x128xbf16, #tpu.memory_space<vmem>>, vector<1x1x32x128xbf16>
      %49 = vector.shape_cast %48 : vector<1x1x32x128xbf16> to vector<32x128xbf16>
      %50 = vector.shape_cast %47 : vector<32x128xbf16> to vector<1x1x32x128xbf16>
      tpu.vector_store %arg9[%c0_41, %c0_42, %c0_43, %c0_44], %50 {strides = array<i32>} : memref<1x2x32x128xbf16, #tpu.memory_space<vmem>>, vector<1x1x32x128xbf16>,
      %c1_45 = arith.constant 1 : index
      %c0_46 = arith.constant 0 : index
      %c0_47 = arith.constant 0 : index
      %51 = vector.load %arg10[%c1_45, %c0_46, %c0_47] : memref<2x32x128xf32, #tpu.memory_space<vmem>>, vector<1x32x128xf32>
      %52 = vector.shape_cast %51 : vector<1x32x128xf32> to vector<32x128xf32>
      %c1_48 = arith.constant 1 : index
      %c0_49 = arith.constant 0 : index
      %c0_50 = arith.constant 0 : index
      %53 = vector.load %arg5[%c1_48, %c0_49, %c0_50] : memref<2x1x128xf32, #tpu.memory_space<vmem>>, vector<1x1x128xf32>
      %54 = vector.shape_cast %53 : vector<1x1x128xf32> to vector<1x128xf32>
      %55 = vector.broadcast %54 : vector<1x128xf32> to vector<32x128xf32>
      %56 = arith.addf %52, %55 : vector<32x128xf32>
      %cst_51 = arith.constant 0.000000e+00 : f32
      %57 = vector.broadcast %cst_51 : f32 to vector<32x128xf32>
      %58 = arith.maximumf %56, %57 : vector<32x128xf32>
      %59 = arith.truncf %58 : vector<32x128xf32> to vector<32x128xbf16>
      %c1_52 = arith.constant 1 : index
      %c0_53 = arith.constant 0 : index
      %c0_54 = arith.constant 0 : index
      %60 = vector.load %arg6[%c1_52, %c0_53, %c0_54] : memref<2x128x128xbf16, #tpu.memory_space<vmem>>, vector<1x128x128xbf16>
      %61 = vector.shape_cast %60 : vector<1x128x128xbf16> to vector<128x128xbf16>
      %cst_55 = arith.constant dense<0.000000e+00> : vector<32x128xf32>
      %62 = tpu.matmul %59, %61, %cst_55 {dimension_numbers = #tpu.dot_dimension_numbers<[1], [0], [0], [1], [0, 0, 1, 1], [], []>} : vector<32x128xbf16>, vector<128x128xbf16>, vector<32x128xf32> -> vector<32x128xf32>
      %c1_56 = arith.constant 1 : index
      %c0_57 = arith.constant 0 : index
      %c0_58 = arith.constant 0 : index
      %63 = vector.load %arg7[%c1_56, %c0_57, %c0_58] : memref<2x1x128xf32, #tpu.memory_space<vmem>>, vector<1x1x128xf32>
      %64 = vector.shape_cast %63 : vector<1x1x128xf32> to vector<1x128xf32>
      %65 = vector.broadcast %64 : vector<1x128xf32> to vector<32x128xf32>
      %66 = arith.addf %62, %65 : vector<32x128xf32>
      %c0_59 = arith.constant 0 : index
      %c1_60 = arith.constant 1 : index
      %c0_61 = arith.constant 0 : index
      %c0_62 = arith.constant 0 : index
      %67 = vector.load %arg8[%c0_59, %c1_60, %c0_61, %c0_62] : memref<1x2x32x128xbf16, #tpu.memory_space<vmem>>, vector<1x1x32x128xbf16>
      %68 = vector.shape_cast %67 : vector<1x1x32x128xbf16> to vector<32x128xbf16>
      %69 = vector.shape_cast %59 : vector<32x128xbf16> to vector<1x1x32x128xbf16>
      tpu.vector_store %arg8[%c0_59, %c1_60, %c0_61, %c0_62], %69 {strides = array<i32>} : memref<1x2x32x128xbf16, #tpu.memory_space<vmem>>, vector<1x1x32x128xbf16>,
      %cst_63 = arith.constant 0.000000e+00 : f32
      %70 = vector.broadcast %cst_63 : f32 to vector<32x128xf32>
      %71 = arith.maximumf %66, %70 : vector<32x128xf32>
      %72 = arith.truncf %71 : vector<32x128xf32> to vector<32x128xbf16>
      %c0_64 = arith.constant 0 : index
      %c1_65 = arith.constant 1 : index
      %c0_66 = arith.constant 0 : index
      %c0_67 = arith.constant 0 : index
      %73 = vector.load %arg9[%c0_64, %c1_65, %c0_66, %c0_67] : memref<1x2x32x128xbf16, #tpu.memory_space<vmem>>, vector<1x1x32x128xbf16>
      %74 = vector.shape_cast %73 : vector<1x1x32x128xbf16> to vector<32x128xbf16>
      %75 = vector.shape_cast %72 : vector<32x128xbf16> to vector<1x1x32x128xbf16>
      tpu.vector_store %arg9[%c0_64, %c1_65, %c0_66, %c0_67], %75 {strides = array<i32>} : memref<1x2x32x128xbf16, #tpu.memory_space<vmem>>, vector<1x1x32x128xbf16>,
    } else {
    }
    return
  }
  func.func @transform_0(%arg0: i32, %arg1: i32, %arg2: i32) -> (i32, i32, i32) {
    %c0_i32 = arith.constant 0 : i32
    return %arg0, %arg1, %arg2 : i32, i32, i32
  }
  func.func @transform_1(%arg0: i32, %arg1: i32, %arg2: i32) -> (i32, i32, i32) {
    %c0_i32 = arith.constant 0 : i32
    %c0_i32_0 = arith.constant 0 : i32
    %c0_i32_1 = arith.constant 0 : i32
    return %c0_i32, %arg2, %c0_i32_0 : i32, i32, i32
  }
  func.func @transform_2(%arg0: i32, %arg1: i32, %arg2: i32) -> (i32, i32, i32) {
    %c0_i32 = arith.constant 0 : i32
    %c0_i32_0 = arith.constant 0 : i32
    %c0_i32_1 = arith.constant 0 : i32
    %c0_i32_2 = arith.constant 0 : i32
    return %c0_i32, %c0_i32_0, %c0_i32_1 : i32, i32, i32
  }
  func.func @transform_3(%arg0: i32, %arg1: i32, %arg2: i32) -> (i32, i32, i32) {
    %c0_i32 = arith.constant 0 : i32
    %c0_i32_0 = arith.constant 0 : i32
    %c0_i32_1 = arith.constant 0 : i32
    %c0_i32_2 = arith.constant 0 : i32
    return %c0_i32, %c0_i32_0, %c0_i32_1 : i32, i32, i32
  }
  func.func @transform_4(%arg0: i32, %arg1: i32, %arg2: i32) -> (i32, i32, i32) {
    %c0_i32 = arith.constant 0 : i32
    %c0_i32_0 = arith.constant 0 : i32
    %c0_i32_1 = arith.constant 0 : i32
    %c0_i32_2 = arith.constant 0 : i32
    return %c0_i32, %c0_i32_0, %c0_i32_1 : i32, i32, i32
  }
  func.func @transform_5(%arg0: i32, %arg1: i32, %arg2: i32) -> (i32, i32, i32, i32) {
    %c0_i32 = arith.constant 0 : i32
    %c0_i32_0 = arith.constant 0 : i32
    %c0_i32_1 = arith.constant 0 : i32
    return %arg0, %c0_i32, %arg1, %c0_i32_0 : i32, i32, i32, i32
  }
  func.func @transform_6(%arg0: i32, %arg1: i32, %arg2: i32) -> (i32, i32, i32, i32) {
    %c0_i32 = arith.constant 0 : i32
    %c0_i32_0 = arith.constant 0 : i32
    %c0_i32_1 = arith.constant 0 : i32
    return %arg0, %c0_i32, %arg1, %c0_i32_0 : i32, i32, i32, i32
  }
}

module attributes {stable_mosaic.version = 11 : i64} {
  func.func @_psa_head_kernel(%arg0: i32, %arg1: i32, %arg2: memref<1x64x256xbf16, #tpu.memory_space<vmem>>, %arg3: memref<1x64x256xbf16, #tpu.memory_space<vmem>>, %arg4: memref<256x256xbf16, #tpu.memory_space<vmem>>, %arg5: memref<1x256xf32, #tpu.memory_space<vmem>>, %arg6: memref<9x128x128xbf16, #tpu.memory_space<vmem>>, %arg7: memref<1x128xf32, #tpu.memory_space<vmem>>, %arg8: memref<128x128xbf16, #tpu.memory_space<vmem>>, %arg9: memref<1x128xf32, #tpu.memory_space<vmem>>, %arg10: memref<1x64x128xf32, #tpu.memory_space<vmem>>, %arg11: memref<4x10x10x128xbf16, #tpu.memory_space<vmem>>, %arg12: memref<64x128xf32, #tpu.memory_space<vmem>>) attributes {dimension_semantics = [#tpu.dimension_semantics<parallel>, #tpu.dimension_semantics<arbitrary>], iteration_bounds = array<i64: 2, 4>, scalar_prefetch = 0 : i64, scratch_operands = 2 : i64, tpu.core_type = #tpu.core_type<tc>, window_params = [{transform_indices = @transform_0, window_bounds = array<i64: 1, 64, 256>}, {transform_indices = @transform_1, window_bounds = array<i64: 1, 64, 256>}, {pipeline_mode = #tpu.pipeline_mode<synchronous>, transform_indices = @transform_2, window_bounds = array<i64: 256, 256>}, {pipeline_mode = #tpu.pipeline_mode<synchronous>, transform_indices = @transform_3, window_bounds = array<i64: 1, 256>}, {transform_indices = @transform_4, window_bounds = array<i64: 9, 128, 128>}, {pipeline_mode = #tpu.pipeline_mode<synchronous>, transform_indices = @transform_5, window_bounds = array<i64: 1, 128>}, {pipeline_mode = #tpu.pipeline_mode<synchronous>, transform_indices = @transform_6, window_bounds = array<i64: 128, 128>}, {pipeline_mode = #tpu.pipeline_mode<synchronous>, transform_indices = @transform_7, window_bounds = array<i64: 1, 128>}, {transform_indices = @transform_8, window_bounds = array<i64: 1, 64, 128>}]} {
    %c0_i32 = arith.constant 0 : i32
    %0 = arith.cmpi eq, %arg1, %c0_i32 : i32
    %1 = arith.extui %0 : i1 to i32
    %c0_i32_0 = arith.constant 0 : i32
    %2 = arith.cmpi ne, %1, %c0_i32_0 : i32
    scf.if %2 {
      %c0_35 = arith.constant 0 : index
      %c0_36 = arith.constant 0 : index
      %c0_37 = arith.constant 0 : index
      %65 = vector.load %arg3[%c0_35, %c0_36, %c0_37] : memref<1x64x256xbf16, #tpu.memory_space<vmem>>, vector<1x64x256xbf16>
      %66 = vector.shape_cast %65 : vector<1x64x256xbf16> to vector<64x256xbf16>
      %c0_38 = arith.constant 0 : index
      %c0_39 = arith.constant 0 : index
      %67 = vector.load %arg4[%c0_38, %c0_39] : memref<256x256xbf16, #tpu.memory_space<vmem>>, vector<256x256xbf16>
      %cst_40 = arith.constant dense<0.000000e+00> : vector<64x256xf32>
      %68 = tpu.matmul %66, %67, %cst_40 {dimension_numbers = #tpu.dot_dimension_numbers<[1], [0], [0], [1], [0, 0, 1, 1], [], []>} : vector<64x256xbf16>, vector<256x256xbf16>, vector<64x256xf32> -> vector<64x256xf32>
      %c0_41 = arith.constant 0 : index
      %c0_42 = arith.constant 0 : index
      %69 = vector.load %arg5[%c0_41, %c0_42] : memref<1x256xf32, #tpu.memory_space<vmem>>, vector<1x256xf32>
      %70 = vector.broadcast %69 : vector<1x256xf32> to vector<64x256xf32>
      %71 = arith.addf %68, %70 : vector<64x256xf32>
      %cst_43 = arith.constant 0.000000e+00 : f32
      %72 = vector.broadcast %cst_43 : f32 to vector<64x256xf32>
      %73 = arith.maximumf %71, %72 : vector<64x256xf32>
      %74 = arith.truncf %73 : vector<64x256xf32> to vector<64x256xbf16>
      %75 = vector.shape_cast %74 : vector<64x256xbf16> to vector<8x8x256xbf16>
      %c0_44 = arith.constant 0 : index
      %c0_45 = arith.constant 0 : index
      %c0_46 = arith.constant 0 : index
      %76 = vector.load %arg2[%c0_44, %c0_45, %c0_46] : memref<1x64x256xbf16, #tpu.memory_space<vmem>>, vector<1x64x256xbf16>
      %77 = vector.shape_cast %76 : vector<1x64x256xbf16> to vector<64x256xbf16>
      %78 = vector.shape_cast %77 : vector<64x256xbf16> to vector<8x8x256xbf16>
      %cst_47 = arith.constant 0.000000e+00 : bf16
      %79 = vector.broadcast %cst_47 : bf16 to vector<1x10x128xbf16>
      %cst_48 = arith.constant 0.000000e+00 : bf16
      %80 = vector.broadcast %cst_48 : bf16 to vector<10x1x128xbf16>
      %c0_49 = arith.constant 0 : index
      %c0_50 = arith.constant 0 : index
      %c0_51 = arith.constant 0 : index
      %c0_52 = arith.constant 0 : index
      %81 = vector.load %arg11[%c0_49, %c0_50, %c0_51, %c0_52] : memref<4x10x10x128xbf16, #tpu.memory_space<vmem>>, vector<1x1x10x128xbf16>
      %82 = vector.shape_cast %81 : vector<1x1x10x128xbf16> to vector<1x10x128xbf16>
      %83 = vector.shape_cast %79 : vector<1x10x128xbf16> to vector<1x1x10x128xbf16>
      tpu.vector_store %arg11[%c0_49, %c0_50, %c0_51, %c0_52], %83 {strides = array<i32>} : memref<4x10x10x128xbf16, #tpu.memory_space<vmem>>, vector<1x1x10x128xbf16>,
      %c0_53 = arith.constant 0 : index
      %c9 = arith.constant 9 : index
      %c0_54 = arith.constant 0 : index
      %c0_55 = arith.constant 0 : index
      %84 = vector.load %arg11[%c0_53, %c9, %c0_54, %c0_55] : memref<4x10x10x128xbf16, #tpu.memory_space<vmem>>, vector<1x1x10x128xbf16>
      %85 = vector.shape_cast %84 : vector<1x1x10x128xbf16> to vector<1x10x128xbf16>
      %86 = vector.shape_cast %79 : vector<1x10x128xbf16> to vector<1x1x10x128xbf16>
      tpu.vector_store %arg11[%c0_53, %c9, %c0_54, %c0_55], %86 {strides = array<i32>} : memref<4x10x10x128xbf16, #tpu.memory_space<vmem>>, vector<1x1x10x128xbf16>,
      %c0_56 = arith.constant 0 : index
      %c0_57 = arith.constant 0 : index
      %c0_58 = arith.constant 0 : index
      %c0_59 = arith.constant 0 : index
      %87 = vector.load %arg11[%c0_56, %c0_57, %c0_58, %c0_59] : memref<4x10x10x128xbf16, #tpu.memory_space<vmem>>, vector<1x10x1x128xbf16>
      %88 = vector.shape_cast %87 : vector<1x10x1x128xbf16> to vector<10x1x128xbf16>
      %89 = vector.shape_cast %80 : vector<10x1x128xbf16> to vector<1x10x1x128xbf16>
      tpu.vector_store %arg11[%c0_56, %c0_57, %c0_58, %c0_59], %89 {strides = array<i32>} : memref<4x10x10x128xbf16, #tpu.memory_space<vmem>>, vector<1x10x1x128xbf16>,
      %c0_60 = arith.constant 0 : index
      %c0_61 = arith.constant 0 : index
      %c9_62 = arith.constant 9 : index
      %c0_63 = arith.constant 0 : index
      %90 = vector.load %arg11[%c0_60, %c0_61, %c9_62, %c0_63] : memref<4x10x10x128xbf16, #tpu.memory_space<vmem>>, vector<1x10x1x128xbf16>
      %91 = vector.shape_cast %90 : vector<1x10x1x128xbf16> to vector<10x1x128xbf16>
      %92 = vector.shape_cast %80 : vector<10x1x128xbf16> to vector<1x10x1x128xbf16>
      tpu.vector_store %arg11[%c0_60, %c0_61, %c9_62, %c0_63], %92 {strides = array<i32>} : memref<4x10x10x128xbf16, #tpu.memory_space<vmem>>, vector<1x10x1x128xbf16>,
      %93 = vector.extract_strided_slice %78 {offsets = [0, 0, 0], sizes = [8, 8, 128], strides = [1, 1, 1]} : vector<8x8x256xbf16> to vector<8x8x128xbf16>
      %c0_64 = arith.constant 0 : index
      %c1_65 = arith.constant 1 : index
      %c1_66 = arith.constant 1 : index
      %c0_67 = arith.constant 0 : index
      %94 = vector.load %arg11[%c0_64, %c1_65, %c1_66, %c0_67] : memref<4x10x10x128xbf16, #tpu.memory_space<vmem>>, vector<1x8x8x128xbf16>
      %95 = vector.shape_cast %94 : vector<1x8x8x128xbf16> to vector<8x8x128xbf16>
      %96 = vector.shape_cast %93 : vector<8x8x128xbf16> to vector<1x8x8x128xbf16>
      tpu.vector_store %arg11[%c0_64, %c1_65, %c1_66, %c0_67], %96 {strides = array<i32>} : memref<4x10x10x128xbf16, #tpu.memory_space<vmem>>, vector<1x8x8x128xbf16>,
      %c1_68 = arith.constant 1 : index
      %c0_69 = arith.constant 0 : index
      %c0_70 = arith.constant 0 : index
      %c0_71 = arith.constant 0 : index
      %97 = vector.load %arg11[%c1_68, %c0_69, %c0_70, %c0_71] : memref<4x10x10x128xbf16, #tpu.memory_space<vmem>>, vector<1x1x10x128xbf16>
      %98 = vector.shape_cast %97 : vector<1x1x10x128xbf16> to vector<1x10x128xbf16>
      %99 = vector.shape_cast %79 : vector<1x10x128xbf16> to vector<1x1x10x128xbf16>
      tpu.vector_store %arg11[%c1_68, %c0_69, %c0_70, %c0_71], %99 {strides = array<i32>} : memref<4x10x10x128xbf16, #tpu.memory_space<vmem>>, vector<1x1x10x128xbf16>,
      %c1_72 = arith.constant 1 : index
      %c9_73 = arith.constant 9 : index
      %c0_74 = arith.constant 0 : index
      %c0_75 = arith.constant 0 : index
      %100 = vector.load %arg11[%c1_72, %c9_73, %c0_74, %c0_75] : memref<4x10x10x128xbf16, #tpu.memory_space<vmem>>, vector<1x1x10x128xbf16>
      %101 = vector.shape_cast %100 : vector<1x1x10x128xbf16> to vector<1x10x128xbf16>
      %102 = vector.shape_cast %79 : vector<1x10x128xbf16> to vector<1x1x10x128xbf16>
      tpu.vector_store %arg11[%c1_72, %c9_73, %c0_74, %c0_75], %102 {strides = array<i32>} : memref<4x10x10x128xbf16, #tpu.memory_space<vmem>>, vector<1x1x10x128xbf16>,
      %c1_76 = arith.constant 1 : index
      %c0_77 = arith.constant 0 : index
      %c0_78 = arith.constant 0 : index
      %c0_79 = arith.constant 0 : index
      %103 = vector.load %arg11[%c1_76, %c0_77, %c0_78, %c0_79] : memref<4x10x10x128xbf16, #tpu.memory_space<vmem>>, vector<1x10x1x128xbf16>
      %104 = vector.shape_cast %103 : vector<1x10x1x128xbf16> to vector<10x1x128xbf16>
      %105 = vector.shape_cast %80 : vector<10x1x128xbf16> to vector<1x10x1x128xbf16>
      tpu.vector_store %arg11[%c1_76, %c0_77, %c0_78, %c0_79], %105 {strides = array<i32>} : memref<4x10x10x128xbf16, #tpu.memory_space<vmem>>, vector<1x10x1x128xbf16>,
      %c1_80 = arith.constant 1 : index
      %c0_81 = arith.constant 0 : index
      %c9_82 = arith.constant 9 : index
      %c0_83 = arith.constant 0 : index
      %106 = vector.load %arg11[%c1_80, %c0_81, %c9_82, %c0_83] : memref<4x10x10x128xbf16, #tpu.memory_space<vmem>>, vector<1x10x1x128xbf16>
      %107 = vector.shape_cast %106 : vector<1x10x1x128xbf16> to vector<10x1x128xbf16>
      %108 = vector.shape_cast %80 : vector<10x1x128xbf16> to vector<1x10x1x128xbf16>
      tpu.vector_store %arg11[%c1_80, %c0_81, %c9_82, %c0_83], %108 {strides = array<i32>} : memref<4x10x10x128xbf16, #tpu.memory_space<vmem>>, vector<1x10x1x128xbf16>,
      %109 = vector.extract_strided_slice %78 {offsets = [0, 0, 128], sizes = [8, 8, 128], strides = [1, 1, 1]} : vector<8x8x256xbf16> to vector<8x8x128xbf16>
      %c1_84 = arith.constant 1 : index
      %c1_85 = arith.constant 1 : index
      %c1_86 = arith.constant 1 : index
      %c0_87 = arith.constant 0 : index
      %110 = vector.load %arg11[%c1_84, %c1_85, %c1_86, %c0_87] : memref<4x10x10x128xbf16, #tpu.memory_space<vmem>>, vector<1x8x8x128xbf16>
      %111 = vector.shape_cast %110 : vector<1x8x8x128xbf16> to vector<8x8x128xbf16>
      %112 = vector.shape_cast %109 : vector<8x8x128xbf16> to vector<1x8x8x128xbf16>
      tpu.vector_store %arg11[%c1_84, %c1_85, %c1_86, %c0_87], %112 {strides = array<i32>} : memref<4x10x10x128xbf16, #tpu.memory_space<vmem>>, vector<1x8x8x128xbf16>,
      %c2_88 = arith.constant 2 : index
      %c0_89 = arith.constant 0 : index
      %c0_90 = arith.constant 0 : index
      %c0_91 = arith.constant 0 : index
      %113 = vector.load %arg11[%c2_88, %c0_89, %c0_90, %c0_91] : memref<4x10x10x128xbf16, #tpu.memory_space<vmem>>, vector<1x1x10x128xbf16>
      %114 = vector.shape_cast %113 : vector<1x1x10x128xbf16> to vector<1x10x128xbf16>
      %115 = vector.shape_cast %79 : vector<1x10x128xbf16> to vector<1x1x10x128xbf16>
      tpu.vector_store %arg11[%c2_88, %c0_89, %c0_90, %c0_91], %115 {strides = array<i32>} : memref<4x10x10x128xbf16, #tpu.memory_space<vmem>>, vector<1x1x10x128xbf16>,
      %c2_92 = arith.constant 2 : index
      %c9_93 = arith.constant 9 : index
      %c0_94 = arith.constant 0 : index
      %c0_95 = arith.constant 0 : index
      %116 = vector.load %arg11[%c2_92, %c9_93, %c0_94, %c0_95] : memref<4x10x10x128xbf16, #tpu.memory_space<vmem>>, vector<1x1x10x128xbf16>
      %117 = vector.shape_cast %116 : vector<1x1x10x128xbf16> to vector<1x10x128xbf16>
      %118 = vector.shape_cast %79 : vector<1x10x128xbf16> to vector<1x1x10x128xbf16>
      tpu.vector_store %arg11[%c2_92, %c9_93, %c0_94, %c0_95], %118 {strides = array<i32>} : memref<4x10x10x128xbf16, #tpu.memory_space<vmem>>, vector<1x1x10x128xbf16>,
      %c2_96 = arith.constant 2 : index
      %c0_97 = arith.constant 0 : index
      %c0_98 = arith.constant 0 : index
      %c0_99 = arith.constant 0 : index
      %119 = vector.load %arg11[%c2_96, %c0_97, %c0_98, %c0_99] : memref<4x10x10x128xbf16, #tpu.memory_space<vmem>>, vector<1x10x1x128xbf16>
      %120 = vector.shape_cast %119 : vector<1x10x1x128xbf16> to vector<10x1x128xbf16>
      %121 = vector.shape_cast %80 : vector<10x1x128xbf16> to vector<1x10x1x128xbf16>
      tpu.vector_store %arg11[%c2_96, %c0_97, %c0_98, %c0_99], %121 {strides = array<i32>} : memref<4x10x10x128xbf16, #tpu.memory_space<vmem>>, vector<1x10x1x128xbf16>,
      %c2_100 = arith.constant 2 : index
      %c0_101 = arith.constant 0 : index
      %c9_102 = arith.constant 9 : index
      %c0_103 = arith.constant 0 : index
      %122 = vector.load %arg11[%c2_100, %c0_101, %c9_102, %c0_103] : memref<4x10x10x128xbf16, #tpu.memory_space<vmem>>, vector<1x10x1x128xbf16>
      %123 = vector.shape_cast %122 : vector<1x10x1x128xbf16> to vector<10x1x128xbf16>
      %124 = vector.shape_cast %80 : vector<10x1x128xbf16> to vector<1x10x1x128xbf16>
      tpu.vector_store %arg11[%c2_100, %c0_101, %c9_102, %c0_103], %124 {strides = array<i32>} : memref<4x10x10x128xbf16, #tpu.memory_space<vmem>>, vector<1x10x1x128xbf16>,
      %125 = vector.extract_strided_slice %75 {offsets = [0, 0, 0], sizes = [8, 8, 128], strides = [1, 1, 1]} : vector<8x8x256xbf16> to vector<8x8x128xbf16>
      %c2_104 = arith.constant 2 : index
      %c1_105 = arith.constant 1 : index
      %c1_106 = arith.constant 1 : index
      %c0_107 = arith.constant 0 : index
      %126 = vector.load %arg11[%c2_104, %c1_105, %c1_106, %c0_107] : memref<4x10x10x128xbf16, #tpu.memory_space<vmem>>, vector<1x8x8x128xbf16>
      %127 = vector.shape_cast %126 : vector<1x8x8x128xbf16> to vector<8x8x128xbf16>
      %128 = vector.shape_cast %125 : vector<8x8x128xbf16> to vector<1x8x8x128xbf16>
      tpu.vector_store %arg11[%c2_104, %c1_105, %c1_106, %c0_107], %128 {strides = array<i32>} : memref<4x10x10x128xbf16, #tpu.memory_space<vmem>>, vector<1x8x8x128xbf16>,
      %c3_108 = arith.constant 3 : index
      %c0_109 = arith.constant 0 : index
      %c0_110 = arith.constant 0 : index
      %c0_111 = arith.constant 0 : index
      %129 = vector.load %arg11[%c3_108, %c0_109, %c0_110, %c0_111] : memref<4x10x10x128xbf16, #tpu.memory_space<vmem>>, vector<1x1x10x128xbf16>
      %130 = vector.shape_cast %129 : vector<1x1x10x128xbf16> to vector<1x10x128xbf16>
      %131 = vector.shape_cast %79 : vector<1x10x128xbf16> to vector<1x1x10x128xbf16>
      tpu.vector_store %arg11[%c3_108, %c0_109, %c0_110, %c0_111], %131 {strides = array<i32>} : memref<4x10x10x128xbf16, #tpu.memory_space<vmem>>, vector<1x1x10x128xbf16>,
      %c3_112 = arith.constant 3 : index
      %c9_113 = arith.constant 9 : index
      %c0_114 = arith.constant 0 : index
      %c0_115 = arith.constant 0 : index
      %132 = vector.load %arg11[%c3_112, %c9_113, %c0_114, %c0_115] : memref<4x10x10x128xbf16, #tpu.memory_space<vmem>>, vector<1x1x10x128xbf16>
      %133 = vector.shape_cast %132 : vector<1x1x10x128xbf16> to vector<1x10x128xbf16>
      %134 = vector.shape_cast %79 : vector<1x10x128xbf16> to vector<1x1x10x128xbf16>
      tpu.vector_store %arg11[%c3_112, %c9_113, %c0_114, %c0_115], %134 {strides = array<i32>} : memref<4x10x10x128xbf16, #tpu.memory_space<vmem>>, vector<1x1x10x128xbf16>,
      %c3_116 = arith.constant 3 : index
      %c0_117 = arith.constant 0 : index
      %c0_118 = arith.constant 0 : index
      %c0_119 = arith.constant 0 : index
      %135 = vector.load %arg11[%c3_116, %c0_117, %c0_118, %c0_119] : memref<4x10x10x128xbf16, #tpu.memory_space<vmem>>, vector<1x10x1x128xbf16>
      %136 = vector.shape_cast %135 : vector<1x10x1x128xbf16> to vector<10x1x128xbf16>
      %137 = vector.shape_cast %80 : vector<10x1x128xbf16> to vector<1x10x1x128xbf16>
      tpu.vector_store %arg11[%c3_116, %c0_117, %c0_118, %c0_119], %137 {strides = array<i32>} : memref<4x10x10x128xbf16, #tpu.memory_space<vmem>>, vector<1x10x1x128xbf16>,
      %c3_120 = arith.constant 3 : index
      %c0_121 = arith.constant 0 : index
      %c9_122 = arith.constant 9 : index
      %c0_123 = arith.constant 0 : index
      %138 = vector.load %arg11[%c3_120, %c0_121, %c9_122, %c0_123] : memref<4x10x10x128xbf16, #tpu.memory_space<vmem>>, vector<1x10x1x128xbf16>
      %139 = vector.shape_cast %138 : vector<1x10x1x128xbf16> to vector<10x1x128xbf16>
      %140 = vector.shape_cast %80 : vector<10x1x128xbf16> to vector<1x10x1x128xbf16>
      tpu.vector_store %arg11[%c3_120, %c0_121, %c9_122, %c0_123], %140 {strides = array<i32>} : memref<4x10x10x128xbf16, #tpu.memory_space<vmem>>, vector<1x10x1x128xbf16>,
      %141 = vector.extract_strided_slice %75 {offsets = [0, 0, 128], sizes = [8, 8, 128], strides = [1, 1, 1]} : vector<8x8x256xbf16> to vector<8x8x128xbf16>
      %c3_124 = arith.constant 3 : index
      %c1_125 = arith.constant 1 : index
      %c1_126 = arith.constant 1 : index
      %c0_127 = arith.constant 0 : index
      %142 = vector.load %arg11[%c3_124, %c1_125, %c1_126, %c0_127] : memref<4x10x10x128xbf16, #tpu.memory_space<vmem>>, vector<1x8x8x128xbf16>
      %143 = vector.shape_cast %142 : vector<1x8x8x128xbf16> to vector<8x8x128xbf16>
      %144 = vector.shape_cast %141 : vector<8x8x128xbf16> to vector<1x8x8x128xbf16>
      tpu.vector_store %arg11[%c3_124, %c1_125, %c1_126, %c0_127], %144 {strides = array<i32>} : memref<4x10x10x128xbf16, #tpu.memory_space<vmem>>, vector<1x8x8x128xbf16>,
      %cst_128 = arith.constant 0.000000e+00 : f32
      %145 = vector.broadcast %cst_128 : f32 to vector<64x128xf32>
      %c0_129 = arith.constant 0 : index
      %c0_130 = arith.constant 0 : index
      %146 = vector.load %arg12[%c0_129, %c0_130] : memref<64x128xf32, #tpu.memory_space<vmem>>, vector<64x128xf32>
      tpu.vector_store %arg12[%c0_129, %c0_130], %145 {strides = array<i32>} : memref<64x128xf32, #tpu.memory_space<vmem>>, vector<64x128xf32>,
    } else {
    }
    %3 = arith.index_cast %arg1 : i32 to index
    %c0 = arith.constant 0 : index
    %c0_1 = arith.constant 0 : index
    %c0_2 = arith.constant 0 : index
    %4 = vector.load %arg11[%3, %c0, %c0_1, %c0_2] : memref<4x10x10x128xbf16, #tpu.memory_space<vmem>>, vector<1x10x10x128xbf16>
    %5 = vector.shape_cast %4 : vector<1x10x10x128xbf16> to vector<10x10x128xbf16>
    %c0_3 = arith.constant 0 : index
    %c0_4 = arith.constant 0 : index
    %6 = vector.load %arg12[%c0_3, %c0_4] : memref<64x128xf32, #tpu.memory_space<vmem>>, vector<64x128xf32>
    %7 = vector.extract_strided_slice %5 {offsets = [0, 0, 0], sizes = [8, 8, 128], strides = [1, 1, 1]} : vector<10x10x128xbf16> to vector<8x8x128xbf16>
    %8 = vector.shape_cast %7 : vector<8x8x128xbf16> to vector<64x128xbf16>
    %c0_5 = arith.constant 0 : index
    %c0_6 = arith.constant 0 : index
    %c0_7 = arith.constant 0 : index
    %9 = vector.load %arg6[%c0_5, %c0_6, %c0_7] : memref<9x128x128xbf16, #tpu.memory_space<vmem>>, vector<1x128x128xbf16>
    %10 = vector.shape_cast %9 : vector<1x128x128xbf16> to vector<128x128xbf16>
    %cst = arith.constant dense<0.000000e+00> : vector<64x128xf32>
    %11 = tpu.matmul %8, %10, %cst {dimension_numbers = #tpu.dot_dimension_numbers<[1], [0], [0], [1], [0, 0, 1, 1], [], []>} : vector<64x128xbf16>, vector<128x128xbf16>, vector<64x128xf32> -> vector<64x128xf32>
    %12 = arith.addf %6, %11 : vector<64x128xf32>
    %13 = vector.extract_strided_slice %5 {offsets = [0, 1, 0], sizes = [8, 8, 128], strides = [1, 1, 1]} : vector<10x10x128xbf16> to vector<8x8x128xbf16>
    %14 = vector.shape_cast %13 : vector<8x8x128xbf16> to vector<64x128xbf16>
    %c1 = arith.constant 1 : index
    %c0_8 = arith.constant 0 : index
    %c0_9 = arith.constant 0 : index
    %15 = vector.load %arg6[%c1, %c0_8, %c0_9] : memref<9x128x128xbf16, #tpu.memory_space<vmem>>, vector<1x128x128xbf16>
    %16 = vector.shape_cast %15 : vector<1x128x128xbf16> to vector<128x128xbf16>
    %cst_10 = arith.constant dense<0.000000e+00> : vector<64x128xf32>
    %17 = tpu.matmul %14, %16, %cst_10 {dimension_numbers = #tpu.dot_dimension_numbers<[1], [0], [0], [1], [0, 0, 1, 1], [], []>} : vector<64x128xbf16>, vector<128x128xbf16>, vector<64x128xf32> -> vector<64x128xf32>
    %18 = arith.addf %12, %17 : vector<64x128xf32>
    %19 = vector.extract_strided_slice %5 {offsets = [0, 2, 0], sizes = [8, 8, 128], strides = [1, 1, 1]} : vector<10x10x128xbf16> to vector<8x8x128xbf16>
    %20 = vector.shape_cast %19 : vector<8x8x128xbf16> to vector<64x128xbf16>
    %c2 = arith.constant 2 : index
    %c0_11 = arith.constant 0 : index
    %c0_12 = arith.constant 0 : index
    %21 = vector.load %arg6[%c2, %c0_11, %c0_12] : memref<9x128x128xbf16, #tpu.memory_space<vmem>>, vector<1x128x128xbf16>
    %22 = vector.shape_cast %21 : vector<1x128x128xbf16> to vector<128x128xbf16>
    %cst_13 = arith.constant dense<0.000000e+00> : vector<64x128xf32>
    %23 = tpu.matmul %20, %22, %cst_13 {dimension_numbers = #tpu.dot_dimension_numbers<[1], [0], [0], [1], [0, 0, 1, 1], [], []>} : vector<64x128xbf16>, vector<128x128xbf16>, vector<64x128xf32> -> vector<64x128xf32>
    %24 = arith.addf %18, %23 : vector<64x128xf32>
    %25 = vector.extract_strided_slice %5 {offsets = [1, 0, 0], sizes = [8, 8, 128], strides = [1, 1, 1]} : vector<10x10x128xbf16> to vector<8x8x128xbf16>
    %26 = vector.shape_cast %25 : vector<8x8x128xbf16> to vector<64x128xbf16>
    %c3 = arith.constant 3 : index
    %c0_14 = arith.constant 0 : index
    %c0_15 = arith.constant 0 : index
    %27 = vector.load %arg6[%c3, %c0_14, %c0_15] : memref<9x128x128xbf16, #tpu.memory_space<vmem>>, vector<1x128x128xbf16>
    %28 = vector.shape_cast %27 : vector<1x128x128xbf16> to vector<128x128xbf16>
    %cst_16 = arith.constant dense<0.000000e+00> : vector<64x128xf32>
    %29 = tpu.matmul %26, %28, %cst_16 {dimension_numbers = #tpu.dot_dimension_numbers<[1], [0], [0], [1], [0, 0, 1, 1], [], []>} : vector<64x128xbf16>, vector<128x128xbf16>, vector<64x128xf32> -> vector<64x128xf32>
    %30 = arith.addf %24, %29 : vector<64x128xf32>
    %31 = vector.extract_strided_slice %5 {offsets = [1, 1, 0], sizes = [8, 8, 128], strides = [1, 1, 1]} : vector<10x10x128xbf16> to vector<8x8x128xbf16>
    %32 = vector.shape_cast %31 : vector<8x8x128xbf16> to vector<64x128xbf16>
    %c4 = arith.constant 4 : index
    %c0_17 = arith.constant 0 : index
    %c0_18 = arith.constant 0 : index
    %33 = vector.load %arg6[%c4, %c0_17, %c0_18] : memref<9x128x128xbf16, #tpu.memory_space<vmem>>, vector<1x128x128xbf16>
    %34 = vector.shape_cast %33 : vector<1x128x128xbf16> to vector<128x128xbf16>
    %cst_19 = arith.constant dense<0.000000e+00> : vector<64x128xf32>
    %35 = tpu.matmul %32, %34, %cst_19 {dimension_numbers = #tpu.dot_dimension_numbers<[1], [0], [0], [1], [0, 0, 1, 1], [], []>} : vector<64x128xbf16>, vector<128x128xbf16>, vector<64x128xf32> -> vector<64x128xf32>
    %36 = arith.addf %30, %35 : vector<64x128xf32>
    %37 = vector.extract_strided_slice %5 {offsets = [1, 2, 0], sizes = [8, 8, 128], strides = [1, 1, 1]} : vector<10x10x128xbf16> to vector<8x8x128xbf16>
    %38 = vector.shape_cast %37 : vector<8x8x128xbf16> to vector<64x128xbf16>
    %c5 = arith.constant 5 : index
    %c0_20 = arith.constant 0 : index
    %c0_21 = arith.constant 0 : index
    %39 = vector.load %arg6[%c5, %c0_20, %c0_21] : memref<9x128x128xbf16, #tpu.memory_space<vmem>>, vector<1x128x128xbf16>
    %40 = vector.shape_cast %39 : vector<1x128x128xbf16> to vector<128x128xbf16>
    %cst_22 = arith.constant dense<0.000000e+00> : vector<64x128xf32>
    %41 = tpu.matmul %38, %40, %cst_22 {dimension_numbers = #tpu.dot_dimension_numbers<[1], [0], [0], [1], [0, 0, 1, 1], [], []>} : vector<64x128xbf16>, vector<128x128xbf16>, vector<64x128xf32> -> vector<64x128xf32>
    %42 = arith.addf %36, %41 : vector<64x128xf32>
    %43 = vector.extract_strided_slice %5 {offsets = [2, 0, 0], sizes = [8, 8, 128], strides = [1, 1, 1]} : vector<10x10x128xbf16> to vector<8x8x128xbf16>
    %44 = vector.shape_cast %43 : vector<8x8x128xbf16> to vector<64x128xbf16>
    %c6 = arith.constant 6 : index
    %c0_23 = arith.constant 0 : index
    %c0_24 = arith.constant 0 : index
    %45 = vector.load %arg6[%c6, %c0_23, %c0_24] : memref<9x128x128xbf16, #tpu.memory_space<vmem>>, vector<1x128x128xbf16>
    %46 = vector.shape_cast %45 : vector<1x128x128xbf16> to vector<128x128xbf16>
    %cst_25 = arith.constant dense<0.000000e+00> : vector<64x128xf32>
    %47 = tpu.matmul %44, %46, %cst_25 {dimension_numbers = #tpu.dot_dimension_numbers<[1], [0], [0], [1], [0, 0, 1, 1], [], []>} : vector<64x128xbf16>, vector<128x128xbf16>, vector<64x128xf32> -> vector<64x128xf32>
    %48 = arith.addf %42, %47 : vector<64x128xf32>
    %49 = vector.extract_strided_slice %5 {offsets = [2, 1, 0], sizes = [8, 8, 128], strides = [1, 1, 1]} : vector<10x10x128xbf16> to vector<8x8x128xbf16>
    %50 = vector.shape_cast %49 : vector<8x8x128xbf16> to vector<64x128xbf16>
    %c7 = arith.constant 7 : index
    %c0_26 = arith.constant 0 : index
    %c0_27 = arith.constant 0 : index
    %51 = vector.load %arg6[%c7, %c0_26, %c0_27] : memref<9x128x128xbf16, #tpu.memory_space<vmem>>, vector<1x128x128xbf16>
    %52 = vector.shape_cast %51 : vector<1x128x128xbf16> to vector<128x128xbf16>
    %cst_28 = arith.constant dense<0.000000e+00> : vector<64x128xf32>
    %53 = tpu.matmul %50, %52, %cst_28 {dimension_numbers = #tpu.dot_dimension_numbers<[1], [0], [0], [1], [0, 0, 1, 1], [], []>} : vector<64x128xbf16>, vector<128x128xbf16>, vector<64x128xf32> -> vector<64x128xf32>
    %54 = arith.addf %48, %53 : vector<64x128xf32>
    %55 = vector.extract_strided_slice %5 {offsets = [2, 2, 0], sizes = [8, 8, 128], strides = [1, 1, 1]} : vector<10x10x128xbf16> to vector<8x8x128xbf16>
    %56 = vector.shape_cast %55 : vector<8x8x128xbf16> to vector<64x128xbf16>
    %c8 = arith.constant 8 : index
    %c0_29 = arith.constant 0 : index
    %c0_30 = arith.constant 0 : index
    %57 = vector.load %arg6[%c8, %c0_29, %c0_30] : memref<9x128x128xbf16, #tpu.memory_space<vmem>>, vector<1x128x128xbf16>
    %58 = vector.shape_cast %57 : vector<1x128x128xbf16> to vector<128x128xbf16>
    %cst_31 = arith.constant dense<0.000000e+00> : vector<64x128xf32>
    %59 = tpu.matmul %56, %58, %cst_31 {dimension_numbers = #tpu.dot_dimension_numbers<[1], [0], [0], [1], [0, 0, 1, 1], [], []>} : vector<64x128xbf16>, vector<128x128xbf16>, vector<64x128xf32> -> vector<64x128xf32>
    %60 = arith.addf %54, %59 : vector<64x128xf32>
    %c0_32 = arith.constant 0 : index
    %c0_33 = arith.constant 0 : index
    %61 = vector.load %arg12[%c0_32, %c0_33] : memref<64x128xf32, #tpu.memory_space<vmem>>, vector<64x128xf32>
    tpu.vector_store %arg12[%c0_32, %c0_33], %60 {strides = array<i32>} : memref<64x128xf32, #tpu.memory_space<vmem>>, vector<64x128xf32>,
    %c3_i32 = arith.constant 3 : i32
    %62 = arith.cmpi eq, %arg1, %c3_i32 : i32
    %63 = arith.extui %62 : i1 to i32
    %c0_i32_34 = arith.constant 0 : i32
    %64 = arith.cmpi ne, %63, %c0_i32_34 : i32
    scf.if %64 {
      %c0_35 = arith.constant 0 : index
      %c0_36 = arith.constant 0 : index
      %65 = vector.load %arg12[%c0_35, %c0_36] : memref<64x128xf32, #tpu.memory_space<vmem>>, vector<64x128xf32>
      %c0_37 = arith.constant 0 : index
      %c0_38 = arith.constant 0 : index
      %66 = vector.load %arg7[%c0_37, %c0_38] : memref<1x128xf32, #tpu.memory_space<vmem>>, vector<1x128xf32>
      %67 = vector.broadcast %66 : vector<1x128xf32> to vector<64x128xf32>
      %68 = arith.addf %65, %67 : vector<64x128xf32>
      %cst_39 = arith.constant 0.000000e+00 : f32
      %69 = vector.broadcast %cst_39 : f32 to vector<64x128xf32>
      %70 = arith.maximumf %68, %69 : vector<64x128xf32>
      %71 = arith.truncf %70 : vector<64x128xf32> to vector<64x128xbf16>
      %c0_40 = arith.constant 0 : index
      %c0_41 = arith.constant 0 : index
      %72 = vector.load %arg8[%c0_40, %c0_41] : memref<128x128xbf16, #tpu.memory_space<vmem>>, vector<128x128xbf16>
      %cst_42 = arith.constant dense<0.000000e+00> : vector<64x128xf32>
      %73 = tpu.matmul %71, %72, %cst_42 {dimension_numbers = #tpu.dot_dimension_numbers<[1], [0], [0], [1], [0, 0, 1, 1], [], []>} : vector<64x128xbf16>, vector<128x128xbf16>, vector<64x128xf32> -> vector<64x128xf32>
      %c0_43 = arith.constant 0 : index
      %c0_44 = arith.constant 0 : index
      %74 = vector.load %arg9[%c0_43, %c0_44] : memref<1x128xf32, #tpu.memory_space<vmem>>, vector<1x128xf32>
      %75 = vector.broadcast %74 : vector<1x128xf32> to vector<64x128xf32>
      %76 = arith.addf %73, %75 : vector<64x128xf32>
      %c0_45 = arith.constant 0 : index
      %c0_46 = arith.constant 0 : index
      %c0_47 = arith.constant 0 : index
      %77 = vector.load %arg10[%c0_45, %c0_46, %c0_47] : memref<1x64x128xf32, #tpu.memory_space<vmem>>, vector<1x64x128xf32>
      %78 = vector.shape_cast %77 : vector<1x64x128xf32> to vector<64x128xf32>
      %79 = vector.shape_cast %76 : vector<64x128xf32> to vector<1x64x128xf32>
      tpu.vector_store %arg10[%c0_45, %c0_46, %c0_47], %79 {strides = array<i32>} : memref<1x64x128xf32, #tpu.memory_space<vmem>>, vector<1x64x128xf32>,
    } else {
    }
    return
  }
  func.func @transform_0(%arg0: i32, %arg1: i32) -> (i32, i32, i32) {
    %c0_i32 = arith.constant 0 : i32
    %c0_i32_0 = arith.constant 0 : i32
    %c0_i32_1 = arith.constant 0 : i32
    return %arg0, %c0_i32, %c0_i32_0 : i32, i32, i32
  }
  func.func @transform_1(%arg0: i32, %arg1: i32) -> (i32, i32, i32) {
    %c0_i32 = arith.constant 0 : i32
    %c0_i32_0 = arith.constant 0 : i32
    %c0_i32_1 = arith.constant 0 : i32
    return %arg0, %c0_i32, %c0_i32_0 : i32, i32, i32
  }
  func.func @transform_2(%arg0: i32, %arg1: i32) -> (i32, i32) {
    %c0_i32 = arith.constant 0 : i32
    %c0_i32_0 = arith.constant 0 : i32
    %c0_i32_1 = arith.constant 0 : i32
    return %c0_i32, %c0_i32_0 : i32, i32
  }
  func.func @transform_3(%arg0: i32, %arg1: i32) -> (i32, i32) {
    %c0_i32 = arith.constant 0 : i32
    %c0_i32_0 = arith.constant 0 : i32
    %c0_i32_1 = arith.constant 0 : i32
    return %c0_i32, %c0_i32_0 : i32, i32
  }
  func.func @transform_4(%arg0: i32, %arg1: i32) -> (i32, i32, i32) {
    %c0_i32 = arith.constant 0 : i32
    %c0_i32_0 = arith.constant 0 : i32
    %c0_i32_1 = arith.constant 0 : i32
    return %c0_i32, %arg1, %c0_i32_0 : i32, i32, i32
  }
  func.func @transform_5(%arg0: i32, %arg1: i32) -> (i32, i32) {
    %c0_i32 = arith.constant 0 : i32
    %c0_i32_0 = arith.constant 0 : i32
    %c0_i32_1 = arith.constant 0 : i32
    return %c0_i32, %c0_i32_0 : i32, i32
  }
  func.func @transform_6(%arg0: i32, %arg1: i32) -> (i32, i32) {
    %c0_i32 = arith.constant 0 : i32
    %c0_i32_0 = arith.constant 0 : i32
    %c0_i32_1 = arith.constant 0 : i32
    return %c0_i32, %c0_i32_0 : i32, i32
  }
  func.func @transform_7(%arg0: i32, %arg1: i32) -> (i32, i32) {
    %c0_i32 = arith.constant 0 : i32
    %c0_i32_0 = arith.constant 0 : i32
    %c0_i32_1 = arith.constant 0 : i32
    return %c0_i32, %c0_i32_0 : i32, i32
  }
  func.func @transform_8(%arg0: i32, %arg1: i32) -> (i32, i32, i32) {
    %c0_i32 = arith.constant 0 : i32
    %c0_i32_0 = arith.constant 0 : i32
    %c0_i32_1 = arith.constant 0 : i32
    return %arg0, %c0_i32, %c0_i32_0 : i32, i32, i32
  }
}

</mosaic_0001>

<llo_original>
// kernel: psa_head_forward.4
$region0: #{psa_head_forward.4}
  #allocation0 [shape = 'u32[]', space=smem, size = 0x4, offset = 0x4, fixed_abs, tag = 'smem constant byte address 0x4 - core index']
  #allocation1 [shape = 'u32[144,128]{1,0:T(1,128)}', space=vmem, size = 0x12000, scoped, tag = 'internal scratch']
  %s0 = inlined_call_operand.vmem [shape: bf16[2,2,64,128], index: 0, kind: input, shape index: {}]
  %s1 = inlined_call_operand.vmem [shape: bf16[2,2,64,128], index: 1, kind: input, shape index: {}]
  %s2 = inlined_call_operand.vmem [shape: bf16[2,128,64], index: 2, kind: input, shape index: {}]
  %s3 = inlined_call_operand.vmem [shape: bf16[2,64,256], index: 3, kind: output, shape index: {}]
  %s4 = sld [smem:[#allocation0]]
  $region82: #{psa_head_forward.4} parent=0
    _
  %s6 = ssub.s32 1, %s4
  %s7 = scalar_select 0, %s6, %s4
  $region1: #{psa_head_forward.4} parent=0
    #allocation2 [shape = 'u8[16384]{0}', space=vmem, size = 0x4000, scoped, tag = 'output window, operand 0']
    loop: start=0, step=1, limit=10
    $region2: #{psa_head_forward.4} parent=1 // loop_pre_header
      _
    $region3: #{psa_head_forward.4} parent=1 // loop_header
      %s9 = sphi 0, %s13
      %p10 = scmp.ge.s32.totalorder %s9, 10
      %s16 = sphi 0, %s35
      %s17 = sphi 0, %s31
      %s18 = sphi 0, %s27
      %s19 = sphi 0, %s16
      %s20 = sphi 0, %s17
      %s21 = sphi 0, %s18
      %s22 = sphi 0, %s19
      %s23 = sphi 0, %s20
      %s24 = sphi 0, %s21
      %s42 = sphi 0, %s44
      %s45 = sphi 0, %s42
      %s46 = sphi 0, %s45
      %s62 = sphi 0, %s46
      %s70 = sphi 0, %s72
      %s73 = sphi 0, %s70
      %s74 = sphi 0, %s73
      %s90 = sphi 0, %s74
      %s96 = sphi 0, %s98
      %s99 = sphi 0, %s96
      %s100 = sphi 0, %s99
      %s116 = sphi 0, %s100
      %s126 = sphi 0, %s128
      %s129 = sphi 0, %s126
      %s130 = sphi 0, %s129
      %s146 = sphi 0, %s130
    $region4: #{psa_head_forward.4} parent=1 // loop_header_branch
      %12 = sbr.rel (%p10) target = $region8
    $region5: #{psa_head_forward.4} parent=1 // loop_body
      %s14 = ssub.s32 %s9, 1
      %s15 = ssub.s32 %s9, 2
      %s25 = sadd.s32 1, %s18
      %p26 = scmp.ge.s32.totalorder %s25, 2
      %s27 = scalar_select %p26, 0, %s25
      %s28 = sadd.s32 1, %s17
      %s29 = scalar_select %p26, %s28, %s17
      %p30 = scmp.ge.s32.totalorder %s29, 2
      %s31 = scalar_select %p30, 0, %s29
      %s32 = sadd.s32 1, %s16
      %s33 = scalar_select %p30, %s32, %s16
      %p34 = scmp.ge.s32.totalorder %s33, 2
      %s35 = scalar_select %p34, 0, %s33
      %s36 = ssub.s32 %s16, %s35
      %s37 = ssub.s32 %s17, %s31
      %s38 = sor.u32 %s36, %s37
      %s39 = ssub.s32 %s18, %s27
      %s40 = sor.u32 %s38, %s39
      %p41 = scmp.eq.s32.totalorder %s40, 0
      %s43 = sadd.s32 %s42, 1
      %s44 = scalar_select %p41, %s42, %s43
      %p47 = pneg %p41
      %p48 = scmp.eq.s32.totalorder %s9, 7
      %p49 = por %p47, %p48
      %p50 = scmp.ne.s32.totalorder %s42, %s45
      %p51 = scmp.eq.s32.totalorder %s9, 0
      %p52 = por %p50, %p51
      %p53 = scmp.ne.s32.totalorder %s42, %s45
      %p54 = scmp.eq.s32.totalorder %s14, 7
      %p55 = por %p53, %p54
      %p56 = scmp.ne.s32.totalorder %s45, %s46
      %p57 = scmp.eq.s32.totalorder %s14, 0
      %p58 = por %p56, %p57
      %p59 = scmp.ne.s32.totalorder %s45, %s46
      %p60 = scmp.eq.s32.totalorder %s15, 7
      %p61 = por %p59, %p60
      %p63 = scmp.ne.s32.totalorder %s46, %s62
      %p64 = scmp.eq.s32.totalorder %s15, 0
      %p65 = por %p63, %p64
      %s66 = ssub.s32 %s16, %s35
      %s67 = ssub.s32 %s17, %s31
      %s68 = sor.u32 %s66, %s67
      %p69 = scmp.eq.s32.totalorder %s68, 0
      %s71 = sadd.s32 %s70, 1
      %s72 = scalar_select %p69, %s70, %s71
      %p75 = pneg %p69
      %p76 = scmp.eq.s32.totalorder %s9, 7
      %p77 = por %p75, %p76
      %p78 = scmp.ne.s32.totalorder %s70, %s73
      %p79 = scmp.eq.s32.totalorder %s9, 0
      %p80 = por %p78, %p79
      %p81 = scmp.ne.s32.totalorder %s70, %s73
      %p82 = scmp.eq.s32.totalorder %s14, 7
      %p83 = por %p81, %p82
      %p84 = scmp.ne.s32.totalorder %s73, %s74
      %p85 = scmp.eq.s32.totalorder %s14, 0
      %p86 = por %p84, %p85
      %p87 = scmp.ne.s32.totalorder %s73, %s74
      %p88 = scmp.eq.s32.totalorder %s15, 7
      %p89 = por %p87, %p88
      %p91 = scmp.ne.s32.totalorder %s74, %s90
      %p92 = scmp.eq.s32.totalorder %s15, 0
      %p93 = por %p91, %p92
      %s94 = ssub.s32 %s17, %s31
      %p95 = scmp.eq.s32.totalorder %s94, 0
      %s97 = sadd.s32 %s96, 1
      %s98 = scalar_select %p95, %s96, %s97
      %p101 = pneg %p95
      %p102 = scmp.eq.s32.totalorder %s9, 7
      %p103 = por %p101, %p102
      %p104 = scmp.ne.s32.totalorder %s96, %s99
      %p105 = scmp.eq.s32.totalorder %s9, 0
      %p106 = por %p104, %p105
      %p107 = scmp.ne.s32.totalorder %s96, %s99
      %p108 = scmp.eq.s32.totalorder %s14, 7
      %p109 = por %p107, %p108
      %p110 = scmp.ne.s32.totalorder %s99, %s100
      %p111 = scmp.eq.s32.totalorder %s14, 0
      %p112 = por %p110, %p111
      %p113 = scmp.ne.s32.totalorder %s99, %s100
      %p114 = scmp.eq.s32.totalorder %s15, 7
      %p115 = por %p113, %p114
      %p117 = scmp.ne.s32.totalorder %s100, %s116
      %p118 = scmp.eq.s32.totalorder %s15, 0
      %p119 = por %p117, %p118
      %s120 = ssub.s32 %s16, %s35
      %s121 = ssub.s32 %s18, %s27
      %s122 = sor.u32 %s120, %s121
      %s123 = ssub.s32 %s17, %s31
      %s124 = sor.u32 %s122, %s123
      %p125 = scmp.eq.s32.totalorder %s124, 0
      %s127 = sadd.s32 %s126, 1
      %s128 = scalar_select %p125, %s126, %s127
      %p131 = pneg %p125
      %p132 = scmp.eq.s32.totalorder %s9, 7
      %p133 = por %p131, %p132
      %p134 = scmp.ne.s32.totalorder %s126, %s129
      %p135 = scmp.eq.s32.totalorder %s9, 0
      %p136 = por %p134, %p135
      %p137 = scmp.ne.s32.totalorder %s126, %s129
      %p138 = scmp.eq.s32.totalorder %s14, 7
      %p139 = por %p137, %p138
      %p140 = scmp.ne.s32.totalorder %s129, %s130
      %p141 = scmp.eq.s32.totalorder %s14, 0
      %p142 = por %p140, %p141
      %p143 = scmp.ne.s32.totalorder %s129, %s130
      %p144 = scmp.eq.s32.totalorder %s15, 7
      %p145 = por %p143, %p144
      %p147 = scmp.ne.s32.totalorder %s130, %s146
      %p148 = scmp.eq.s32.totalorder %s15, 0
      %p149 = por %p147, %p148
      %p150 = scmp.le.s32.totalorder 1, %s9
      %p151 = scmp.lt.s32.totalorder %s9, 9
      %p152 = pnand %p150, %p151
      %p153 = pneg %p152
      // Predicated region
      $region9: #{psa_head_forward.4} parent=5 // pred_check
        _
      $region10: #{psa_head_forward.4} parent=5 // pred_check_branch
        %155 = sbr.rel (%p152) target = $region12
      $region11: #{psa_head_forward.4} parent=5 // pred_region
        %s156 = ssub.s32 %s9, 1
      $region12: #{psa_head_forward.4} parent=5 // pred_fallthru
        _
      %p157 = scmp.lt.s32.totalorder %s9, 8
      // Predicated region
      $region13: #{psa_head_forward.4} parent=5 // pred_check
        %p158 = pneg %p157
      $region14: #{psa_head_forward.4} parent=5 // pred_check_branch
        %160 = sbr.rel (%p158) target = $region16
      $region15: #{psa_head_forward.4} parent=5 // pred_region
        // Predicated region
        $region17: #{psa_head_forward.4} parent=15 // pred_check
          %p161 = pneg %p52
        $region18: #{psa_head_forward.4} parent=15 // pred_check_branch
          %163 = sbr.rel (%p161) target = $region20
        $region19: #{psa_head_forward.4} parent=15 // pred_region
          %s164 = smul.u32 4, %s18
          %p165 = scmp.lt.s32.totalorder %s16, 1
          %s166 = scalar_select %p165, %s16, 1
          %p167 = scmp.lt.s32.totalorder %s17, 1
          %s168 = scalar_select %p167, %s17, 1
          %p169 = scmp.lt.s32.totalorder %s164, 7
          %s170 = scalar_select %p169, %s164, 7
          %s171 = smul.addr %s168, 8
          %s172 = sadd.s32 %s170, %s171
          %s173 = smul.addr %s166, 16
          %s174 = sadd.s32 %s172, %s173
          %s175 = smul.addr %s174, 4
          %s176 = scalar_lea.vmem %s0, %s175
          %s177 = smul.u32 4, %s18
        $region20: #{psa_head_forward.4} parent=15 // pred_fallthru
          _
        // Predicated region
        $region21: #{psa_head_forward.4} parent=15 // pred_check
          %p178 = pneg %p80
        $region22: #{psa_head_forward.4} parent=15 // pred_check_branch
          %180 = sbr.rel (%p178) target = $region24
        $region23: #{psa_head_forward.4} parent=15 // pred_region
          %p181 = scmp.lt.s32.totalorder %s16, 1
          %s182 = scalar_select %p181, %s16, 1
          %p183 = scmp.lt.s32.totalorder %s17, 1
          %s184 = scalar_select %p183, %s17, 1
          %s185 = smul.addr %s184, 8
          %s186 = smul.addr %s182, 16
          %s187 = sadd.s32 %s185, %s186
          %s188 = smul.addr %s187, 4
          %s189 = scalar_lea.vmem %s1, %s188
        $region24: #{psa_head_forward.4} parent=15 // pred_fallthru
          _
        // Predicated region
        $region25: #{psa_head_forward.4} parent=15 // pred_check
          %p190 = pneg %p106
        $region26: #{psa_head_forward.4} parent=15 // pred_check_branch
          %192 = sbr.rel (%p190) target = $region28
        $region27: #{psa_head_forward.4} parent=15 // pred_region
          %p193 = scmp.lt.s32.totalorder %s17, 1
          %s194 = scalar_select %p193, %s17, 1
          %s195 = smul.addr %s194, 16
          %s196 = smul.addr %s195, 4
          %s197 = scalar_lea.vmem %s2, %s196
        $region28: #{psa_head_forward.4} parent=15 // pred_fallthru
          _
      $region16: #{psa_head_forward.4} parent=5 // pred_fallthru
        _
      %p198 = scmp.le.s32.totalorder 1, %s9
      %p199 = scmp.lt.s32.totalorder %s9, 9
      %p200 = pnand %p198, %p199
      %p201 = pneg %p200
      // Predicated region
      $region29: #{psa_head_forward.4} parent=5 // pred_check
        _
      $region30: #{psa_head_forward.4} parent=5 // pred_check_branch
        %203 = sbr.rel (%p200) target = $region32
      $region31: #{psa_head_forward.4} parent=5 // pred_region
        %s204 = ssub.s32 %s9, 1
        %s205 = smul.u32 4, %s21
        %p206 = scmp.lt.s32.totalorder %s19, 1
        %s207 = scalar_select %p206, %s19, 1
        %p208 = scmp.lt.s32.totalorder %s20, 1
        %s209 = scalar_select %p208, %s20, 1
        %p210 = scmp.lt.s32.totalorder %s205, 7
        %s211 = scalar_select %p210, %s205, 7
        %s212 = smul.addr %s209, 8
        %s213 = sadd.s32 %s211, %s212
        %s214 = smul.addr %s207, 16
        %s215 = sadd.s32 %s213, %s214
        %s216 = smul.addr %s215, 4
        %s217 = scalar_lea.vmem %s0, %s216
        %p218 = pneg %p58
        %p219 = pneg %p55
        %p220 = scmp.lt.s32.totalorder %s19, 1
        %s221 = scalar_select %p220, %s19, 1
        %p222 = scmp.lt.s32.totalorder %s20, 1
        %s223 = scalar_select %p222, %s20, 1
        %s224 = smul.addr %s223, 8
        %s225 = smul.addr %s221, 16
        %s226 = sadd.s32 %s224, %s225
        %s227 = smul.addr %s226, 4
        %s228 = scalar_lea.vmem %s1, %s227
        %p229 = pneg %p86
        %p230 = pneg %p83
        %p231 = scmp.lt.s32.totalorder %s20, 1
        %s232 = scalar_select %p231, %s20, 1
        %s233 = smul.addr %s232, 16
        %s234 = smul.addr %s233, 4
        %s235 = scalar_lea.vmem %s2, %s234
        %p236 = pneg %p112
        %p237 = pneg %p109
        %p238 = pneg %p142
        %p239 = pneg %p139
        %s240 = sand.u32 %s129, 1
        %s241 = sand.u32 %s129, 1
        %s242 = smul.addr %s241, 16
        %s243 = scalar_lea.vmem [#allocation2], %s242
        %s244 = smul.u32 4, %s21
        %p245 = scmp.lt.s32.totalorder %s19, 1
        %s246 = scalar_select %p245, %s19, 1
        %p247 = scmp.lt.s32.totalorder %s20, 1
        %s248 = scalar_select %p247, %s20, 1
        %p249 = scmp.lt.s32.totalorder %s244, 7
        %s250 = scalar_select %p249, %s244, 7
        %s251 = smul.addr %s248, 8
        %s252 = sadd.s32 %s250, %s251
        %s253 = smul.addr %s246, 16
        %s254 = sadd.s32 %s252, %s253
        %s255 = smul.addr %s254, 4
        %s256 = scalar_lea.vmem %s0, %s255
        %s257 = smul.u32 4, %s21
        %p258 = scmp.lt.s32.totalorder %s19, 1
        %s259 = scalar_select %p258, %s19, 1
        %p260 = scmp.lt.s32.totalorder %s20, 1
        %s261 = scalar_select %p260, %s20, 1
        %s262 = smul.addr %s261, 8
        %s263 = smul.addr %s259, 16
        %s264 = sadd.s32 %s262, %s263
        %s265 = smul.addr %s264, 4
        %s266 = scalar_lea.vmem %s1, %s265
        %p267 = scmp.lt.s32.totalorder %s20, 1
        %s268 = scalar_select %p267, %s20, 1
        %s269 = smul.addr %s268, 16
        %s270 = smul.addr %s269, 4
        %s271 = scalar_lea.vmem %s2, %s270
        %s272 = smul.u32 4, %s21
        %v274 = vld [vmem:[%s256] sm:$0xf]
        %v275 = vld [vmem:[%s256 + $0x4] sm:$0xf]
        %v276 = vld [vmem:[%s256 + $0x8] sm:$0xf]
        %v277 = vld [vmem:[%s256 + $0xc] sm:$0xf]
        %v278 = vld [vmem:[%s266] sm:$0xf]
        %v279 = vld [vmem:[%s266 + $0x4] sm:$0xf]
        %v280 = vld [vmem:[%s266 + $0x8] sm:$0xf]
        %v281 = vld [vmem:[%s266 + $0xc] sm:$0xf]
        %v282 = vld [vmem:[%s266 + $0x10] sm:$0xf]
        %v283 = vld [vmem:[%s266 + $0x14] sm:$0xf]
        %v284 = vld [vmem:[%s266 + $0x18] sm:$0xf]
        %v285 = vld [vmem:[%s266 + $0x1c] sm:$0xf]
        %v286 = vld [vmem:[%s271] sm:$0xf]
        %v287 = vld [vmem:[%s271 + $0x4] sm:$0xf]
        %v288 = vld [vmem:[%s271 + $0x8] sm:$0xf]
        %v289 = vld [vmem:[%s271 + $0xc] sm:$0xf]
        %v290 = vld [vmem:[%s271 + $0x10] sm:$0xf]
        %v291 = vld [vmem:[%s271 + $0x14] sm:$0xf]
        %v292 = vld [vmem:[%s271 + $0x18] sm:$0xf]
        %v293 = vld [vmem:[%s271 + $0x1c] sm:$0xf]
        %v294 = vld [vmem:[%s271 + $0x20] sm:$0xf]
        %v295 = vld [vmem:[%s271 + $0x24] sm:$0xf]
        %v296 = vld [vmem:[%s271 + $0x28] sm:$0xf]
        %v297 = vld [vmem:[%s271 + $0x2c] sm:$0xf]
        %v298 = vld [vmem:[%s271 + $0x30] sm:$0xf]
        %v299 = vld [vmem:[%s271 + $0x34] sm:$0xf]
        %v300 = vld [vmem:[%s271 + $0x38] sm:$0xf]
        %v301 = vld [vmem:[%s271 + $0x3c] sm:$0xf]
        %v306 = vunpack.c.l.b16 %v274
        %v307 = vunpack.c.l.b16 %v275
        %v308 = vunpack.c.l.b16 %v276
        %v309 = vunpack.c.l.b16 %v277
        %v310 = vpack.c.b16 %v307, %v306
        %v311 = vpack.c.b16 %v309, %v308
        %v330 = vunpack.c.l.b16 %v286
        %v331 = vunpack.c.l.b16 %v287
        %v332 = vunpack.c.l.b16 %v288
        %v333 = vunpack.c.l.b16 %v289
        %v334 = vunpack.c.l.b16 %v290
        %v335 = vunpack.c.l.b16 %v291
        %v336 = vunpack.c.l.b16 %v292
        %v337 = vunpack.c.l.b16 %v293
        %v338 = vunpack.c.l.b16 %v294
        %v339 = vunpack.c.l.b16 %v295
        %v340 = vunpack.c.l.b16 %v296
        %v341 = vunpack.c.l.b16 %v297
        %v342 = vunpack.c.l.b16 %v298
        %v343 = vunpack.c.l.b16 %v299
        %v344 = vunpack.c.l.b16 %v300
        %v345 = vunpack.c.l.b16 %v301
        %v346 = vpack.c.b16 %v331, %v330
        %v347 = vpack.c.b16 %v333, %v332
        %v348 = vpack.c.b16 %v335, %v334
        %v349 = vpack.c.b16 %v337, %v336
        %v350 = vpack.c.b16 %v339, %v338
        %v351 = vpack.c.b16 %v341, %v340
        %v352 = vpack.c.b16 %v343, %v342
        %v353 = vpack.c.b16 %v345, %v344
        %362 = vmatprep.subr.bf16.mxu0 0
        %363 = vmatpush1.bf16.msra.mxu0 %v346
        %364 = vmatprep.subr.bf16.mxu0 0
        %365 = vmatpush1.bf16.msra.mxu0 %v347
        %366 = vmatprep.subr.bf16.mxu0 0
        %367 = vmatpush1.bf16.msra.mxu0 %v348
        %368 = vmatprep.subr.bf16.mxu0 0
        %369 = vmatpush1.bf16.msra.mxu0 %v349
        %370 = vmatprep.subr.bf16.mxu0 0
        %371 = vmatpush1.bf16.msra.mxu0 %v350
        %372 = vmatprep.subr.bf16.mxu0 0
        %373 = vmatpush1.bf16.msra.mxu0 %v351
        %374 = vmatprep.subr.bf16.mxu0 0
        %375 = vmatpush1.bf16.msra.mxu0 %v352
        %376 = vmatprep.subr.bf16.mxu0 0
        %377 = vmatpush1.bf16.msra.mxu0 %v353
        %378 = vmatprep.subr.bf16.mxu0 0
        %379 = vmatpush1.bf16.msra.mxu0 0
        %380 = vmatprep.subr.bf16.mxu0 0
        %381 = vmatpush1.bf16.msra.mxu0 0
        %382 = vmatprep.subr.bf16.mxu0 0
        %383 = vmatpush1.bf16.msra.mxu0 0
        %384 = vmatprep.subr.bf16.mxu0 0
        %385 = vmatpush1.bf16.msra.mxu0 0
        %386 = vmatprep.subr.bf16.mxu0 0
        %387 = vmatpush1.bf16.msra.mxu0 0
        %388 = vmatprep.subr.bf16.mxu0 0
        %389 = vmatpush1.bf16.msra.mxu0 0
        %390 = vmatprep.subr.bf16.mxu0 0
        %391 = vmatpush1.bf16.msra.mxu0 0
        %392 = vmatprep.subr.bf16.mxu0 0
        %393 = vmatpush1.bf16.msra.mxu0 0
        %394 = vmatprep.mubr.bf16.mxu0 0
        %395 = vmatmul.mubr.bf16.gmra.mrb[0].mxu0 %v310
        %v396 = vpop.f32.mrb[0].mxu0
        %v397 = vadd.f32 0.0, %v396
        %v398 = vpop.f32.mrb[0].mxu0
        %v399 = vpop.f32.mrb[0].mxu0
        %v400 = vadd.f32 0.0, %v399
        %v401 = vpop.f32.mrb[0].mxu0
        %402 = vmatprep.mubr.bf16.mxu0 0
        %403 = vmatmul.mubr.bf16.gmra.mrb[0].mxu0 %v311
        %v404 = vpop.f32.mrb[0].mxu0
        %v405 = vadd.f32 0.0, %v404
        %v406 = vpop.f32.mrb[0].mxu0
        %v407 = vpop.f32.mrb[0].mxu0
        %v408 = vadd.f32 0.0, %v407
        %v409 = vpop.f32.mrb[0].mxu0
        %410 = vdwg.mxu0
        %vm411 = vcmask 523264
        %v412 = vsel %vm411, %v397, -inf
        %413 = vmax.xlane.f32.xlu0 %v412
        %v414 = vpop.xlane.xlu0 %413
        %v415 = vsel %vm411, %v400, -inf
        %416 = vmax.xlane.f32.xlu0 %v415
        %v417 = vpop.xlane.xlu0 %416
        %v418 = vsel %vm411, %v405, -inf
        %419 = vmax.xlane.f32.xlu0 %v418
        %v420 = vpop.xlane.xlu0 %419
        %v421 = vsel %vm411, %v408, -inf
        %422 = vmax.xlane.f32.xlu0 %v421
        %v423 = vpop.xlane.xlu0 %422
        %v424 = vsub.f32 %v397, %v414
        %v425 = vsub.f32 %v400, %v417
        %v426 = vsub.f32 %v405, %v420
        %v427 = vsub.f32 %v408, %v423
        %v428 = vmul.f32 %v424, 1.442695
        %v429 = vpow.pop %v428
        %v430 = vmul.f32 %v425, 1.442695
        %v431 = vpow.pop %v430
        %v432 = vmul.f32 %v426, 1.442695
        %v433 = vpow.pop %v432
        %v434 = vmul.f32 %v427, 1.442695
        %v435 = vpow.pop %v434
        %v436 = vsel %vm411, %v429, 0.0
        %437 = vadd.xlane.f32.xlu0 %v436
        %v438 = vpop.xlane.xlu0 %437
        %v439 = vsel %vm411, %v431, 0.0
        %440 = vadd.xlane.f32.xlu0 %v439
        %v441 = vpop.xlane.xlu0 %440
        %v442 = vsel %vm411, %v433, 0.0
        %443 = vadd.xlane.f32.xlu0 %v442
        %v444 = vpop.xlane.xlu0 %443
        %v445 = vsel %vm411, %v435, 0.0
        %446 = vadd.xlane.f32.xlu0 %v445
        %v447 = vpop.xlane.xlu0 %446
        %v448 = vpack.c.bf16 %v431, %v429
        %v449 = vpack.c.bf16 %v435, %v433
        %v458 = vunpack.c.l.b16 %v278
        %v459 = vunpack.c.l.b16 %v279
        %v460 = vunpack.c.l.b16 %v280
        %v461 = vunpack.c.l.b16 %v281
        %v462 = vunpack.c.l.b16 %v282
        %v463 = vunpack.c.l.b16 %v283
        %v464 = vunpack.c.l.b16 %v284
        %v465 = vunpack.c.l.b16 %v285
        %v466 = vpack.c.b16 %v459, %v458
        %v467 = vpack.c.b16 %v461, %v460
        %v468 = vpack.c.b16 %v463, %v462
        %v469 = vpack.c.b16 %v465, %v464
        %v475 = vsel %vm411, %v448, 0
        %v478 = vsel %vm411, %v449, 0
        %480 = vmatprep.subr.bf16.mxu0 0
        %481 = vmatpush1.bf16.msra.mxu0 %v466
        %482 = vmatprep.subr.bf16.mxu0 0
        %483 = vmatpush1.bf16.msra.mxu0 %v467
        %484 = vmatprep.subr.bf16.mxu0 0
        %485 = vmatpush1.bf16.msra.mxu0 %v468
        %486 = vmatprep.subr.bf16.mxu0 0
        %487 = vmatpush1.bf16.msra.mxu0 %v469
        %488 = vmatprep.subr.bf16.mxu0 0
        %489 = vmatpush1.bf16.msra.mxu0 0
        %490 = vmatprep.subr.bf16.mxu0 0
        %491 = vmatpush1.bf16.msra.mxu0 0
        %492 = vmatprep.subr.bf16.mxu0 0
        %493 = vmatpush1.bf16.msra.mxu0 0
        %494 = vmatprep.subr.bf16.mxu0 0
        %495 = vmatpush1.bf16.msra.mxu0 0
        %496 = vmatprep.subr.bf16.mxu0 0
        %497 = vmatpush1.bf16.msra.mxu0 0
        %498 = vmatprep.subr.bf16.mxu0 0
        %499 = vmatpush1.bf16.msra.mxu0 0
        %500 = vmatprep.subr.bf16.mxu0 0
        %501 = vmatpush1.bf16.msra.mxu0 0
        %502 = vmatprep.subr.bf16.mxu0 0
        %503 = vmatpush1.bf16.msra.mxu0 0
        %504 = vmatprep.subr.bf16.mxu0 0
        %505 = vmatpush1.bf16.msra.mxu0 0
        %506 = vmatprep.subr.bf16.mxu0 0
        %507 = vmatpush1.bf16.msra.mxu0 0
        %508 = vmatprep.subr.bf16.mxu0 0
        %509 = vmatpush1.bf16.msra.mxu0 0
        %510 = vmatprep.subr.bf16.mxu0 0
        %511 = vmatpush1.bf16.msra.mxu0 0
        %512 = vmatprep.mubr.bf16.mxu0 0
        %513 = vmatmul.mubr.bf16.gmra.mrb[0].mxu0 %v475
        %v514 = vpop.f32.mrb[0].mxu0
        %v515 = vadd.f32 0.0, %v514
        %v516 = vpop.f32.mrb[0].mxu0
        %v517 = vpop.f32.mrb[0].mxu0
        %v518 = vadd.f32 0.0, %v517
        %v519 = vpop.f32.mrb[0].mxu0
        %520 = vmatprep.mubr.bf16.mxu0 0
        %521 = vmatmul.mubr.bf16.gmra.mrb[0].mxu0 %v478
        %v522 = vpop.f32.mrb[0].mxu0
        %v523 = vadd.f32 0.0, %v522
        %v524 = vpop.f32.mrb[0].mxu0
        %v525 = vpop.f32.mrb[0].mxu0
        %v526 = vadd.f32 0.0, %v525
        %v527 = vpop.f32.mrb[0].mxu0
        %528 = vdwg.mxu0
        %v529 = vrcp.pop %v438
        %v530 = vrcp.pop %v441
        %v531 = vrcp.pop %v444
        %v532 = vrcp.pop %v447
        %v533 = vmul.f32 %v515, %v529
        %v534 = vmul.f32 %v518, %v530
        %v535 = vmul.f32 %v523, %v531
        %v536 = vmul.f32 %v526, %v532
        %v537 = vpack.c.bf16 %v534, %v533
        %v538 = vpack.c.bf16 %v536, %v535
        %v541 = vunpack.c.l.b16 %v537
        %v542 = vunpack.c.h.b16 %v537
        %v543 = vunpack.c.l.b16 %v538
        %v544 = vunpack.c.h.b16 %v538
        %v545 = vpack.c.b16 %v541, %v541
        %v546 = vpack.c.b16 %v542, %v542
        %v547 = vpack.c.b16 %v543, %v543
        %v548 = vpack.c.b16 %v544, %v544
        %553 = vst [vmem:[%s243] sm:$0xf] %v545
        %554 = vst [vmem:[%s243 + $0x4] sm:$0xf] %v546
        %555 = vst [vmem:[%s243 + $0x8] sm:$0xf] %v547
        %556 = vst [vmem:[%s243 + $0xc] sm:$0xf] %v548
        %s557 = sand.u32 %s129, 1
        %s558 = sand.u32 %s129, 1
        %s559 = smul.addr %s558, 16
        %s560 = scalar_lea.vmem [#allocation2], %s559
        // Predicated region
        $region33: #{psa_head_forward.4} parent=31 // pred_check
          %p561 = pneg %p139
        $region34: #{psa_head_forward.4} parent=31 // pred_check_branch
          %563 = sbr.rel (%p561) target = $region36
        $region35: #{psa_head_forward.4} parent=31 // pred_region
          %s564 = smul.u32 4, %s21
          %s565 = smul.addr %s564, 2
          %s566 = sadd.s32 %s20, %s565
          %s567 = smul.addr %s19, 16
          %s568 = sadd.s32 %s566, %s567
          %s569 = smul.addr %s568, 4
          %s570 = scalar_lea.vmem %s3, %s569
          // Predicated region
          $region37: #{psa_head_forward.4} parent=35 // pred_check
            _
          $region38: #{psa_head_forward.4} parent=35 // pred_check_branch
            %572 = sbr.rel (0) target = $region40
          $region39: #{psa_head_forward.4} parent=35 // pred_region
            // Predicated region
            $region41: #{psa_head_forward.4} parent=39 // pred_check
              _
            $region42: #{psa_head_forward.4} parent=39 // pred_check_branch
              %574 = sbr.rel target = $region44
            $region43: #{psa_head_forward.4} parent=39 // pred_region
              // Predicated region
              $region56: #{psa_head_forward.4} parent=43 // pred_check
                _
              $region57: #{psa_head_forward.4} parent=43 // pred_check_branch
                %595 = sbr.rel (0) target = $region59
              $region58: #{psa_head_forward.4} parent=43 // pred_region
                loop: start=0, step=1, limit=1
                $region60: #{psa_head_forward.4} parent=58 // loop_pre_header
                  _
                $region61: #{psa_head_forward.4} parent=58 // loop_header
                  %s597 = sphi 0, %s601
                  %p598 = scmp.ge.s32.totalorder %s597, 1
                  %s602 = sphi %s560, %s560
                  %s603 = sphi %s570, %s570
                $region62: #{psa_head_forward.4} parent=58 // loop_header_branch
                  %600 = sbr.rel (%p598) target = $region66
                $region63: #{psa_head_forward.4} parent=58 // loop_body
                  _
                $region64: #{psa_head_forward.4} parent=58 // loop_footer
                  %s601 = sadd.s32 1, %s597
                $region65: #{psa_head_forward.4} parent=58 // loop_footer_branch
                  %596 = sbr.rel target = $region61
                $region66: #{psa_head_forward.4} parent=58 // loop_exit
                  _
                loop: start=0, step=1, limit=1
                $region67: #{psa_head_forward.4} parent=58 // loop_pre_header
                  _
                $region68: #{psa_head_forward.4} parent=58 // loop_header
                  %s606 = sphi 0, %s610
                  %p607 = scmp.ge.s32.totalorder %s606, 1
                  %s611 = sphi %s560, %s560
                  %s612 = sphi %s570, %s570
                $region69: #{psa_head_forward.4} parent=58 // loop_header_branch
                  %609 = sbr.rel (%p607) target = $region73
                $region70: #{psa_head_forward.4} parent=58 // loop_body
                  %v613 = vld [vmem:[%s611] sm:$0xf]
                  %614 = vst [vmem:[%s612] sm:$0xf] %v613
                  %v615 = vld [vmem:[%s611 + $0x4] sm:$0xf]
                  %616 = vst [vmem:[%s612 + $0x8] sm:$0xf] %v615
                  %v617 = vld [vmem:[%s611 + $0x8] sm:$0xf]
                  %618 = vst [vmem:[%s612 + $0x10] sm:$0xf] %v617
                  %v619 = vld [vmem:[%s611 + $0xc] sm:$0xf]
                  %620 = vst [vmem:[%s612 + $0x18] sm:$0xf] %v619
                $region71: #{psa_head_forward.4} parent=58 // loop_footer
                  %s610 = sadd.s32 1, %s606
                $region72: #{psa_head_forward.4} parent=58 // loop_footer_branch
                  %605 = sbr.rel target = $region68
                $region73: #{psa_head_forward.4} parent=58 // loop_exit
                  _
              $region59: #{psa_head_forward.4} parent=43 // pred_fallthru
                _
            $region44: #{psa_head_forward.4} parent=39 // pred_fallthru
              _
            // Predicated region
            $region45: #{psa_head_forward.4} parent=39 // pred_check
              _
            $region46: #{psa_head_forward.4} parent=39 // pred_check_branch
              %576 = sbr.rel (0) target = $region48
            $region47: #{psa_head_forward.4} parent=39 // pred_region
              loop: start=0, step=1, limit=1
              $region49: #{psa_head_forward.4} parent=47 // loop_pre_header
                _
              $region50: #{psa_head_forward.4} parent=47 // loop_header
                %s579 = sphi 0, %s583
                %p580 = scmp.ge.s32.totalorder %s579, 1
                %s584 = sphi %s560, %s560
                %s585 = sphi %s570, %s570
              $region51: #{psa_head_forward.4} parent=47 // loop_header_branch
                %582 = sbr.rel (%p580) target = $region55
              $region52: #{psa_head_forward.4} parent=47 // loop_body
                %v586 = vld [vmem:[%s584] sm:$0xf]
                %587 = vst [vmem:[%s585] sm:$0xf] %v586
                %v588 = vld [vmem:[%s584 + $0x4] sm:$0xf]
                %589 = vst [vmem:[%s585 + $0x8] sm:$0xf] %v588
                %v590 = vld [vmem:[%s584 + $0x8] sm:$0xf]
                %591 = vst [vmem:[%s585 + $0x10] sm:$0xf] %v590
                %v592 = vld [vmem:[%s584 + $0xc] sm:$0xf]
                %593 = vst [vmem:[%s585 + $0x18] sm:$0xf] %v592
              $region53: #{psa_head_forward.4} parent=47 // loop_footer
                %s583 = sadd.s32 1, %s579
              $region54: #{psa_head_forward.4} parent=47 // loop_footer_branch
                %578 = sbr.rel target = $region50
              $region55: #{psa_head_forward.4} parent=47 // loop_exit
                _
            $region48: #{psa_head_forward.4} parent=39 // pred_fallthru
              _
          $region40: #{psa_head_forward.4} parent=35 // pred_fallthru
            _
          %621 = vnop
        $region36: #{psa_head_forward.4} parent=31 // pred_fallthru
          _
      $region32: #{psa_head_forward.4} parent=5 // pred_fallthru
        _
      %p622 = scmp.le.s32.totalorder 2, %s9
      // Predicated region
      $region74: #{psa_head_forward.4} parent=5 // pred_check
        %p623 = pneg %p622
      $region75: #{psa_head_forward.4} parent=5 // pred_check_branch
        %625 = sbr.rel (%p623) target = $region77
      $region76: #{psa_head_forward.4} parent=5 // pred_region
        %s626 = ssub.s32 %s9, 2
        // Predicated region
        $region78: #{psa_head_forward.4} parent=76 // pred_check
          %p627 = pneg %p145
        $region79: #{psa_head_forward.4} parent=76 // pred_check_branch
          %629 = sbr.rel (%p627) target = $region81
        $region80: #{psa_head_forward.4} parent=76 // pred_region
          %s630 = sand.u32 %s130, 1
          %s631 = sand.u32 %s130, 1
          %s632 = smul.addr %s631, 16
          %s633 = scalar_lea.vmem [#allocation2], %s632
        $region81: #{psa_head_forward.4} parent=76 // pred_fallthru
          _
      $region77: #{psa_head_forward.4} parent=5 // pred_fallthru
        _
    $region6: #{psa_head_forward.4} parent=1 // loop_footer
      %s13 = sadd.s32 1, %s9
    $region7: #{psa_head_forward.4} parent=1 // loop_footer_branch
      %8 = sbr.rel target = $region3
    $region8: #{psa_head_forward.4} parent=1 // loop_exit
      _

// kernel: psa_head_forward.3
$region0: #{psa_head_forward.3}
  #allocation0 [shape = 'u32[]', space=smem, size = 0x4, offset = 0x4, fixed_abs, tag = 'smem constant byte address 0x4 - core index']
  #allocation1 [shape = 'u32[144,128]{1,0:T(1,128)}', space=vmem, size = 0x12000, scoped, tag = 'internal scratch']
  #allocation2 [shape = 'f32[2,32,128]{2,1,0:T(8,128)}', space=vmem, size = 0x8000, scoped, tag = 'scratch operand']
  %s0 = inlined_call_operand.vmem [shape: bf16[2,64,256], index: 0, kind: input, shape index: {}]
  %s1 = inlined_call_operand.vmem [shape: bf16[2,256,128], index: 1, kind: input, shape index: {}]
  %s2 = inlined_call_operand.hbm [shape: f32[2,1,128], index: 2, kind: input, shape index: {}]
  %s3 = inlined_call_operand.vmem [shape: bf16[2,128,128], index: 3, kind: input, shape index: {}]
  %s4 = inlined_call_operand.hbm [shape: f32[2,1,128], index: 4, kind: input, shape index: {}]
  %s5 = inlined_call_operand.vmem [shape: bf16[2,2,64,128], index: 5, kind: output, shape index: {0}]
  %s6 = inlined_call_operand.vmem [shape: bf16[2,2,64,128], index: 6, kind: output, shape index: {1}]
  %7 = xla_tuple %s5, %s6
  %s8 = sld [smem:[#allocation0]]
  $region233: #{psa_head_forward.3} parent=0
    _
  %s10 = ssub.s32 1, %s8
  %s11 = scalar_select 0, %s10, %s8
  $region1: #{psa_head_forward.3} parent=0
    #allocation3 [shape = 'u8[16384]{0}', space=vmem, size = 0x4000, scoped, tag = 'input window, operand 0']
    #allocation4 [shape = 'u8[131072]{0}', space=vmem, size = 0x20000, scoped, tag = 'input window, operand 1']
    #allocation5 [shape = 'u8[1024]{0}', space=vmem, size = 0x400, scoped, tag = 'input window, operand 2, single buffered']
    #allocation6 [shape = 's32[2]{0}', space=sflag, size = 0x8, scoped, tag = 'scoped memory for psa_head_forward.3']
    #allocation7 [shape = 'u8[1024]{0}', space=vmem, size = 0x400, scoped, tag = 'input window, operand 4, single buffered']
    #allocation8 [shape = 's32[1]{0}', space=sflag, size = 0x4, scoped, tag = 'scoped memory for psa_head_forward.3']
    #allocation9 [shape = 'u8[32768]{0}', space=vmem, size = 0x8000, scoped, tag = 'output window, operand 0']
    #allocation10 [shape = 'u8[32768]{0}', space=vmem, size = 0x8000, scoped, tag = 'output window, operand 1']
    %12 = vsyncpa [#allocation6], 0
    %13 = vsyncpa [#allocation8], 0
    loop: start=0, step=1, limit=10
    $region2: #{psa_head_forward.3} parent=1 // loop_pre_header
      _
    $region3: #{psa_head_forward.3} parent=1 // loop_header
      %s15 = sphi 0, %s19
      %p16 = scmp.ge.s32.totalorder %s15, 10
      %s22 = sphi 0, %s41
      %s23 = sphi 0, %s37
      %s24 = sphi 0, %s33
      %s25 = sphi 0, %s22
      %s26 = sphi 0, %s23
      %s27 = sphi 0, %s24
      %s28 = sphi 0, %s25
      %s29 = sphi 0, %s26
      %s30 = sphi 0, %s27
      %s48 = sphi 0, %s50
      %s51 = sphi 0, %s48
      %s52 = sphi 0, %s51
      %s68 = sphi 0, %s52
      %s74 = sphi 0, %s76
      %s77 = sphi 0, %s74
      %s78 = sphi 0, %s77
      %s94 = sphi 0, %s78
      %s98 = sphi 0, %s98
      %s100 = sphi 0, %s98
      %s101 = sphi 0, %s100
      %s115 = sphi 0, %s101
      %s119 = sphi 0, %s119
      %s121 = sphi 0, %s119
      %s122 = sphi 0, %s121
      %s136 = sphi 0, %s122
      %s140 = sphi 0, %s140
      %s142 = sphi 0, %s140
      %s143 = sphi 0, %s142
      %s157 = sphi 0, %s143
      %s165 = sphi 0, %s167
      %s168 = sphi 0, %s165
      %s169 = sphi 0, %s168
      %s185 = sphi 0, %s169
      %s193 = sphi 0, %s195
      %s196 = sphi 0, %s193
      %s197 = sphi 0, %s196
      %s213 = sphi 0, %s197
    $region4: #{psa_head_forward.3} parent=1 // loop_header_branch
      %18 = sbr.rel (%p16) target = $region8
    $region5: #{psa_head_forward.3} parent=1 // loop_body
      %s20 = ssub.s32 %s15, 1
      %s21 = ssub.s32 %s15, 2
      %s31 = sadd.s32 1, %s24
      %p32 = scmp.ge.s32.totalorder %s31, 2
      %s33 = scalar_select %p32, 0, %s31
      %s34 = sadd.s32 1, %s23
      %s35 = scalar_select %p32, %s34, %s23
      %p36 = scmp.ge.s32.totalorder %s35, 2
      %s37 = scalar_select %p36, 0, %s35
      %s38 = sadd.s32 1, %s22
      %s39 = scalar_select %p36, %s38, %s22
      %p40 = scmp.ge.s32.totalorder %s39, 2
      %s41 = scalar_select %p40, 0, %s39
      %s42 = ssub.s32 %s22, %s41
      %s43 = ssub.s32 %s23, %s37
      %s44 = sor.u32 %s42, %s43
      %s45 = ssub.s32 %s24, %s33
      %s46 = sor.u32 %s44, %s45
      %p47 = scmp.eq.s32.totalorder %s46, 0
      %s49 = sadd.s32 %s48, 1
      %s50 = scalar_select %p47, %s48, %s49
      %p53 = pneg %p47
      %p54 = scmp.eq.s32.totalorder %s15, 7
      %p55 = por %p53, %p54
      %p56 = scmp.ne.s32.totalorder %s48, %s51
      %p57 = scmp.eq.s32.totalorder %s15, 0
      %p58 = por %p56, %p57
      %p59 = scmp.ne.s32.totalorder %s48, %s51
      %p60 = scmp.eq.s32.totalorder %s20, 7
      %p61 = por %p59, %p60
      %p62 = scmp.ne.s32.totalorder %s51, %s52
      %p63 = scmp.eq.s32.totalorder %s20, 0
      %p64 = por %p62, %p63
      %p65 = scmp.ne.s32.totalorder %s51, %s52
      %p66 = scmp.eq.s32.totalorder %s21, 7
      %p67 = por %p65, %p66
      %p69 = scmp.ne.s32.totalorder %s52, %s68
      %p70 = scmp.eq.s32.totalorder %s21, 0
      %p71 = por %p69, %p70
      %s72 = ssub.s32 %s24, %s33
      %p73 = scmp.eq.s32.totalorder %s72, 0
      %s75 = sadd.s32 %s74, 1
      %s76 = scalar_select %p73, %s74, %s75
      %p79 = pneg %p73
      %p80 = scmp.eq.s32.totalorder %s15, 7
      %p81 = por %p79, %p80
      %p82 = scmp.ne.s32.totalorder %s74, %s77
      %p83 = scmp.eq.s32.totalorder %s15, 0
      %p84 = por %p82, %p83
      %p85 = scmp.ne.s32.totalorder %s74, %s77
      %p86 = scmp.eq.s32.totalorder %s20, 7
      %p87 = por %p85, %p86
      %p88 = scmp.ne.s32.totalorder %s77, %s78
      %p89 = scmp.eq.s32.totalorder %s20, 0
      %p90 = por %p88, %p89
      %p91 = scmp.ne.s32.totalorder %s77, %s78
      %p92 = scmp.eq.s32.totalorder %s21, 7
      %p93 = por %p91, %p92
      %p95 = scmp.ne.s32.totalorder %s78, %s94
      %p96 = scmp.eq.s32.totalorder %s21, 0
      %p97 = por %p95, %p96
      %s99 = sadd.s32 %s98, 1
      %p102 = scmp.eq.s32.totalorder %s15, 7
      %p103 = scmp.ne.s32.totalorder %s98, %s100
      %p104 = scmp.eq.s32.totalorder %s15, 0
      %p105 = por %p103, %p104
      %p106 = scmp.ne.s32.totalorder %s98, %s100
      %p107 = scmp.eq.s32.totalorder %s20, 7
      %p108 = por %p106, %p107
      %p109 = scmp.ne.s32.totalorder %s100, %s101
      %p110 = scmp.eq.s32.totalorder %s20, 0
      %p111 = por %p109, %p110
      %p112 = scmp.ne.s32.totalorder %s100, %s101
      %p113 = scmp.eq.s32.totalorder %s21, 7
      %p114 = por %p112, %p113
      %p116 = scmp.ne.s32.totalorder %s101, %s115
      %p117 = scmp.eq.s32.totalorder %s21, 0
      %p118 = por %p116, %p117
      %s120 = sadd.s32 %s119, 1
      %p123 = scmp.eq.s32.totalorder %s15, 7
      %p124 = scmp.ne.s32.totalorder %s119, %s121
      %p125 = scmp.eq.s32.totalorder %s15, 0
      %p126 = por %p124, %p125
      %p127 = scmp.ne.s32.totalorder %s119, %s121
      %p128 = scmp.eq.s32.totalorder %s20, 7
      %p129 = por %p127, %p128
      %p130 = scmp.ne.s32.totalorder %s121, %s122
      %p131 = scmp.eq.s32.totalorder %s20, 0
      %p132 = por %p130, %p131
      %p133 = scmp.ne.s32.totalorder %s121, %s122
      %p134 = scmp.eq.s32.totalorder %s21, 7
      %p135 = por %p133, %p134
      %p137 = scmp.ne.s32.totalorder %s122, %s136
      %p138 = scmp.eq.s32.totalorder %s21, 0
      %p139 = por %p137, %p138
      %s141 = sadd.s32 %s140, 1
      %p144 = scmp.eq.s32.totalorder %s15, 7
      %p145 = scmp.ne.s32.totalorder %s140, %s142
      %p146 = scmp.eq.s32.totalorder %s15, 0
      %p147 = por %p145, %p146
      %p148 = scmp.ne.s32.totalorder %s140, %s142
      %p149 = scmp.eq.s32.totalorder %s20, 7
      %p150 = por %p148, %p149
      %p151 = scmp.ne.s32.totalorder %s142, %s143
      %p152 = scmp.eq.s32.totalorder %s20, 0
      %p153 = por %p151, %p152
      %p154 = scmp.ne.s32.totalorder %s142, %s143
      %p155 = scmp.eq.s32.totalorder %s21, 7
      %p156 = por %p154, %p155
      %p158 = scmp.ne.s32.totalorder %s143, %s157
      %p159 = scmp.eq.s32.totalorder %s21, 0
      %p160 = por %p158, %p159
      %s161 = ssub.s32 %s22, %s41
      %s162 = ssub.s32 %s23, %s37
      %s163 = sor.u32 %s161, %s162
      %p164 = scmp.eq.s32.totalorder %s163, 0
      %s166 = sadd.s32 %s165, 1
      %s167 = scalar_select %p164, %s165, %s166
      %p170 = pneg %p164
      %p171 = scmp.eq.s32.totalorder %s15, 7
      %p172 = por %p170, %p171
      %p173 = scmp.ne.s32.totalorder %s165, %s168
      %p174 = scmp.eq.s32.totalorder %s15, 0
      %p175 = por %p173, %p174
      %p176 = scmp.ne.s32.totalorder %s165, %s168
      %p177 = scmp.eq.s32.totalorder %s20, 7
      %p178 = por %p176, %p177
      %p179 = scmp.ne.s32.totalorder %s168, %s169
      %p180 = scmp.eq.s32.totalorder %s20, 0
      %p181 = por %p179, %p180
      %p182 = scmp.ne.s32.totalorder %s168, %s169
      %p183 = scmp.eq.s32.totalorder %s21, 7
      %p184 = por %p182, %p183
      %p186 = scmp.ne.s32.totalorder %s169, %s185
      %p187 = scmp.eq.s32.totalorder %s21, 0
      %p188 = por %p186, %p187
      %s189 = ssub.s32 %s22, %s41
      %s190 = ssub.s32 %s23, %s37
      %s191 = sor.u32 %s189, %s190
      %p192 = scmp.eq.s32.totalorder %s191, 0
      %s194 = sadd.s32 %s193, 1
      %s195 = scalar_select %p192, %s193, %s194
      %p198 = pneg %p192
      %p199 = scmp.eq.s32.totalorder %s15, 7
      %p200 = por %p198, %p199
      %p201 = scmp.ne.s32.totalorder %s193, %s196
      %p202 = scmp.eq.s32.totalorder %s15, 0
      %p203 = por %p201, %p202
      %p204 = scmp.ne.s32.totalorder %s193, %s196
      %p205 = scmp.eq.s32.totalorder %s20, 7
      %p206 = por %p204, %p205
      %p207 = scmp.ne.s32.totalorder %s196, %s197
      %p208 = scmp.eq.s32.totalorder %s20, 0
      %p209 = por %p207, %p208
      %p210 = scmp.ne.s32.totalorder %s196, %s197
      %p211 = scmp.eq.s32.totalorder %s21, 7
      %p212 = por %p210, %p211
      %p214 = scmp.ne.s32.totalorder %s197, %s213
      %p215 = scmp.eq.s32.totalorder %s21, 0
      %p216 = por %p214, %p215
      %p217 = scmp.le.s32.totalorder 1, %s15
      %p218 = scmp.lt.s32.totalorder %s15, 9
      %p219 = pnand %p217, %p218
      %p220 = pneg %p219
      // Predicated region
      $region9: #{psa_head_forward.3} parent=5 // pred_check
        _
      $region10: #{psa_head_forward.3} parent=5 // pred_check_branch
        %222 = sbr.rel (%p219) target = $region12
      $region11: #{psa_head_forward.3} parent=5 // pred_region
        %s223 = ssub.s32 %s15, 1
        // Predicated region
        $region13: #{psa_head_forward.3} parent=11 // pred_check
          %p224 = pneg %p111
        $region14: #{psa_head_forward.3} parent=11 // pred_check_branch
          %226 = sbr.rel (%p224) target = $region16
        $region15: #{psa_head_forward.3} parent=11 // pred_region
          %s228 = ssub.s32 32, 32
          %229 = vsyncadd [#allocation6], %s228
          %s230 = sshll.u32 [#allocation5], 4
          %s231 = int_to_ptr.vmem [resolvable:$true] %s230
          %236 = dma.hbm_to_vmem [thread:$0]  %s2, 32, %s231, [#allocation6], 16, 16, 1
        $region16: #{psa_head_forward.3} parent=11 // pred_fallthru
          _
        // Predicated region
        $region17: #{psa_head_forward.3} parent=11 // pred_check
          %p237 = pneg %p132
        $region18: #{psa_head_forward.3} parent=11 // pred_check_branch
          %239 = sbr.rel (%p237) target = $region20
        $region19: #{psa_head_forward.3} parent=11 // pred_region
          _
        $region20: #{psa_head_forward.3} parent=11 // pred_fallthru
          _
        // Predicated region
        $region21: #{psa_head_forward.3} parent=11 // pred_check
          %p240 = pneg %p153
        $region22: #{psa_head_forward.3} parent=11 // pred_check_branch
          %242 = sbr.rel (%p240) target = $region24
        $region23: #{psa_head_forward.3} parent=11 // pred_region
          %s244 = ssub.s32 32, 32
          %245 = vsyncadd [#allocation8], %s244
          %s246 = sshll.u32 [#allocation7], 4
          %s247 = int_to_ptr.vmem [resolvable:$true] %s246
          %252 = dma.hbm_to_vmem [thread:$0]  %s4, 32, %s247, [#allocation8], 16, 16, 1
        $region24: #{psa_head_forward.3} parent=11 // pred_fallthru
          _
      $region12: #{psa_head_forward.3} parent=5 // pred_fallthru
        _
      %p253 = scmp.lt.s32.totalorder %s15, 8
      // Predicated region
      $region25: #{psa_head_forward.3} parent=5 // pred_check
        %p254 = pneg %p253
      $region26: #{psa_head_forward.3} parent=5 // pred_check_branch
        %256 = sbr.rel (%p254) target = $region28
      $region27: #{psa_head_forward.3} parent=5 // pred_region
        // Predicated region
        $region29: #{psa_head_forward.3} parent=27 // pred_check
          %p257 = pneg %p58
        $region30: #{psa_head_forward.3} parent=27 // pred_check_branch
          %259 = sbr.rel (%p257) target = $region32
        $region31: #{psa_head_forward.3} parent=27 // pred_region
          %s260 = sand.u32 %s48, 1
          %s261 = sand.u32 %s48, 1
          %s262 = smul.addr %s261, 16
          %s263 = scalar_lea.vmem [#allocation3], %s262
          %s264 = smul.u32 4, %s23
          %s265 = smul.addr %s264, 2
          %s266 = sadd.s32 %s24, %s265
          %s267 = smul.addr %s22, 16
          %s268 = sadd.s32 %s266, %s267
          %s269 = smul.addr %s268, 4
          %s270 = scalar_lea.vmem %s0, %s269
          // Predicated region
          $region33: #{psa_head_forward.3} parent=31 // pred_check
            _
          $region34: #{psa_head_forward.3} parent=31 // pred_check_branch
            %272 = sbr.rel (0) target = $region36
          $region35: #{psa_head_forward.3} parent=31 // pred_region
            // Predicated region
            $region37: #{psa_head_forward.3} parent=35 // pred_check
              _
            $region38: #{psa_head_forward.3} parent=35 // pred_check_branch
              %274 = sbr.rel target = $region40
            $region39: #{psa_head_forward.3} parent=35 // pred_region
              // Predicated region
              $region52: #{psa_head_forward.3} parent=39 // pred_check
                _
              $region53: #{psa_head_forward.3} parent=39 // pred_check_branch
                %295 = sbr.rel (0) target = $region55
              $region54: #{psa_head_forward.3} parent=39 // pred_region
                loop: start=0, step=1, limit=1
                $region56: #{psa_head_forward.3} parent=54 // loop_pre_header
                  _
                $region57: #{psa_head_forward.3} parent=54 // loop_header
                  %s297 = sphi 0, %s301
                  %p298 = scmp.ge.s32.totalorder %s297, 1
                  %s302 = sphi %s270, %s270
                  %s303 = sphi %s263, %s263
                $region58: #{psa_head_forward.3} parent=54 // loop_header_branch
                  %300 = sbr.rel (%p298) target = $region62
                $region59: #{psa_head_forward.3} parent=54 // loop_body
                  _
                $region60: #{psa_head_forward.3} parent=54 // loop_footer
                  %s301 = sadd.s32 1, %s297
                $region61: #{psa_head_forward.3} parent=54 // loop_footer_branch
                  %296 = sbr.rel target = $region57
                $region62: #{psa_head_forward.3} parent=54 // loop_exit
                  _
                loop: start=0, step=1, limit=1
                $region63: #{psa_head_forward.3} parent=54 // loop_pre_header
                  _
                $region64: #{psa_head_forward.3} parent=54 // loop_header
                  %s306 = sphi 0, %s310
                  %p307 = scmp.ge.s32.totalorder %s306, 1
                  %s311 = sphi %s270, %s270
                  %s312 = sphi %s263, %s263
                $region65: #{psa_head_forward.3} parent=54 // loop_header_branch
                  %309 = sbr.rel (%p307) target = $region69
                $region66: #{psa_head_forward.3} parent=54 // loop_body
                  %v313 = vld [vmem:[%s311] sm:$0xf]
                  %314 = vst [vmem:[%s312] sm:$0xf] %v313
                  %v315 = vld [vmem:[%s311 + $0x8] sm:$0xf]
                  %316 = vst [vmem:[%s312 + $0x4] sm:$0xf] %v315
                  %v317 = vld [vmem:[%s311 + $0x10] sm:$0xf]
                  %318 = vst [vmem:[%s312 + $0x8] sm:$0xf] %v317
                  %v319 = vld [vmem:[%s311 + $0x18] sm:$0xf]
                  %320 = vst [vmem:[%s312 + $0xc] sm:$0xf] %v319
                $region67: #{psa_head_forward.3} parent=54 // loop_footer
                  %s310 = sadd.s32 1, %s306
                $region68: #{psa_head_forward.3} parent=54 // loop_footer_branch
                  %305 = sbr.rel target = $region64
                $region69: #{psa_head_forward.3} parent=54 // loop_exit
                  _
              $region55: #{psa_head_forward.3} parent=39 // pred_fallthru
                _
            $region40: #{psa_head_forward.3} parent=35 // pred_fallthru
              _
            // Predicated region
            $region41: #{psa_head_forward.3} parent=35 // pred_check
              _
            $region42: #{psa_head_forward.3} parent=35 // pred_check_branch
              %276 = sbr.rel (0) target = $region44
            $region43: #{psa_head_forward.3} parent=35 // pred_region
              loop: start=0, step=1, limit=1
              $region45: #{psa_head_forward.3} parent=43 // loop_pre_header
                _
              $region46: #{psa_head_forward.3} parent=43 // loop_header
                %s279 = sphi 0, %s283
                %p280 = scmp.ge.s32.totalorder %s279, 1
                %s284 = sphi %s270, %s270
                %s285 = sphi %s263, %s263
              $region47: #{psa_head_forward.3} parent=43 // loop_header_branch
                %282 = sbr.rel (%p280) target = $region51
              $region48: #{psa_head_forward.3} parent=43 // loop_body
                %v286 = vld [vmem:[%s284] sm:$0xf]
                %287 = vst [vmem:[%s285] sm:$0xf] %v286
                %v288 = vld [vmem:[%s284 + $0x8] sm:$0xf]
                %289 = vst [vmem:[%s285 + $0x4] sm:$0xf] %v288
                %v290 = vld [vmem:[%s284 + $0x10] sm:$0xf]
                %291 = vst [vmem:[%s285 + $0x8] sm:$0xf] %v290
                %v292 = vld [vmem:[%s284 + $0x18] sm:$0xf]
                %293 = vst [vmem:[%s285 + $0xc] sm:$0xf] %v292
              $region49: #{psa_head_forward.3} parent=43 // loop_footer
                %s283 = sadd.s32 1, %s279
              $region50: #{psa_head_forward.3} parent=43 // loop_footer_branch
                %278 = sbr.rel target = $region46
              $region51: #{psa_head_forward.3} parent=43 // loop_exit
                _
            $region44: #{psa_head_forward.3} parent=35 // pred_fallthru
              _
          $region36: #{psa_head_forward.3} parent=31 // pred_fallthru
            _
          %321 = vnop
        $region32: #{psa_head_forward.3} parent=27 // pred_fallthru
          _
        // Predicated region
        $region70: #{psa_head_forward.3} parent=27 // pred_check
          %p322 = pneg %p84
        $region71: #{psa_head_forward.3} parent=27 // pred_check_branch
          %324 = sbr.rel (%p322) target = $region73
        $region72: #{psa_head_forward.3} parent=27 // pred_region
          %s325 = sand.u32 %s74, 1
          %s326 = sand.u32 %s74, 1
          %s327 = smul.addr %s326, 128
          %s328 = scalar_lea.vmem [#allocation4], %s327
          %s329 = smul.u32 16, %s24
          %s330 = smul.addr %s329, 4
          %s331 = scalar_lea.vmem %s1, %s330
          // Predicated region
          $region74: #{psa_head_forward.3} parent=72 // pred_check
            _
          $region75: #{psa_head_forward.3} parent=72 // pred_check_branch
            %333 = sbr.rel (0) target = $region77
          $region76: #{psa_head_forward.3} parent=72 // pred_region
            // Predicated region
            $region78: #{psa_head_forward.3} parent=76 // pred_check
              _
            $region79: #{psa_head_forward.3} parent=76 // pred_check_branch
              %335 = sbr.rel target = $region81
            $region80: #{psa_head_forward.3} parent=76 // pred_region
              // Predicated region
              $region93: #{psa_head_forward.3} parent=80 // pred_check
                _
              $region94: #{psa_head_forward.3} parent=80 // pred_check_branch
                %412 = sbr.rel (0) target = $region96
              $region95: #{psa_head_forward.3} parent=80 // pred_region
                loop: start=0, step=1, limit=1
                $region97: #{psa_head_forward.3} parent=95 // loop_pre_header
                  _
                $region98: #{psa_head_forward.3} parent=95 // loop_header
                  %s414 = sphi 0, %s418
                  %p415 = scmp.ge.s32.totalorder %s414, 1
                  %s419 = sphi %s331, %s331
                  %s420 = sphi %s328, %s328
                $region99: #{psa_head_forward.3} parent=95 // loop_header_branch
                  %417 = sbr.rel (%p415) target = $region103
                $region100: #{psa_head_forward.3} parent=95 // loop_body
                  _
                $region101: #{psa_head_forward.3} parent=95 // loop_footer
                  %s418 = sadd.s32 1, %s414
                $region102: #{psa_head_forward.3} parent=95 // loop_footer_branch
                  %413 = sbr.rel target = $region98
                $region103: #{psa_head_forward.3} parent=95 // loop_exit
                  _
                loop: start=0, step=1, limit=1
                $region104: #{psa_head_forward.3} parent=95 // loop_pre_header
                  _
                $region105: #{psa_head_forward.3} parent=95 // loop_header
                  %s423 = sphi 0, %s427
                  %p424 = scmp.ge.s32.totalorder %s423, 1
                  %s428 = sphi %s331, %s331
                  %s429 = sphi %s328, %s328
                $region106: #{psa_head_forward.3} parent=95 // loop_header_branch
                  %426 = sbr.rel (%p424) target = $region110
                $region107: #{psa_head_forward.3} parent=95 // loop_body
                  %v430 = vld [vmem:[%s428] sm:$0xf]
                  %431 = vst [vmem:[%s429] sm:$0xf] %v430
                  %v432 = vld [vmem:[%s428 + $0x4] sm:$0xf]
                  %433 = vst [vmem:[%s429 + $0x4] sm:$0xf] %v432
                  %v434 = vld [vmem:[%s428 + $0x8] sm:$0xf]
                  %435 = vst [vmem:[%s429 + $0x8] sm:$0xf] %v434
                  %v436 = vld [vmem:[%s428 + $0xc] sm:$0xf]
                  %437 = vst [vmem:[%s429 + $0xc] sm:$0xf] %v436
                  %v438 = vld [vmem:[%s428 + $0x10] sm:$0xf]
                  %439 = vst [vmem:[%s429 + $0x10] sm:$0xf] %v438
                  %v440 = vld [vmem:[%s428 + $0x14] sm:$0xf]
                  %441 = vst [vmem:[%s429 + $0x14] sm:$0xf] %v440
                  %v442 = vld [vmem:[%s428 + $0x18] sm:$0xf]
                  %443 = vst [vmem:[%s429 + $0x18] sm:$0xf] %v442
                  %v444 = vld [vmem:[%s428 + $0x1c] sm:$0xf]
                  %445 = vst [vmem:[%s429 + $0x1c] sm:$0xf] %v444
                  %v446 = vld [vmem:[%s428 + $0x20] sm:$0xf]
                  %447 = vst [vmem:[%s429 + $0x20] sm:$0xf] %v446
                  %v448 = vld [vmem:[%s428 + $0x24] sm:$0xf]
                  %449 = vst [vmem:[%s429 + $0x24] sm:$0xf] %v448
                  %v450 = vld [vmem:[%s428 + $0x28] sm:$0xf]
                  %451 = vst [vmem:[%s429 + $0x28] sm:$0xf] %v450
                  %v452 = vld [vmem:[%s428 + $0x2c] sm:$0xf]
                  %453 = vst [vmem:[%s429 + $0x2c] sm:$0xf] %v452
                  %v454 = vld [vmem:[%s428 + $0x30] sm:$0xf]
                  %455 = vst [vmem:[%s429 + $0x30] sm:$0xf] %v454
                  %v456 = vld [vmem:[%s428 + $0x34] sm:$0xf]
                  %457 = vst [vmem:[%s429 + $0x34] sm:$0xf] %v456
                  %v458 = vld [vmem:[%s428 + $0x38] sm:$0xf]
                  %459 = vst [vmem:[%s429 + $0x38] sm:$0xf] %v458
                  %v460 = vld [vmem:[%s428 + $0x3c] sm:$0xf]
                  %461 = vst [vmem:[%s429 + $0x3c] sm:$0xf] %v460
                  %v462 = vld [vmem:[%s428 + $0x80] sm:$0xf]
                  %463 = vst [vmem:[%s429 + $0x40] sm:$0xf] %v462
                  %v464 = vld [vmem:[%s428 + $0x84] sm:$0xf]
                  %465 = vst [vmem:[%s429 + $0x44] sm:$0xf] %v464
                  %v466 = vld [vmem:[%s428 + $0x88] sm:$0xf]
                  %467 = vst [vmem:[%s429 + $0x48] sm:$0xf] %v466
                  %v468 = vld [vmem:[%s428 + $0x8c] sm:$0xf]
                  %469 = vst [vmem:[%s429 + $0x4c] sm:$0xf] %v468
                  %v470 = vld [vmem:[%s428 + $0x90] sm:$0xf]
                  %471 = vst [vmem:[%s429 + $0x50] sm:$0xf] %v470
                  %v472 = vld [vmem:[%s428 + $0x94] sm:$0xf]
                  %473 = vst [vmem:[%s429 + $0x54] sm:$0xf] %v472
                  %v474 = vld [vmem:[%s428 + $0x98] sm:$0xf]
                  %475 = vst [vmem:[%s429 + $0x58] sm:$0xf] %v474
                  %v476 = vld [vmem:[%s428 + $0x9c] sm:$0xf]
                  %477 = vst [vmem:[%s429 + $0x5c] sm:$0xf] %v476
                  %v478 = vld [vmem:[%s428 + $0xa0] sm:$0xf]
                  %479 = vst [vmem:[%s429 + $0x60] sm:$0xf] %v478
                  %v480 = vld [vmem:[%s428 + $0xa4] sm:$0xf]
                  %481 = vst [vmem:[%s429 + $0x64] sm:$0xf] %v480
                  %v482 = vld [vmem:[%s428 + $0xa8] sm:$0xf]
                  %483 = vst [vmem:[%s429 + $0x68] sm:$0xf] %v482
                  %v484 = vld [vmem:[%s428 + $0xac] sm:$0xf]
                  %485 = vst [vmem:[%s429 + $0x6c] sm:$0xf] %v484
                  %v486 = vld [vmem:[%s428 + $0xb0] sm:$0xf]
                  %487 = vst [vmem:[%s429 + $0x70] sm:$0xf] %v486
                  %v488 = vld [vmem:[%s428 + $0xb4] sm:$0xf]
                  %489 = vst [vmem:[%s429 + $0x74] sm:$0xf] %v488
                  %v490 = vld [vmem:[%s428 + $0xb8] sm:$0xf]
                  %491 = vst [vmem:[%s429 + $0x78] sm:$0xf] %v490
                  %v492 = vld [vmem:[%s428 + $0xbc] sm:$0xf]
                  %493 = vst [vmem:[%s429 + $0x7c] sm:$0xf] %v492
                $region108: #{psa_head_forward.3} parent=95 // loop_footer
                  %s427 = sadd.s32 1, %s423
                $region109: #{psa_head_forward.3} parent=95 // loop_footer_branch
                  %422 = sbr.rel target = $region105
                $region110: #{psa_head_forward.3} parent=95 // loop_exit
                  _
              $region96: #{psa_head_forward.3} parent=80 // pred_fallthru
                _
            $region81: #{psa_head_forward.3} parent=76 // pred_fallthru
              _
            // Predicated region
            $region82: #{psa_head_forward.3} parent=76 // pred_check
              _
            $region83: #{psa_head_forward.3} parent=76 // pred_check_branch
              %337 = sbr.rel (0) target = $region85
            $region84: #{psa_head_forward.3} parent=76 // pred_region
              loop: start=0, step=1, limit=1
              $region86: #{psa_head_forward.3} parent=84 // loop_pre_header
                _
              $region87: #{psa_head_forward.3} parent=84 // loop_header
                %s340 = sphi 0, %s344
                %p341 = scmp.ge.s32.totalorder %s340, 1
                %s345 = sphi %s331, %s331
                %s346 = sphi %s328, %s328
              $region88: #{psa_head_forward.3} parent=84 // loop_header_branch
                %343 = sbr.rel (%p341) target = $region92
              $region89: #{psa_head_forward.3} parent=84 // loop_body
                %v347 = vld [vmem:[%s345] sm:$0xf]
                %348 = vst [vmem:[%s346] sm:$0xf] %v347
                %v349 = vld [vmem:[%s345 + $0x4] sm:$0xf]
                %350 = vst [vmem:[%s346 + $0x4] sm:$0xf] %v349
                %v351 = vld [vmem:[%s345 + $0x8] sm:$0xf]
                %352 = vst [vmem:[%s346 + $0x8] sm:$0xf] %v351
                %v353 = vld [vmem:[%s345 + $0xc] sm:$0xf]
                %354 = vst [vmem:[%s346 + $0xc] sm:$0xf] %v353
                %v355 = vld [vmem:[%s345 + $0x10] sm:$0xf]
                %356 = vst [vmem:[%s346 + $0x10] sm:$0xf] %v355
                %v357 = vld [vmem:[%s345 + $0x14] sm:$0xf]
                %358 = vst [vmem:[%s346 + $0x14] sm:$0xf] %v357
                %v359 = vld [vmem:[%s345 + $0x18] sm:$0xf]
                %360 = vst [vmem:[%s346 + $0x18] sm:$0xf] %v359
                %v361 = vld [vmem:[%s345 + $0x1c] sm:$0xf]
                %362 = vst [vmem:[%s346 + $0x1c] sm:$0xf] %v361
                %v363 = vld [vmem:[%s345 + $0x20] sm:$0xf]
                %364 = vst [vmem:[%s346 + $0x20] sm:$0xf] %v363
                %v365 = vld [vmem:[%s345 + $0x24] sm:$0xf]
                %366 = vst [vmem:[%s346 + $0x24] sm:$0xf] %v365
                %v367 = vld [vmem:[%s345 + $0x28] sm:$0xf]
                %368 = vst [vmem:[%s346 + $0x28] sm:$0xf] %v367
                %v369 = vld [vmem:[%s345 + $0x2c] sm:$0xf]
                %370 = vst [vmem:[%s346 + $0x2c] sm:$0xf] %v369
                %v371 = vld [vmem:[%s345 + $0x30] sm:$0xf]
                %372 = vst [vmem:[%s346 + $0x30] sm:$0xf] %v371
                %v373 = vld [vmem:[%s345 + $0x34] sm:$0xf]
                %374 = vst [vmem:[%s346 + $0x34] sm:$0xf] %v373
                %v375 = vld [vmem:[%s345 + $0x38] sm:$0xf]
                %376 = vst [vmem:[%s346 + $0x38] sm:$0xf] %v375
                %v377 = vld [vmem:[%s345 + $0x3c] sm:$0xf]
                %378 = vst [vmem:[%s346 + $0x3c] sm:$0xf] %v377
                %v379 = vld [vmem:[%s345 + $0x80] sm:$0xf]
                %380 = vst [vmem:[%s346 + $0x40] sm:$0xf] %v379
                %v381 = vld [vmem:[%s345 + $0x84] sm:$0xf]
                %382 = vst [vmem:[%s346 + $0x44] sm:$0xf] %v381
                %v383 = vld [vmem:[%s345 + $0x88] sm:$0xf]
                %384 = vst [vmem:[%s346 + $0x48] sm:$0xf] %v383
                %v385 = vld [vmem:[%s345 + $0x8c] sm:$0xf]
                %386 = vst [vmem:[%s346 + $0x4c] sm:$0xf] %v385
                %v387 = vld [vmem:[%s345 + $0x90] sm:$0xf]
                %388 = vst [vmem:[%s346 + $0x50] sm:$0xf] %v387
                %v389 = vld [vmem:[%s345 + $0x94] sm:$0xf]
                %390 = vst [vmem:[%s346 + $0x54] sm:$0xf] %v389
                %v391 = vld [vmem:[%s345 + $0x98] sm:$0xf]
                %392 = vst [vmem:[%s346 + $0x58] sm:$0xf] %v391
                %v393 = vld [vmem:[%s345 + $0x9c] sm:$0xf]
                %394 = vst [vmem:[%s346 + $0x5c] sm:$0xf] %v393
                %v395 = vld [vmem:[%s345 + $0xa0] sm:$0xf]
                %396 = vst [vmem:[%s346 + $0x60] sm:$0xf] %v395
                %v397 = vld [vmem:[%s345 + $0xa4] sm:$0xf]
                %398 = vst [vmem:[%s346 + $0x64] sm:$0xf] %v397
                %v399 = vld [vmem:[%s345 + $0xa8] sm:$0xf]
                %400 = vst [vmem:[%s346 + $0x68] sm:$0xf] %v399
                %v401 = vld [vmem:[%s345 + $0xac] sm:$0xf]
                %402 = vst [vmem:[%s346 + $0x6c] sm:$0xf] %v401
                %v403 = vld [vmem:[%s345 + $0xb0] sm:$0xf]
                %404 = vst [vmem:[%s346 + $0x70] sm:$0xf] %v403
                %v405 = vld [vmem:[%s345 + $0xb4] sm:$0xf]
                %406 = vst [vmem:[%s346 + $0x74] sm:$0xf] %v405
                %v407 = vld [vmem:[%s345 + $0xb8] sm:$0xf]
                %408 = vst [vmem:[%s346 + $0x78] sm:$0xf] %v407
                %v409 = vld [vmem:[%s345 + $0xbc] sm:$0xf]
                %410 = vst [vmem:[%s346 + $0x7c] sm:$0xf] %v409
              $region90: #{psa_head_forward.3} parent=84 // loop_footer
                %s344 = sadd.s32 1, %s340
              $region91: #{psa_head_forward.3} parent=84 // loop_footer_branch
                %339 = sbr.rel target = $region87
              $region92: #{psa_head_forward.3} parent=84 // loop_exit
                _
            $region85: #{psa_head_forward.3} parent=76 // pred_fallthru
              _
          $region77: #{psa_head_forward.3} parent=72 // pred_fallthru
            _
          %494 = vnop
        $region73: #{psa_head_forward.3} parent=27 // pred_fallthru
          _
      $region28: #{psa_head_forward.3} parent=5 // pred_fallthru
        _
      %p495 = scmp.le.s32.totalorder 1, %s15
      %p496 = scmp.lt.s32.totalorder %s15, 9
      %p497 = pnand %p495, %p496
      %p498 = pneg %p497
      // Predicated region
      $region111: #{psa_head_forward.3} parent=5 // pred_check
        _
      $region112: #{psa_head_forward.3} parent=5 // pred_check_branch
        %500 = sbr.rel (%p497) target = $region114
      $region113: #{psa_head_forward.3} parent=5 // pred_region
        %s501 = ssub.s32 %s15, 1
        %s502 = sand.u32 %s51, 1
        %s503 = sand.u32 %s51, 1
        %s504 = smul.addr %s503, 16
        %s505 = scalar_lea.vmem [#allocation3], %s504
        // Predicated region
        $region115: #{psa_head_forward.3} parent=113 // pred_check
          %p506 = pneg %p64
        $region116: #{psa_head_forward.3} parent=113 // pred_check_branch
          %508 = sbr.rel (%p506) target = $region118
        $region117: #{psa_head_forward.3} parent=113 // pred_region
          _
        $region118: #{psa_head_forward.3} parent=113 // pred_fallthru
          _
        %s509 = sand.u32 %s77, 1
        %s510 = sand.u32 %s77, 1
        %s511 = smul.addr %s510, 128
        %s512 = scalar_lea.vmem [#allocation4], %s511
        // Predicated region
        $region119: #{psa_head_forward.3} parent=113 // pred_check
          %p513 = pneg %p90
        $region120: #{psa_head_forward.3} parent=113 // pred_check_branch
          %515 = sbr.rel (%p513) target = $region122
        $region121: #{psa_head_forward.3} parent=113 // pred_region
          _
        $region122: #{psa_head_forward.3} parent=113 // pred_fallthru
          _
        // Predicated region
        $region123: #{psa_head_forward.3} parent=113 // pred_check
          %p516 = pneg %p111
        $region124: #{psa_head_forward.3} parent=113 // pred_check_branch
          %518 = sbr.rel (%p516) target = $region126
        $region125: #{psa_head_forward.3} parent=113 // pred_region
          %519 = dma.done [#allocation6], 32
        $region126: #{psa_head_forward.3} parent=113 // pred_fallthru
          _
        // Predicated region
        $region127: #{psa_head_forward.3} parent=113 // pred_check
          %p520 = pneg %p153
        $region128: #{psa_head_forward.3} parent=113 // pred_check_branch
          %522 = sbr.rel (%p520) target = $region130
        $region129: #{psa_head_forward.3} parent=113 // pred_region
          %523 = dma.done [#allocation8], 32
        $region130: #{psa_head_forward.3} parent=113 // pred_fallthru
          _
        %s524 = sand.u32 %s51, 1
        %s525 = sand.u32 %s51, 1
        %s526 = smul.addr %s525, 16
        %s527 = scalar_lea.vmem [#allocation3], %s526
        %p528 = pneg %p64
        %p529 = pneg %p61
        %s530 = sand.u32 %s77, 1
        %s531 = sand.u32 %s77, 1
        %s532 = smul.addr %s531, 128
        %s533 = scalar_lea.vmem [#allocation4], %s532
        %p534 = pneg %p90
        %p535 = pneg %p87
        %p536 = pneg %p111
        %p537 = pneg %p108
        %p538 = pneg %p132
        %p539 = pneg %p129
        %p540 = pneg %p153
        %p541 = pneg %p150
        %p542 = pneg %p181
        %p543 = pneg %p178
        %s544 = sand.u32 %s168, 1
        %s545 = sand.u32 %s168, 1
        %s546 = smul.addr %s545, 32
        %s547 = scalar_lea.vmem [#allocation9], %s546
        %p548 = pneg %p209
        %p549 = pneg %p206
        %s550 = sand.u32 %s196, 1
        %s551 = sand.u32 %s196, 1
        %s552 = smul.addr %s551, 32
        %s553 = scalar_lea.vmem [#allocation10], %s552
        %s554 = smul.u32 4, %s26
        %s555 = smul.u32 16, %s27
        %s556 = smul.u32 4, %s26
        %s557 = smul.u32 4, %s26
        %p559 = scmp.eq.s32.totalorder %s27, 0
        // Predicated region
        $region131: #{psa_head_forward.3} parent=113 // pred_check
          %p560 = pneg %p559
        $region132: #{psa_head_forward.3} parent=113 // pred_check_branch
          %562 = sbr.rel (%p560) target = $region134
        $region133: #{psa_head_forward.3} parent=113 // pred_region
          %563 = vst [vmem:[#allocation2] sm:$0xff] 0.0
          %564 = vst [vmem:[#allocation2 + $0x8] sm:$0xff] 0.0
          %565 = vst [vmem:[#allocation2 + $0x10] sm:$0xff] 0.0
          %566 = vst [vmem:[#allocation2 + $0x18] sm:$0xff] 0.0
          %567 = vst [vmem:[#allocation2 + $0x20] sm:$0xff] 0.0
          %568 = vst [vmem:[#allocation2 + $0x28] sm:$0xff] 0.0
          %569 = vst [vmem:[#allocation2 + $0x30] sm:$0xff] 0.0
          %570 = vst [vmem:[#allocation2 + $0x38] sm:$0xff] 0.0
        $region134: #{psa_head_forward.3} parent=113 // pred_fallthru
          _
        %v571 = vld [vmem:[%s505] sm:$0xf]
        %v572 = vld [vmem:[%s505 + $0x4] sm:$0xf]
        %v573 = vld [vmem:[%s505 + $0x8] sm:$0xf]
        %v574 = vld [vmem:[%s505 + $0xc] sm:$0xf]
        %v575 = vld [vmem:[#allocation2] sm:$0xff]
        %v576 = vld [vmem:[#allocation2 + $0x8] sm:$0xff]
        %v577 = vld [vmem:[#allocation2 + $0x10] sm:$0xff]
        %v578 = vld [vmem:[#allocation2 + $0x18] sm:$0xff]
        %v579 = vld [vmem:[%s512] sm:$0xf]
        %v580 = vld [vmem:[%s512 + $0x4] sm:$0xf]
        %v581 = vld [vmem:[%s512 + $0x8] sm:$0xf]
        %v582 = vld [vmem:[%s512 + $0xc] sm:$0xf]
        %v583 = vld [vmem:[%s512 + $0x10] sm:$0xf]
        %v584 = vld [vmem:[%s512 + $0x14] sm:$0xf]
        %v585 = vld [vmem:[%s512 + $0x18] sm:$0xf]
        %v586 = vld [vmem:[%s512 + $0x1c] sm:$0xf]
        %v587 = vld [vmem:[%s512 + $0x20] sm:$0xf]
        %v588 = vld [vmem:[%s512 + $0x24] sm:$0xf]
        %v589 = vld [vmem:[%s512 + $0x28] sm:$0xf]
        %v590 = vld [vmem:[%s512 + $0x2c] sm:$0xf]
        %v591 = vld [vmem:[%s512 + $0x30] sm:$0xf]
        %v592 = vld [vmem:[%s512 + $0x34] sm:$0xf]
        %v593 = vld [vmem:[%s512 + $0x38] sm:$0xf]
        %v594 = vld [vmem:[%s512 + $0x3c] sm:$0xf]
        %v599 = vunpack.c.l.b16 %v571
        %v600 = vunpack.c.l.b16 %v572
        %v601 = vunpack.c.l.b16 %v573
        %v602 = vunpack.c.l.b16 %v574
        %v603 = vpack.c.b16 %v600, %v599
        %v604 = vpack.c.b16 %v602, %v601
        %v623 = vunpack.c.l.b16 %v579
        %v624 = vunpack.c.l.b16 %v580
        %v625 = vunpack.c.l.b16 %v581
        %v626 = vunpack.c.l.b16 %v582
        %v627 = vunpack.c.l.b16 %v583
        %v628 = vunpack.c.l.b16 %v584
        %v629 = vunpack.c.l.b16 %v585
        %v630 = vunpack.c.l.b16 %v586
        %v631 = vunpack.c.l.b16 %v587
        %v632 = vunpack.c.l.b16 %v588
        %v633 = vunpack.c.l.b16 %v589
        %v634 = vunpack.c.l.b16 %v590
        %v635 = vunpack.c.l.b16 %v591
        %v636 = vunpack.c.l.b16 %v592
        %v637 = vunpack.c.l.b16 %v593
        %v638 = vunpack.c.l.b16 %v594
        %v639 = vpack.c.b16 %v624, %v623
        %v640 = vpack.c.b16 %v626, %v625
        %v641 = vpack.c.b16 %v628, %v627
        %v642 = vpack.c.b16 %v630, %v629
        %v643 = vpack.c.b16 %v632, %v631
        %v644 = vpack.c.b16 %v634, %v633
        %v645 = vpack.c.b16 %v636, %v635
        %v646 = vpack.c.b16 %v638, %v637
        %655 = vmatprep.subr.bf16.mxu0 0
        %656 = vmatpush1.bf16.msra.mxu0 %v639
        %657 = vmatprep.subr.bf16.mxu0 0
        %658 = vmatpush1.bf16.msra.mxu0 %v640
        %659 = vmatprep.subr.bf16.mxu0 0
        %660 = vmatpush1.bf16.msra.mxu0 %v641
        %661 = vmatprep.subr.bf16.mxu0 0
        %662 = vmatpush1.bf16.msra.mxu0 %v642
        %663 = vmatprep.subr.bf16.mxu0 0
        %664 = vmatpush1.bf16.msra.mxu0 %v643
        %665 = vmatprep.subr.bf16.mxu0 0
        %666 = vmatpush1.bf16.msra.mxu0 %v644
        %667 = vmatprep.subr.bf16.mxu0 0
        %668 = vmatpush1.bf16.msra.mxu0 %v645
        %669 = vmatprep.subr.bf16.mxu0 0
        %670 = vmatpush1.bf16.msra.mxu0 %v646
        %671 = vmatprep.subr.bf16.mxu0 0
        %672 = vmatpush1.bf16.msra.mxu0 0
        %673 = vmatprep.subr.bf16.mxu0 0
        %674 = vmatpush1.bf16.msra.mxu0 0
        %675 = vmatprep.subr.bf16.mxu0 0
        %676 = vmatpush1.bf16.msra.mxu0 0
        %677 = vmatprep.subr.bf16.mxu0 0
        %678 = vmatpush1.bf16.msra.mxu0 0
        %679 = vmatprep.subr.bf16.mxu0 0
        %680 = vmatpush1.bf16.msra.mxu0 0
        %681 = vmatprep.subr.bf16.mxu0 0
        %682 = vmatpush1.bf16.msra.mxu0 0
        %683 = vmatprep.subr.bf16.mxu0 0
        %684 = vmatpush1.bf16.msra.mxu0 0
        %685 = vmatprep.subr.bf16.mxu0 0
        %686 = vmatpush1.bf16.msra.mxu0 0
        %687 = vmatprep.mubr.bf16.mxu0 0
        %688 = vmatmul.mubr.bf16.gmra.mrb[0].mxu0 %v603
        %v689 = vpop.f32.mrb[0].mxu0
        %v690 = vadd.f32 0.0, %v689
        %v691 = vpop.f32.mrb[0].mxu0
        %v692 = vpop.f32.mrb[0].mxu0
        %v693 = vadd.f32 0.0, %v692
        %v694 = vpop.f32.mrb[0].mxu0
        %695 = vmatprep.mubr.bf16.mxu0 0
        %696 = vmatmul.mubr.bf16.gmra.mrb[0].mxu0 %v604
        %v697 = vpop.f32.mrb[0].mxu0
        %v698 = vadd.f32 0.0, %v697
        %v699 = vpop.f32.mrb[0].mxu0
        %v700 = vpop.f32.mrb[0].mxu0
        %v701 = vadd.f32 0.0, %v700
        %v702 = vpop.f32.mrb[0].mxu0
        %703 = vdwg.mxu0
        %v704 = vadd.f32 %v575, %v690
        %v705 = vadd.f32 %v576, %v693
        %v706 = vadd.f32 %v577, %v698
        %v707 = vadd.f32 %v578, %v701
        %708 = vst [vmem:[#allocation2] sm:$0xff] %v704
        %709 = vst [vmem:[#allocation2 + $0x8] sm:$0xff] %v705
        %710 = vst [vmem:[#allocation2 + $0x10] sm:$0xff] %v706
        %711 = vst [vmem:[#allocation2 + $0x18] sm:$0xff] %v707
        %s712 = scalar_lea.vmem [#allocation2], 32
        %v713 = vld [vmem:[%s712] sm:$0xff]
        %v714 = vld [vmem:[%s712 + $0x8] sm:$0xff]
        %v715 = vld [vmem:[%s712 + $0x10] sm:$0xff]
        %v716 = vld [vmem:[%s712 + $0x18] sm:$0xff]
        %s717 = scalar_lea.vmem %s512, 64 [#allocation4]
        %v718 = vld [vmem:[%s717] sm:$0xf]
        %v719 = vld [vmem:[%s717 + $0x4] sm:$0xf]
        %v720 = vld [vmem:[%s717 + $0x8] sm:$0xf]
        %v721 = vld [vmem:[%s717 + $0xc] sm:$0xf]
        %v722 = vld [vmem:[%s717 + $0x10] sm:$0xf]
        %v723 = vld [vmem:[%s717 + $0x14] sm:$0xf]
        %v724 = vld [vmem:[%s717 + $0x18] sm:$0xf]
        %v725 = vld [vmem:[%s717 + $0x1c] sm:$0xf]
        %v726 = vld [vmem:[%s717 + $0x20] sm:$0xf]
        %v727 = vld [vmem:[%s717 + $0x24] sm:$0xf]
        %v728 = vld [vmem:[%s717 + $0x28] sm:$0xf]
        %v729 = vld [vmem:[%s717 + $0x2c] sm:$0xf]
        %v730 = vld [vmem:[%s717 + $0x30] sm:$0xf]
        %v731 = vld [vmem:[%s717 + $0x34] sm:$0xf]
        %v732 = vld [vmem:[%s717 + $0x38] sm:$0xf]
        %v733 = vld [vmem:[%s717 + $0x3c] sm:$0xf]
        %v750 = vunpack.c.l.b16 %v718
        %v751 = vunpack.c.l.b16 %v719
        %v752 = vunpack.c.l.b16 %v720
        %v753 = vunpack.c.l.b16 %v721
        %v754 = vunpack.c.l.b16 %v722
        %v755 = vunpack.c.l.b16 %v723
        %v756 = vunpack.c.l.b16 %v724
        %v757 = vunpack.c.l.b16 %v725
        %v758 = vunpack.c.l.b16 %v726
        %v759 = vunpack.c.l.b16 %v727
        %v760 = vunpack.c.l.b16 %v728
        %v761 = vunpack.c.l.b16 %v729
        %v762 = vunpack.c.l.b16 %v730
        %v763 = vunpack.c.l.b16 %v731
        %v764 = vunpack.c.l.b16 %v732
        %v765 = vunpack.c.l.b16 %v733
        %v766 = vpack.c.b16 %v751, %v750
        %v767 = vpack.c.b16 %v753, %v752
        %v768 = vpack.c.b16 %v755, %v754
        %v769 = vpack.c.b16 %v757, %v756
        %v770 = vpack.c.b16 %v759, %v758
        %v771 = vpack.c.b16 %v761, %v760
        %v772 = vpack.c.b16 %v763, %v762
        %v773 = vpack.c.b16 %v765, %v764
        %782 = vmatprep.subr.bf16.mxu0 0
        %783 = vmatpush1.bf16.msra.mxu0 %v766
        %784 = vmatprep.subr.bf16.mxu0 0
        %785 = vmatpush1.bf16.msra.mxu0 %v767
        %786 = vmatprep.subr.bf16.mxu0 0
        %787 = vmatpush1.bf16.msra.mxu0 %v768
        %788 = vmatprep.subr.bf16.mxu0 0
        %789 = vmatpush1.bf16.msra.mxu0 %v769
        %790 = vmatprep.subr.bf16.mxu0 0
        %791 = vmatpush1.bf16.msra.mxu0 %v770
        %792 = vmatprep.subr.bf16.mxu0 0
        %793 = vmatpush1.bf16.msra.mxu0 %v771
        %794 = vmatprep.subr.bf16.mxu0 0
        %795 = vmatpush1.bf16.msra.mxu0 %v772
        %796 = vmatprep.subr.bf16.mxu0 0
        %797 = vmatpush1.bf16.msra.mxu0 %v773
        %798 = vmatprep.subr.bf16.mxu0 0
        %799 = vmatpush1.bf16.msra.mxu0 0
        %800 = vmatprep.subr.bf16.mxu0 0
        %801 = vmatpush1.bf16.msra.mxu0 0
        %802 = vmatprep.subr.bf16.mxu0 0
        %803 = vmatpush1.bf16.msra.mxu0 0
        %804 = vmatprep.subr.bf16.mxu0 0
        %805 = vmatpush1.bf16.msra.mxu0 0
        %806 = vmatprep.subr.bf16.mxu0 0
        %807 = vmatpush1.bf16.msra.mxu0 0
        %808 = vmatprep.subr.bf16.mxu0 0
        %809 = vmatpush1.bf16.msra.mxu0 0
        %810 = vmatprep.subr.bf16.mxu0 0
        %811 = vmatpush1.bf16.msra.mxu0 0
        %812 = vmatprep.subr.bf16.mxu0 0
        %813 = vmatpush1.bf16.msra.mxu0 0
        %814 = vmatprep.mubr.bf16.mxu0 0
        %815 = vmatmul.mubr.bf16.gmra.mrb[0].mxu0 %v603
        %v816 = vpop.f32.mrb[0].mxu0
        %v817 = vadd.f32 0.0, %v816
        %v818 = vpop.f32.mrb[0].mxu0
        %v819 = vpop.f32.mrb[0].mxu0
        %v820 = vadd.f32 0.0, %v819
        %v821 = vpop.f32.mrb[0].mxu0
        %822 = vmatprep.mubr.bf16.mxu0 0
        %823 = vmatmul.mubr.bf16.gmra.mrb[0].mxu0 %v604
        %v824 = vpop.f32.mrb[0].mxu0
        %v825 = vadd.f32 0.0, %v824
        %v826 = vpop.f32.mrb[0].mxu0
        %v827 = vpop.f32.mrb[0].mxu0
        %v828 = vadd.f32 0.0, %v827
        %v829 = vpop.f32.mrb[0].mxu0
        %830 = vdwg.mxu0
        %v831 = vadd.f32 %v713, %v817
        %v832 = vadd.f32 %v714, %v820
        %v833 = vadd.f32 %v715, %v825
        %v834 = vadd.f32 %v716, %v828
        %835 = vst [vmem:[%s712] sm:$0xff] %v831
        %836 = vst [vmem:[%s712 + $0x8] sm:$0xff] %v832
        %837 = vst [vmem:[%s712 + $0x10] sm:$0xff] %v833
        %838 = vst [vmem:[%s712 + $0x18] sm:$0xff] %v834
        %p839 = scmp.eq.s32.totalorder %s27, 1
        // Predicated region
        $region135: #{psa_head_forward.3} parent=113 // pred_check
          %p840 = pneg %p839
        $region136: #{psa_head_forward.3} parent=113 // pred_check_branch
          %842 = sbr.rel (%p840) target = $region138
        $region137: #{psa_head_forward.3} parent=113 // pred_region
          %v843 = vld [vmem:[#allocation2] sm:$0xff]
          %v844 = vld [vmem:[#allocation2 + $0x8] sm:$0xff]
          %v845 = vld [vmem:[#allocation2 + $0x10] sm:$0xff]
          %v846 = vld [vmem:[#allocation2 + $0x18] sm:$0xff]
          %v847 = vld [vmem:[#allocation5] sm:$0x1]
          %v849 = vlaneseq
          %v850 = vshrl.u32 %v849, 7
          %v851 = vsub.s32 0, %v850
          %v852 = vrot.slane %v847, %v851
          %v854 = vadd.f32 %v843, %v852
          %v855 = vadd.f32 %v844, %v852
          %v856 = vadd.f32 %v845, %v852
          %v857 = vadd.f32 %v846, %v852
          %v858 = vmax.f32 %v854, 0.0
          %v859 = vmax.f32 %v855, 0.0
          %v860 = vmax.f32 %v856, 0.0
          %v861 = vmax.f32 %v857, 0.0
          %v862 = vpack.c.bf16 %v859, %v858
          %v863 = vpack.c.bf16 %v861, %v860
          %v864 = vld [vmem:[%s3] sm:$0xf]
          %v865 = vld [vmem:[%s3 + $0x4] sm:$0xf]
          %v866 = vld [vmem:[%s3 + $0x8] sm:$0xf]
          %v867 = vld [vmem:[%s3 + $0xc] sm:$0xf]
          %v868 = vld [vmem:[%s3 + $0x10] sm:$0xf]
          %v869 = vld [vmem:[%s3 + $0x14] sm:$0xf]
          %v870 = vld [vmem:[%s3 + $0x18] sm:$0xf]
          %v871 = vld [vmem:[%s3 + $0x1c] sm:$0xf]
          %v872 = vld [vmem:[%s3 + $0x20] sm:$0xf]
          %v873 = vld [vmem:[%s3 + $0x24] sm:$0xf]
          %v874 = vld [vmem:[%s3 + $0x28] sm:$0xf]
          %v875 = vld [vmem:[%s3 + $0x2c] sm:$0xf]
          %v876 = vld [vmem:[%s3 + $0x30] sm:$0xf]
          %v877 = vld [vmem:[%s3 + $0x34] sm:$0xf]
          %v878 = vld [vmem:[%s3 + $0x38] sm:$0xf]
          %v879 = vld [vmem:[%s3 + $0x3c] sm:$0xf]
          %v880 = vld [vmem:[#allocation7] sm:$0x1]
          %v882 = vlaneseq
          %v883 = vshrl.u32 %v882, 7
          %v884 = vsub.s32 0, %v883
          %v885 = vrot.slane %v880, %v884
          %v903 = vunpack.c.l.b16 %v864
          %v904 = vunpack.c.l.b16 %v865
          %v905 = vunpack.c.l.b16 %v866
          %v906 = vunpack.c.l.b16 %v867
          %v907 = vunpack.c.l.b16 %v868
          %v908 = vunpack.c.l.b16 %v869
          %v909 = vunpack.c.l.b16 %v870
          %v910 = vunpack.c.l.b16 %v871
          %v911 = vunpack.c.l.b16 %v872
          %v912 = vunpack.c.l.b16 %v873
          %v913 = vunpack.c.l.b16 %v874
          %v914 = vunpack.c.l.b16 %v875
          %v915 = vunpack.c.l.b16 %v876
          %v916 = vunpack.c.l.b16 %v877
          %v917 = vunpack.c.l.b16 %v878
          %v918 = vunpack.c.l.b16 %v879
          %v919 = vpack.c.b16 %v904, %v903
          %v920 = vpack.c.b16 %v906, %v905
          %v921 = vpack.c.b16 %v908, %v907
          %v922 = vpack.c.b16 %v910, %v909
          %v923 = vpack.c.b16 %v912, %v911
          %v924 = vpack.c.b16 %v914, %v913
          %v925 = vpack.c.b16 %v916, %v915
          %v926 = vpack.c.b16 %v918, %v917
          %935 = vmatprep.subr.bf16.mxu0 0
          %936 = vmatpush1.bf16.msra.mxu0 %v919
          %937 = vmatprep.subr.bf16.mxu0 0
          %938 = vmatpush1.bf16.msra.mxu0 %v920
          %939 = vmatprep.subr.bf16.mxu0 0
          %940 = vmatpush1.bf16.msra.mxu0 %v921
          %941 = vmatprep.subr.bf16.mxu0 0
          %942 = vmatpush1.bf16.msra.mxu0 %v922
          %943 = vmatprep.subr.bf16.mxu0 0
          %944 = vmatpush1.bf16.msra.mxu0 %v923
          %945 = vmatprep.subr.bf16.mxu0 0
          %946 = vmatpush1.bf16.msra.mxu0 %v924
          %947 = vmatprep.subr.bf16.mxu0 0
          %948 = vmatpush1.bf16.msra.mxu0 %v925
          %949 = vmatprep.subr.bf16.mxu0 0
          %950 = vmatpush1.bf16.msra.mxu0 %v926
          %951 = vmatprep.subr.bf16.mxu0 0
          %952 = vmatpush1.bf16.msra.mxu0 0
          %953 = vmatprep.subr.bf16.mxu0 0
          %954 = vmatpush1.bf16.msra.mxu0 0
          %955 = vmatprep.subr.bf16.mxu0 0
          %956 = vmatpush1.bf16.msra.mxu0 0
          %957 = vmatprep.subr.bf16.mxu0 0
          %958 = vmatpush1.bf16.msra.mxu0 0
          %959 = vmatprep.subr.bf16.mxu0 0
          %960 = vmatpush1.bf16.msra.mxu0 0
          %961 = vmatprep.subr.bf16.mxu0 0
          %962 = vmatpush1.bf16.msra.mxu0 0
          %963 = vmatprep.subr.bf16.mxu0 0
          %964 = vmatpush1.bf16.msra.mxu0 0
          %965 = vmatprep.subr.bf16.mxu0 0
          %966 = vmatpush1.bf16.msra.mxu0 0
          %967 = vmatprep.mubr.bf16.mxu0 0
          %968 = vmatmul.mubr.bf16.gmra.mrb[0].mxu0 %v862
          %v969 = vpop.f32.mrb[0].mxu0
          %v970 = vadd.f32 %v885, %v969
          %v971 = vpop.f32.mrb[0].mxu0
          %v972 = vpop.f32.mrb[0].mxu0
          %v973 = vadd.f32 %v885, %v972
          %v974 = vpop.f32.mrb[0].mxu0
          %975 = vmatprep.mubr.bf16.mxu0 0
          %976 = vmatmul.mubr.bf16.gmra.mrb[0].mxu0 %v863
          %v977 = vpop.f32.mrb[0].mxu0
          %v978 = vadd.f32 %v885, %v977
          %v979 = vpop.f32.mrb[0].mxu0
          %v980 = vpop.f32.mrb[0].mxu0
          %v981 = vadd.f32 %v885, %v980
          %v982 = vpop.f32.mrb[0].mxu0
          %983 = vdwg.mxu0
          %v986 = vunpack.c.l.b16 %v862
          %v987 = vunpack.c.h.b16 %v862
          %v988 = vunpack.c.l.b16 %v863
          %v989 = vunpack.c.h.b16 %v863
          %v990 = vpack.c.b16 %v986, %v986
          %v991 = vpack.c.b16 %v987, %v987
          %v992 = vpack.c.b16 %v988, %v988
          %v993 = vpack.c.b16 %v989, %v989
          %998 = vst [vmem:[%s547] sm:$0xf] %v990
          %999 = vst [vmem:[%s547 + $0x4] sm:$0xf] %v991
          %1000 = vst [vmem:[%s547 + $0x8] sm:$0xf] %v992
          %1001 = vst [vmem:[%s547 + $0xc] sm:$0xf] %v993
          %v1002 = vmax.f32 %v970, 0.0
          %v1003 = vmax.f32 %v973, 0.0
          %v1004 = vmax.f32 %v978, 0.0
          %v1005 = vmax.f32 %v981, 0.0
          %v1006 = vpack.c.bf16 %v1003, %v1002
          %v1007 = vpack.c.bf16 %v1005, %v1004
          %v1010 = vunpack.c.l.b16 %v1006
          %v1011 = vunpack.c.h.b16 %v1006
          %v1012 = vunpack.c.l.b16 %v1007
          %v1013 = vunpack.c.h.b16 %v1007
          %v1014 = vpack.c.b16 %v1010, %v1010
          %v1015 = vpack.c.b16 %v1011, %v1011
          %v1016 = vpack.c.b16 %v1012, %v1012
          %v1017 = vpack.c.b16 %v1013, %v1013
          %1022 = vst [vmem:[%s553] sm:$0xf] %v1014
          %1023 = vst [vmem:[%s553 + $0x4] sm:$0xf] %v1015
          %1024 = vst [vmem:[%s553 + $0x8] sm:$0xf] %v1016
          %1025 = vst [vmem:[%s553 + $0xc] sm:$0xf] %v1017
          %v1026 = vld [vmem:[%s712] sm:$0xff]
          %v1027 = vld [vmem:[%s712 + $0x8] sm:$0xff]
          %v1028 = vld [vmem:[%s712 + $0x10] sm:$0xff]
          %v1029 = vld [vmem:[%s712 + $0x18] sm:$0xff]
          %s1030 = scalar_lea.vmem [#allocation5], 1
          %v1031 = vld [vmem:[%s1030] sm:$0x1]
          %v1033 = vlaneseq
          %v1034 = vshrl.u32 %v1033, 7
          %v1035 = vsub.s32 0, %v1034
          %v1036 = vrot.slane %v1031, %v1035
          %v1038 = vadd.f32 %v1026, %v1036
          %v1039 = vadd.f32 %v1027, %v1036
          %v1040 = vadd.f32 %v1028, %v1036
          %v1041 = vadd.f32 %v1029, %v1036
          %v1042 = vmax.f32 %v1038, 0.0
          %v1043 = vmax.f32 %v1039, 0.0
          %v1044 = vmax.f32 %v1040, 0.0
          %v1045 = vmax.f32 %v1041, 0.0
          %v1046 = vpack.c.bf16 %v1043, %v1042
          %v1047 = vpack.c.bf16 %v1045, %v1044
          %s1048 = scalar_lea.vmem %s3, 64
          %v1049 = vld [vmem:[%s1048] sm:$0xf]
          %v1050 = vld [vmem:[%s1048 + $0x4] sm:$0xf]
          %v1051 = vld [vmem:[%s1048 + $0x8] sm:$0xf]
          %v1052 = vld [vmem:[%s1048 + $0xc] sm:$0xf]
          %v1053 = vld [vmem:[%s1048 + $0x10] sm:$0xf]
          %v1054 = vld [vmem:[%s1048 + $0x14] sm:$0xf]
          %v1055 = vld [vmem:[%s1048 + $0x18] sm:$0xf]
          %v1056 = vld [vmem:[%s1048 + $0x1c] sm:$0xf]
          %v1057 = vld [vmem:[%s1048 + $0x20] sm:$0xf]
          %v1058 = vld [vmem:[%s1048 + $0x24] sm:$0xf]
          %v1059 = vld [vmem:[%s1048 + $0x28] sm:$0xf]
          %v1060 = vld [vmem:[%s1048 + $0x2c] sm:$0xf]
          %v1061 = vld [vmem:[%s1048 + $0x30] sm:$0xf]
          %v1062 = vld [vmem:[%s1048 + $0x34] sm:$0xf]
          %v1063 = vld [vmem:[%s1048 + $0x38] sm:$0xf]
          %v1064 = vld [vmem:[%s1048 + $0x3c] sm:$0xf]
          %s1065 = scalar_lea.vmem [#allocation7], 1
          %v1066 = vld [vmem:[%s1065] sm:$0x1]
          %v1068 = vlaneseq
          %v1069 = vshrl.u32 %v1068, 7
          %v1070 = vsub.s32 0, %v1069
          %v1071 = vrot.slane %v1066, %v1070
          %v1089 = vunpack.c.l.b16 %v1049
          %v1090 = vunpack.c.l.b16 %v1050
          %v1091 = vunpack.c.l.b16 %v1051
          %v1092 = vunpack.c.l.b16 %v1052
          %v1093 = vunpack.c.l.b16 %v1053
          %v1094 = vunpack.c.l.b16 %v1054
          %v1095 = vunpack.c.l.b16 %v1055
          %v1096 = vunpack.c.l.b16 %v1056
          %v1097 = vunpack.c.l.b16 %v1057
          %v1098 = vunpack.c.l.b16 %v1058
          %v1099 = vunpack.c.l.b16 %v1059
          %v1100 = vunpack.c.l.b16 %v1060
          %v1101 = vunpack.c.l.b16 %v1061
          %v1102 = vunpack.c.l.b16 %v1062
          %v1103 = vunpack.c.l.b16 %v1063
          %v1104 = vunpack.c.l.b16 %v1064
          %v1105 = vpack.c.b16 %v1090, %v1089
          %v1106 = vpack.c.b16 %v1092, %v1091
          %v1107 = vpack.c.b16 %v1094, %v1093
          %v1108 = vpack.c.b16 %v1096, %v1095
          %v1109 = vpack.c.b16 %v1098, %v1097
          %v1110 = vpack.c.b16 %v1100, %v1099
          %v1111 = vpack.c.b16 %v1102, %v1101
          %v1112 = vpack.c.b16 %v1104, %v1103
          %1121 = vmatprep.subr.bf16.mxu0 0
          %1122 = vmatpush1.bf16.msra.mxu0 %v1105
          %1123 = vmatprep.subr.bf16.mxu0 0
          %1124 = vmatpush1.bf16.msra.mxu0 %v1106
          %1125 = vmatprep.subr.bf16.mxu0 0
          %1126 = vmatpush1.bf16.msra.mxu0 %v1107
          %1127 = vmatprep.subr.bf16.mxu0 0
          %1128 = vmatpush1.bf16.msra.mxu0 %v1108
          %1129 = vmatprep.subr.bf16.mxu0 0
          %1130 = vmatpush1.bf16.msra.mxu0 %v1109
          %1131 = vmatprep.subr.bf16.mxu0 0
          %1132 = vmatpush1.bf16.msra.mxu0 %v1110
          %1133 = vmatprep.subr.bf16.mxu0 0
          %1134 = vmatpush1.bf16.msra.mxu0 %v1111
          %1135 = vmatprep.subr.bf16.mxu0 0
          %1136 = vmatpush1.bf16.msra.mxu0 %v1112
          %1137 = vmatprep.subr.bf16.mxu0 0
          %1138 = vmatpush1.bf16.msra.mxu0 0
          %1139 = vmatprep.subr.bf16.mxu0 0
          %1140 = vmatpush1.bf16.msra.mxu0 0
          %1141 = vmatprep.subr.bf16.mxu0 0
          %1142 = vmatpush1.bf16.msra.mxu0 0
          %1143 = vmatprep.subr.bf16.mxu0 0
          %1144 = vmatpush1.bf16.msra.mxu0 0
          %1145 = vmatprep.subr.bf16.mxu0 0
          %1146 = vmatpush1.bf16.msra.mxu0 0
          %1147 = vmatprep.subr.bf16.mxu0 0
          %1148 = vmatpush1.bf16.msra.mxu0 0
          %1149 = vmatprep.subr.bf16.mxu0 0
          %1150 = vmatpush1.bf16.msra.mxu0 0
          %1151 = vmatprep.subr.bf16.mxu0 0
          %1152 = vmatpush1.bf16.msra.mxu0 0
          %1153 = vmatprep.mubr.bf16.mxu0 0
          %1154 = vmatmul.mubr.bf16.gmra.mrb[0].mxu0 %v1046
          %v1155 = vpop.f32.mrb[0].mxu0
          %v1156 = vadd.f32 %v1071, %v1155
          %v1157 = vpop.f32.mrb[0].mxu0
          %v1158 = vpop.f32.mrb[0].mxu0
          %v1159 = vadd.f32 %v1071, %v1158
          %v1160 = vpop.f32.mrb[0].mxu0
          %1161 = vmatprep.mubr.bf16.mxu0 0
          %1162 = vmatmul.mubr.bf16.gmra.mrb[0].mxu0 %v1047
          %v1163 = vpop.f32.mrb[0].mxu0
          %v1164 = vadd.f32 %v1071, %v1163
          %v1165 = vpop.f32.mrb[0].mxu0
          %v1166 = vpop.f32.mrb[0].mxu0
          %v1167 = vadd.f32 %v1071, %v1166
          %v1168 = vpop.f32.mrb[0].mxu0
          %1169 = vdwg.mxu0
          %v1172 = vunpack.c.l.b16 %v1046
          %v1173 = vunpack.c.h.b16 %v1046
          %v1174 = vunpack.c.l.b16 %v1047
          %v1175 = vunpack.c.h.b16 %v1047
          %v1176 = vpack.c.b16 %v1172, %v1172
          %v1177 = vpack.c.b16 %v1173, %v1173
          %v1178 = vpack.c.b16 %v1174, %v1174
          %v1179 = vpack.c.b16 %v1175, %v1175
          %s1184 = scalar_lea.vmem %s547, 16 [#allocation9]
          %1185 = vst [vmem:[%s1184] sm:$0xf] %v1176
          %1186 = vst [vmem:[%s1184 + $0x4] sm:$0xf] %v1177
          %1187 = vst [vmem:[%s1184 + $0x8] sm:$0xf] %v1178
          %1188 = vst [vmem:[%s1184 + $0xc] sm:$0xf] %v1179
          %v1189 = vmax.f32 %v1156, 0.0
          %v1190 = vmax.f32 %v1159, 0.0
          %v1191 = vmax.f32 %v1164, 0.0
          %v1192 = vmax.f32 %v1167, 0.0
          %v1193 = vpack.c.bf16 %v1190, %v1189
          %v1194 = vpack.c.bf16 %v1192, %v1191
          %v1197 = vunpack.c.l.b16 %v1193
          %v1198 = vunpack.c.h.b16 %v1193
          %v1199 = vunpack.c.l.b16 %v1194
          %v1200 = vunpack.c.h.b16 %v1194
          %v1201 = vpack.c.b16 %v1197, %v1197
          %v1202 = vpack.c.b16 %v1198, %v1198
          %v1203 = vpack.c.b16 %v1199, %v1199
          %v1204 = vpack.c.b16 %v1200, %v1200
          %s1209 = scalar_lea.vmem %s553, 16 [#allocation10]
          %1210 = vst [vmem:[%s1209] sm:$0xf] %v1201
          %1211 = vst [vmem:[%s1209 + $0x4] sm:$0xf] %v1202
          %1212 = vst [vmem:[%s1209 + $0x8] sm:$0xf] %v1203
          %1213 = vst [vmem:[%s1209 + $0xc] sm:$0xf] %v1204
        $region138: #{psa_head_forward.3} parent=113 // pred_fallthru
          _
        %s1214 = sand.u32 %s168, 1
        %s1215 = sand.u32 %s168, 1
        %s1216 = smul.addr %s1215, 32
        %s1217 = scalar_lea.vmem [#allocation9], %s1216
        %s1218 = sand.u32 %s196, 1
        %s1219 = sand.u32 %s196, 1
        %s1220 = smul.addr %s1219, 32
        %s1221 = scalar_lea.vmem [#allocation10], %s1220
        // Predicated region
        $region139: #{psa_head_forward.3} parent=113 // pred_check
          %p1222 = pneg %p178
        $region140: #{psa_head_forward.3} parent=113 // pred_check_branch
          %1224 = sbr.rel (%p1222) target = $region142
        $region141: #{psa_head_forward.3} parent=113 // pred_region
          %s1225 = smul.u32 4, %s26
          %s1226 = smul.addr %s25, 16
          %s1227 = sadd.s32 %s1225, %s1226
          %s1228 = smul.addr %s1227, 4
          %s1229 = scalar_lea.vmem %s5, %s1228
          // Predicated region
          $region143: #{psa_head_forward.3} parent=141 // pred_check
            _
          $region144: #{psa_head_forward.3} parent=141 // pred_check_branch
            %1231 = sbr.rel (0) target = $region146
          $region145: #{psa_head_forward.3} parent=141 // pred_region
            // Predicated region
            $region147: #{psa_head_forward.3} parent=145 // pred_check
              _
            $region148: #{psa_head_forward.3} parent=145 // pred_check_branch
              %1233 = sbr.rel target = $region150
            $region149: #{psa_head_forward.3} parent=145 // pred_region
              // Predicated region
              $region162: #{psa_head_forward.3} parent=149 // pred_check
                _
              $region163: #{psa_head_forward.3} parent=149 // pred_check_branch
                %1262 = sbr.rel (0) target = $region165
              $region164: #{psa_head_forward.3} parent=149 // pred_region
                loop: start=0, step=1, limit=1
                $region166: #{psa_head_forward.3} parent=164 // loop_pre_header
                  _
                $region167: #{psa_head_forward.3} parent=164 // loop_header
                  %s1264 = sphi 0, %s1268
                  %p1265 = scmp.ge.s32.totalorder %s1264, 1
                  %s1269 = sphi %s1217, %s1217
                  %s1270 = sphi %s1229, %s1229
                $region168: #{psa_head_forward.3} parent=164 // loop_header_branch
                  %1267 = sbr.rel (%p1265) target = $region172
                $region169: #{psa_head_forward.3} parent=164 // loop_body
                  _
                $region170: #{psa_head_forward.3} parent=164 // loop_footer
                  %s1268 = sadd.s32 1, %s1264
                $region171: #{psa_head_forward.3} parent=164 // loop_footer_branch
                  %1263 = sbr.rel target = $region167
                $region172: #{psa_head_forward.3} parent=164 // loop_exit
                  _
                loop: start=0, step=1, limit=1
                $region173: #{psa_head_forward.3} parent=164 // loop_pre_header
                  _
                $region174: #{psa_head_forward.3} parent=164 // loop_header
                  %s1273 = sphi 0, %s1277
                  %p1274 = scmp.ge.s32.totalorder %s1273, 1
                  %s1278 = sphi %s1217, %s1217
                  %s1279 = sphi %s1229, %s1229
                $region175: #{psa_head_forward.3} parent=164 // loop_header_branch
                  %1276 = sbr.rel (%p1274) target = $region179
                $region176: #{psa_head_forward.3} parent=164 // loop_body
                  %v1280 = vld [vmem:[%s1278] sm:$0xf]
                  %1281 = vst [vmem:[%s1279] sm:$0xf] %v1280
                  %v1282 = vld [vmem:[%s1278 + $0x4] sm:$0xf]
                  %1283 = vst [vmem:[%s1279 + $0x4] sm:$0xf] %v1282
                  %v1284 = vld [vmem:[%s1278 + $0x8] sm:$0xf]
                  %1285 = vst [vmem:[%s1279 + $0x8] sm:$0xf] %v1284
                  %v1286 = vld [vmem:[%s1278 + $0xc] sm:$0xf]
                  %1287 = vst [vmem:[%s1279 + $0xc] sm:$0xf] %v1286
                  %v1288 = vld [vmem:[%s1278 + $0x10] sm:$0xf]
                  %1289 = vst [vmem:[%s1279 + $0x20] sm:$0xf] %v1288
                  %v1290 = vld [vmem:[%s1278 + $0x14] sm:$0xf]
                  %1291 = vst [vmem:[%s1279 + $0x24] sm:$0xf] %v1290
                  %v1292 = vld [vmem:[%s1278 + $0x18] sm:$0xf]
                  %1293 = vst [vmem:[%s1279 + $0x28] sm:$0xf] %v1292
                  %v1294 = vld [vmem:[%s1278 + $0x1c] sm:$0xf]
                  %1295 = vst [vmem:[%s1279 + $0x2c] sm:$0xf] %v1294
                $region177: #{psa_head_forward.3} parent=164 // loop_footer
                  %s1277 = sadd.s32 1, %s1273
                $region178: #{psa_head_forward.3} parent=164 // loop_footer_branch
                  %1272 = sbr.rel target = $region174
                $region179: #{psa_head_forward.3} parent=164 // loop_exit
                  _
              $region165: #{psa_head_forward.3} parent=149 // pred_fallthru
                _
            $region150: #{psa_head_forward.3} parent=145 // pred_fallthru
              _
            // Predicated region
            $region151: #{psa_head_forward.3} parent=145 // pred_check
              _
            $region152: #{psa_head_forward.3} parent=145 // pred_check_branch
              %1235 = sbr.rel (0) target = $region154
            $region153: #{psa_head_forward.3} parent=145 // pred_region
              loop: start=0, step=1, limit=1
              $region155: #{psa_head_forward.3} parent=153 // loop_pre_header
                _
              $region156: #{psa_head_forward.3} parent=153 // loop_header
                %s1238 = sphi 0, %s1242
                %p1239 = scmp.ge.s32.totalorder %s1238, 1
                %s1243 = sphi %s1217, %s1217
                %s1244 = sphi %s1229, %s1229
              $region157: #{psa_head_forward.3} parent=153 // loop_header_branch
                %1241 = sbr.rel (%p1239) target = $region161
              $region158: #{psa_head_forward.3} parent=153 // loop_body
                %v1245 = vld [vmem:[%s1243] sm:$0xf]
                %1246 = vst [vmem:[%s1244] sm:$0xf] %v1245
                %v1247 = vld [vmem:[%s1243 + $0x4] sm:$0xf]
                %1248 = vst [vmem:[%s1244 + $0x4] sm:$0xf] %v1247
                %v1249 = vld [vmem:[%s1243 + $0x8] sm:$0xf]
                %1250 = vst [vmem:[%s1244 + $0x8] sm:$0xf] %v1249
                %v1251 = vld [vmem:[%s1243 + $0xc] sm:$0xf]
                %1252 = vst [vmem:[%s1244 + $0xc] sm:$0xf] %v1251
                %v1253 = vld [vmem:[%s1243 + $0x10] sm:$0xf]
                %1254 = vst [vmem:[%s1244 + $0x20] sm:$0xf] %v1253
                %v1255 = vld [vmem:[%s1243 + $0x14] sm:$0xf]
                %1256 = vst [vmem:[%s1244 + $0x24] sm:$0xf] %v1255
                %v1257 = vld [vmem:[%s1243 + $0x18] sm:$0xf]
                %1258 = vst [vmem:[%s1244 + $0x28] sm:$0xf] %v1257
                %v1259 = vld [vmem:[%s1243 + $0x1c] sm:$0xf]
                %1260 = vst [vmem:[%s1244 + $0x2c] sm:$0xf] %v1259
              $region159: #{psa_head_forward.3} parent=153 // loop_footer
                %s1242 = sadd.s32 1, %s1238
              $region160: #{psa_head_forward.3} parent=153 // loop_footer_branch
                %1237 = sbr.rel target = $region156
              $region161: #{psa_head_forward.3} parent=153 // loop_exit
                _
            $region154: #{psa_head_forward.3} parent=145 // pred_fallthru
              _
          $region146: #{psa_head_forward.3} parent=141 // pred_fallthru
            _
          %1296 = vnop
        $region142: #{psa_head_forward.3} parent=113 // pred_fallthru
          _
        // Predicated region
        $region180: #{psa_head_forward.3} parent=113 // pred_check
          %p1297 = pneg %p206
        $region181: #{psa_head_forward.3} parent=113 // pred_check_branch
          %1299 = sbr.rel (%p1297) target = $region183
        $region182: #{psa_head_forward.3} parent=113 // pred_region
          %s1300 = smul.u32 4, %s26
          %s1301 = smul.addr %s25, 16
          %s1302 = sadd.s32 %s1300, %s1301
          %s1303 = smul.addr %s1302, 4
          %s1304 = scalar_lea.vmem %s6, %s1303
          // Predicated region
          $region184: #{psa_head_forward.3} parent=182 // pred_check
            _
          $region185: #{psa_head_forward.3} parent=182 // pred_check_branch
            %1306 = sbr.rel (0) target = $region187
          $region186: #{psa_head_forward.3} parent=182 // pred_region
            // Predicated region
            $region188: #{psa_head_forward.3} parent=186 // pred_check
              _
            $region189: #{psa_head_forward.3} parent=186 // pred_check_branch
              %1308 = sbr.rel target = $region191
            $region190: #{psa_head_forward.3} parent=186 // pred_region
              // Predicated region
              $region203: #{psa_head_forward.3} parent=190 // pred_check
                _
              $region204: #{psa_head_forward.3} parent=190 // pred_check_branch
                %1337 = sbr.rel (0) target = $region206
              $region205: #{psa_head_forward.3} parent=190 // pred_region
                loop: start=0, step=1, limit=1
                $region207: #{psa_head_forward.3} parent=205 // loop_pre_header
                  _
                $region208: #{psa_head_forward.3} parent=205 // loop_header
                  %s1339 = sphi 0, %s1343
                  %p1340 = scmp.ge.s32.totalorder %s1339, 1
                  %s1344 = sphi %s1221, %s1221
                  %s1345 = sphi %s1304, %s1304
                $region209: #{psa_head_forward.3} parent=205 // loop_header_branch
                  %1342 = sbr.rel (%p1340) target = $region213
                $region210: #{psa_head_forward.3} parent=205 // loop_body
                  _
                $region211: #{psa_head_forward.3} parent=205 // loop_footer
                  %s1343 = sadd.s32 1, %s1339
                $region212: #{psa_head_forward.3} parent=205 // loop_footer_branch
                  %1338 = sbr.rel target = $region208
                $region213: #{psa_head_forward.3} parent=205 // loop_exit
                  _
                loop: start=0, step=1, limit=1
                $region214: #{psa_head_forward.3} parent=205 // loop_pre_header
                  _
                $region215: #{psa_head_forward.3} parent=205 // loop_header
                  %s1348 = sphi 0, %s1352
                  %p1349 = scmp.ge.s32.totalorder %s1348, 1
                  %s1353 = sphi %s1221, %s1221
                  %s1354 = sphi %s1304, %s1304
                $region216: #{psa_head_forward.3} parent=205 // loop_header_branch
                  %1351 = sbr.rel (%p1349) target = $region220
                $region217: #{psa_head_forward.3} parent=205 // loop_body
                  %v1355 = vld [vmem:[%s1353] sm:$0xf]
                  %1356 = vst [vmem:[%s1354] sm:$0xf] %v1355
                  %v1357 = vld [vmem:[%s1353 + $0x4] sm:$0xf]
                  %1358 = vst [vmem:[%s1354 + $0x4] sm:$0xf] %v1357
                  %v1359 = vld [vmem:[%s1353 + $0x8] sm:$0xf]
                  %1360 = vst [vmem:[%s1354 + $0x8] sm:$0xf] %v1359
                  %v1361 = vld [vmem:[%s1353 + $0xc] sm:$0xf]
                  %1362 = vst [vmem:[%s1354 + $0xc] sm:$0xf] %v1361
                  %v1363 = vld [vmem:[%s1353 + $0x10] sm:$0xf]
                  %1364 = vst [vmem:[%s1354 + $0x20] sm:$0xf] %v1363
                  %v1365 = vld [vmem:[%s1353 + $0x14] sm:$0xf]
                  %1366 = vst [vmem:[%s1354 + $0x24] sm:$0xf] %v1365
                  %v1367 = vld [vmem:[%s1353 + $0x18] sm:$0xf]
                  %1368 = vst [vmem:[%s1354 + $0x28] sm:$0xf] %v1367
                  %v1369 = vld [vmem:[%s1353 + $0x1c] sm:$0xf]
                  %1370 = vst [vmem:[%s1354 + $0x2c] sm:$0xf] %v1369
                $region218: #{psa_head_forward.3} parent=205 // loop_footer
                  %s1352 = sadd.s32 1, %s1348
                $region219: #{psa_head_forward.3} parent=205 // loop_footer_branch
                  %1347 = sbr.rel target = $region215
                $region220: #{psa_head_forward.3} parent=205 // loop_exit
                  _
              $region206: #{psa_head_forward.3} parent=190 // pred_fallthru
                _
            $region191: #{psa_head_forward.3} parent=186 // pred_fallthru
              _
            // Predicated region
            $region192: #{psa_head_forward.3} parent=186 // pred_check
              _
            $region193: #{psa_head_forward.3} parent=186 // pred_check_branch
              %1310 = sbr.rel (0) target = $region195
            $region194: #{psa_head_forward.3} parent=186 // pred_region
              loop: start=0, step=1, limit=1
              $region196: #{psa_head_forward.3} parent=194 // loop_pre_header
                _
              $region197: #{psa_head_forward.3} parent=194 // loop_header
                %s1313 = sphi 0, %s1317
                %p1314 = scmp.ge.s32.totalorder %s1313, 1
                %s1318 = sphi %s1221, %s1221
                %s1319 = sphi %s1304, %s1304
              $region198: #{psa_head_forward.3} parent=194 // loop_header_branch
                %1316 = sbr.rel (%p1314) target = $region202
              $region199: #{psa_head_forward.3} parent=194 // loop_body
                %v1320 = vld [vmem:[%s1318] sm:$0xf]
                %1321 = vst [vmem:[%s1319] sm:$0xf] %v1320
                %v1322 = vld [vmem:[%s1318 + $0x4] sm:$0xf]
                %1323 = vst [vmem:[%s1319 + $0x4] sm:$0xf] %v1322
                %v1324 = vld [vmem:[%s1318 + $0x8] sm:$0xf]
                %1325 = vst [vmem:[%s1319 + $0x8] sm:$0xf] %v1324
                %v1326 = vld [vmem:[%s1318 + $0xc] sm:$0xf]
                %1327 = vst [vmem:[%s1319 + $0xc] sm:$0xf] %v1326
                %v1328 = vld [vmem:[%s1318 + $0x10] sm:$0xf]
                %1329 = vst [vmem:[%s1319 + $0x20] sm:$0xf] %v1328
                %v1330 = vld [vmem:[%s1318 + $0x14] sm:$0xf]
                %1331 = vst [vmem:[%s1319 + $0x24] sm:$0xf] %v1330
                %v1332 = vld [vmem:[%s1318 + $0x18] sm:$0xf]
                %1333 = vst [vmem:[%s1319 + $0x28] sm:$0xf] %v1332
                %v1334 = vld [vmem:[%s1318 + $0x1c] sm:$0xf]
                %1335 = vst [vmem:[%s1319 + $0x2c] sm:$0xf] %v1334
              $region200: #{psa_head_forward.3} parent=194 // loop_footer
                %s1317 = sadd.s32 1, %s1313
              $region201: #{psa_head_forward.3} parent=194 // loop_footer_branch
                %1312 = sbr.rel target = $region197
              $region202: #{psa_head_forward.3} parent=194 // loop_exit
                _
            $region195: #{psa_head_forward.3} parent=186 // pred_fallthru
              _
          $region187: #{psa_head_forward.3} parent=182 // pred_fallthru
            _
          %1371 = vnop
        $region183: #{psa_head_forward.3} parent=113 // pred_fallthru
          _
      $region114: #{psa_head_forward.3} parent=5 // pred_fallthru
        _
      %p1372 = scmp.le.s32.totalorder 2, %s15
      // Predicated region
      $region221: #{psa_head_forward.3} parent=5 // pred_check
        %p1373 = pneg %p1372
      $region222: #{psa_head_forward.3} parent=5 // pred_check_branch
        %1375 = sbr.rel (%p1373) target = $region224
      $region223: #{psa_head_forward.3} parent=5 // pred_region
        %s1376 = ssub.s32 %s15, 2
        // Predicated region
        $region225: #{psa_head_forward.3} parent=223 // pred_check
          %p1377 = pneg %p184
        $region226: #{psa_head_forward.3} parent=223 // pred_check_branch
          %1379 = sbr.rel (%p1377) target = $region228
        $region227: #{psa_head_forward.3} parent=223 // pred_region
          %s1380 = sand.u32 %s169, 1
          %s1381 = sand.u32 %s169, 1
          %s1382 = smul.addr %s1381, 32
          %s1383 = scalar_lea.vmem [#allocation9], %s1382
        $region228: #{psa_head_forward.3} parent=223 // pred_fallthru
          _
        // Predicated region
        $region229: #{psa_head_forward.3} parent=223 // pred_check
          %p1384 = pneg %p212
        $region230: #{psa_head_forward.3} parent=223 // pred_check_branch
          %1386 = sbr.rel (%p1384) target = $region232
        $region231: #{psa_head_forward.3} parent=223 // pred_region
          %s1387 = sand.u32 %s197, 1
          %s1388 = sand.u32 %s197, 1
          %s1389 = smul.addr %s1388, 32
          %s1390 = scalar_lea.vmem [#allocation10], %s1389
        $region232: #{psa_head_forward.3} parent=223 // pred_fallthru
          _
      $region224: #{psa_head_forward.3} parent=5 // pred_fallthru
        _
    $region6: #{psa_head_forward.3} parent=1 // loop_footer
      %s19 = sadd.s32 1, %s15
    $region7: #{psa_head_forward.3} parent=1 // loop_footer_branch
      %14 = sbr.rel target = $region3
    $region8: #{psa_head_forward.3} parent=1 // loop_exit
      _
    %1391 = vsyncpa [#allocation6], 1
    %s1392 = scalar_lea.sflag [#allocation6], 1
    %1393 = vsyncpa %s1392, 1
    %1394 = vsyncpa [#allocation8], 1

// kernel: psa_head_forward.5
$region0: #{psa_head_forward.5}
  #allocation0 [shape = 'u32[]', space=smem, size = 0x4, offset = 0x4, fixed_abs, tag = 'smem constant byte address 0x4 - core index']
  #allocation1 [shape = 'u32[144,128]{1,0:T(1,128)}', space=vmem, size = 0x12000, scoped, tag = 'internal scratch']
  #allocation2 [shape = 'bf16[4,10,10,128]{3,2,1,0:T(8,128)(2,1)}', space=vmem, size = 0x28000, scoped, tag = 'scratch operand']
  #allocation3 [shape = 'f32[64,128]{1,0:T(8,128)}', space=vmem, size = 0x8000, scoped, tag = 'scratch operand']
  %s0 = inlined_call_operand.vmem [shape: bf16[2,64,256], index: 0, kind: input, shape index: {}]
  %s1 = inlined_call_operand.vmem [shape: bf16[2,64,256], index: 1, kind: input, shape index: {}]
  %s2 = inlined_call_operand.vmem [shape: bf16[256,256], index: 2, kind: input, shape index: {}]
  %s3 = inlined_call_operand.vmem [shape: f32[1,256], index: 3, kind: input, shape index: {}]
  %s4 = inlined_call_operand.vmem [shape: bf16[9,512,128], index: 4, kind: input, shape index: {}]
  %s5 = inlined_call_operand.vmem [shape: f32[1,128], index: 5, kind: input, shape index: {}]
  %s6 = inlined_call_operand.vmem [shape: bf16[128,128], index: 6, kind: input, shape index: {}]
  %s7 = inlined_call_operand.vmem [shape: f32[1,128], index: 7, kind: input, shape index: {}]
  %s8 = inlined_call_operand.vmem [shape: f32[2,64,128], index: 8, kind: output, shape index: {}]
  %s9 = sld [smem:[#allocation0]]
  $region114: #{psa_head_forward.5} parent=0
    _
  %s11 = ssub.s32 1, %s9
  %s12 = scalar_select 0, %s11, %s9
  $region1: #{psa_head_forward.5} parent=0
    #allocation4 [shape = 'u8[589824]{0}', space=vmem, size = 0x90000, scoped, tag = 'input window, operand 4']
    loop: start=0, step=1, limit=10
    $region2: #{psa_head_forward.5} parent=1 // loop_pre_header
      _
    $region3: #{psa_head_forward.5} parent=1 // loop_header
      %s14 = sphi 0, %s18
      %p15 = scmp.ge.s32.totalorder %s14, 10
      %s21 = sphi 0, %s33
      %s22 = sphi 0, %s29
      %s23 = sphi 0, %s21
      %s24 = sphi 0, %s22
      %s25 = sphi 0, %s23
      %s26 = sphi 0, %s24
      %s36 = sphi 0, %s38
      %s39 = sphi 0, %s36
      %s40 = sphi 0, %s39
      %s56 = sphi 0, %s40
      %s62 = sphi 0, %s64
      %s65 = sphi 0, %s62
      %s66 = sphi 0, %s65
      %s82 = sphi 0, %s66
      %s86 = sphi 0, %s86
      %s88 = sphi 0, %s86
      %s89 = sphi 0, %s88
      %s103 = sphi 0, %s89
      %s107 = sphi 0, %s107
      %s109 = sphi 0, %s107
      %s110 = sphi 0, %s109
      %s124 = sphi 0, %s110
      %s130 = sphi 0, %s132
      %s133 = sphi 0, %s130
      %s134 = sphi 0, %s133
      %s150 = sphi 0, %s134
      %s154 = sphi 0, %s154
      %s156 = sphi 0, %s154
      %s157 = sphi 0, %s156
      %s171 = sphi 0, %s157
      %s175 = sphi 0, %s175
      %s177 = sphi 0, %s175
      %s178 = sphi 0, %s177
      %s192 = sphi 0, %s178
      %s196 = sphi 0, %s196
      %s198 = sphi 0, %s196
      %s199 = sphi 0, %s198
      %s213 = sphi 0, %s199
      %s219 = sphi 0, %s221
      %s222 = sphi 0, %s219
      %s223 = sphi 0, %s222
      %s239 = sphi 0, %s223
    $region4: #{psa_head_forward.5} parent=1 // loop_header_branch
      %17 = sbr.rel (%p15) target = $region8
    $region5: #{psa_head_forward.5} parent=1 // loop_body
      %s19 = ssub.s32 %s14, 1
      %s20 = ssub.s32 %s14, 2
      %s27 = sadd.s32 1, %s22
      %p28 = scmp.ge.s32.totalorder %s27, 4
      %s29 = scalar_select %p28, 0, %s27
      %s30 = sadd.s32 1, %s21
      %s31 = scalar_select %p28, %s30, %s21
      %p32 = scmp.ge.s32.totalorder %s31, 2
      %s33 = scalar_select %p32, 0, %s31
      %s34 = ssub.s32 %s21, %s33
      %p35 = scmp.eq.s32.totalorder %s34, 0
      %s37 = sadd.s32 %s36, 1
      %s38 = scalar_select %p35, %s36, %s37
      %p41 = pneg %p35
      %p42 = scmp.eq.s32.totalorder %s14, 7
      %p43 = por %p41, %p42
      %p44 = scmp.ne.s32.totalorder %s36, %s39
      %p45 = scmp.eq.s32.totalorder %s14, 0
      %p46 = por %p44, %p45
      %p47 = scmp.ne.s32.totalorder %s36, %s39
      %p48 = scmp.eq.s32.totalorder %s19, 7
      %p49 = por %p47, %p48
      %p50 = scmp.ne.s32.totalorder %s39, %s40
      %p51 = scmp.eq.s32.totalorder %s19, 0
      %p52 = por %p50, %p51
      %p53 = scmp.ne.s32.totalorder %s39, %s40
      %p54 = scmp.eq.s32.totalorder %s20, 7
      %p55 = por %p53, %p54
      %p57 = scmp.ne.s32.totalorder %s40, %s56
      %p58 = scmp.eq.s32.totalorder %s20, 0
      %p59 = por %p57, %p58
      %s60 = ssub.s32 %s21, %s33
      %p61 = scmp.eq.s32.totalorder %s60, 0
      %s63 = sadd.s32 %s62, 1
      %s64 = scalar_select %p61, %s62, %s63
      %p67 = pneg %p61
      %p68 = scmp.eq.s32.totalorder %s14, 7
      %p69 = por %p67, %p68
      %p70 = scmp.ne.s32.totalorder %s62, %s65
      %p71 = scmp.eq.s32.totalorder %s14, 0
      %p72 = por %p70, %p71
      %p73 = scmp.ne.s32.totalorder %s62, %s65
      %p74 = scmp.eq.s32.totalorder %s19, 7
      %p75 = por %p73, %p74
      %p76 = scmp.ne.s32.totalorder %s65, %s66
      %p77 = scmp.eq.s32.totalorder %s19, 0
      %p78 = por %p76, %p77
      %p79 = scmp.ne.s32.totalorder %s65, %s66
      %p80 = scmp.eq.s32.totalorder %s20, 7
      %p81 = por %p79, %p80
      %p83 = scmp.ne.s32.totalorder %s66, %s82
      %p84 = scmp.eq.s32.totalorder %s20, 0
      %p85 = por %p83, %p84
      %s87 = sadd.s32 %s86, 1
      %p90 = scmp.eq.s32.totalorder %s14, 7
      %p91 = scmp.ne.s32.totalorder %s86, %s88
      %p92 = scmp.eq.s32.totalorder %s14, 0
      %p93 = por %p91, %p92
      %p94 = scmp.ne.s32.totalorder %s86, %s88
      %p95 = scmp.eq.s32.totalorder %s19, 7
      %p96 = por %p94, %p95
      %p97 = scmp.ne.s32.totalorder %s88, %s89
      %p98 = scmp.eq.s32.totalorder %s19, 0
      %p99 = por %p97, %p98
      %p100 = scmp.ne.s32.totalorder %s88, %s89
      %p101 = scmp.eq.s32.totalorder %s20, 7
      %p102 = por %p100, %p101
      %p104 = scmp.ne.s32.totalorder %s89, %s103
      %p105 = scmp.eq.s32.totalorder %s20, 0
      %p106 = por %p104, %p105
      %s108 = sadd.s32 %s107, 1
      %p111 = scmp.eq.s32.totalorder %s14, 7
      %p112 = scmp.ne.s32.totalorder %s107, %s109
      %p113 = scmp.eq.s32.totalorder %s14, 0
      %p114 = por %p112, %p113
      %p115 = scmp.ne.s32.totalorder %s107, %s109
      %p116 = scmp.eq.s32.totalorder %s19, 7
      %p117 = por %p115, %p116
      %p118 = scmp.ne.s32.totalorder %s109, %s110
      %p119 = scmp.eq.s32.totalorder %s19, 0
      %p120 = por %p118, %p119
      %p121 = scmp.ne.s32.totalorder %s109, %s110
      %p122 = scmp.eq.s32.totalorder %s20, 7
      %p123 = por %p121, %p122
      %p125 = scmp.ne.s32.totalorder %s110, %s124
      %p126 = scmp.eq.s32.totalorder %s20, 0
      %p127 = por %p125, %p126
      %s128 = ssub.s32 %s22, %s29
      %p129 = scmp.eq.s32.totalorder %s128, 0
      %s131 = sadd.s32 %s130, 1
      %s132 = scalar_select %p129, %s130, %s131
      %p135 = pneg %p129
      %p136 = scmp.eq.s32.totalorder %s14, 7
      %p137 = por %p135, %p136
      %p138 = scmp.ne.s32.totalorder %s130, %s133
      %p139 = scmp.eq.s32.totalorder %s14, 0
      %p140 = por %p138, %p139
      %p141 = scmp.ne.s32.totalorder %s130, %s133
      %p142 = scmp.eq.s32.totalorder %s19, 7
      %p143 = por %p141, %p142
      %p144 = scmp.ne.s32.totalorder %s133, %s134
      %p145 = scmp.eq.s32.totalorder %s19, 0
      %p146 = por %p144, %p145
      %p147 = scmp.ne.s32.totalorder %s133, %s134
      %p148 = scmp.eq.s32.totalorder %s20, 7
      %p149 = por %p147, %p148
      %p151 = scmp.ne.s32.totalorder %s134, %s150
      %p152 = scmp.eq.s32.totalorder %s20, 0
      %p153 = por %p151, %p152
      %s155 = sadd.s32 %s154, 1
      %p158 = scmp.eq.s32.totalorder %s14, 7
      %p159 = scmp.ne.s32.totalorder %s154, %s156
      %p160 = scmp.eq.s32.totalorder %s14, 0
      %p161 = por %p159, %p160
      %p162 = scmp.ne.s32.totalorder %s154, %s156
      %p163 = scmp.eq.s32.totalorder %s19, 7
      %p164 = por %p162, %p163
      %p165 = scmp.ne.s32.totalorder %s156, %s157
      %p166 = scmp.eq.s32.totalorder %s19, 0
      %p167 = por %p165, %p166
      %p168 = scmp.ne.s32.totalorder %s156, %s157
      %p169 = scmp.eq.s32.totalorder %s20, 7
      %p170 = por %p168, %p169
      %p172 = scmp.ne.s32.totalorder %s157, %s171
      %p173 = scmp.eq.s32.totalorder %s20, 0
      %p174 = por %p172, %p173
      %s176 = sadd.s32 %s175, 1
      %p179 = scmp.eq.s32.totalorder %s14, 7
      %p180 = scmp.ne.s32.totalorder %s175, %s177
      %p181 = scmp.eq.s32.totalorder %s14, 0
      %p182 = por %p180, %p181
      %p183 = scmp.ne.s32.totalorder %s175, %s177
      %p184 = scmp.eq.s32.totalorder %s19, 7
      %p185 = por %p183, %p184
      %p186 = scmp.ne.s32.totalorder %s177, %s178
      %p187 = scmp.eq.s32.totalorder %s19, 0
      %p188 = por %p186, %p187
      %p189 = scmp.ne.s32.totalorder %s177, %s178
      %p190 = scmp.eq.s32.totalorder %s20, 7
      %p191 = por %p189, %p190
      %p193 = scmp.ne.s32.totalorder %s178, %s192
      %p194 = scmp.eq.s32.totalorder %s20, 0
      %p195 = por %p193, %p194
      %s197 = sadd.s32 %s196, 1
      %p200 = scmp.eq.s32.totalorder %s14, 7
      %p201 = scmp.ne.s32.totalorder %s196, %s198
      %p202 = scmp.eq.s32.totalorder %s14, 0
      %p203 = por %p201, %p202
      %p204 = scmp.ne.s32.totalorder %s196, %s198
      %p205 = scmp.eq.s32.totalorder %s19, 7
      %p206 = por %p204, %p205
      %p207 = scmp.ne.s32.totalorder %s198, %s199
      %p208 = scmp.eq.s32.totalorder %s19, 0
      %p209 = por %p207, %p208
      %p210 = scmp.ne.s32.totalorder %s198, %s199
      %p211 = scmp.eq.s32.totalorder %s20, 7
      %p212 = por %p210, %p211
      %p214 = scmp.ne.s32.totalorder %s199, %s213
      %p215 = scmp.eq.s32.totalorder %s20, 0
      %p216 = por %p214, %p215
      %s217 = ssub.s32 %s21, %s33
      %p218 = scmp.eq.s32.totalorder %s217, 0
      %s220 = sadd.s32 %s219, 1
      %s221 = scalar_select %p218, %s219, %s220
      %p224 = pneg %p218
      %p225 = scmp.eq.s32.totalorder %s14, 7
      %p226 = por %p224, %p225
      %p227 = scmp.ne.s32.totalorder %s219, %s222
      %p228 = scmp.eq.s32.totalorder %s14, 0
      %p229 = por %p227, %p228
      %p230 = scmp.ne.s32.totalorder %s219, %s222
      %p231 = scmp.eq.s32.totalorder %s19, 7
      %p232 = por %p230, %p231
      %p233 = scmp.ne.s32.totalorder %s222, %s223
      %p234 = scmp.eq.s32.totalorder %s19, 0
      %p235 = por %p233, %p234
      %p236 = scmp.ne.s32.totalorder %s222, %s223
      %p237 = scmp.eq.s32.totalorder %s20, 7
      %p238 = por %p236, %p237
      %p240 = scmp.ne.s32.totalorder %s223, %s239
      %p241 = scmp.eq.s32.totalorder %s20, 0
      %p242 = por %p240, %p241
      %p243 = scmp.le.s32.totalorder 1, %s14
      %p244 = scmp.lt.s32.totalorder %s14, 9
      %p245 = pnand %p243, %p244
      %p246 = pneg %p245
      // Predicated region
      $region9: #{psa_head_forward.5} parent=5 // pred_check
        _
      $region10: #{psa_head_forward.5} parent=5 // pred_check_branch
        %248 = sbr.rel (%p245) target = $region12
      $region11: #{psa_head_forward.5} parent=5 // pred_region
        %s249 = ssub.s32 %s14, 1
        // Predicated region
        $region13: #{psa_head_forward.5} parent=11 // pred_check
          %p250 = pneg %p99
        $region14: #{psa_head_forward.5} parent=11 // pred_check_branch
          %252 = sbr.rel (%p250) target = $region16
        $region15: #{psa_head_forward.5} parent=11 // pred_region
          _
        $region16: #{psa_head_forward.5} parent=11 // pred_fallthru
          _
        // Predicated region
        $region17: #{psa_head_forward.5} parent=11 // pred_check
          %p253 = pneg %p120
        $region18: #{psa_head_forward.5} parent=11 // pred_check_branch
          %255 = sbr.rel (%p253) target = $region20
        $region19: #{psa_head_forward.5} parent=11 // pred_region
          _
        $region20: #{psa_head_forward.5} parent=11 // pred_fallthru
          _
        // Predicated region
        $region21: #{psa_head_forward.5} parent=11 // pred_check
          %p256 = pneg %p167
        $region22: #{psa_head_forward.5} parent=11 // pred_check_branch
          %258 = sbr.rel (%p256) target = $region24
        $region23: #{psa_head_forward.5} parent=11 // pred_region
          _
        $region24: #{psa_head_forward.5} parent=11 // pred_fallthru
          _
        // Predicated region
        $region25: #{psa_head_forward.5} parent=11 // pred_check
          %p259 = pneg %p188
        $region26: #{psa_head_forward.5} parent=11 // pred_check_branch
          %261 = sbr.rel (%p259) target = $region28
        $region27: #{psa_head_forward.5} parent=11 // pred_region
          _
        $region28: #{psa_head_forward.5} parent=11 // pred_fallthru
          _
        // Predicated region
        $region29: #{psa_head_forward.5} parent=11 // pred_check
          %p262 = pneg %p209
        $region30: #{psa_head_forward.5} parent=11 // pred_check_branch
          %264 = sbr.rel (%p262) target = $region32
        $region31: #{psa_head_forward.5} parent=11 // pred_region
          _
        $region32: #{psa_head_forward.5} parent=11 // pred_fallthru
          _
      $region12: #{psa_head_forward.5} parent=5 // pred_fallthru
        _
      %p265 = scmp.lt.s32.totalorder %s14, 8
      // Predicated region
      $region33: #{psa_head_forward.5} parent=5 // pred_check
        %p266 = pneg %p265
      $region34: #{psa_head_forward.5} parent=5 // pred_check_branch
        %268 = sbr.rel (%p266) target = $region36
      $region35: #{psa_head_forward.5} parent=5 // pred_region
        // Predicated region
        $region37: #{psa_head_forward.5} parent=35 // pred_check
          %p269 = pneg %p46
        $region38: #{psa_head_forward.5} parent=35 // pred_check_branch
          %271 = sbr.rel (%p269) target = $region40
        $region39: #{psa_head_forward.5} parent=35 // pred_region
          %p272 = scmp.lt.s32.totalorder %s21, 1
          %s273 = scalar_select %p272, %s21, 1
          %s274 = smul.addr %s273, 16
          %s275 = smul.addr %s274, 4
          %s276 = scalar_lea.vmem %s0, %s275
        $region40: #{psa_head_forward.5} parent=35 // pred_fallthru
          _
        // Predicated region
        $region41: #{psa_head_forward.5} parent=35 // pred_check
          %p277 = pneg %p72
        $region42: #{psa_head_forward.5} parent=35 // pred_check_branch
          %279 = sbr.rel (%p277) target = $region44
        $region43: #{psa_head_forward.5} parent=35 // pred_region
          %p280 = scmp.lt.s32.totalorder %s21, 1
          %s281 = scalar_select %p280, %s21, 1
          %s282 = smul.addr %s281, 16
          %s283 = smul.addr %s282, 4
          %s284 = scalar_lea.vmem %s1, %s283
        $region44: #{psa_head_forward.5} parent=35 // pred_fallthru
          _
        // Predicated region
        $region45: #{psa_head_forward.5} parent=35 // pred_check
          %p285 = pneg %p140
        $region46: #{psa_head_forward.5} parent=35 // pred_check_branch
          %287 = sbr.rel (%p285) target = $region48
        $region47: #{psa_head_forward.5} parent=35 // pred_region
          %s288 = sand.u32 %s130, 1
          %s289 = sand.u32 %s130, 1
          %s290 = smul.addr %s289, 576
          %s291 = scalar_lea.vmem [#allocation4], %s290
          %s292 = smul.u32 16, %s22
          %s293 = smul.addr %s292, 4
          %s294 = scalar_lea.vmem %s4, %s293
          // Predicated region
          $region49: #{psa_head_forward.5} parent=47 // pred_check
            _
          $region50: #{psa_head_forward.5} parent=47 // pred_check_branch
            %296 = sbr.rel (0) target = $region52
          $region51: #{psa_head_forward.5} parent=47 // pred_region
            // Predicated region
            $region53: #{psa_head_forward.5} parent=51 // pred_check
              _
            $region54: #{psa_head_forward.5} parent=51 // pred_check_branch
              %298 = sbr.rel target = $region56
            $region55: #{psa_head_forward.5} parent=51 // pred_region
              // Predicated region
              $region68: #{psa_head_forward.5} parent=55 // pred_check
                _
              $region69: #{psa_head_forward.5} parent=55 // pred_check_branch
                %599 = sbr.rel (0) target = $region71
              $region70: #{psa_head_forward.5} parent=55 // pred_region
                loop: start=0, step=1, limit=1
                $region72: #{psa_head_forward.5} parent=70 // loop_pre_header
                  _
                $region73: #{psa_head_forward.5} parent=70 // loop_header
                  %s601 = sphi 0, %s605
                  %p602 = scmp.ge.s32.totalorder %s601, 1
                  %s606 = sphi %s294, %s294
                  %s607 = sphi %s291, %s291
                $region74: #{psa_head_forward.5} parent=70 // loop_header_branch
                  %604 = sbr.rel (%p602) target = $region78
                $region75: #{psa_head_forward.5} parent=70 // loop_body
                  _
                $region76: #{psa_head_forward.5} parent=70 // loop_footer
                  %s605 = sadd.s32 1, %s601
                $region77: #{psa_head_forward.5} parent=70 // loop_footer_branch
                  %600 = sbr.rel target = $region73
                $region78: #{psa_head_forward.5} parent=70 // loop_exit
                  _
                loop: start=0, step=1, limit=1
                $region79: #{psa_head_forward.5} parent=70 // loop_pre_header
                  _
                $region80: #{psa_head_forward.5} parent=70 // loop_header
                  %s610 = sphi 0, %s614
                  %p611 = scmp.ge.s32.totalorder %s610, 1
                  %s615 = sphi %s294, %s294
                  %s616 = sphi %s291, %s291
                $region81: #{psa_head_forward.5} parent=70 // loop_header_branch
                  %613 = sbr.rel (%p611) target = $region85
                $region82: #{psa_head_forward.5} parent=70 // loop_body
                  %v617 = vld [vmem:[%s615] sm:$0xf]
                  %618 = vst [vmem:[%s616] sm:$0xf] %v617
                  %v619 = vld [vmem:[%s615 + $0x4] sm:$0xf]
                  %620 = vst [vmem:[%s616 + $0x4] sm:$0xf] %v619
                  %v621 = vld [vmem:[%s615 + $0x8] sm:$0xf]
                  %622 = vst [vmem:[%s616 + $0x8] sm:$0xf] %v621
                  %v623 = vld [vmem:[%s615 + $0xc] sm:$0xf]
                  %624 = vst [vmem:[%s616 + $0xc] sm:$0xf] %v623
                  %v625 = vld [vmem:[%s615 + $0x10] sm:$0xf]
                  %626 = vst [vmem:[%s616 + $0x10] sm:$0xf] %v625
                  %v627 = vld [vmem:[%s615 + $0x14] sm:$0xf]
                  %628 = vst [vmem:[%s616 + $0x14] sm:$0xf] %v627
                  %v629 = vld [vmem:[%s615 + $0x18] sm:$0xf]
                  %630 = vst [vmem:[%s616 + $0x18] sm:$0xf] %v629
                  %v631 = vld [vmem:[%s615 + $0x1c] sm:$0xf]
                  %632 = vst [vmem:[%s616 + $0x1c] sm:$0xf] %v631
                  %v633 = vld [vmem:[%s615 + $0x20] sm:$0xf]
                  %634 = vst [vmem:[%s616 + $0x20] sm:$0xf] %v633
                  %v635 = vld [vmem:[%s615 + $0x24] sm:$0xf]
                  %636 = vst [vmem:[%s616 + $0x24] sm:$0xf] %v635
                  %v637 = vld [vmem:[%s615 + $0x28] sm:$0xf]
                  %638 = vst [vmem:[%s616 + $0x28] sm:$0xf] %v637
                  %v639 = vld [vmem:[%s615 + $0x2c] sm:$0xf]
                  %640 = vst [vmem:[%s616 + $0x2c] sm:$0xf] %v639
                  %v641 = vld [vmem:[%s615 + $0x30] sm:$0xf]
                  %642 = vst [vmem:[%s616 + $0x30] sm:$0xf] %v641
                  %v643 = vld [vmem:[%s615 + $0x34] sm:$0xf]
                  %644 = vst [vmem:[%s616 + $0x34] sm:$0xf] %v643
                  %v645 = vld [vmem:[%s615 + $0x38] sm:$0xf]
                  %646 = vst [vmem:[%s616 + $0x38] sm:$0xf] %v645
                  %v647 = vld [vmem:[%s615 + $0x3c] sm:$0xf]
                  %648 = vst [vmem:[%s616 + $0x3c] sm:$0xf] %v647
                  %v649 = vld [vmem:[%s615 + $0x100] sm:$0xf]
                  %650 = vst [vmem:[%s616 + $0x40] sm:$0xf] %v649
                  %v651 = vld [vmem:[%s615 + $0x104] sm:$0xf]
                  %652 = vst [vmem:[%s616 + $0x44] sm:$0xf] %v651
                  %v653 = vld [vmem:[%s615 + $0x108] sm:$0xf]
                  %654 = vst [vmem:[%s616 + $0x48] sm:$0xf] %v653
                  %v655 = vld [vmem:[%s615 + $0x10c] sm:$0xf]
                  %656 = vst [vmem:[%s616 + $0x4c] sm:$0xf] %v655
                  %v657 = vld [vmem:[%s615 + $0x110] sm:$0xf]
                  %658 = vst [vmem:[%s616 + $0x50] sm:$0xf] %v657
                  %v659 = vld [vmem:[%s615 + $0x114] sm:$0xf]
                  %660 = vst [vmem:[%s616 + $0x54] sm:$0xf] %v659
                  %v661 = vld [vmem:[%s615 + $0x118] sm:$0xf]
                  %662 = vst [vmem:[%s616 + $0x58] sm:$0xf] %v661
                  %v663 = vld [vmem:[%s615 + $0x11c] sm:$0xf]
                  %664 = vst [vmem:[%s616 + $0x5c] sm:$0xf] %v663
                  %v665 = vld [vmem:[%s615 + $0x120] sm:$0xf]
                  %666 = vst [vmem:[%s616 + $0x60] sm:$0xf] %v665
                  %v667 = vld [vmem:[%s615 + $0x124] sm:$0xf]
                  %668 = vst [vmem:[%s616 + $0x64] sm:$0xf] %v667
                  %v669 = vld [vmem:[%s615 + $0x128] sm:$0xf]
                  %670 = vst [vmem:[%s616 + $0x68] sm:$0xf] %v669
                  %v671 = vld [vmem:[%s615 + $0x12c] sm:$0xf]
                  %672 = vst [vmem:[%s616 + $0x6c] sm:$0xf] %v671
                  %v673 = vld [vmem:[%s615 + $0x130] sm:$0xf]
                  %674 = vst [vmem:[%s616 + $0x70] sm:$0xf] %v673
                  %v675 = vld [vmem:[%s615 + $0x134] sm:$0xf]
                  %676 = vst [vmem:[%s616 + $0x74] sm:$0xf] %v675
                  %v677 = vld [vmem:[%s615 + $0x138] sm:$0xf]
                  %678 = vst [vmem:[%s616 + $0x78] sm:$0xf] %v677
                  %v679 = vld [vmem:[%s615 + $0x13c] sm:$0xf]
                  %680 = vst [vmem:[%s616 + $0x7c] sm:$0xf] %v679
                  %v681 = vld [vmem:[%s615 + $0x200] sm:$0xf]
                  %682 = vst [vmem:[%s616 + $0x80] sm:$0xf] %v681
                  %v683 = vld [vmem:[%s615 + $0x204] sm:$0xf]
                  %684 = vst [vmem:[%s616 + $0x84] sm:$0xf] %v683
                  %v685 = vld [vmem:[%s615 + $0x208] sm:$0xf]
                  %686 = vst [vmem:[%s616 + $0x88] sm:$0xf] %v685
                  %v687 = vld [vmem:[%s615 + $0x20c] sm:$0xf]
                  %688 = vst [vmem:[%s616 + $0x8c] sm:$0xf] %v687
                  %v689 = vld [vmem:[%s615 + $0x210] sm:$0xf]
                  %690 = vst [vmem:[%s616 + $0x90] sm:$0xf] %v689
                  %v691 = vld [vmem:[%s615 + $0x214] sm:$0xf]
                  %692 = vst [vmem:[%s616 + $0x94] sm:$0xf] %v691
                  %v693 = vld [vmem:[%s615 + $0x218] sm:$0xf]
                  %694 = vst [vmem:[%s616 + $0x98] sm:$0xf] %v693
                  %v695 = vld [vmem:[%s615 + $0x21c] sm:$0xf]
                  %696 = vst [vmem:[%s616 + $0x9c] sm:$0xf] %v695
                  %v697 = vld [vmem:[%s615 + $0x220] sm:$0xf]
                  %698 = vst [vmem:[%s616 + $0xa0] sm:$0xf] %v697
                  %v699 = vld [vmem:[%s615 + $0x224] sm:$0xf]
                  %700 = vst [vmem:[%s616 + $0xa4] sm:$0xf] %v699
                  %v701 = vld [vmem:[%s615 + $0x228] sm:$0xf]
                  %702 = vst [vmem:[%s616 + $0xa8] sm:$0xf] %v701
                  %v703 = vld [vmem:[%s615 + $0x22c] sm:$0xf]
                  %704 = vst [vmem:[%s616 + $0xac] sm:$0xf] %v703
                  %v705 = vld [vmem:[%s615 + $0x230] sm:$0xf]
                  %706 = vst [vmem:[%s616 + $0xb0] sm:$0xf] %v705
                  %v707 = vld [vmem:[%s615 + $0x234] sm:$0xf]
                  %708 = vst [vmem:[%s616 + $0xb4] sm:$0xf] %v707
                  %v709 = vld [vmem:[%s615 + $0x238] sm:$0xf]
                  %710 = vst [vmem:[%s616 + $0xb8] sm:$0xf] %v709
                  %v711 = vld [vmem:[%s615 + $0x23c] sm:$0xf]
                  %712 = vst [vmem:[%s616 + $0xbc] sm:$0xf] %v711
                  %v713 = vld [vmem:[%s615 + $0x300] sm:$0xf]
                  %714 = vst [vmem:[%s616 + $0xc0] sm:$0xf] %v713
                  %v715 = vld [vmem:[%s615 + $0x304] sm:$0xf]
                  %716 = vst [vmem:[%s616 + $0xc4] sm:$0xf] %v715
                  %v717 = vld [vmem:[%s615 + $0x308] sm:$0xf]
                  %718 = vst [vmem:[%s616 + $0xc8] sm:$0xf] %v717
                  %v719 = vld [vmem:[%s615 + $0x30c] sm:$0xf]
                  %720 = vst [vmem:[%s616 + $0xcc] sm:$0xf] %v719
                  %v721 = vld [vmem:[%s615 + $0x310] sm:$0xf]
                  %722 = vst [vmem:[%s616 + $0xd0] sm:$0xf] %v721
                  %v723 = vld [vmem:[%s615 + $0x314] sm:$0xf]
                  %724 = vst [vmem:[%s616 + $0xd4] sm:$0xf] %v723
                  %v725 = vld [vmem:[%s615 + $0x318] sm:$0xf]
                  %726 = vst [vmem:[%s616 + $0xd8] sm:$0xf] %v725
                  %v727 = vld [vmem:[%s615 + $0x31c] sm:$0xf]
                  %728 = vst [vmem:[%s616 + $0xdc] sm:$0xf] %v727
                  %v729 = vld [vmem:[%s615 + $0x320] sm:$0xf]
                  %730 = vst [vmem:[%s616 + $0xe0] sm:$0xf] %v729
                  %v731 = vld [vmem:[%s615 + $0x324] sm:$0xf]
                  %732 = vst [vmem:[%s616 + $0xe4] sm:$0xf] %v731
                  %v733 = vld [vmem:[%s615 + $0x328] sm:$0xf]
                  %734 = vst [vmem:[%s616 + $0xe8] sm:$0xf] %v733
                  %v735 = vld [vmem:[%s615 + $0x32c] sm:$0xf]
                  %736 = vst [vmem:[%s616 + $0xec] sm:$0xf] %v735
                  %v737 = vld [vmem:[%s615 + $0x330] sm:$0xf]
                  %738 = vst [vmem:[%s616 + $0xf0] sm:$0xf] %v737
                  %v739 = vld [vmem:[%s615 + $0x334] sm:$0xf]
                  %740 = vst [vmem:[%s616 + $0xf4] sm:$0xf] %v739
                  %v741 = vld [vmem:[%s615 + $0x338] sm:$0xf]
                  %742 = vst [vmem:[%s616 + $0xf8] sm:$0xf] %v741
                  %v743 = vld [vmem:[%s615 + $0x33c] sm:$0xf]
                  %744 = vst [vmem:[%s616 + $0xfc] sm:$0xf] %v743
                  %v745 = vld [vmem:[%s615 + $0x400] sm:$0xf]
                  %746 = vst [vmem:[%s616 + $0x100] sm:$0xf] %v745
                  %v747 = vld [vmem:[%s615 + $0x404] sm:$0xf]
                  %748 = vst [vmem:[%s616 + $0x104] sm:$0xf] %v747
                  %v749 = vld [vmem:[%s615 + $0x408] sm:$0xf]
                  %750 = vst [vmem:[%s616 + $0x108] sm:$0xf] %v749
                  %v751 = vld [vmem:[%s615 + $0x40c] sm:$0xf]
                  %752 = vst [vmem:[%s616 + $0x10c] sm:$0xf] %v751
                  %v753 = vld [vmem:[%s615 + $0x410] sm:$0xf]
                  %754 = vst [vmem:[%s616 + $0x110] sm:$0xf] %v753
                  %v755 = vld [vmem:[%s615 + $0x414] sm:$0xf]
                  %756 = vst [vmem:[%s616 + $0x114] sm:$0xf] %v755
                  %v757 = vld [vmem:[%s615 + $0x418] sm:$0xf]
                  %758 = vst [vmem:[%s616 + $0x118] sm:$0xf] %v757
                  %v759 = vld [vmem:[%s615 + $0x41c] sm:$0xf]
                  %760 = vst [vmem:[%s616 + $0x11c] sm:$0xf] %v759
                  %v761 = vld [vmem:[%s615 + $0x420] sm:$0xf]
                  %762 = vst [vmem:[%s616 + $0x120] sm:$0xf] %v761
                  %v763 = vld [vmem:[%s615 + $0x424] sm:$0xf]
                  %764 = vst [vmem:[%s616 + $0x124] sm:$0xf] %v763
                  %v765 = vld [vmem:[%s615 + $0x428] sm:$0xf]
                  %766 = vst [vmem:[%s616 + $0x128] sm:$0xf] %v765
                  %v767 = vld [vmem:[%s615 + $0x42c] sm:$0xf]
                  %768 = vst [vmem:[%s616 + $0x12c] sm:$0xf] %v767
                  %v769 = vld [vmem:[%s615 + $0x430] sm:$0xf]
                  %770 = vst [vmem:[%s616 + $0x130] sm:$0xf] %v769
                  %v771 = vld [vmem:[%s615 + $0x434] sm:$0xf]
                  %772 = vst [vmem:[%s616 + $0x134] sm:$0xf] %v771
                  %v773 = vld [vmem:[%s615 + $0x438] sm:$0xf]
                  %774 = vst [vmem:[%s616 + $0x138] sm:$0xf] %v773
                  %v775 = vld [vmem:[%s615 + $0x43c] sm:$0xf]
                  %776 = vst [vmem:[%s616 + $0x13c] sm:$0xf] %v775
                  %v777 = vld [vmem:[%s615 + $0x500] sm:$0xf]
                  %778 = vst [vmem:[%s616 + $0x140] sm:$0xf] %v777
                  %v779 = vld [vmem:[%s615 + $0x504] sm:$0xf]
                  %780 = vst [vmem:[%s616 + $0x144] sm:$0xf] %v779
                  %v781 = vld [vmem:[%s615 + $0x508] sm:$0xf]
                  %782 = vst [vmem:[%s616 + $0x148] sm:$0xf] %v781
                  %v783 = vld [vmem:[%s615 + $0x50c] sm:$0xf]
                  %784 = vst [vmem:[%s616 + $0x14c] sm:$0xf] %v783
                  %v785 = vld [vmem:[%s615 + $0x510] sm:$0xf]
                  %786 = vst [vmem:[%s616 + $0x150] sm:$0xf] %v785
                  %v787 = vld [vmem:[%s615 + $0x514] sm:$0xf]
                  %788 = vst [vmem:[%s616 + $0x154] sm:$0xf] %v787
                  %v789 = vld [vmem:[%s615 + $0x518] sm:$0xf]
                  %790 = vst [vmem:[%s616 + $0x158] sm:$0xf] %v789
                  %v791 = vld [vmem:[%s615 + $0x51c] sm:$0xf]
                  %792 = vst [vmem:[%s616 + $0x15c] sm:$0xf] %v791
                  %v793 = vld [vmem:[%s615 + $0x520] sm:$0xf]
                  %794 = vst [vmem:[%s616 + $0x160] sm:$0xf] %v793
                  %v795 = vld [vmem:[%s615 + $0x524] sm:$0xf]
                  %796 = vst [vmem:[%s616 + $0x164] sm:$0xf] %v795
                  %v797 = vld [vmem:[%s615 + $0x528] sm:$0xf]
                  %798 = vst [vmem:[%s616 + $0x168] sm:$0xf] %v797
                  %v799 = vld [vmem:[%s615 + $0x52c] sm:$0xf]
                  %800 = vst [vmem:[%s616 + $0x16c] sm:$0xf] %v799
                  %v801 = vld [vmem:[%s615 + $0x530] sm:$0xf]
                  %802 = vst [vmem:[%s616 + $0x170] sm:$0xf] %v801
                  %v803 = vld [vmem:[%s615 + $0x534] sm:$0xf]
                  %804 = vst [vmem:[%s616 + $0x174] sm:$0xf] %v803
                  %v805 = vld [vmem:[%s615 + $0x538] sm:$0xf]
                  %806 = vst [vmem:[%s616 + $0x178] sm:$0xf] %v805
                  %v807 = vld [vmem:[%s615 + $0x53c] sm:$0xf]
                  %808 = vst [vmem:[%s616 + $0x17c] sm:$0xf] %v807
                  %v809 = vld [vmem:[%s615 + $0x600] sm:$0xf]
                  %810 = vst [vmem:[%s616 + $0x180] sm:$0xf] %v809
                  %v811 = vld [vmem:[%s615 + $0x604] sm:$0xf]
                  %812 = vst [vmem:[%s616 + $0x184] sm:$0xf] %v811
                  %v813 = vld [vmem:[%s615 + $0x608] sm:$0xf]
                  %814 = vst [vmem:[%s616 + $0x188] sm:$0xf] %v813
                  %v815 = vld [vmem:[%s615 + $0x60c] sm:$0xf]
                  %816 = vst [vmem:[%s616 + $0x18c] sm:$0xf] %v815
                  %v817 = vld [vmem:[%s615 + $0x610] sm:$0xf]
                  %818 = vst [vmem:[%s616 + $0x190] sm:$0xf] %v817
                  %v819 = vld [vmem:[%s615 + $0x614] sm:$0xf]
                  %820 = vst [vmem:[%s616 + $0x194] sm:$0xf] %v819
                  %v821 = vld [vmem:[%s615 + $0x618] sm:$0xf]
                  %822 = vst [vmem:[%s616 + $0x198] sm:$0xf] %v821
                  %v823 = vld [vmem:[%s615 + $0x61c] sm:$0xf]
                  %824 = vst [vmem:[%s616 + $0x19c] sm:$0xf] %v823
                  %v825 = vld [vmem:[%s615 + $0x620] sm:$0xf]
                  %826 = vst [vmem:[%s616 + $0x1a0] sm:$0xf] %v825
                  %v827 = vld [vmem:[%s615 + $0x624] sm:$0xf]
                  %828 = vst [vmem:[%s616 + $0x1a4] sm:$0xf] %v827
                  %v829 = vld [vmem:[%s615 + $0x628] sm:$0xf]
                  %830 = vst [vmem:[%s616 + $0x1a8] sm:$0xf] %v829
                  %v831 = vld [vmem:[%s615 + $0x62c] sm:$0xf]
                  %832 = vst [vmem:[%s616 + $0x1ac] sm:$0xf] %v831
                  %v833 = vld [vmem:[%s615 + $0x630] sm:$0xf]
                  %834 = vst [vmem:[%s616 + $0x1b0] sm:$0xf] %v833
                  %v835 = vld [vmem:[%s615 + $0x634] sm:$0xf]
                  %836 = vst [vmem:[%s616 + $0x1b4] sm:$0xf] %v835
                  %v837 = vld [vmem:[%s615 + $0x638] sm:$0xf]
                  %838 = vst [vmem:[%s616 + $0x1b8] sm:$0xf] %v837
                  %v839 = vld [vmem:[%s615 + $0x63c] sm:$0xf]
                  %840 = vst [vmem:[%s616 + $0x1bc] sm:$0xf] %v839
                  %v841 = vld [vmem:[%s615 + $0x700] sm:$0xf]
                  %842 = vst [vmem:[%s616 + $0x1c0] sm:$0xf] %v841
                  %v843 = vld [vmem:[%s615 + $0x704] sm:$0xf]
                  %844 = vst [vmem:[%s616 + $0x1c4] sm:$0xf] %v843
                  %v845 = vld [vmem:[%s615 + $0x708] sm:$0xf]
                  %846 = vst [vmem:[%s616 + $0x1c8] sm:$0xf] %v845
                  %v847 = vld [vmem:[%s615 + $0x70c] sm:$0xf]
                  %848 = vst [vmem:[%s616 + $0x1cc] sm:$0xf] %v847
                  %v849 = vld [vmem:[%s615 + $0x710] sm:$0xf]
                  %850 = vst [vmem:[%s616 + $0x1d0] sm:$0xf] %v849
                  %v851 = vld [vmem:[%s615 + $0x714] sm:$0xf]
                  %852 = vst [vmem:[%s616 + $0x1d4] sm:$0xf] %v851
                  %v853 = vld [vmem:[%s615 + $0x718] sm:$0xf]
                  %854 = vst [vmem:[%s616 + $0x1d8] sm:$0xf] %v853
                  %v855 = vld [vmem:[%s615 + $0x71c] sm:$0xf]
                  %856 = vst [vmem:[%s616 + $0x1dc] sm:$0xf] %v855
                  %v857 = vld [vmem:[%s615 + $0x720] sm:$0xf]
                  %858 = vst [vmem:[%s616 + $0x1e0] sm:$0xf] %v857
                  %v859 = vld [vmem:[%s615 + $0x724] sm:$0xf]
                  %860 = vst [vmem:[%s616 + $0x1e4] sm:$0xf] %v859
                  %v861 = vld [vmem:[%s615 + $0x728] sm:$0xf]
                  %862 = vst [vmem:[%s616 + $0x1e8] sm:$0xf] %v861
                  %v863 = vld [vmem:[%s615 + $0x72c] sm:$0xf]
                  %864 = vst [vmem:[%s616 + $0x1ec] sm:$0xf] %v863
                  %v865 = vld [vmem:[%s615 + $0x730] sm:$0xf]
                  %866 = vst [vmem:[%s616 + $0x1f0] sm:$0xf] %v865
                  %v867 = vld [vmem:[%s615 + $0x734] sm:$0xf]
                  %868 = vst [vmem:[%s616 + $0x1f4] sm:$0xf] %v867
                  %v869 = vld [vmem:[%s615 + $0x738] sm:$0xf]
                  %870 = vst [vmem:[%s616 + $0x1f8] sm:$0xf] %v869
                  %v871 = vld [vmem:[%s615 + $0x73c] sm:$0xf]
                  %872 = vst [vmem:[%s616 + $0x1fc] sm:$0xf] %v871
                  %v873 = vld [vmem:[%s615 + $0x800] sm:$0xf]
                  %874 = vst [vmem:[%s616 + $0x200] sm:$0xf] %v873
                  %v875 = vld [vmem:[%s615 + $0x804] sm:$0xf]
                  %876 = vst [vmem:[%s616 + $0x204] sm:$0xf] %v875
                  %v877 = vld [vmem:[%s615 + $0x808] sm:$0xf]
                  %878 = vst [vmem:[%s616 + $0x208] sm:$0xf] %v877
                  %v879 = vld [vmem:[%s615 + $0x80c] sm:$0xf]
                  %880 = vst [vmem:[%s616 + $0x20c] sm:$0xf] %v879
                  %v881 = vld [vmem:[%s615 + $0x810] sm:$0xf]
                  %882 = vst [vmem:[%s616 + $0x210] sm:$0xf] %v881
                  %v883 = vld [vmem:[%s615 + $0x814] sm:$0xf]
                  %884 = vst [vmem:[%s616 + $0x214] sm:$0xf] %v883
                  %v885 = vld [vmem:[%s615 + $0x818] sm:$0xf]
                  %886 = vst [vmem:[%s616 + $0x218] sm:$0xf] %v885
                  %v887 = vld [vmem:[%s615 + $0x81c] sm:$0xf]
                  %888 = vst [vmem:[%s616 + $0x21c] sm:$0xf] %v887
                  %v889 = vld [vmem:[%s615 + $0x820] sm:$0xf]
                  %890 = vst [vmem:[%s616 + $0x220] sm:$0xf] %v889
                  %v891 = vld [vmem:[%s615 + $0x824] sm:$0xf]
                  %892 = vst [vmem:[%s616 + $0x224] sm:$0xf] %v891
                  %v893 = vld [vmem:[%s615 + $0x828] sm:$0xf]
                  %894 = vst [vmem:[%s616 + $0x228] sm:$0xf] %v893
                  %v895 = vld [vmem:[%s615 + $0x82c] sm:$0xf]
                  %896 = vst [vmem:[%s616 + $0x22c] sm:$0xf] %v895
                  %v897 = vld [vmem:[%s615 + $0x830] sm:$0xf]
                  %898 = vst [vmem:[%s616 + $0x230] sm:$0xf] %v897
                  %v899 = vld [vmem:[%s615 + $0x834] sm:$0xf]
                  %900 = vst [vmem:[%s616 + $0x234] sm:$0xf] %v899
                  %v901 = vld [vmem:[%s615 + $0x838] sm:$0xf]
                  %902 = vst [vmem:[%s616 + $0x238] sm:$0xf] %v901
                  %v903 = vld [vmem:[%s615 + $0x83c] sm:$0xf]
                  %904 = vst [vmem:[%s616 + $0x23c] sm:$0xf] %v903
                $region83: #{psa_head_forward.5} parent=70 // loop_footer
                  %s614 = sadd.s32 1, %s610
                $region84: #{psa_head_forward.5} parent=70 // loop_footer_branch
                  %609 = sbr.rel target = $region80
                $region85: #{psa_head_forward.5} parent=70 // loop_exit
                  _
              $region71: #{psa_head_forward.5} parent=55 // pred_fallthru
                _
            $region56: #{psa_head_forward.5} parent=51 // pred_fallthru
              _
            // Predicated region
            $region57: #{psa_head_forward.5} parent=51 // pred_check
              _
            $region58: #{psa_head_forward.5} parent=51 // pred_check_branch
              %300 = sbr.rel (0) target = $region60
            $region59: #{psa_head_forward.5} parent=51 // pred_region
              loop: start=0, step=1, limit=1
              $region61: #{psa_head_forward.5} parent=59 // loop_pre_header
                _
              $region62: #{psa_head_forward.5} parent=59 // loop_header
                %s303 = sphi 0, %s307
                %p304 = scmp.ge.s32.totalorder %s303, 1
                %s308 = sphi %s294, %s294
                %s309 = sphi %s291, %s291
              $region63: #{psa_head_forward.5} parent=59 // loop_header_branch
                %306 = sbr.rel (%p304) target = $region67
              $region64: #{psa_head_forward.5} parent=59 // loop_body
                %v310 = vld [vmem:[%s308] sm:$0xf]
                %311 = vst [vmem:[%s309] sm:$0xf] %v310
                %v312 = vld [vmem:[%s308 + $0x4] sm:$0xf]
                %313 = vst [vmem:[%s309 + $0x4] sm:$0xf] %v312
                %v314 = vld [vmem:[%s308 + $0x8] sm:$0xf]
                %315 = vst [vmem:[%s309 + $0x8] sm:$0xf] %v314
                %v316 = vld [vmem:[%s308 + $0xc] sm:$0xf]
                %317 = vst [vmem:[%s309 + $0xc] sm:$0xf] %v316
                %v318 = vld [vmem:[%s308 + $0x10] sm:$0xf]
                %319 = vst [vmem:[%s309 + $0x10] sm:$0xf] %v318
                %v320 = vld [vmem:[%s308 + $0x14] sm:$0xf]
                %321 = vst [vmem:[%s309 + $0x14] sm:$0xf] %v320
                %v322 = vld [vmem:[%s308 + $0x18] sm:$0xf]
                %323 = vst [vmem:[%s309 + $0x18] sm:$0xf] %v322
                %v324 = vld [vmem:[%s308 + $0x1c] sm:$0xf]
                %325 = vst [vmem:[%s309 + $0x1c] sm:$0xf] %v324
                %v326 = vld [vmem:[%s308 + $0x20] sm:$0xf]
                %327 = vst [vmem:[%s309 + $0x20] sm:$0xf] %v326
                %v328 = vld [vmem:[%s308 + $0x24] sm:$0xf]
                %329 = vst [vmem:[%s309 + $0x24] sm:$0xf] %v328
                %v330 = vld [vmem:[%s308 + $0x28] sm:$0xf]
                %331 = vst [vmem:[%s309 + $0x28] sm:$0xf] %v330
                %v332 = vld [vmem:[%s308 + $0x2c] sm:$0xf]
                %333 = vst [vmem:[%s309 + $0x2c] sm:$0xf] %v332
                %v334 = vld [vmem:[%s308 + $0x30] sm:$0xf]
                %335 = vst [vmem:[%s309 + $0x30] sm:$0xf] %v334
                %v336 = vld [vmem:[%s308 + $0x34] sm:$0xf]
                %337 = vst [vmem:[%s309 + $0x34] sm:$0xf] %v336
                %v338 = vld [vmem:[%s308 + $0x38] sm:$0xf]
                %339 = vst [vmem:[%s309 + $0x38] sm:$0xf] %v338
                %v340 = vld [vmem:[%s308 + $0x3c] sm:$0xf]
                %341 = vst [vmem:[%s309 + $0x3c] sm:$0xf] %v340
                %v342 = vld [vmem:[%s308 + $0x100] sm:$0xf]
                %343 = vst [vmem:[%s309 + $0x40] sm:$0xf] %v342
                %v344 = vld [vmem:[%s308 + $0x104] sm:$0xf]
                %345 = vst [vmem:[%s309 + $0x44] sm:$0xf] %v344
                %v346 = vld [vmem:[%s308 + $0x108] sm:$0xf]
                %347 = vst [vmem:[%s309 + $0x48] sm:$0xf] %v346
                %v348 = vld [vmem:[%s308 + $0x10c] sm:$0xf]
                %349 = vst [vmem:[%s309 + $0x4c] sm:$0xf] %v348
                %v350 = vld [vmem:[%s308 + $0x110] sm:$0xf]
                %351 = vst [vmem:[%s309 + $0x50] sm:$0xf] %v350
                %v352 = vld [vmem:[%s308 + $0x114] sm:$0xf]
                %353 = vst [vmem:[%s309 + $0x54] sm:$0xf] %v352
                %v354 = vld [vmem:[%s308 + $0x118] sm:$0xf]
                %355 = vst [vmem:[%s309 + $0x58] sm:$0xf] %v354
                %v356 = vld [vmem:[%s308 + $0x11c] sm:$0xf]
                %357 = vst [vmem:[%s309 + $0x5c] sm:$0xf] %v356
                %v358 = vld [vmem:[%s308 + $0x120] sm:$0xf]
                %359 = vst [vmem:[%s309 + $0x60] sm:$0xf] %v358
                %v360 = vld [vmem:[%s308 + $0x124] sm:$0xf]
                %361 = vst [vmem:[%s309 + $0x64] sm:$0xf] %v360
                %v362 = vld [vmem:[%s308 + $0x128] sm:$0xf]
                %363 = vst [vmem:[%s309 + $0x68] sm:$0xf] %v362
                %v364 = vld [vmem:[%s308 + $0x12c] sm:$0xf]
                %365 = vst [vmem:[%s309 + $0x6c] sm:$0xf] %v364
                %v366 = vld [vmem:[%s308 + $0x130] sm:$0xf]
                %367 = vst [vmem:[%s309 + $0x70] sm:$0xf] %v366
                %v368 = vld [vmem:[%s308 + $0x134] sm:$0xf]
                %369 = vst [vmem:[%s309 + $0x74] sm:$0xf] %v368
                %v370 = vld [vmem:[%s308 + $0x138] sm:$0xf]
                %371 = vst [vmem:[%s309 + $0x78] sm:$0xf] %v370
                %v372 = vld [vmem:[%s308 + $0x13c] sm:$0xf]
                %373 = vst [vmem:[%s309 + $0x7c] sm:$0xf] %v372
                %v374 = vld [vmem:[%s308 + $0x200] sm:$0xf]
                %375 = vst [vmem:[%s309 + $0x80] sm:$0xf] %v374
                %v376 = vld [vmem:[%s308 + $0x204] sm:$0xf]
                %377 = vst [vmem:[%s309 + $0x84] sm:$0xf] %v376
                %v378 = vld [vmem:[%s308 + $0x208] sm:$0xf]
                %379 = vst [vmem:[%s309 + $0x88] sm:$0xf] %v378
                %v380 = vld [vmem:[%s308 + $0x20c] sm:$0xf]
                %381 = vst [vmem:[%s309 + $0x8c] sm:$0xf] %v380
                %v382 = vld [vmem:[%s308 + $0x210] sm:$0xf]
                %383 = vst [vmem:[%s309 + $0x90] sm:$0xf] %v382
                %v384 = vld [vmem:[%s308 + $0x214] sm:$0xf]
                %385 = vst [vmem:[%s309 + $0x94] sm:$0xf] %v384
                %v386 = vld [vmem:[%s308 + $0x218] sm:$0xf]
                %387 = vst [vmem:[%s309 + $0x98] sm:$0xf] %v386
                %v388 = vld [vmem:[%s308 + $0x21c] sm:$0xf]
                %389 = vst [vmem:[%s309 + $0x9c] sm:$0xf] %v388
                %v390 = vld [vmem:[%s308 + $0x220] sm:$0xf]
                %391 = vst [vmem:[%s309 + $0xa0] sm:$0xf] %v390
                %v392 = vld [vmem:[%s308 + $0x224] sm:$0xf]
                %393 = vst [vmem:[%s309 + $0xa4] sm:$0xf] %v392
                %v394 = vld [vmem:[%s308 + $0x228] sm:$0xf]
                %395 = vst [vmem:[%s309 + $0xa8] sm:$0xf] %v394
                %v396 = vld [vmem:[%s308 + $0x22c] sm:$0xf]
                %397 = vst [vmem:[%s309 + $0xac] sm:$0xf] %v396
                %v398 = vld [vmem:[%s308 + $0x230] sm:$0xf]
                %399 = vst [vmem:[%s309 + $0xb0] sm:$0xf] %v398
                %v400 = vld [vmem:[%s308 + $0x234] sm:$0xf]
                %401 = vst [vmem:[%s309 + $0xb4] sm:$0xf] %v400
                %v402 = vld [vmem:[%s308 + $0x238] sm:$0xf]
                %403 = vst [vmem:[%s309 + $0xb8] sm:$0xf] %v402
                %v404 = vld [vmem:[%s308 + $0x23c] sm:$0xf]
                %405 = vst [vmem:[%s309 + $0xbc] sm:$0xf] %v404
                %v406 = vld [vmem:[%s308 + $0x300] sm:$0xf]
                %407 = vst [vmem:[%s309 + $0xc0] sm:$0xf] %v406
                %v408 = vld [vmem:[%s308 + $0x304] sm:$0xf]
                %409 = vst [vmem:[%s309 + $0xc4] sm:$0xf] %v408
                %v410 = vld [vmem:[%s308 + $0x308] sm:$0xf]
                %411 = vst [vmem:[%s309 + $0xc8] sm:$0xf] %v410
                %v412 = vld [vmem:[%s308 + $0x30c] sm:$0xf]
                %413 = vst [vmem:[%s309 + $0xcc] sm:$0xf] %v412
                %v414 = vld [vmem:[%s308 + $0x310] sm:$0xf]
                %415 = vst [vmem:[%s309 + $0xd0] sm:$0xf] %v414
                %v416 = vld [vmem:[%s308 + $0x314] sm:$0xf]
                %417 = vst [vmem:[%s309 + $0xd4] sm:$0xf] %v416
                %v418 = vld [vmem:[%s308 + $0x318] sm:$0xf]
                %419 = vst [vmem:[%s309 + $0xd8] sm:$0xf] %v418
                %v420 = vld [vmem:[%s308 + $0x31c] sm:$0xf]
                %421 = vst [vmem:[%s309 + $0xdc] sm:$0xf] %v420
                %v422 = vld [vmem:[%s308 + $0x320] sm:$0xf]
                %423 = vst [vmem:[%s309 + $0xe0] sm:$0xf] %v422
                %v424 = vld [vmem:[%s308 + $0x324] sm:$0xf]
                %425 = vst [vmem:[%s309 + $0xe4] sm:$0xf] %v424
                %v426 = vld [vmem:[%s308 + $0x328] sm:$0xf]
                %427 = vst [vmem:[%s309 + $0xe8] sm:$0xf] %v426
                %v428 = vld [vmem:[%s308 + $0x32c] sm:$0xf]
                %429 = vst [vmem:[%s309 + $0xec] sm:$0xf] %v428
                %v430 = vld [vmem:[%s308 + $0x330] sm:$0xf]
                %431 = vst [vmem:[%s309 + $0xf0] sm:$0xf] %v430
                %v432 = vld [vmem:[%s308 + $0x334] sm:$0xf]
                %433 = vst [vmem:[%s309 + $0xf4] sm:$0xf] %v432
                %v434 = vld [vmem:[%s308 + $0x338] sm:$0xf]
                %435 = vst [vmem:[%s309 + $0xf8] sm:$0xf] %v434
                %v436 = vld [vmem:[%s308 + $0x33c] sm:$0xf]
                %437 = vst [vmem:[%s309 + $0xfc] sm:$0xf] %v436
                %v438 = vld [vmem:[%s308 + $0x400] sm:$0xf]
                %439 = vst [vmem:[%s309 + $0x100] sm:$0xf] %v438
                %v440 = vld [vmem:[%s308 + $0x404] sm:$0xf]
                %441 = vst [vmem:[%s309 + $0x104] sm:$0xf] %v440
                %v442 = vld [vmem:[%s308 + $0x408] sm:$0xf]
                %443 = vst [vmem:[%s309 + $0x108] sm:$0xf] %v442
                %v444 = vld [vmem:[%s308 + $0x40c] sm:$0xf]
                %445 = vst [vmem:[%s309 + $0x10c] sm:$0xf] %v444
                %v446 = vld [vmem:[%s308 + $0x410] sm:$0xf]
                %447 = vst [vmem:[%s309 + $0x110] sm:$0xf] %v446
                %v448 = vld [vmem:[%s308 + $0x414] sm:$0xf]
                %449 = vst [vmem:[%s309 + $0x114] sm:$0xf] %v448
                %v450 = vld [vmem:[%s308 + $0x418] sm:$0xf]
                %451 = vst [vmem:[%s309 + $0x118] sm:$0xf] %v450
                %v452 = vld [vmem:[%s308 + $0x41c] sm:$0xf]
                %453 = vst [vmem:[%s309 + $0x11c] sm:$0xf] %v452
                %v454 = vld [vmem:[%s308 + $0x420] sm:$0xf]
                %455 = vst [vmem:[%s309 + $0x120] sm:$0xf] %v454
                %v456 = vld [vmem:[%s308 + $0x424] sm:$0xf]
                %457 = vst [vmem:[%s309 + $0x124] sm:$0xf] %v456
                %v458 = vld [vmem:[%s308 + $0x428] sm:$0xf]
                %459 = vst [vmem:[%s309 + $0x128] sm:$0xf] %v458
                %v460 = vld [vmem:[%s308 + $0x42c] sm:$0xf]
                %461 = vst [vmem:[%s309 + $0x12c] sm:$0xf] %v460
                %v462 = vld [vmem:[%s308 + $0x430] sm:$0xf]
                %463 = vst [vmem:[%s309 + $0x130] sm:$0xf] %v462
                %v464 = vld [vmem:[%s308 + $0x434] sm:$0xf]
                %465 = vst [vmem:[%s309 + $0x134] sm:$0xf] %v464
                %v466 = vld [vmem:[%s308 + $0x438] sm:$0xf]
                %467 = vst [vmem:[%s309 + $0x138] sm:$0xf] %v466
                %v468 = vld [vmem:[%s308 + $0x43c] sm:$0xf]
                %469 = vst [vmem:[%s309 + $0x13c] sm:$0xf] %v468
                %v470 = vld [vmem:[%s308 + $0x500] sm:$0xf]
                %471 = vst [vmem:[%s309 + $0x140] sm:$0xf] %v470
                %v472 = vld [vmem:[%s308 + $0x504] sm:$0xf]
                %473 = vst [vmem:[%s309 + $0x144] sm:$0xf] %v472
                %v474 = vld [vmem:[%s308 + $0x508] sm:$0xf]
                %475 = vst [vmem:[%s309 + $0x148] sm:$0xf] %v474
                %v476 = vld [vmem:[%s308 + $0x50c] sm:$0xf]
                %477 = vst [vmem:[%s309 + $0x14c] sm:$0xf] %v476
                %v478 = vld [vmem:[%s308 + $0x510] sm:$0xf]
                %479 = vst [vmem:[%s309 + $0x150] sm:$0xf] %v478
                %v480 = vld [vmem:[%s308 + $0x514] sm:$0xf]
                %481 = vst [vmem:[%s309 + $0x154] sm:$0xf] %v480
                %v482 = vld [vmem:[%s308 + $0x518] sm:$0xf]
                %483 = vst [vmem:[%s309 + $0x158] sm:$0xf] %v482
                %v484 = vld [vmem:[%s308 + $0x51c] sm:$0xf]
                %485 = vst [vmem:[%s309 + $0x15c] sm:$0xf] %v484
                %v486 = vld [vmem:[%s308 + $0x520] sm:$0xf]
                %487 = vst [vmem:[%s309 + $0x160] sm:$0xf] %v486
                %v488 = vld [vmem:[%s308 + $0x524] sm:$0xf]
                %489 = vst [vmem:[%s309 + $0x164] sm:$0xf] %v488
                %v490 = vld [vmem:[%s308 + $0x528] sm:$0xf]
                %491 = vst [vmem:[%s309 + $0x168] sm:$0xf] %v490
                %v492 = vld [vmem:[%s308 + $0x52c] sm:$0xf]
                %493 = vst [vmem:[%s309 + $0x16c] sm:$0xf] %v492
                %v494 = vld [vmem:[%s308 + $0x530] sm:$0xf]
                %495 = vst [vmem:[%s309 + $0x170] sm:$0xf] %v494
                %v496 = vld [vmem:[%s308 + $0x534] sm:$0xf]
                %497 = vst [vmem:[%s309 + $0x174] sm:$0xf] %v496
                %v498 = vld [vmem:[%s308 + $0x538] sm:$0xf]
                %499 = vst [vmem:[%s309 + $0x178] sm:$0xf] %v498
                %v500 = vld [vmem:[%s308 + $0x53c] sm:$0xf]
                %501 = vst [vmem:[%s309 + $0x17c] sm:$0xf] %v500
                %v502 = vld [vmem:[%s308 + $0x600] sm:$0xf]
                %503 = vst [vmem:[%s309 + $0x180] sm:$0xf] %v502
                %v504 = vld [vmem:[%s308 + $0x604] sm:$0xf]
                %505 = vst [vmem:[%s309 + $0x184] sm:$0xf] %v504
                %v506 = vld [vmem:[%s308 + $0x608] sm:$0xf]
                %507 = vst [vmem:[%s309 + $0x188] sm:$0xf] %v506
                %v508 = vld [vmem:[%s308 + $0x60c] sm:$0xf]
                %509 = vst [vmem:[%s309 + $0x18c] sm:$0xf] %v508
                %v510 = vld [vmem:[%s308 + $0x610] sm:$0xf]
                %511 = vst [vmem:[%s309 + $0x190] sm:$0xf] %v510
                %v512 = vld [vmem:[%s308 + $0x614] sm:$0xf]
                %513 = vst [vmem:[%s309 + $0x194] sm:$0xf] %v512
                %v514 = vld [vmem:[%s308 + $0x618] sm:$0xf]
                %515 = vst [vmem:[%s309 + $0x198] sm:$0xf] %v514
                %v516 = vld [vmem:[%s308 + $0x61c] sm:$0xf]
                %517 = vst [vmem:[%s309 + $0x19c] sm:$0xf] %v516
                %v518 = vld [vmem:[%s308 + $0x620] sm:$0xf]
                %519 = vst [vmem:[%s309 + $0x1a0] sm:$0xf] %v518
                %v520 = vld [vmem:[%s308 + $0x624] sm:$0xf]
                %521 = vst [vmem:[%s309 + $0x1a4] sm:$0xf] %v520
                %v522 = vld [vmem:[%s308 + $0x628] sm:$0xf]
                %523 = vst [vmem:[%s309 + $0x1a8] sm:$0xf] %v522
                %v524 = vld [vmem:[%s308 + $0x62c] sm:$0xf]
                %525 = vst [vmem:[%s309 + $0x1ac] sm:$0xf] %v524
                %v526 = vld [vmem:[%s308 + $0x630] sm:$0xf]
                %527 = vst [vmem:[%s309 + $0x1b0] sm:$0xf] %v526
                %v528 = vld [vmem:[%s308 + $0x634] sm:$0xf]
                %529 = vst [vmem:[%s309 + $0x1b4] sm:$0xf] %v528
                %v530 = vld [vmem:[%s308 + $0x638] sm:$0xf]
                %531 = vst [vmem:[%s309 + $0x1b8] sm:$0xf] %v530
                %v532 = vld [vmem:[%s308 + $0x63c] sm:$0xf]
                %533 = vst [vmem:[%s309 + $0x1bc] sm:$0xf] %v532
                %v534 = vld [vmem:[%s308 + $0x700] sm:$0xf]
                %535 = vst [vmem:[%s309 + $0x1c0] sm:$0xf] %v534
                %v536 = vld [vmem:[%s308 + $0x704] sm:$0xf]
                %537 = vst [vmem:[%s309 + $0x1c4] sm:$0xf] %v536
                %v538 = vld [vmem:[%s308 + $0x708] sm:$0xf]
                %539 = vst [vmem:[%s309 + $0x1c8] sm:$0xf] %v538
                %v540 = vld [vmem:[%s308 + $0x70c] sm:$0xf]
                %541 = vst [vmem:[%s309 + $0x1cc] sm:$0xf] %v540
                %v542 = vld [vmem:[%s308 + $0x710] sm:$0xf]
                %543 = vst [vmem:[%s309 + $0x1d0] sm:$0xf] %v542
                %v544 = vld [vmem:[%s308 + $0x714] sm:$0xf]
                %545 = vst [vmem:[%s309 + $0x1d4] sm:$0xf] %v544
                %v546 = vld [vmem:[%s308 + $0x718] sm:$0xf]
                %547 = vst [vmem:[%s309 + $0x1d8] sm:$0xf] %v546
                %v548 = vld [vmem:[%s308 + $0x71c] sm:$0xf]
                %549 = vst [vmem:[%s309 + $0x1dc] sm:$0xf] %v548
                %v550 = vld [vmem:[%s308 + $0x720] sm:$0xf]
                %551 = vst [vmem:[%s309 + $0x1e0] sm:$0xf] %v550
                %v552 = vld [vmem:[%s308 + $0x724] sm:$0xf]
                %553 = vst [vmem:[%s309 + $0x1e4] sm:$0xf] %v552
                %v554 = vld [vmem:[%s308 + $0x728] sm:$0xf]
                %555 = vst [vmem:[%s309 + $0x1e8] sm:$0xf] %v554
                %v556 = vld [vmem:[%s308 + $0x72c] sm:$0xf]
                %557 = vst [vmem:[%s309 + $0x1ec] sm:$0xf] %v556
                %v558 = vld [vmem:[%s308 + $0x730] sm:$0xf]
                %559 = vst [vmem:[%s309 + $0x1f0] sm:$0xf] %v558
                %v560 = vld [vmem:[%s308 + $0x734] sm:$0xf]
                %561 = vst [vmem:[%s309 + $0x1f4] sm:$0xf] %v560
                %v562 = vld [vmem:[%s308 + $0x738] sm:$0xf]
                %563 = vst [vmem:[%s309 + $0x1f8] sm:$0xf] %v562
                %v564 = vld [vmem:[%s308 + $0x73c] sm:$0xf]
                %565 = vst [vmem:[%s309 + $0x1fc] sm:$0xf] %v564
                %v566 = vld [vmem:[%s308 + $0x800] sm:$0xf]
                %567 = vst [vmem:[%s309 + $0x200] sm:$0xf] %v566
                %v568 = vld [vmem:[%s308 + $0x804] sm:$0xf]
                %569 = vst [vmem:[%s309 + $0x204] sm:$0xf] %v568
                %v570 = vld [vmem:[%s308 + $0x808] sm:$0xf]
                %571 = vst [vmem:[%s309 + $0x208] sm:$0xf] %v570
                %v572 = vld [vmem:[%s308 + $0x80c] sm:$0xf]
                %573 = vst [vmem:[%s309 + $0x20c] sm:$0xf] %v572
                %v574 = vld [vmem:[%s308 + $0x810] sm:$0xf]
                %575 = vst [vmem:[%s309 + $0x210] sm:$0xf] %v574
                %v576 = vld [vmem:[%s308 + $0x814] sm:$0xf]
                %577 = vst [vmem:[%s309 + $0x214] sm:$0xf] %v576
                %v578 = vld [vmem:[%s308 + $0x818] sm:$0xf]
                %579 = vst [vmem:[%s309 + $0x218] sm:$0xf] %v578
                %v580 = vld [vmem:[%s308 + $0x81c] sm:$0xf]
                %581 = vst [vmem:[%s309 + $0x21c] sm:$0xf] %v580
                %v582 = vld [vmem:[%s308 + $0x820] sm:$0xf]
                %583 = vst [vmem:[%s309 + $0x220] sm:$0xf] %v582
                %v584 = vld [vmem:[%s308 + $0x824] sm:$0xf]
                %585 = vst [vmem:[%s309 + $0x224] sm:$0xf] %v584
                %v586 = vld [vmem:[%s308 + $0x828] sm:$0xf]
                %587 = vst [vmem:[%s309 + $0x228] sm:$0xf] %v586
                %v588 = vld [vmem:[%s308 + $0x82c] sm:$0xf]
                %589 = vst [vmem:[%s309 + $0x22c] sm:$0xf] %v588
                %v590 = vld [vmem:[%s308 + $0x830] sm:$0xf]
                %591 = vst [vmem:[%s309 + $0x230] sm:$0xf] %v590
                %v592 = vld [vmem:[%s308 + $0x834] sm:$0xf]
                %593 = vst [vmem:[%s309 + $0x234] sm:$0xf] %v592
                %v594 = vld [vmem:[%s308 + $0x838] sm:$0xf]
                %595 = vst [vmem:[%s309 + $0x238] sm:$0xf] %v594
                %v596 = vld [vmem:[%s308 + $0x83c] sm:$0xf]
                %597 = vst [vmem:[%s309 + $0x23c] sm:$0xf] %v596
              $region65: #{psa_head_forward.5} parent=59 // loop_footer
                %s307 = sadd.s32 1, %s303
              $region66: #{psa_head_forward.5} parent=59 // loop_footer_branch
                %302 = sbr.rel target = $region62
              $region67: #{psa_head_forward.5} parent=59 // loop_exit
                _
            $region60: #{psa_head_forward.5} parent=51 // pred_fallthru
              _
          $region52: #{psa_head_forward.5} parent=47 // pred_fallthru
            _
          %905 = vnop
        $region48: #{psa_head_forward.5} parent=35 // pred_fallthru
          _
      $region36: #{psa_head_forward.5} parent=5 // pred_fallthru
        _
      %p906 = scmp.le.s32.totalorder 1, %s14
      %p907 = scmp.lt.s32.totalorder %s14, 9
      %p908 = pnand %p906, %p907
      %p909 = pneg %p908
      // Predicated region
      $region86: #{psa_head_forward.5} parent=5 // pred_check
        _
      $region87: #{psa_head_forward.5} parent=5 // pred_check_branch
        %911 = sbr.rel (%p908) target = $region89
      $region88: #{psa_head_forward.5} parent=5 // pred_region
        %s912 = ssub.s32 %s14, 1
        %s913 = sand.u32 %s133, 1
        %s914 = sand.u32 %s133, 1
        %s915 = smul.addr %s914, 576
        %s916 = scalar_lea.vmem [#allocation4], %s915
        // Predicated region
        $region90: #{psa_head_forward.5} parent=88 // pred_check
          %p917 = pneg %p146
        $region91: #{psa_head_forward.5} parent=88 // pred_check_branch
          %919 = sbr.rel (%p917) target = $region93
        $region92: #{psa_head_forward.5} parent=88 // pred_region
          _
        $region93: #{psa_head_forward.5} parent=88 // pred_fallthru
          _
        %p920 = scmp.lt.s32.totalorder %s23, 1
        %s921 = scalar_select %p920, %s23, 1
        %s922 = smul.addr %s921, 16
        %s923 = smul.addr %s922, 4
        %s924 = scalar_lea.vmem %s0, %s923
        %p925 = pneg %p52
        %p926 = pneg %p49
        %p927 = scmp.lt.s32.totalorder %s23, 1
        %s928 = scalar_select %p927, %s23, 1
        %s929 = smul.addr %s928, 16
        %s930 = smul.addr %s929, 4
        %s931 = scalar_lea.vmem %s1, %s930
        %p932 = pneg %p78
        %p933 = pneg %p75
        %p934 = pneg %p99
        %p935 = pneg %p96
        %p936 = pneg %p120
        %p937 = pneg %p117
        %s938 = sand.u32 %s133, 1
        %s939 = sand.u32 %s133, 1
        %s940 = smul.addr %s939, 576
        %s941 = scalar_lea.vmem [#allocation4], %s940
        %p942 = pneg %p146
        %p943 = pneg %p143
        %p944 = pneg %p167
        %p945 = pneg %p164
        %p946 = pneg %p188
        %p947 = pneg %p185
        %p948 = pneg %p209
        %p949 = pneg %p206
        %p950 = pneg %p235
        %p951 = pneg %p232
        %p952 = scmp.lt.s32.totalorder %s23, 1
        %s953 = scalar_select %p952, %s23, 1
        %s954 = smul.addr %s953, 8
        %s955 = smul.addr %s954, 8
        %s956 = scalar_lea.vmem %s8, %s955
        %p957 = scmp.lt.s32.totalorder %s23, 1
        %s958 = scalar_select %p957, %s23, 1
        %s959 = smul.addr %s958, 16
        %s960 = smul.addr %s959, 4
        %s961 = scalar_lea.vmem %s0, %s960
        %p962 = scmp.lt.s32.totalorder %s23, 1
        %s963 = scalar_select %p962, %s23, 1
        %s964 = smul.addr %s963, 16
        %s965 = smul.addr %s964, 4
        %s966 = scalar_lea.vmem %s1, %s965
        %s967 = smul.u32 16, %s24
        %p968 = scmp.lt.s32.totalorder %s23, 1
        %s969 = scalar_select %p968, %s23, 1
        %s970 = smul.addr %s969, 8
        %s971 = smul.addr %s970, 8
        %s972 = scalar_lea.vmem %s8, %s971
        %p974 = scmp.eq.s32.totalorder %s24, 0
        // Predicated region
        $region94: #{psa_head_forward.5} parent=88 // pred_check
          %p975 = pneg %p974
        $region95: #{psa_head_forward.5} parent=88 // pred_check_branch
          %977 = sbr.rel (%p975) target = $region97
        $region96: #{psa_head_forward.5} parent=88 // pred_region
          %v978 = vld [vmem:[%s966] sm:$0xff]
          %v979 = vld [vmem:[%s966 + $0x8] sm:$0xff]
          %v980 = vld [vmem:[%s966 + $0x10] sm:$0xff]
          %v981 = vld [vmem:[%s966 + $0x18] sm:$0xff]
          %v982 = vld [vmem:[%s966 + $0x20] sm:$0xff]
          %v983 = vld [vmem:[%s966 + $0x28] sm:$0xff]
          %v984 = vld [vmem:[%s966 + $0x30] sm:$0xff]
          %v985 = vld [vmem:[%s966 + $0x38] sm:$0xff]
          %v986 = vld [vmem:[%s2] sm:$0xff]
          %v987 = vld [vmem:[%s2 + $0x8] sm:$0xff]
          %v988 = vld [vmem:[%s2 + $0x10] sm:$0xff]
          %v989 = vld [vmem:[%s2 + $0x18] sm:$0xff]
          %v990 = vld [vmem:[%s2 + $0x20] sm:$0xff]
          %v991 = vld [vmem:[%s2 + $0x28] sm:$0xff]
          %v992 = vld [vmem:[%s2 + $0x30] sm:$0xff]
          %v993 = vld [vmem:[%s2 + $0x38] sm:$0xff]
          %v994 = vld [vmem:[%s2 + $0x40] sm:$0xff]
          %v995 = vld [vmem:[%s2 + $0x48] sm:$0xff]
          %v996 = vld [vmem:[%s2 + $0x50] sm:$0xff]
          %v997 = vld [vmem:[%s2 + $0x58] sm:$0xff]
          %v998 = vld [vmem:[%s2 + $0x60] sm:$0xff]
          %v999 = vld [vmem:[%s2 + $0x68] sm:$0xff]
          %v1000 = vld [vmem:[%s2 + $0x70] sm:$0xff]
          %v1001 = vld [vmem:[%s2 + $0x78] sm:$0xff]
          %v1002 = vld [vmem:[%s2 + $0x80] sm:$0xff]
          %v1003 = vld [vmem:[%s2 + $0x88] sm:$0xff]
          %v1004 = vld [vmem:[%s2 + $0x90] sm:$0xff]
          %v1005 = vld [vmem:[%s2 + $0x98] sm:$0xff]
          %v1006 = vld [vmem:[%s2 + $0xa0] sm:$0xff]
          %v1007 = vld [vmem:[%s2 + $0xa8] sm:$0xff]
          %v1008 = vld [vmem:[%s2 + $0xb0] sm:$0xff]
          %v1009 = vld [vmem:[%s2 + $0xb8] sm:$0xff]
          %v1010 = vld [vmem:[%s2 + $0xc0] sm:$0xff]
          %v1011 = vld [vmem:[%s2 + $0xc8] sm:$0xff]
          %v1012 = vld [vmem:[%s2 + $0xd0] sm:$0xff]
          %v1013 = vld [vmem:[%s2 + $0xd8] sm:$0xff]
          %v1014 = vld [vmem:[%s2 + $0xe0] sm:$0xff]
          %v1015 = vld [vmem:[%s2 + $0xe8] sm:$0xff]
          %v1016 = vld [vmem:[%s2 + $0xf0] sm:$0xff]
          %v1017 = vld [vmem:[%s2 + $0xf8] sm:$0xff]
          %v1018 = vld [vmem:[%s3] sm:$0x3]
          %v1020 = vlaneseq
          %v1021 = vshrl.u32 %v1020, 7
          %v1022 = vsub.s32 0, %v1021
          %v1023 = vrot.slane %v1018, %v1022
          %v1024 = vlaneseq
          %v1025 = vshrl.u32 %v1024, 7
          %v1026 = vsub.s32 1, %v1025
          %v1027 = vrot.slane %v1018, %v1026
          %v1038 = vunpack.c.l.b16 %v978
          %v1039 = vunpack.c.h.b16 %v978
          %v1040 = vunpack.c.l.b16 %v979
          %v1041 = vunpack.c.h.b16 %v979
          %v1042 = vunpack.c.l.b16 %v980
          %v1043 = vunpack.c.h.b16 %v980
          %v1044 = vunpack.c.l.b16 %v981
          %v1045 = vunpack.c.h.b16 %v981
          %v1046 = vunpack.c.l.b16 %v982
          %v1047 = vunpack.c.h.b16 %v982
          %v1048 = vunpack.c.l.b16 %v983
          %v1049 = vunpack.c.h.b16 %v983
          %v1050 = vunpack.c.l.b16 %v984
          %v1051 = vunpack.c.h.b16 %v984
          %v1052 = vunpack.c.l.b16 %v985
          %v1053 = vunpack.c.h.b16 %v985
          %v1054 = vpack.c.b16 %v1040, %v1038
          %v1055 = vpack.c.b16 %v1041, %v1039
          %v1056 = vpack.c.b16 %v1044, %v1042
          %v1057 = vpack.c.b16 %v1045, %v1043
          %v1058 = vpack.c.b16 %v1048, %v1046
          %v1059 = vpack.c.b16 %v1049, %v1047
          %v1060 = vpack.c.b16 %v1052, %v1050
          %v1061 = vpack.c.b16 %v1053, %v1051
          %v1102 = vunpack.c.l.b16 %v986
          %v1103 = vunpack.c.h.b16 %v986
          %v1104 = vunpack.c.l.b16 %v987
          %v1105 = vunpack.c.h.b16 %v987
          %v1106 = vunpack.c.l.b16 %v988
          %v1107 = vunpack.c.h.b16 %v988
          %v1108 = vunpack.c.l.b16 %v989
          %v1109 = vunpack.c.h.b16 %v989
          %v1110 = vunpack.c.l.b16 %v990
          %v1111 = vunpack.c.h.b16 %v990
          %v1112 = vunpack.c.l.b16 %v991
          %v1113 = vunpack.c.h.b16 %v991
          %v1114 = vunpack.c.l.b16 %v992
          %v1115 = vunpack.c.h.b16 %v992
          %v1116 = vunpack.c.l.b16 %v993
          %v1117 = vunpack.c.h.b16 %v993
          %v1118 = vunpack.c.l.b16 %v994
          %v1119 = vunpack.c.h.b16 %v994
          %v1120 = vunpack.c.l.b16 %v995
          %v1121 = vunpack.c.h.b16 %v995
          %v1122 = vunpack.c.l.b16 %v996
          %v1123 = vunpack.c.h.b16 %v996
          %v1124 = vunpack.c.l.b16 %v997
          %v1125 = vunpack.c.h.b16 %v997
          %v1126 = vunpack.c.l.b16 %v998
          %v1127 = vunpack.c.h.b16 %v998
          %v1128 = vunpack.c.l.b16 %v999
          %v1129 = vunpack.c.h.b16 %v999
          %v1130 = vunpack.c.l.b16 %v1000
          %v1131 = vunpack.c.h.b16 %v1000
          %v1132 = vunpack.c.l.b16 %v1001
          %v1133 = vunpack.c.h.b16 %v1001
          %v1134 = vunpack.c.l.b16 %v1002
          %v1135 = vunpack.c.h.b16 %v1002
          %v1136 = vunpack.c.l.b16 %v1003
          %v1137 = vunpack.c.h.b16 %v1003
          %v1138 = vunpack.c.l.b16 %v1004
          %v1139 = vunpack.c.h.b16 %v1004
          %v1140 = vunpack.c.l.b16 %v1005
          %v1141 = vunpack.c.h.b16 %v1005
          %v1142 = vunpack.c.l.b16 %v1006
          %v1143 = vunpack.c.h.b16 %v1006
          %v1144 = vunpack.c.l.b16 %v1007
          %v1145 = vunpack.c.h.b16 %v1007
          %v1146 = vunpack.c.l.b16 %v1008
          %v1147 = vunpack.c.h.b16 %v1008
          %v1148 = vunpack.c.l.b16 %v1009
          %v1149 = vunpack.c.h.b16 %v1009
          %v1150 = vunpack.c.l.b16 %v1010
          %v1151 = vunpack.c.h.b16 %v1010
          %v1152 = vunpack.c.l.b16 %v1011
          %v1153 = vunpack.c.h.b16 %v1011
          %v1154 = vunpack.c.l.b16 %v1012
          %v1155 = vunpack.c.h.b16 %v1012
          %v1156 = vunpack.c.l.b16 %v1013
          %v1157 = vunpack.c.h.b16 %v1013
          %v1158 = vunpack.c.l.b16 %v1014
          %v1159 = vunpack.c.h.b16 %v1014
          %v1160 = vunpack.c.l.b16 %v1015
          %v1161 = vunpack.c.h.b16 %v1015
          %v1162 = vunpack.c.l.b16 %v1016
          %v1163 = vunpack.c.h.b16 %v1016
          %v1164 = vunpack.c.l.b16 %v1017
          %v1165 = vunpack.c.h.b16 %v1017
          %v1166 = vpack.c.b16 %v1104, %v1102
          %v1167 = vpack.c.b16 %v1105, %v1103
          %v1168 = vpack.c.b16 %v1108, %v1106
          %v1169 = vpack.c.b16 %v1109, %v1107
          %v1170 = vpack.c.b16 %v1112, %v1110
          %v1171 = vpack.c.b16 %v1113, %v1111
          %v1172 = vpack.c.b16 %v1116, %v1114
          %v1173 = vpack.c.b16 %v1117, %v1115
          %v1174 = vpack.c.b16 %v1120, %v1118
          %v1175 = vpack.c.b16 %v1121, %v1119
          %v1176 = vpack.c.b16 %v1124, %v1122
          %v1177 = vpack.c.b16 %v1125, %v1123
          %v1178 = vpack.c.b16 %v1128, %v1126
          %v1179 = vpack.c.b16 %v1129, %v1127
          %v1180 = vpack.c.b16 %v1132, %v1130
          %v1181 = vpack.c.b16 %v1133, %v1131
          %v1182 = vpack.c.b16 %v1136, %v1134
          %v1183 = vpack.c.b16 %v1137, %v1135
          %v1184 = vpack.c.b16 %v1140, %v1138
          %v1185 = vpack.c.b16 %v1141, %v1139
          %v1186 = vpack.c.b16 %v1144, %v1142
          %v1187 = vpack.c.b16 %v1145, %v1143
          %v1188 = vpack.c.b16 %v1148, %v1146
          %v1189 = vpack.c.b16 %v1149, %v1147
          %v1190 = vpack.c.b16 %v1152, %v1150
          %v1191 = vpack.c.b16 %v1153, %v1151
          %v1192 = vpack.c.b16 %v1156, %v1154
          %v1193 = vpack.c.b16 %v1157, %v1155
          %v1194 = vpack.c.b16 %v1160, %v1158
          %v1195 = vpack.c.b16 %v1161, %v1159
          %v1196 = vpack.c.b16 %v1164, %v1162
          %v1197 = vpack.c.b16 %v1165, %v1163
          %1230 = vmatprep.subr.bf16.mxu0 %v1167
          %1231 = vmatpush1.bf16.msra.mxu0 %v1166
          %1232 = vmatprep.subr.bf16.mxu0 %v1169
          %1233 = vmatpush1.bf16.msra.mxu0 %v1168
          %1234 = vmatprep.subr.bf16.mxu0 %v1171
          %1235 = vmatpush1.bf16.msra.mxu0 %v1170
          %1236 = vmatprep.subr.bf16.mxu0 %v1173
          %1237 = vmatpush1.bf16.msra.mxu0 %v1172
          %1238 = vmatprep.subr.bf16.mxu0 %v1175
          %1239 = vmatpush1.bf16.msra.mxu0 %v1174
          %1240 = vmatprep.subr.bf16.mxu0 %v1177
          %1241 = vmatpush1.bf16.msra.mxu0 %v1176
          %1242 = vmatprep.subr.bf16.mxu0 %v1179
          %1243 = vmatpush1.bf16.msra.mxu0 %v1178
          %1244 = vmatprep.subr.bf16.mxu0 %v1181
          %1245 = vmatpush1.bf16.msra.mxu0 %v1180
          %1246 = vmatprep.subr.bf16.mxu0 %v1183
          %1247 = vmatpush1.bf16.msra.mxu0 %v1182
          %1248 = vmatprep.subr.bf16.mxu0 %v1185
          %1249 = vmatpush1.bf16.msra.mxu0 %v1184
          %1250 = vmatprep.subr.bf16.mxu0 %v1187
          %1251 = vmatpush1.bf16.msra.mxu0 %v1186
          %1252 = vmatprep.subr.bf16.mxu0 %v1189
          %1253 = vmatpush1.bf16.msra.mxu0 %v1188
          %1254 = vmatprep.subr.bf16.mxu0 %v1191
          %1255 = vmatpush1.bf16.msra.mxu0 %v1190
          %1256 = vmatprep.subr.bf16.mxu0 %v1193
          %1257 = vmatpush1.bf16.msra.mxu0 %v1192
          %1258 = vmatprep.subr.bf16.mxu0 %v1195
          %1259 = vmatpush1.bf16.msra.mxu0 %v1194
          %1260 = vmatprep.subr.bf16.mxu0 %v1197
          %1261 = vmatpush1.bf16.msra.mxu0 %v1196
          %1262 = vmatprep.mubr.bf16.mxu0 %v1055
          %1263 = vmatmul.mubr.bf16.gmra.mrb[0].mxu0 %v1054
          %v1264 = vpop.f32.mrb[0].mxu0
          %v1265 = vadd.f32 %v1023, %v1264
          %v1266 = vpop.f32.mrb[0].mxu0
          %v1267 = vadd.f32 %v1027, %v1266
          %v1268 = vpop.f32.mrb[0].mxu0
          %v1269 = vadd.f32 %v1023, %v1268
          %v1270 = vpop.f32.mrb[0].mxu0
          %v1271 = vadd.f32 %v1027, %v1270
          %1272 = vmatprep.mubr.bf16.mxu0 %v1057
          %1273 = vmatmul.mubr.bf16.gmra.mrb[0].mxu0 %v1056
          %v1274 = vpop.f32.mrb[0].mxu0
          %v1275 = vadd.f32 %v1023, %v1274
          %v1276 = vpop.f32.mrb[0].mxu0
          %v1277 = vadd.f32 %v1027, %v1276
          %v1278 = vpop.f32.mrb[0].mxu0
          %v1279 = vadd.f32 %v1023, %v1278
          %v1280 = vpop.f32.mrb[0].mxu0
          %v1281 = vadd.f32 %v1027, %v1280
          %1282 = vmatprep.mubr.bf16.mxu0 %v1059
          %1283 = vmatmul.mubr.bf16.gmra.mrb[0].mxu0 %v1058
          %v1284 = vpop.f32.mrb[0].mxu0
          %v1285 = vadd.f32 %v1023, %v1284
          %v1286 = vpop.f32.mrb[0].mxu0
          %v1287 = vadd.f32 %v1027, %v1286
          %v1288 = vpop.f32.mrb[0].mxu0
          %v1289 = vadd.f32 %v1023, %v1288
          %v1290 = vpop.f32.mrb[0].mxu0
          %v1291 = vadd.f32 %v1027, %v1290
          %1292 = vmatprep.mubr.bf16.mxu0 %v1061
          %1293 = vmatmul.mubr.bf16.gmra.mrb[0].mxu0 %v1060
          %v1294 = vpop.f32.mrb[0].mxu0
          %v1295 = vadd.f32 %v1023, %v1294
          %v1296 = vpop.f32.mrb[0].mxu0
          %v1297 = vadd.f32 %v1027, %v1296
          %v1298 = vpop.f32.mrb[0].mxu0
          %v1299 = vadd.f32 %v1023, %v1298
          %v1300 = vpop.f32.mrb[0].mxu0
          %v1301 = vadd.f32 %v1027, %v1300
          %1302 = vdwg.mxu0
          %v1303 = vmax.f32 %v1265, 0.0
          %v1304 = vmax.f32 %v1267, 0.0
          %v1305 = vmax.f32 %v1269, 0.0
          %v1306 = vmax.f32 %v1271, 0.0
          %v1307 = vmax.f32 %v1275, 0.0
          %v1308 = vmax.f32 %v1277, 0.0
          %v1309 = vmax.f32 %v1279, 0.0
          %v1310 = vmax.f32 %v1281, 0.0
          %v1311 = vmax.f32 %v1285, 0.0
          %v1312 = vmax.f32 %v1287, 0.0
          %v1313 = vmax.f32 %v1289, 0.0
          %v1314 = vmax.f32 %v1291, 0.0
          %v1315 = vmax.f32 %v1295, 0.0
          %v1316 = vmax.f32 %v1297, 0.0
          %v1317 = vmax.f32 %v1299, 0.0
          %v1318 = vmax.f32 %v1301, 0.0
          %v1319 = vpack.c.bf16 %v1305, %v1303
          %v1320 = vpack.c.bf16 %v1306, %v1304
          %v1321 = vpack.c.bf16 %v1309, %v1307
          %v1322 = vpack.c.bf16 %v1310, %v1308
          %v1323 = vpack.c.bf16 %v1313, %v1311
          %v1324 = vpack.c.bf16 %v1314, %v1312
          %v1325 = vpack.c.bf16 %v1317, %v1315
          %v1326 = vpack.c.bf16 %v1318, %v1316
          %v1335 = vunpack.c.l.b16 %v1319
          %v1336 = vunpack.c.l.b16 %v1320
          %v1337 = vunpack.c.h.b16 %v1319
          %v1338 = vunpack.c.h.b16 %v1320
          %v1339 = vunpack.c.l.b16 %v1321
          %v1340 = vunpack.c.l.b16 %v1322
          %v1341 = vunpack.c.h.b16 %v1321
          %v1342 = vunpack.c.h.b16 %v1322
          %v1343 = vunpack.c.l.b16 %v1323
          %v1344 = vunpack.c.l.b16 %v1324
          %v1345 = vunpack.c.h.b16 %v1323
          %v1346 = vunpack.c.h.b16 %v1324
          %v1347 = vunpack.c.l.b16 %v1325
          %v1348 = vunpack.c.l.b16 %v1326
          %v1349 = vunpack.c.h.b16 %v1325
          %v1350 = vunpack.c.h.b16 %v1326
          %v1351 = vpack.c.b16 %v1336, %v1335
          %v1352 = vpack.c.b16 %v1338, %v1337
          %v1353 = vpack.c.b16 %v1340, %v1339
          %v1354 = vpack.c.b16 %v1342, %v1341
          %v1355 = vpack.c.b16 %v1344, %v1343
          %v1356 = vpack.c.b16 %v1346, %v1345
          %v1357 = vpack.c.b16 %v1348, %v1347
          %v1358 = vpack.c.b16 %v1350, %v1349
          %v1359 = vld [vmem:[%s961] sm:$0xff]
          %v1360 = vld [vmem:[%s961 + $0x8] sm:$0xff]
          %v1361 = vld [vmem:[%s961 + $0x10] sm:$0xff]
          %v1362 = vld [vmem:[%s961 + $0x18] sm:$0xff]
          %v1363 = vld [vmem:[%s961 + $0x20] sm:$0xff]
          %v1364 = vld [vmem:[%s961 + $0x28] sm:$0xff]
          %v1365 = vld [vmem:[%s961 + $0x30] sm:$0xff]
          %v1366 = vld [vmem:[%s961 + $0x38] sm:$0xff]
          %1367 = vst [vmem:[#allocation2] sm:$0xf] 0
          %1368 = vst [vmem:[#allocation2 + $0x4] sm:$0x1] 0
          %s1369 = scalar_lea.vmem [#allocation2], 72
          %1370 = vst [vmem:[%s1369] sm:$0xf] 0
          %1371 = vst [vmem:[%s1369 + $0x4] sm:$0x1] 0
          %vm1372 = vcmask 1040384
          %vm1373 = vsmask.f32 256
          %vm1374 = vmand %vm1372, %vm1373
          %v1375 = vld [vmem:[#allocation2] sm:$0x1]
          %v1376 = vsel %vm1374, 0, %v1375
          %1377 = vst [vmem:[#allocation2] sm:$0x1] %v1376
          %v1378 = vld [vmem:[#allocation2 + $0x8] sm:$0x1]
          %v1379 = vsel %vm1374, 0, %v1378
          %1380 = vst [vmem:[#allocation2 + $0x8] sm:$0x1] %v1379
          %v1381 = vld [vmem:[#allocation2 + $0x10] sm:$0x1]
          %v1382 = vsel %vm1374, 0, %v1381
          %1383 = vst [vmem:[#allocation2 + $0x10] sm:$0x1] %v1382
          %v1384 = vld [vmem:[#allocation2 + $0x18] sm:$0x1]
          %v1385 = vsel %vm1374, 0, %v1384
          %1386 = vst [vmem:[#allocation2 + $0x18] sm:$0x1] %v1385
          %v1387 = vld [vmem:[#allocation2 + $0x20] sm:$0x1]
          %v1388 = vsel %vm1374, 0, %v1387
          %1389 = vst [vmem:[#allocation2 + $0x20] sm:$0x1] %v1388
          %v1390 = vld [vmem:[#allocation2 + $0x28] sm:$0x1]
          %v1391 = vsel %vm1374, 0, %v1390
          %1392 = vst [vmem:[#allocation2 + $0x28] sm:$0x1] %v1391
          %v1393 = vld [vmem:[#allocation2 + $0x30] sm:$0x1]
          %v1394 = vsel %vm1374, 0, %v1393
          %1395 = vst [vmem:[#allocation2 + $0x30] sm:$0x1] %v1394
          %v1396 = vld [vmem:[#allocation2 + $0x38] sm:$0x1]
          %v1397 = vsel %vm1374, 0, %v1396
          %1398 = vst [vmem:[#allocation2 + $0x38] sm:$0x1] %v1397
          %v1399 = vld [vmem:[#allocation2 + $0x40] sm:$0x1]
          %v1400 = vsel %vm1374, 0, %v1399
          %1401 = vst [vmem:[#allocation2 + $0x40] sm:$0x1] %v1400
          %v1402 = vld [vmem:[#allocation2 + $0x48] sm:$0x1]
          %v1403 = vsel %vm1374, 0, %v1402
          %1404 = vst [vmem:[#allocation2 + $0x48] sm:$0x1] %v1403
          %vm1405 = vsmask.f32 7938
          %vm1406 = vmand %vm1372, %vm1405
          %v1407 = vld [vmem:[#allocation2 + $0x4] sm:$0x1]
          %v1408 = vsel %vm1406, 0, %v1407
          %1409 = vst [vmem:[#allocation2 + $0x4] sm:$0x1] %v1408
          %v1410 = vld [vmem:[#allocation2 + $0xc] sm:$0x1]
          %v1411 = vsel %vm1406, 0, %v1410
          %1412 = vst [vmem:[#allocation2 + $0xc] sm:$0x1] %v1411
          %v1413 = vld [vmem:[#allocation2 + $0x14] sm:$0x1]
          %v1414 = vsel %vm1406, 0, %v1413
          %1415 = vst [vmem:[#allocation2 + $0x14] sm:$0x1] %v1414
          %v1416 = vld [vmem:[#allocation2 + $0x1c] sm:$0x1]
          %v1417 = vsel %vm1406, 0, %v1416
          %1418 = vst [vmem:[#allocation2 + $0x1c] sm:$0x1] %v1417
          %v1419 = vld [vmem:[#allocation2 + $0x24] sm:$0x1]
          %v1420 = vsel %vm1406, 0, %v1419
          %1421 = vst [vmem:[#allocation2 + $0x24] sm:$0x1] %v1420
          %v1422 = vld [vmem:[#allocation2 + $0x2c] sm:$0x1]
          %v1423 = vsel %vm1406, 0, %v1422
          %1424 = vst [vmem:[#allocation2 + $0x2c] sm:$0x1] %v1423
          %v1425 = vld [vmem:[#allocation2 + $0x34] sm:$0x1]
          %v1426 = vsel %vm1406, 0, %v1425
          %1427 = vst [vmem:[#allocation2 + $0x34] sm:$0x1] %v1426
          %v1428 = vld [vmem:[#allocation2 + $0x3c] sm:$0x1]
          %v1429 = vsel %vm1406, 0, %v1428
          %1430 = vst [vmem:[#allocation2 + $0x3c] sm:$0x1] %v1429
          %v1431 = vld [vmem:[#allocation2 + $0x44] sm:$0x1]
          %v1432 = vsel %vm1406, 0, %v1431
          %1433 = vst [vmem:[#allocation2 + $0x44] sm:$0x1] %v1432
          %v1434 = vld [vmem:[#allocation2 + $0x4c] sm:$0x1]
          %v1435 = vsel %vm1406, 0, %v1434
          %1436 = vst [vmem:[#allocation2 + $0x4c] sm:$0x1] %v1435
          %v1438 = vshrl.u32 %v1359, 16
          %v1440 = vrot.slane %v1438, 7
          %v1441 = vshll.u32 %v1359, 16
          %v1443 = vor.u32 %v1440, %v1441
          %v1444 = vrot.slane %v1440, 4
          %v1446 = vshrl.u32 %v1360, 16
          %v1448 = vrot.slane %v1446, 7
          %v1449 = vshll.u32 %v1360, 16
          %v1451 = vor.u32 %v1448, %v1449
          %v1452 = vrot.slane %v1448, 4
          %v1454 = vshrl.u32 %v1361, 16
          %v1456 = vrot.slane %v1454, 7
          %v1457 = vshll.u32 %v1361, 16
          %v1459 = vor.u32 %v1456, %v1457
          %v1460 = vrot.slane %v1456, 4
          %v1462 = vshrl.u32 %v1362, 16
          %v1464 = vrot.slane %v1462, 7
          %v1465 = vshll.u32 %v1362, 16
          %v1467 = vor.u32 %v1464, %v1465
          %v1468 = vrot.slane %v1464, 4
          %v1470 = vshrl.u32 %v1363, 16
          %v1472 = vrot.slane %v1470, 7
          %v1473 = vshll.u32 %v1363, 16
          %v1475 = vor.u32 %v1472, %v1473
          %v1476 = vrot.slane %v1472, 4
          %v1478 = vshrl.u32 %v1364, 16
          %v1480 = vrot.slane %v1478, 7
          %v1481 = vshll.u32 %v1364, 16
          %v1483 = vor.u32 %v1480, %v1481
          %v1484 = vrot.slane %v1480, 4
          %v1486 = vshrl.u32 %v1365, 16
          %v1488 = vrot.slane %v1486, 7
          %v1489 = vshll.u32 %v1365, 16
          %v1491 = vor.u32 %v1488, %v1489
          %v1492 = vrot.slane %v1488, 4
          %v1494 = vshrl.u32 %v1366, 16
          %v1496 = vrot.slane %v1494, 7
          %v1497 = vshll.u32 %v1366, 16
          %v1499 = vor.u32 %v1496, %v1497
          %v1500 = vrot.slane %v1496, 4
          %s1517 = scalar_lea.vmem [#allocation2], 8
          %vm1518 = vcmask 1043456
          %vm1519 = vmand %vm1518, %vm1405
          %v1520 = vld [vmem:[%s1517] sm:$0xf]
          %v1521 = vsel %vm1519, %v1443, %v1520
          %1522 = vst [vmem:[%s1517] sm:$0xf] %v1521
          %v1523 = vld [vmem:[%s1517 + $0x4] sm:$0x1]
          %v1524 = vsel %vm1374, %v1444, %v1523
          %1525 = vst [vmem:[%s1517 + $0x4] sm:$0x1] %v1524
          %v1526 = vld [vmem:[%s1517 + $0x8] sm:$0xf]
          %v1527 = vsel %vm1519, %v1451, %v1526
          %1528 = vst [vmem:[%s1517 + $0x8] sm:$0xf] %v1527
          %v1529 = vld [vmem:[%s1517 + $0xc] sm:$0x1]
          %v1530 = vsel %vm1374, %v1452, %v1529
          %1531 = vst [vmem:[%s1517 + $0xc] sm:$0x1] %v1530
          %v1532 = vld [vmem:[%s1517 + $0x10] sm:$0xf]
          %v1533 = vsel %vm1519, %v1459, %v1532
          %1534 = vst [vmem:[%s1517 + $0x10] sm:$0xf] %v1533
          %v1535 = vld [vmem:[%s1517 + $0x14] sm:$0x1]
          %v1536 = vsel %vm1374, %v1460, %v1535
          %1537 = vst [vmem:[%s1517 + $0x14] sm:$0x1] %v1536
          %v1538 = vld [vmem:[%s1517 + $0x18] sm:$0xf]
          %v1539 = vsel %vm1519, %v1467, %v1538
          %1540 = vst [vmem:[%s1517 + $0x18] sm:$0xf] %v1539
          %v1541 = vld [vmem:[%s1517 + $0x1c] sm:$0x1]
          %v1542 = vsel %vm1374, %v1468, %v1541
          %1543 = vst [vmem:[%s1517 + $0x1c] sm:$0x1] %v1542
          %v1544 = vld [vmem:[%s1517 + $0x20] sm:$0xf]
          %v1545 = vsel %vm1519, %v1475, %v1544
          %1546 = vst [vmem:[%s1517 + $0x20] sm:$0xf] %v1545
          %v1547 = vld [vmem:[%s1517 + $0x24] sm:$0x1]
          %v1548 = vsel %vm1374, %v1476, %v1547
          %1549 = vst [vmem:[%s1517 + $0x24] sm:$0x1] %v1548
          %v1550 = vld [vmem:[%s1517 + $0x28] sm:$0xf]
          %v1551 = vsel %vm1519, %v1483, %v1550
          %1552 = vst [vmem:[%s1517 + $0x28] sm:$0xf] %v1551
          %v1553 = vld [vmem:[%s1517 + $0x2c] sm:$0x1]
          %v1554 = vsel %vm1374, %v1484, %v1553
          %1555 = vst [vmem:[%s1517 + $0x2c] sm:$0x1] %v1554
          %v1556 = vld [vmem:[%s1517 + $0x30] sm:$0xf]
          %v1557 = vsel %vm1519, %v1491, %v1556
          %1558 = vst [vmem:[%s1517 + $0x30] sm:$0xf] %v1557
          %v1559 = vld [vmem:[%s1517 + $0x34] sm:$0x1]
          %v1560 = vsel %vm1374, %v1492, %v1559
          %1561 = vst [vmem:[%s1517 + $0x34] sm:$0x1] %v1560
          %v1562 = vld [vmem:[%s1517 + $0x38] sm:$0xf]
          %v1563 = vsel %vm1519, %v1499, %v1562
          %1564 = vst [vmem:[%s1517 + $0x38] sm:$0xf] %v1563
          %v1565 = vld [vmem:[%s1517 + $0x3c] sm:$0x1]
          %v1566 = vsel %vm1374, %v1500, %v1565
          %1567 = vst [vmem:[%s1517 + $0x3c] sm:$0x1] %v1566
          %s1568 = scalar_lea.vmem [#allocation2], 80
          %1569 = vst [vmem:[%s1568] sm:$0xf] 0
          %1570 = vst [vmem:[%s1568 + $0x4] sm:$0x1] 0
          %s1571 = scalar_lea.vmem [#allocation2], 152
          %1572 = vst [vmem:[%s1571] sm:$0xf] 0
          %1573 = vst [vmem:[%s1571 + $0x4] sm:$0x1] 0
          %v1574 = vld [vmem:[%s1568] sm:$0x1]
          %v1575 = vsel %vm1374, 0, %v1574
          %1576 = vst [vmem:[%s1568] sm:$0x1] %v1575
          %v1577 = vld [vmem:[%s1568 + $0x8] sm:$0x1]
          %v1578 = vsel %vm1374, 0, %v1577
          %1579 = vst [vmem:[%s1568 + $0x8] sm:$0x1] %v1578
          %v1580 = vld [vmem:[%s1568 + $0x10] sm:$0x1]
          %v1581 = vsel %vm1374, 0, %v1580
          %1582 = vst [vmem:[%s1568 + $0x10] sm:$0x1] %v1581
          %v1583 = vld [vmem:[%s1568 + $0x18] sm:$0x1]
          %v1584 = vsel %vm1374, 0, %v1583
          %1585 = vst [vmem:[%s1568 + $0x18] sm:$0x1] %v1584
          %v1586 = vld [vmem:[%s1568 + $0x20] sm:$0x1]
          %v1587 = vsel %vm1374, 0, %v1586
          %1588 = vst [vmem:[%s1568 + $0x20] sm:$0x1] %v1587
          %v1589 = vld [vmem:[%s1568 + $0x28] sm:$0x1]
          %v1590 = vsel %vm1374, 0, %v1589
          %1591 = vst [vmem:[%s1568 + $0x28] sm:$0x1] %v1590
          %v1592 = vld [vmem:[%s1568 + $0x30] sm:$0x1]
          %v1593 = vsel %vm1374, 0, %v1592
          %1594 = vst [vmem:[%s1568 + $0x30] sm:$0x1] %v1593
          %v1595 = vld [vmem:[%s1568 + $0x38] sm:$0x1]
          %v1596 = vsel %vm1374, 0, %v1595
          %1597 = vst [vmem:[%s1568 + $0x38] sm:$0x1] %v1596
          %v1598 = vld [vmem:[%s1568 + $0x40] sm:$0x1]
          %v1599 = vsel %vm1374, 0, %v1598
          %1600 = vst [vmem:[%s1568 + $0x40] sm:$0x1] %v1599
          %v1601 = vld [vmem:[%s1568 + $0x48] sm:$0x1]
          %v1602 = vsel %vm1374, 0, %v1601
          %1603 = vst [vmem:[%s1568 + $0x48] sm:$0x1] %v1602
          %v1604 = vld [vmem:[%s1568 + $0x4] sm:$0x1]
          %v1605 = vsel %vm1406, 0, %v1604
          %1606 = vst [vmem:[%s1568 + $0x4] sm:$0x1] %v1605
          %v1607 = vld [vmem:[%s1568 + $0xc] sm:$0x1]
          %v1608 = vsel %vm1406, 0, %v1607
          %1609 = vst [vmem:[%s1568 + $0xc] sm:$0x1] %v1608
          %v1610 = vld [vmem:[%s1568 + $0x14] sm:$0x1]
          %v1611 = vsel %vm1406, 0, %v1610
          %1612 = vst [vmem:[%s1568 + $0x14] sm:$0x1] %v1611
          %v1613 = vld [vmem:[%s1568 + $0x1c] sm:$0x1]
          %v1614 = vsel %vm1406, 0, %v1613
          %1615 = vst [vmem:[%s1568 + $0x1c] sm:$0x1] %v1614
          %v1616 = vld [vmem:[%s1568 + $0x24] sm:$0x1]
          %v1617 = vsel %vm1406, 0, %v1616
          %1618 = vst [vmem:[%s1568 + $0x24] sm:$0x1] %v1617
          %v1619 = vld [vmem:[%s1568 + $0x2c] sm:$0x1]
          %v1620 = vsel %vm1406, 0, %v1619
          %1621 = vst [vmem:[%s1568 + $0x2c] sm:$0x1] %v1620
          %v1622 = vld [vmem:[%s1568 + $0x34] sm:$0x1]
          %v1623 = vsel %vm1406, 0, %v1622
          %1624 = vst [vmem:[%s1568 + $0x34] sm:$0x1] %v1623
          %v1625 = vld [vmem:[%s1568 + $0x3c] sm:$0x1]
          %v1626 = vsel %vm1406, 0, %v1625
          %1627 = vst [vmem:[%s1568 + $0x3c] sm:$0x1] %v1626
          %v1628 = vld [vmem:[%s1568 + $0x44] sm:$0x1]
          %v1629 = vsel %vm1406, 0, %v1628
          %1630 = vst [vmem:[%s1568 + $0x44] sm:$0x1] %v1629
          %v1631 = vld [vmem:[%s1568 + $0x4c] sm:$0x1]
          %v1632 = vsel %vm1406, 0, %v1631
          %1633 = vst [vmem:[%s1568 + $0x4c] sm:$0x1] %v1632
          %v1642 = vrot.slane %v1359, 4
          %v1643 = vrot.slane %v1360, 4
          %v1644 = vrot.slane %v1361, 4
          %v1645 = vrot.slane %v1362, 4
          %v1646 = vrot.slane %v1363, 4
          %v1647 = vrot.slane %v1364, 4
          %v1648 = vrot.slane %v1365, 4
          %v1649 = vrot.slane %v1366, 4
          %v1651 = vshrl.u32 %v1642, 16
          %v1653 = vrot.slane %v1651, 7
          %v1654 = vshll.u32 %v1642, 16
          %v1656 = vor.u32 %v1653, %v1654
          %v1657 = vrot.slane %v1653, 4
          %v1659 = vshrl.u32 %v1643, 16
          %v1661 = vrot.slane %v1659, 7
          %v1662 = vshll.u32 %v1643, 16
          %v1664 = vor.u32 %v1661, %v1662
          %v1665 = vrot.slane %v1661, 4
          %v1667 = vshrl.u32 %v1644, 16
          %v1669 = vrot.slane %v1667, 7
          %v1670 = vshll.u32 %v1644, 16
          %v1672 = vor.u32 %v1669, %v1670
          %v1673 = vrot.slane %v1669, 4
          %v1675 = vshrl.u32 %v1645, 16
          %v1677 = vrot.slane %v1675, 7
          %v1678 = vshll.u32 %v1645, 16
          %v1680 = vor.u32 %v1677, %v1678
          %v1681 = vrot.slane %v1677, 4
          %v1683 = vshrl.u32 %v1646, 16
          %v1685 = vrot.slane %v1683, 7
          %v1686 = vshll.u32 %v1646, 16
          %v1688 = vor.u32 %v1685, %v1686
          %v1689 = vrot.slane %v1685, 4
          %v1691 = vshrl.u32 %v1647, 16
          %v1693 = vrot.slane %v1691, 7
          %v1694 = vshll.u32 %v1647, 16
          %v1696 = vor.u32 %v1693, %v1694
          %v1697 = vrot.slane %v1693, 4
          %v1699 = vshrl.u32 %v1648, 16
          %v1701 = vrot.slane %v1699, 7
          %v1702 = vshll.u32 %v1648, 16
          %v1704 = vor.u32 %v1701, %v1702
          %v1705 = vrot.slane %v1701, 4
          %v1707 = vshrl.u32 %v1649, 16
          %v1709 = vrot.slane %v1707, 7
          %v1710 = vshll.u32 %v1649, 16
          %v1712 = vor.u32 %v1709, %v1710
          %v1713 = vrot.slane %v1709, 4
          %s1730 = scalar_lea.vmem [#allocation2], 88
          %v1731 = vld [vmem:[%s1730] sm:$0xf]
          %v1732 = vsel %vm1519, %v1656, %v1731
          %1733 = vst [vmem:[%s1730] sm:$0xf] %v1732
          %v1734 = vld [vmem:[%s1730 + $0x4] sm:$0x1]
          %v1735 = vsel %vm1374, %v1657, %v1734
          %1736 = vst [vmem:[%s1730 + $0x4] sm:$0x1] %v1735
          %v1737 = vld [vmem:[%s1730 + $0x8] sm:$0xf]
          %v1738 = vsel %vm1519, %v1664, %v1737
          %1739 = vst [vmem:[%s1730 + $0x8] sm:$0xf] %v1738
          %v1740 = vld [vmem:[%s1730 + $0xc] sm:$0x1]
          %v1741 = vsel %vm1374, %v1665, %v1740
          %1742 = vst [vmem:[%s1730 + $0xc] sm:$0x1] %v1741
          %v1743 = vld [vmem:[%s1730 + $0x10] sm:$0xf]
          %v1744 = vsel %vm1519, %v1672, %v1743
          %1745 = vst [vmem:[%s1730 + $0x10] sm:$0xf] %v1744
          %v1746 = vld [vmem:[%s1730 + $0x14] sm:$0x1]
          %v1747 = vsel %vm1374, %v1673, %v1746
          %1748 = vst [vmem:[%s1730 + $0x14] sm:$0x1] %v1747
          %v1749 = vld [vmem:[%s1730 + $0x18] sm:$0xf]
          %v1750 = vsel %vm1519, %v1680, %v1749
          %1751 = vst [vmem:[%s1730 + $0x18] sm:$0xf] %v1750
          %v1752 = vld [vmem:[%s1730 + $0x1c] sm:$0x1]
          %v1753 = vsel %vm1374, %v1681, %v1752
          %1754 = vst [vmem:[%s1730 + $0x1c] sm:$0x1] %v1753
          %v1755 = vld [vmem:[%s1730 + $0x20] sm:$0xf]
          %v1756 = vsel %vm1519, %v1688, %v1755
          %1757 = vst [vmem:[%s1730 + $0x20] sm:$0xf] %v1756
          %v1758 = vld [vmem:[%s1730 + $0x24] sm:$0x1]
          %v1759 = vsel %vm1374, %v1689, %v1758
          %1760 = vst [vmem:[%s1730 + $0x24] sm:$0x1] %v1759
          %v1761 = vld [vmem:[%s1730 + $0x28] sm:$0xf]
          %v1762 = vsel %vm1519, %v1696, %v1761
          %1763 = vst [vmem:[%s1730 + $0x28] sm:$0xf] %v1762
          %v1764 = vld [vmem:[%s1730 + $0x2c] sm:$0x1]
          %v1765 = vsel %vm1374, %v1697, %v1764
          %1766 = vst [vmem:[%s1730 + $0x2c] sm:$0x1] %v1765
          %v1767 = vld [vmem:[%s1730 + $0x30] sm:$0xf]
          %v1768 = vsel %vm1519, %v1704, %v1767
          %1769 = vst [vmem:[%s1730 + $0x30] sm:$0xf] %v1768
          %v1770 = vld [vmem:[%s1730 + $0x34] sm:$0x1]
          %v1771 = vsel %vm1374, %v1705, %v1770
          %1772 = vst [vmem:[%s1730 + $0x34] sm:$0x1] %v1771
          %v1773 = vld [vmem:[%s1730 + $0x38] sm:$0xf]
          %v1774 = vsel %vm1519, %v1712, %v1773
          %1775 = vst [vmem:[%s1730 + $0x38] sm:$0xf] %v1774
          %v1776 = vld [vmem:[%s1730 + $0x3c] sm:$0x1]
          %v1777 = vsel %vm1374, %v1713, %v1776
          %1778 = vst [vmem:[%s1730 + $0x3c] sm:$0x1] %v1777
          %s1779 = scalar_lea.vmem [#allocation2], 160
          %1780 = vst [vmem:[%s1779] sm:$0xf] 0
          %1781 = vst [vmem:[%s1779 + $0x4] sm:$0x1] 0
          %s1782 = scalar_lea.vmem [#allocation2], 232
          %1783 = vst [vmem:[%s1782] sm:$0xf] 0
          %1784 = vst [vmem:[%s1782 + $0x4] sm:$0x1] 0
          %v1785 = vld [vmem:[%s1779] sm:$0x1]
          %v1786 = vsel %vm1374, 0, %v1785
          %1787 = vst [vmem:[%s1779] sm:$0x1] %v1786
          %v1788 = vld [vmem:[%s1779 + $0x8] sm:$0x1]
          %v1789 = vsel %vm1374, 0, %v1788
          %1790 = vst [vmem:[%s1779 + $0x8] sm:$0x1] %v1789
          %v1791 = vld [vmem:[%s1779 + $0x10] sm:$0x1]
          %v1792 = vsel %vm1374, 0, %v1791
          %1793 = vst [vmem:[%s1779 + $0x10] sm:$0x1] %v1792
          %v1794 = vld [vmem:[%s1779 + $0x18] sm:$0x1]
          %v1795 = vsel %vm1374, 0, %v1794
          %1796 = vst [vmem:[%s1779 + $0x18] sm:$0x1] %v1795
          %v1797 = vld [vmem:[%s1779 + $0x20] sm:$0x1]
          %v1798 = vsel %vm1374, 0, %v1797
          %1799 = vst [vmem:[%s1779 + $0x20] sm:$0x1] %v1798
          %v1800 = vld [vmem:[%s1779 + $0x28] sm:$0x1]
          %v1801 = vsel %vm1374, 0, %v1800
          %1802 = vst [vmem:[%s1779 + $0x28] sm:$0x1] %v1801
          %v1803 = vld [vmem:[%s1779 + $0x30] sm:$0x1]
          %v1804 = vsel %vm1374, 0, %v1803
          %1805 = vst [vmem:[%s1779 + $0x30] sm:$0x1] %v1804
          %v1806 = vld [vmem:[%s1779 + $0x38] sm:$0x1]
          %v1807 = vsel %vm1374, 0, %v1806
          %1808 = vst [vmem:[%s1779 + $0x38] sm:$0x1] %v1807
          %v1809 = vld [vmem:[%s1779 + $0x40] sm:$0x1]
          %v1810 = vsel %vm1374, 0, %v1809
          %1811 = vst [vmem:[%s1779 + $0x40] sm:$0x1] %v1810
          %v1812 = vld [vmem:[%s1779 + $0x48] sm:$0x1]
          %v1813 = vsel %vm1374, 0, %v1812
          %1814 = vst [vmem:[%s1779 + $0x48] sm:$0x1] %v1813
          %v1815 = vld [vmem:[%s1779 + $0x4] sm:$0x1]
          %v1816 = vsel %vm1406, 0, %v1815
          %1817 = vst [vmem:[%s1779 + $0x4] sm:$0x1] %v1816
          %v1818 = vld [vmem:[%s1779 + $0xc] sm:$0x1]
          %v1819 = vsel %vm1406, 0, %v1818
          %1820 = vst [vmem:[%s1779 + $0xc] sm:$0x1] %v1819
          %v1821 = vld [vmem:[%s1779 + $0x14] sm:$0x1]
          %v1822 = vsel %vm1406, 0, %v1821
          %1823 = vst [vmem:[%s1779 + $0x14] sm:$0x1] %v1822
          %v1824 = vld [vmem:[%s1779 + $0x1c] sm:$0x1]
          %v1825 = vsel %vm1406, 0, %v1824
          %1826 = vst [vmem:[%s1779 + $0x1c] sm:$0x1] %v1825
          %v1827 = vld [vmem:[%s1779 + $0x24] sm:$0x1]
          %v1828 = vsel %vm1406, 0, %v1827
          %1829 = vst [vmem:[%s1779 + $0x24] sm:$0x1] %v1828
          %v1830 = vld [vmem:[%s1779 + $0x2c] sm:$0x1]
          %v1831 = vsel %vm1406, 0, %v1830
          %1832 = vst [vmem:[%s1779 + $0x2c] sm:$0x1] %v1831
          %v1833 = vld [vmem:[%s1779 + $0x34] sm:$0x1]
          %v1834 = vsel %vm1406, 0, %v1833
          %1835 = vst [vmem:[%s1779 + $0x34] sm:$0x1] %v1834
          %v1836 = vld [vmem:[%s1779 + $0x3c] sm:$0x1]
          %v1837 = vsel %vm1406, 0, %v1836
          %1838 = vst [vmem:[%s1779 + $0x3c] sm:$0x1] %v1837
          %v1839 = vld [vmem:[%s1779 + $0x44] sm:$0x1]
          %v1840 = vsel %vm1406, 0, %v1839
          %1841 = vst [vmem:[%s1779 + $0x44] sm:$0x1] %v1840
          %v1842 = vld [vmem:[%s1779 + $0x4c] sm:$0x1]
          %v1843 = vsel %vm1406, 0, %v1842
          %1844 = vst [vmem:[%s1779 + $0x4c] sm:$0x1] %v1843
          %v1846 = vshrl.u32 %v1351, 16
          %v1848 = vrot.slane %v1846, 7
          %v1849 = vshll.u32 %v1351, 16
          %v1851 = vor.u32 %v1848, %v1849
          %v1852 = vrot.slane %v1848, 4
          %v1854 = vshrl.u32 %v1352, 16
          %v1856 = vrot.slane %v1854, 7
          %v1857 = vshll.u32 %v1352, 16
          %v1859 = vor.u32 %v1856, %v1857
          %v1860 = vrot.slane %v1856, 4
          %v1862 = vshrl.u32 %v1353, 16
          %v1864 = vrot.slane %v1862, 7
          %v1865 = vshll.u32 %v1353, 16
          %v1867 = vor.u32 %v1864, %v1865
          %v1868 = vrot.slane %v1864, 4
          %v1870 = vshrl.u32 %v1354, 16
          %v1872 = vrot.slane %v1870, 7
          %v1873 = vshll.u32 %v1354, 16
          %v1875 = vor.u32 %v1872, %v1873
          %v1876 = vrot.slane %v1872, 4
          %v1878 = vshrl.u32 %v1355, 16
          %v1880 = vrot.slane %v1878, 7
          %v1881 = vshll.u32 %v1355, 16
          %v1883 = vor.u32 %v1880, %v1881
          %v1884 = vrot.slane %v1880, 4
          %v1886 = vshrl.u32 %v1356, 16
          %v1888 = vrot.slane %v1886, 7
          %v1889 = vshll.u32 %v1356, 16
          %v1891 = vor.u32 %v1888, %v1889
          %v1892 = vrot.slane %v1888, 4
          %v1894 = vshrl.u32 %v1357, 16
          %v1896 = vrot.slane %v1894, 7
          %v1897 = vshll.u32 %v1357, 16
          %v1899 = vor.u32 %v1896, %v1897
          %v1900 = vrot.slane %v1896, 4
          %v1902 = vshrl.u32 %v1358, 16
          %v1904 = vrot.slane %v1902, 7
          %v1905 = vshll.u32 %v1358, 16
          %v1907 = vor.u32 %v1904, %v1905
          %v1908 = vrot.slane %v1904, 4
          %s1925 = scalar_lea.vmem [#allocation2], 168
          %v1926 = vld [vmem:[%s1925] sm:$0xf]
          %v1927 = vsel %vm1519, %v1851, %v1926
          %1928 = vst [vmem:[%s1925] sm:$0xf] %v1927
          %v1929 = vld [vmem:[%s1925 + $0x4] sm:$0x1]
          %v1930 = vsel %vm1374, %v1852, %v1929
          %1931 = vst [vmem:[%s1925 + $0x4] sm:$0x1] %v1930
          %v1932 = vld [vmem:[%s1925 + $0x8] sm:$0xf]
          %v1933 = vsel %vm1519, %v1859, %v1932
          %1934 = vst [vmem:[%s1925 + $0x8] sm:$0xf] %v1933
          %v1935 = vld [vmem:[%s1925 + $0xc] sm:$0x1]
          %v1936 = vsel %vm1374, %v1860, %v1935
          %1937 = vst [vmem:[%s1925 + $0xc] sm:$0x1] %v1936
          %v1938 = vld [vmem:[%s1925 + $0x10] sm:$0xf]
          %v1939 = vsel %vm1519, %v1867, %v1938
          %1940 = vst [vmem:[%s1925 + $0x10] sm:$0xf] %v1939
          %v1941 = vld [vmem:[%s1925 + $0x14] sm:$0x1]
          %v1942 = vsel %vm1374, %v1868, %v1941
          %1943 = vst [vmem:[%s1925 + $0x14] sm:$0x1] %v1942
          %v1944 = vld [vmem:[%s1925 + $0x18] sm:$0xf]
          %v1945 = vsel %vm1519, %v1875, %v1944
          %1946 = vst [vmem:[%s1925 + $0x18] sm:$0xf] %v1945
          %v1947 = vld [vmem:[%s1925 + $0x1c] sm:$0x1]
          %v1948 = vsel %vm1374, %v1876, %v1947
          %1949 = vst [vmem:[%s1925 + $0x1c] sm:$0x1] %v1948
          %v1950 = vld [vmem:[%s1925 + $0x20] sm:$0xf]
          %v1951 = vsel %vm1519, %v1883, %v1950
          %1952 = vst [vmem:[%s1925 + $0x20] sm:$0xf] %v1951
          %v1953 = vld [vmem:[%s1925 + $0x24] sm:$0x1]
          %v1954 = vsel %vm1374, %v1884, %v1953
          %1955 = vst [vmem:[%s1925 + $0x24] sm:$0x1] %v1954
          %v1956 = vld [vmem:[%s1925 + $0x28] sm:$0xf]
          %v1957 = vsel %vm1519, %v1891, %v1956
          %1958 = vst [vmem:[%s1925 + $0x28] sm:$0xf] %v1957
          %v1959 = vld [vmem:[%s1925 + $0x2c] sm:$0x1]
          %v1960 = vsel %vm1374, %v1892, %v1959
          %1961 = vst [vmem:[%s1925 + $0x2c] sm:$0x1] %v1960
          %v1962 = vld [vmem:[%s1925 + $0x30] sm:$0xf]
          %v1963 = vsel %vm1519, %v1899, %v1962
          %1964 = vst [vmem:[%s1925 + $0x30] sm:$0xf] %v1963
          %v1965 = vld [vmem:[%s1925 + $0x34] sm:$0x1]
          %v1966 = vsel %vm1374, %v1900, %v1965
          %1967 = vst [vmem:[%s1925 + $0x34] sm:$0x1] %v1966
          %v1968 = vld [vmem:[%s1925 + $0x38] sm:$0xf]
          %v1969 = vsel %vm1519, %v1907, %v1968
          %1970 = vst [vmem:[%s1925 + $0x38] sm:$0xf] %v1969
          %v1971 = vld [vmem:[%s1925 + $0x3c] sm:$0x1]
          %v1972 = vsel %vm1374, %v1908, %v1971
          %1973 = vst [vmem:[%s1925 + $0x3c] sm:$0x1] %v1972
          %s1974 = scalar_lea.vmem [#allocation2], 240
          %1975 = vst [vmem:[%s1974] sm:$0xf] 0
          %1976 = vst [vmem:[%s1974 + $0x4] sm:$0x1] 0
          %s1977 = scalar_lea.vmem [#allocation2], 312
          %1978 = vst [vmem:[%s1977] sm:$0xf] 0
          %1979 = vst [vmem:[%s1977 + $0x4] sm:$0x1] 0
          %v1980 = vld [vmem:[%s1974] sm:$0x1]
          %v1981 = vsel %vm1374, 0, %v1980
          %1982 = vst [vmem:[%s1974] sm:$0x1] %v1981
          %v1983 = vld [vmem:[%s1974 + $0x8] sm:$0x1]
          %v1984 = vsel %vm1374, 0, %v1983
          %1985 = vst [vmem:[%s1974 + $0x8] sm:$0x1] %v1984
          %v1986 = vld [vmem:[%s1974 + $0x10] sm:$0x1]
          %v1987 = vsel %vm1374, 0, %v1986
          %1988 = vst [vmem:[%s1974 + $0x10] sm:$0x1] %v1987
          %v1989 = vld [vmem:[%s1974 + $0x18] sm:$0x1]
          %v1990 = vsel %vm1374, 0, %v1989
          %1991 = vst [vmem:[%s1974 + $0x18] sm:$0x1] %v1990
          %v1992 = vld [vmem:[%s1974 + $0x20] sm:$0x1]
          %v1993 = vsel %vm1374, 0, %v1992
          %1994 = vst [vmem:[%s1974 + $0x20] sm:$0x1] %v1993
          %v1995 = vld [vmem:[%s1974 + $0x28] sm:$0x1]
          %v1996 = vsel %vm1374, 0, %v1995
          %1997 = vst [vmem:[%s1974 + $0x28] sm:$0x1] %v1996
          %v1998 = vld [vmem:[%s1974 + $0x30] sm:$0x1]
          %v1999 = vsel %vm1374, 0, %v1998
          %2000 = vst [vmem:[%s1974 + $0x30] sm:$0x1] %v1999
          %v2001 = vld [vmem:[%s1974 + $0x38] sm:$0x1]
          %v2002 = vsel %vm1374, 0, %v2001
          %2003 = vst [vmem:[%s1974 + $0x38] sm:$0x1] %v2002
          %v2004 = vld [vmem:[%s1974 + $0x40] sm:$0x1]
          %v2005 = vsel %vm1374, 0, %v2004
          %2006 = vst [vmem:[%s1974 + $0x40] sm:$0x1] %v2005
          %v2007 = vld [vmem:[%s1974 + $0x48] sm:$0x1]
          %v2008 = vsel %vm1374, 0, %v2007
          %2009 = vst [vmem:[%s1974 + $0x48] sm:$0x1] %v2008
          %v2010 = vld [vmem:[%s1974 + $0x4] sm:$0x1]
          %v2011 = vsel %vm1406, 0, %v2010
          %2012 = vst [vmem:[%s1974 + $0x4] sm:$0x1] %v2011
          %v2013 = vld [vmem:[%s1974 + $0xc] sm:$0x1]
          %v2014 = vsel %vm1406, 0, %v2013
          %2015 = vst [vmem:[%s1974 + $0xc] sm:$0x1] %v2014
          %v2016 = vld [vmem:[%s1974 + $0x14] sm:$0x1]
          %v2017 = vsel %vm1406, 0, %v2016
          %2018 = vst [vmem:[%s1974 + $0x14] sm:$0x1] %v2017
          %v2019 = vld [vmem:[%s1974 + $0x1c] sm:$0x1]
          %v2020 = vsel %vm1406, 0, %v2019
          %2021 = vst [vmem:[%s1974 + $0x1c] sm:$0x1] %v2020
          %v2022 = vld [vmem:[%s1974 + $0x24] sm:$0x1]
          %v2023 = vsel %vm1406, 0, %v2022
          %2024 = vst [vmem:[%s1974 + $0x24] sm:$0x1] %v2023
          %v2025 = vld [vmem:[%s1974 + $0x2c] sm:$0x1]
          %v2026 = vsel %vm1406, 0, %v2025
          %2027 = vst [vmem:[%s1974 + $0x2c] sm:$0x1] %v2026
          %v2028 = vld [vmem:[%s1974 + $0x34] sm:$0x1]
          %v2029 = vsel %vm1406, 0, %v2028
          %2030 = vst [vmem:[%s1974 + $0x34] sm:$0x1] %v2029
          %v2031 = vld [vmem:[%s1974 + $0x3c] sm:$0x1]
          %v2032 = vsel %vm1406, 0, %v2031
          %2033 = vst [vmem:[%s1974 + $0x3c] sm:$0x1] %v2032
          %v2034 = vld [vmem:[%s1974 + $0x44] sm:$0x1]
          %v2035 = vsel %vm1406, 0, %v2034
          %2036 = vst [vmem:[%s1974 + $0x44] sm:$0x1] %v2035
          %v2037 = vld [vmem:[%s1974 + $0x4c] sm:$0x1]
          %v2038 = vsel %vm1406, 0, %v2037
          %2039 = vst [vmem:[%s1974 + $0x4c] sm:$0x1] %v2038
          %v2040 = vrot.slane %v1351, 4
          %v2041 = vrot.slane %v1352, 4
          %v2042 = vrot.slane %v1353, 4
          %v2043 = vrot.slane %v1354, 4
          %v2044 = vrot.slane %v1355, 4
          %v2045 = vrot.slane %v1356, 4
          %v2046 = vrot.slane %v1357, 4
          %v2047 = vrot.slane %v1358, 4
          %v2049 = vshrl.u32 %v2040, 16
          %v2051 = vrot.slane %v2049, 7
          %v2052 = vshll.u32 %v2040, 16
          %v2054 = vor.u32 %v2051, %v2052
          %v2055 = vrot.slane %v2051, 4
          %v2057 = vshrl.u32 %v2041, 16
          %v2059 = vrot.slane %v2057, 7
          %v2060 = vshll.u32 %v2041, 16
          %v2062 = vor.u32 %v2059, %v2060
          %v2063 = vrot.slane %v2059, 4
          %v2065 = vshrl.u32 %v2042, 16
          %v2067 = vrot.slane %v2065, 7
          %v2068 = vshll.u32 %v2042, 16
          %v2070 = vor.u32 %v2067, %v2068
          %v2071 = vrot.slane %v2067, 4
          %v2073 = vshrl.u32 %v2043, 16
          %v2075 = vrot.slane %v2073, 7
          %v2076 = vshll.u32 %v2043, 16
          %v2078 = vor.u32 %v2075, %v2076
          %v2079 = vrot.slane %v2075, 4
          %v2081 = vshrl.u32 %v2044, 16
          %v2083 = vrot.slane %v2081, 7
          %v2084 = vshll.u32 %v2044, 16
          %v2086 = vor.u32 %v2083, %v2084
          %v2087 = vrot.slane %v2083, 4
          %v2089 = vshrl.u32 %v2045, 16
          %v2091 = vrot.slane %v2089, 7
          %v2092 = vshll.u32 %v2045, 16
          %v2094 = vor.u32 %v2091, %v2092
          %v2095 = vrot.slane %v2091, 4
          %v2097 = vshrl.u32 %v2046, 16
          %v2099 = vrot.slane %v2097, 7
          %v2100 = vshll.u32 %v2046, 16
          %v2102 = vor.u32 %v2099, %v2100
          %v2103 = vrot.slane %v2099, 4
          %v2105 = vshrl.u32 %v2047, 16
          %v2107 = vrot.slane %v2105, 7
          %v2108 = vshll.u32 %v2047, 16
          %v2110 = vor.u32 %v2107, %v2108
          %v2111 = vrot.slane %v2107, 4
          %s2128 = scalar_lea.vmem [#allocation2], 248
          %v2129 = vld [vmem:[%s2128] sm:$0xf]
          %v2130 = vsel %vm1519, %v2054, %v2129
          %2131 = vst [vmem:[%s2128] sm:$0xf] %v2130
          %v2132 = vld [vmem:[%s2128 + $0x4] sm:$0x1]
          %v2133 = vsel %vm1374, %v2055, %v2132
          %2134 = vst [vmem:[%s2128 + $0x4] sm:$0x1] %v2133
          %v2135 = vld [vmem:[%s2128 + $0x8] sm:$0xf]
          %v2136 = vsel %vm1519, %v2062, %v2135
          %2137 = vst [vmem:[%s2128 + $0x8] sm:$0xf] %v2136
          %v2138 = vld [vmem:[%s2128 + $0xc] sm:$0x1]
          %v2139 = vsel %vm1374, %v2063, %v2138
          %2140 = vst [vmem:[%s2128 + $0xc] sm:$0x1] %v2139
          %v2141 = vld [vmem:[%s2128 + $0x10] sm:$0xf]
          %v2142 = vsel %vm1519, %v2070, %v2141
          %2143 = vst [vmem:[%s2128 + $0x10] sm:$0xf] %v2142
          %v2144 = vld [vmem:[%s2128 + $0x14] sm:$0x1]
          %v2145 = vsel %vm1374, %v2071, %v2144
          %2146 = vst [vmem:[%s2128 + $0x14] sm:$0x1] %v2145
          %v2147 = vld [vmem:[%s2128 + $0x18] sm:$0xf]
          %v2148 = vsel %vm1519, %v2078, %v2147
          %2149 = vst [vmem:[%s2128 + $0x18] sm:$0xf] %v2148
          %v2150 = vld [vmem:[%s2128 + $0x1c] sm:$0x1]
          %v2151 = vsel %vm1374, %v2079, %v2150
          %2152 = vst [vmem:[%s2128 + $0x1c] sm:$0x1] %v2151
          %v2153 = vld [vmem:[%s2128 + $0x20] sm:$0xf]
          %v2154 = vsel %vm1519, %v2086, %v2153
          %2155 = vst [vmem:[%s2128 + $0x20] sm:$0xf] %v2154
          %v2156 = vld [vmem:[%s2128 + $0x24] sm:$0x1]
          %v2157 = vsel %vm1374, %v2087, %v2156
          %2158 = vst [vmem:[%s2128 + $0x24] sm:$0x1] %v2157
          %v2159 = vld [vmem:[%s2128 + $0x28] sm:$0xf]
          %v2160 = vsel %vm1519, %v2094, %v2159
          %2161 = vst [vmem:[%s2128 + $0x28] sm:$0xf] %v2160
          %v2162 = vld [vmem:[%s2128 + $0x2c] sm:$0x1]
          %v2163 = vsel %vm1374, %v2095, %v2162
          %2164 = vst [vmem:[%s2128 + $0x2c] sm:$0x1] %v2163
          %v2165 = vld [vmem:[%s2128 + $0x30] sm:$0xf]
          %v2166 = vsel %vm1519, %v2102, %v2165
          %2167 = vst [vmem:[%s2128 + $0x30] sm:$0xf] %v2166
          %v2168 = vld [vmem:[%s2128 + $0x34] sm:$0x1]
          %v2169 = vsel %vm1374, %v2103, %v2168
          %2170 = vst [vmem:[%s2128 + $0x34] sm:$0x1] %v2169
          %v2171 = vld [vmem:[%s2128 + $0x38] sm:$0xf]
          %v2172 = vsel %vm1519, %v2110, %v2171
          %2173 = vst [vmem:[%s2128 + $0x38] sm:$0xf] %v2172
          %v2174 = vld [vmem:[%s2128 + $0x3c] sm:$0x1]
          %v2175 = vsel %vm1374, %v2111, %v2174
          %2176 = vst [vmem:[%s2128 + $0x3c] sm:$0x1] %v2175
          %2177 = vst [vmem:[#allocation3] sm:$0xff] 0.0
          %2178 = vst [vmem:[#allocation3 + $0x8] sm:$0xff] 0.0
          %2179 = vst [vmem:[#allocation3 + $0x10] sm:$0xff] 0.0
          %2180 = vst [vmem:[#allocation3 + $0x18] sm:$0xff] 0.0
          %2181 = vst [vmem:[#allocation3 + $0x20] sm:$0xff] 0.0
          %2182 = vst [vmem:[#allocation3 + $0x28] sm:$0xff] 0.0
          %2183 = vst [vmem:[#allocation3 + $0x30] sm:$0xff] 0.0
          %2184 = vst [vmem:[#allocation3 + $0x38] sm:$0xff] 0.0
        $region97: #{psa_head_forward.5} parent=88 // pred_fallthru
          _
        %s2185 = smul.u32 %s24, 20
        %s2186 = smul.addr %s2185, 4
        %s2187 = scalar_lea.vmem [#allocation2], %s2186
        %v2188 = vld [vmem:[%s2187] sm:$0xf]
        %v2189 = vld [vmem:[%s2187 + $0x4] sm:$0x1]
        %v2190 = vld [vmem:[%s2187 + $0x8] sm:$0xf]
        %v2191 = vld [vmem:[%s2187 + $0xc] sm:$0x1]
        %v2192 = vld [vmem:[%s2187 + $0x10] sm:$0xf]
        %v2193 = vld [vmem:[%s2187 + $0x14] sm:$0x1]
        %v2194 = vld [vmem:[%s2187 + $0x18] sm:$0xf]
        %v2195 = vld [vmem:[%s2187 + $0x1c] sm:$0x1]
        %v2196 = vld [vmem:[%s2187 + $0x20] sm:$0xf]
        %v2197 = vld [vmem:[%s2187 + $0x24] sm:$0x1]
        %v2198 = vld [vmem:[%s2187 + $0x28] sm:$0xf]
        %v2199 = vld [vmem:[%s2187 + $0x2c] sm:$0x1]
        %v2200 = vld [vmem:[%s2187 + $0x30] sm:$0xf]
        %v2201 = vld [vmem:[%s2187 + $0x34] sm:$0x1]
        %v2202 = vld [vmem:[%s2187 + $0x38] sm:$0xf]
        %v2203 = vld [vmem:[%s2187 + $0x3c] sm:$0x1]
        %v2204 = vld [vmem:[%s2187 + $0x40] sm:$0xf]
        %v2205 = vld [vmem:[%s2187 + $0x44] sm:$0x1]
        %v2206 = vld [vmem:[%s2187 + $0x48] sm:$0xf]
        %v2207 = vld [vmem:[%s2187 + $0x4c] sm:$0x1]
        %v2208 = vld [vmem:[#allocation3] sm:$0xff]
        %v2209 = vld [vmem:[#allocation3 + $0x8] sm:$0xff]
        %v2210 = vld [vmem:[#allocation3 + $0x10] sm:$0xff]
        %v2211 = vld [vmem:[#allocation3 + $0x18] sm:$0xff]
        %v2212 = vld [vmem:[#allocation3 + $0x20] sm:$0xff]
        %v2213 = vld [vmem:[#allocation3 + $0x28] sm:$0xff]
        %v2214 = vld [vmem:[#allocation3 + $0x30] sm:$0xff]
        %v2215 = vld [vmem:[#allocation3 + $0x38] sm:$0xff]
        %v2216 = vld [vmem:[%s916] sm:$0xf]
        %v2217 = vld [vmem:[%s916 + $0x4] sm:$0xf]
        %v2218 = vld [vmem:[%s916 + $0x8] sm:$0xf]
        %v2219 = vld [vmem:[%s916 + $0xc] sm:$0xf]
        %v2220 = vld [vmem:[%s916 + $0x10] sm:$0xf]
        %v2221 = vld [vmem:[%s916 + $0x14] sm:$0xf]
        %v2222 = vld [vmem:[%s916 + $0x18] sm:$0xf]
        %v2223 = vld [vmem:[%s916 + $0x1c] sm:$0xf]
        %v2224 = vld [vmem:[%s916 + $0x20] sm:$0xf]
        %v2225 = vld [vmem:[%s916 + $0x24] sm:$0xf]
        %v2226 = vld [vmem:[%s916 + $0x28] sm:$0xf]
        %v2227 = vld [vmem:[%s916 + $0x2c] sm:$0xf]
        %v2228 = vld [vmem:[%s916 + $0x30] sm:$0xf]
        %v2229 = vld [vmem:[%s916 + $0x34] sm:$0xf]
        %v2230 = vld [vmem:[%s916 + $0x38] sm:$0xf]
        %v2231 = vld [vmem:[%s916 + $0x3c] sm:$0xf]
        %v2240 = vunpack.c.l.b16 %v2188
        %v2241 = vunpack.c.l.b16 %v2190
        %v2242 = vunpack.c.l.b16 %v2192
        %v2243 = vunpack.c.l.b16 %v2194
        %v2244 = vunpack.c.l.b16 %v2196
        %v2245 = vunpack.c.l.b16 %v2198
        %v2246 = vunpack.c.l.b16 %v2200
        %v2247 = vunpack.c.l.b16 %v2202
        %v2248 = vpack.c.b16 %v2241, %v2240
        %v2249 = vpack.c.b16 %v2243, %v2242
        %v2250 = vpack.c.b16 %v2245, %v2244
        %v2251 = vpack.c.b16 %v2247, %v2246
        %v2272 = vunpack.c.l.b16 %v2216
        %v2273 = vunpack.c.l.b16 %v2217
        %v2274 = vunpack.c.l.b16 %v2218
        %v2275 = vunpack.c.l.b16 %v2219
        %v2276 = vunpack.c.l.b16 %v2220
        %v2277 = vunpack.c.l.b16 %v2221
        %v2278 = vunpack.c.l.b16 %v2222
        %v2279 = vunpack.c.l.b16 %v2223
        %v2280 = vunpack.c.l.b16 %v2224
        %v2281 = vunpack.c.l.b16 %v2225
        %v2282 = vunpack.c.l.b16 %v2226
        %v2283 = vunpack.c.l.b16 %v2227
        %v2284 = vunpack.c.l.b16 %v2228
        %v2285 = vunpack.c.l.b16 %v2229
        %v2286 = vunpack.c.l.b16 %v2230
        %v2287 = vunpack.c.l.b16 %v2231
        %v2288 = vpack.c.b16 %v2273, %v2272
        %v2289 = vpack.c.b16 %v2275, %v2274
        %v2290 = vpack.c.b16 %v2277, %v2276
        %v2291 = vpack.c.b16 %v2279, %v2278
        %v2292 = vpack.c.b16 %v2281, %v2280
        %v2293 = vpack.c.b16 %v2283, %v2282
        %v2294 = vpack.c.b16 %v2285, %v2284
        %v2295 = vpack.c.b16 %v2287, %v2286
        %2304 = vmatprep.subr.bf16.mxu0 0
        %2305 = vmatpush1.bf16.msra.mxu0 %v2288
        %2306 = vmatprep.subr.bf16.mxu0 0
        %2307 = vmatpush1.bf16.msra.mxu0 %v2289
        %2308 = vmatprep.subr.bf16.mxu0 0
        %2309 = vmatpush1.bf16.msra.mxu0 %v2290
        %2310 = vmatprep.subr.bf16.mxu0 0
        %2311 = vmatpush1.bf16.msra.mxu0 %v2291
        %2312 = vmatprep.subr.bf16.mxu0 0
        %2313 = vmatpush1.bf16.msra.mxu0 %v2292
        %2314 = vmatprep.subr.bf16.mxu0 0
        %2315 = vmatpush1.bf16.msra.mxu0 %v2293
        %2316 = vmatprep.subr.bf16.mxu0 0
        %2317 = vmatpush1.bf16.msra.mxu0 %v2294
        %2318 = vmatprep.subr.bf16.mxu0 0
        %2319 = vmatpush1.bf16.msra.mxu0 %v2295
        %2320 = vmatprep.subr.bf16.mxu0 0
        %2321 = vmatpush1.bf16.msra.mxu0 0
        %2322 = vmatprep.subr.bf16.mxu0 0
        %2323 = vmatpush1.bf16.msra.mxu0 0
        %2324 = vmatprep.subr.bf16.mxu0 0
        %2325 = vmatpush1.bf16.msra.mxu0 0
        %2326 = vmatprep.subr.bf16.mxu0 0
        %2327 = vmatpush1.bf16.msra.mxu0 0
        %2328 = vmatprep.subr.bf16.mxu0 0
        %2329 = vmatpush1.bf16.msra.mxu0 0
        %2330 = vmatprep.subr.bf16.mxu0 0
        %2331 = vmatpush1.bf16.msra.mxu0 0
        %2332 = vmatprep.subr.bf16.mxu0 0
        %2333 = vmatpush1.bf16.msra.mxu0 0
        %2334 = vmatprep.subr.bf16.mxu0 0
        %2335 = vmatpush1.bf16.msra.mxu0 0
        %2336 = vmatprep.mubr.bf16.mxu0 0
        %2337 = vmatmul.mubr.bf16.gmra.mrb[0].mxu0 %v2248
        %v2338 = vpop.f32.mrb[0].mxu0
        %v2339 = vadd.f32 0.0, %v2338
        %v2340 = vpop.f32.mrb[0].mxu0
        %v2341 = vpop.f32.mrb[0].mxu0
        %v2342 = vadd.f32 0.0, %v2341
        %v2343 = vpop.f32.mrb[0].mxu0
        %2344 = vmatprep.mubr.bf16.mxu0 0
        %2345 = vmatmul.mubr.bf16.gmra.mrb[0].mxu0 %v2249
        %v2346 = vpop.f32.mrb[0].mxu0
        %v2347 = vadd.f32 0.0, %v2346
        %v2348 = vpop.f32.mrb[0].mxu0
        %v2349 = vpop.f32.mrb[0].mxu0
        %v2350 = vadd.f32 0.0, %v2349
        %v2351 = vpop.f32.mrb[0].mxu0
        %2352 = vmatprep.mubr.bf16.mxu0 0
        %2353 = vmatmul.mubr.bf16.gmra.mrb[0].mxu0 %v2250
        %v2354 = vpop.f32.mrb[0].mxu0
        %v2355 = vadd.f32 0.0, %v2354
        %v2356 = vpop.f32.mrb[0].mxu0
        %v2357 = vpop.f32.mrb[0].mxu0
        %v2358 = vadd.f32 0.0, %v2357
        %v2359 = vpop.f32.mrb[0].mxu0
        %2360 = vmatprep.mubr.bf16.mxu0 0
        %2361 = vmatmul.mubr.bf16.gmra.mrb[0].mxu0 %v2251
        %v2362 = vpop.f32.mrb[0].mxu0
        %v2363 = vadd.f32 0.0, %v2362
        %v2364 = vpop.f32.mrb[0].mxu0
        %v2365 = vpop.f32.mrb[0].mxu0
        %v2366 = vadd.f32 0.0, %v2365
        %v2367 = vpop.f32.mrb[0].mxu0
        %2368 = vdwg.mxu0
        %v2369 = vadd.f32 %v2208, %v2339
        %v2370 = vadd.f32 %v2209, %v2342
        %v2371 = vadd.f32 %v2210, %v2347
        %v2372 = vadd.f32 %v2211, %v2350
        %v2373 = vadd.f32 %v2212, %v2355
        %v2374 = vadd.f32 %v2213, %v2358
        %v2375 = vadd.f32 %v2214, %v2363
        %v2376 = vadd.f32 %v2215, %v2366
        %vm2377 = vsmask.f32 3328
        %vm2378 = vsmask.f32 7440
        %vm2379 = vmor %vm2377, %vm2378
        %v2381 = vshrl.u32 %v2188, 16
        %v2383 = vrot.slane %v2381, 4
        %v2384 = vshll.u32 %v2188, 16
        %v2386 = vrot.slane %v2384, 5
        %v2387 = vor.u32 %v2383, %v2386
        %v2388 = vrot.slane %v2387, 4
        %v2390 = vshll.u32 %v2189, 16
        %v2392 = vrot.slane %v2390, 5
        %v2393 = vsel %vm2379, %v2388, %v2392
        %v2395 = vshrl.u32 %v2190, 16
        %v2397 = vrot.slane %v2395, 4
        %v2398 = vshll.u32 %v2190, 16
        %v2400 = vrot.slane %v2398, 5
        %v2401 = vor.u32 %v2397, %v2400
        %v2402 = vrot.slane %v2401, 4
        %v2404 = vshll.u32 %v2191, 16
        %v2406 = vrot.slane %v2404, 5
        %v2407 = vsel %vm2379, %v2402, %v2406
        %v2409 = vshrl.u32 %v2192, 16
        %v2411 = vrot.slane %v2409, 4
        %v2412 = vshll.u32 %v2192, 16
        %v2414 = vrot.slane %v2412, 5
        %v2415 = vor.u32 %v2411, %v2414
        %v2416 = vrot.slane %v2415, 4
        %v2418 = vshll.u32 %v2193, 16
        %v2420 = vrot.slane %v2418, 5
        %v2421 = vsel %vm2379, %v2416, %v2420
        %v2423 = vshrl.u32 %v2194, 16
        %v2425 = vrot.slane %v2423, 4
        %v2426 = vshll.u32 %v2194, 16
        %v2428 = vrot.slane %v2426, 5
        %v2429 = vor.u32 %v2425, %v2428
        %v2430 = vrot.slane %v2429, 4
        %v2432 = vshll.u32 %v2195, 16
        %v2434 = vrot.slane %v2432, 5
        %v2435 = vsel %vm2379, %v2430, %v2434
        %v2437 = vshrl.u32 %v2196, 16
        %v2439 = vrot.slane %v2437, 4
        %v2440 = vshll.u32 %v2196, 16
        %v2442 = vrot.slane %v2440, 5
        %v2443 = vor.u32 %v2439, %v2442
        %v2444 = vrot.slane %v2443, 4
        %v2446 = vshll.u32 %v2197, 16
        %v2448 = vrot.slane %v2446, 5
        %v2449 = vsel %vm2379, %v2444, %v2448
        %v2451 = vshrl.u32 %v2198, 16
        %v2453 = vrot.slane %v2451, 4
        %v2454 = vshll.u32 %v2198, 16
        %v2456 = vrot.slane %v2454, 5
        %v2457 = vor.u32 %v2453, %v2456
        %v2458 = vrot.slane %v2457, 4
        %v2460 = vshll.u32 %v2199, 16
        %v2462 = vrot.slane %v2460, 5
        %v2463 = vsel %vm2379, %v2458, %v2462
        %v2465 = vshrl.u32 %v2200, 16
        %v2467 = vrot.slane %v2465, 4
        %v2468 = vshll.u32 %v2200, 16
        %v2470 = vrot.slane %v2468, 5
        %v2471 = vor.u32 %v2467, %v2470
        %v2472 = vrot.slane %v2471, 4
        %v2474 = vshll.u32 %v2201, 16
        %v2476 = vrot.slane %v2474, 5
        %v2477 = vsel %vm2379, %v2472, %v2476
        %v2479 = vshrl.u32 %v2202, 16
        %v2481 = vrot.slane %v2479, 4
        %v2482 = vshll.u32 %v2202, 16
        %v2484 = vrot.slane %v2482, 5
        %v2485 = vor.u32 %v2481, %v2484
        %v2486 = vrot.slane %v2485, 4
        %v2488 = vshll.u32 %v2203, 16
        %v2490 = vrot.slane %v2488, 5
        %v2491 = vsel %vm2379, %v2486, %v2490
        %s2492 = scalar_lea.vmem %s916, 64 [#allocation4]
        %v2493 = vld [vmem:[%s2492] sm:$0xf]
        %v2494 = vld [vmem:[%s2492 + $0x4] sm:$0xf]
        %v2495 = vld [vmem:[%s2492 + $0x8] sm:$0xf]
        %v2496 = vld [vmem:[%s2492 + $0xc] sm:$0xf]
        %v2497 = vld [vmem:[%s2492 + $0x10] sm:$0xf]
        %v2498 = vld [vmem:[%s2492 + $0x14] sm:$0xf]
        %v2499 = vld [vmem:[%s2492 + $0x18] sm:$0xf]
        %v2500 = vld [vmem:[%s2492 + $0x1c] sm:$0xf]
        %v2501 = vld [vmem:[%s2492 + $0x20] sm:$0xf]
        %v2502 = vld [vmem:[%s2492 + $0x24] sm:$0xf]
        %v2503 = vld [vmem:[%s2492 + $0x28] sm:$0xf]
        %v2504 = vld [vmem:[%s2492 + $0x2c] sm:$0xf]
        %v2505 = vld [vmem:[%s2492 + $0x30] sm:$0xf]
        %v2506 = vld [vmem:[%s2492 + $0x34] sm:$0xf]
        %v2507 = vld [vmem:[%s2492 + $0x38] sm:$0xf]
        %v2508 = vld [vmem:[%s2492 + $0x3c] sm:$0xf]
        %v2509 = vunpack.c.l.b16 %v2393
        %v2510 = vunpack.c.l.b16 %v2407
        %v2511 = vunpack.c.l.b16 %v2421
        %v2512 = vunpack.c.l.b16 %v2435
        %v2513 = vunpack.c.l.b16 %v2449
        %v2514 = vunpack.c.l.b16 %v2463
        %v2515 = vunpack.c.l.b16 %v2477
        %v2516 = vunpack.c.l.b16 %v2491
        %v2517 = vpack.c.b16 %v2510, %v2509
        %v2518 = vpack.c.b16 %v2512, %v2511
        %v2519 = vpack.c.b16 %v2514, %v2513
        %v2520 = vpack.c.b16 %v2516, %v2515
        %v2541 = vunpack.c.l.b16 %v2493
        %v2542 = vunpack.c.l.b16 %v2494
        %v2543 = vunpack.c.l.b16 %v2495
        %v2544 = vunpack.c.l.b16 %v2496
        %v2545 = vunpack.c.l.b16 %v2497
        %v2546 = vunpack.c.l.b16 %v2498
        %v2547 = vunpack.c.l.b16 %v2499
        %v2548 = vunpack.c.l.b16 %v2500
        %v2549 = vunpack.c.l.b16 %v2501
        %v2550 = vunpack.c.l.b16 %v2502
        %v2551 = vunpack.c.l.b16 %v2503
        %v2552 = vunpack.c.l.b16 %v2504
        %v2553 = vunpack.c.l.b16 %v2505
        %v2554 = vunpack.c.l.b16 %v2506
        %v2555 = vunpack.c.l.b16 %v2507
        %v2556 = vunpack.c.l.b16 %v2508
        %v2557 = vpack.c.b16 %v2542, %v2541
        %v2558 = vpack.c.b16 %v2544, %v2543
        %v2559 = vpack.c.b16 %v2546, %v2545
        %v2560 = vpack.c.b16 %v2548, %v2547
        %v2561 = vpack.c.b16 %v2550, %v2549
        %v2562 = vpack.c.b16 %v2552, %v2551
        %v2563 = vpack.c.b16 %v2554, %v2553
        %v2564 = vpack.c.b16 %v2556, %v2555
        %2573 = vmatprep.subr.bf16.mxu0 0
        %2574 = vmatpush1.bf16.msra.mxu0 %v2557
        %2575 = vmatprep.subr.bf16.mxu0 0
        %2576 = vmatpush1.bf16.msra.mxu0 %v2558
        %2577 = vmatprep.subr.bf16.mxu0 0
        %2578 = vmatpush1.bf16.msra.mxu0 %v2559
        %2579 = vmatprep.subr.bf16.mxu0 0
        %2580 = vmatpush1.bf16.msra.mxu0 %v2560
        %2581 = vmatprep.subr.bf16.mxu0 0
        %2582 = vmatpush1.bf16.msra.mxu0 %v2561
        %2583 = vmatprep.subr.bf16.mxu0 0
        %2584 = vmatpush1.bf16.msra.mxu0 %v2562
        %2585 = vmatprep.subr.bf16.mxu0 0
        %2586 = vmatpush1.bf16.msra.mxu0 %v2563
        %2587 = vmatprep.subr.bf16.mxu0 0
        %2588 = vmatpush1.bf16.msra.mxu0 %v2564
        %2589 = vmatprep.subr.bf16.mxu0 0
        %2590 = vmatpush1.bf16.msra.mxu0 0
        %2591 = vmatprep.subr.bf16.mxu0 0
        %2592 = vmatpush1.bf16.msra.mxu0 0
        %2593 = vmatprep.subr.bf16.mxu0 0
        %2594 = vmatpush1.bf16.msra.mxu0 0
        %2595 = vmatprep.subr.bf16.mxu0 0
        %2596 = vmatpush1.bf16.msra.mxu0 0
        %2597 = vmatprep.subr.bf16.mxu0 0
        %2598 = vmatpush1.bf16.msra.mxu0 0
        %2599 = vmatprep.subr.bf16.mxu0 0
        %2600 = vmatpush1.bf16.msra.mxu0 0
        %2601 = vmatprep.subr.bf16.mxu0 0
        %2602 = vmatpush1.bf16.msra.mxu0 0
        %2603 = vmatprep.subr.bf16.mxu0 0
        %2604 = vmatpush1.bf16.msra.mxu0 0
        %2605 = vmatprep.mubr.bf16.mxu0 0
        %2606 = vmatmul.mubr.bf16.gmra.mrb[0].mxu0 %v2517
        %v2607 = vpop.f32.mrb[0].mxu0
        %v2608 = vadd.f32 0.0, %v2607
        %v2609 = vpop.f32.mrb[0].mxu0
        %v2610 = vpop.f32.mrb[0].mxu0
        %v2611 = vadd.f32 0.0, %v2610
        %v2612 = vpop.f32.mrb[0].mxu0
        %2613 = vmatprep.mubr.bf16.mxu0 0
        %2614 = vmatmul.mubr.bf16.gmra.mrb[0].mxu0 %v2518
        %v2615 = vpop.f32.mrb[0].mxu0
        %v2616 = vadd.f32 0.0, %v2615
        %v2617 = vpop.f32.mrb[0].mxu0
        %v2618 = vpop.f32.mrb[0].mxu0
        %v2619 = vadd.f32 0.0, %v2618
        %v2620 = vpop.f32.mrb[0].mxu0
        %2621 = vmatprep.mubr.bf16.mxu0 0
        %2622 = vmatmul.mubr.bf16.gmra.mrb[0].mxu0 %v2519
        %v2623 = vpop.f32.mrb[0].mxu0
        %v2624 = vadd.f32 0.0, %v2623
        %v2625 = vpop.f32.mrb[0].mxu0
        %v2626 = vpop.f32.mrb[0].mxu0
        %v2627 = vadd.f32 0.0, %v2626
        %v2628 = vpop.f32.mrb[0].mxu0
        %2629 = vmatprep.mubr.bf16.mxu0 0
        %2630 = vmatmul.mubr.bf16.gmra.mrb[0].mxu0 %v2520
        %v2631 = vpop.f32.mrb[0].mxu0
        %v2632 = vadd.f32 0.0, %v2631
        %v2633 = vpop.f32.mrb[0].mxu0
        %v2634 = vpop.f32.mrb[0].mxu0
        %v2635 = vadd.f32 0.0, %v2634
        %v2636 = vpop.f32.mrb[0].mxu0
        %2637 = vdwg.mxu0
        %v2638 = vadd.f32 %v2369, %v2608
        %v2639 = vadd.f32 %v2370, %v2611
        %v2640 = vadd.f32 %v2371, %v2616
        %v2641 = vadd.f32 %v2372, %v2619
        %v2642 = vadd.f32 %v2373, %v2624
        %v2643 = vadd.f32 %v2374, %v2627
        %v2644 = vadd.f32 %v2375, %v2632
        %v2645 = vadd.f32 %v2376, %v2635
        %vm2654 = vcmask 1042432
        %vm2655 = vcmask 1046532
        %vm2656 = vmor %vm2654, %vm2655
        %v2657 = vrot.slane %v2188, 5
        %v2658 = vrot.slane %v2657, 4
        %v2659 = vrot.slane %v2189, 5
        %v2660 = vsel %vm2656, %v2658, %v2659
        %v2661 = vrot.slane %v2190, 5
        %v2662 = vrot.slane %v2661, 4
        %v2663 = vrot.slane %v2191, 5
        %v2664 = vsel %vm2656, %v2662, %v2663
        %v2665 = vrot.slane %v2192, 5
        %v2666 = vrot.slane %v2665, 4
        %v2667 = vrot.slane %v2193, 5
        %v2668 = vsel %vm2656, %v2666, %v2667
        %v2669 = vrot.slane %v2194, 5
        %v2670 = vrot.slane %v2669, 4
        %v2671 = vrot.slane %v2195, 5
        %v2672 = vsel %vm2656, %v2670, %v2671
        %v2673 = vrot.slane %v2196, 5
        %v2674 = vrot.slane %v2673, 4
        %v2675 = vrot.slane %v2197, 5
        %v2676 = vsel %vm2656, %v2674, %v2675
        %v2677 = vrot.slane %v2198, 5
        %v2678 = vrot.slane %v2677, 4
        %v2679 = vrot.slane %v2199, 5
        %v2680 = vsel %vm2656, %v2678, %v2679
        %v2681 = vrot.slane %v2200, 5
        %v2682 = vrot.slane %v2681, 4
        %v2683 = vrot.slane %v2201, 5
        %v2684 = vsel %vm2656, %v2682, %v2683
        %v2685 = vrot.slane %v2202, 5
        %v2686 = vrot.slane %v2685, 4
        %v2687 = vrot.slane %v2203, 5
        %v2688 = vsel %vm2656, %v2686, %v2687
        %s2689 = scalar_lea.vmem %s916, 128 [#allocation4]
        %v2690 = vld [vmem:[%s2689] sm:$0xf]
        %v2691 = vld [vmem:[%s2689 + $0x4] sm:$0xf]
        %v2692 = vld [vmem:[%s2689 + $0x8] sm:$0xf]
        %v2693 = vld [vmem:[%s2689 + $0xc] sm:$0xf]
        %v2694 = vld [vmem:[%s2689 + $0x10] sm:$0xf]
        %v2695 = vld [vmem:[%s2689 + $0x14] sm:$0xf]
        %v2696 = vld [vmem:[%s2689 + $0x18] sm:$0xf]
        %v2697 = vld [vmem:[%s2689 + $0x1c] sm:$0xf]
        %v2698 = vld [vmem:[%s2689 + $0x20] sm:$0xf]
        %v2699 = vld [vmem:[%s2689 + $0x24] sm:$0xf]
        %v2700 = vld [vmem:[%s2689 + $0x28] sm:$0xf]
        %v2701 = vld [vmem:[%s2689 + $0x2c] sm:$0xf]
        %v2702 = vld [vmem:[%s2689 + $0x30] sm:$0xf]
        %v2703 = vld [vmem:[%s2689 + $0x34] sm:$0xf]
        %v2704 = vld [vmem:[%s2689 + $0x38] sm:$0xf]
        %v2705 = vld [vmem:[%s2689 + $0x3c] sm:$0xf]
        %v2706 = vunpack.c.l.b16 %v2660
        %v2707 = vunpack.c.l.b16 %v2664
        %v2708 = vunpack.c.l.b16 %v2668
        %v2709 = vunpack.c.l.b16 %v2672
        %v2710 = vunpack.c.l.b16 %v2676
        %v2711 = vunpack.c.l.b16 %v2680
        %v2712 = vunpack.c.l.b16 %v2684
        %v2713 = vunpack.c.l.b16 %v2688
        %v2714 = vpack.c.b16 %v2707, %v2706
        %v2715 = vpack.c.b16 %v2709, %v2708
        %v2716 = vpack.c.b16 %v2711, %v2710
        %v2717 = vpack.c.b16 %v2713, %v2712
        %v2738 = vunpack.c.l.b16 %v2690
        %v2739 = vunpack.c.l.b16 %v2691
        %v2740 = vunpack.c.l.b16 %v2692
        %v2741 = vunpack.c.l.b16 %v2693
        %v2742 = vunpack.c.l.b16 %v2694
        %v2743 = vunpack.c.l.b16 %v2695
        %v2744 = vunpack.c.l.b16 %v2696
        %v2745 = vunpack.c.l.b16 %v2697
        %v2746 = vunpack.c.l.b16 %v2698
        %v2747 = vunpack.c.l.b16 %v2699
        %v2748 = vunpack.c.l.b16 %v2700
        %v2749 = vunpack.c.l.b16 %v2701
        %v2750 = vunpack.c.l.b16 %v2702
        %v2751 = vunpack.c.l.b16 %v2703
        %v2752 = vunpack.c.l.b16 %v2704
        %v2753 = vunpack.c.l.b16 %v2705
        %v2754 = vpack.c.b16 %v2739, %v2738
        %v2755 = vpack.c.b16 %v2741, %v2740
        %v2756 = vpack.c.b16 %v2743, %v2742
        %v2757 = vpack.c.b16 %v2745, %v2744
        %v2758 = vpack.c.b16 %v2747, %v2746
        %v2759 = vpack.c.b16 %v2749, %v2748
        %v2760 = vpack.c.b16 %v2751, %v2750
        %v2761 = vpack.c.b16 %v2753, %v2752
        %2770 = vmatprep.subr.bf16.mxu0 0
        %2771 = vmatpush1.bf16.msra.mxu0 %v2754
        %2772 = vmatprep.subr.bf16.mxu0 0
        %2773 = vmatpush1.bf16.msra.mxu0 %v2755
        %2774 = vmatprep.subr.bf16.mxu0 0
        %2775 = vmatpush1.bf16.msra.mxu0 %v2756
        %2776 = vmatprep.subr.bf16.mxu0 0
        %2777 = vmatpush1.bf16.msra.mxu0 %v2757
        %2778 = vmatprep.subr.bf16.mxu0 0
        %2779 = vmatpush1.bf16.msra.mxu0 %v2758
        %2780 = vmatprep.subr.bf16.mxu0 0
        %2781 = vmatpush1.bf16.msra.mxu0 %v2759
        %2782 = vmatprep.subr.bf16.mxu0 0
        %2783 = vmatpush1.bf16.msra.mxu0 %v2760
        %2784 = vmatprep.subr.bf16.mxu0 0
        %2785 = vmatpush1.bf16.msra.mxu0 %v2761
        %2786 = vmatprep.subr.bf16.mxu0 0
        %2787 = vmatpush1.bf16.msra.mxu0 0
        %2788 = vmatprep.subr.bf16.mxu0 0
        %2789 = vmatpush1.bf16.msra.mxu0 0
        %2790 = vmatprep.subr.bf16.mxu0 0
        %2791 = vmatpush1.bf16.msra.mxu0 0
        %2792 = vmatprep.subr.bf16.mxu0 0
        %2793 = vmatpush1.bf16.msra.mxu0 0
        %2794 = vmatprep.subr.bf16.mxu0 0
        %2795 = vmatpush1.bf16.msra.mxu0 0
        %2796 = vmatprep.subr.bf16.mxu0 0
        %2797 = vmatpush1.bf16.msra.mxu0 0
        %2798 = vmatprep.subr.bf16.mxu0 0
        %2799 = vmatpush1.bf16.msra.mxu0 0
        %2800 = vmatprep.subr.bf16.mxu0 0
        %2801 = vmatpush1.bf16.msra.mxu0 0
        %2802 = vmatprep.mubr.bf16.mxu0 0
        %2803 = vmatmul.mubr.bf16.gmra.mrb[0].mxu0 %v2714
        %v2804 = vpop.f32.mrb[0].mxu0
        %v2805 = vadd.f32 0.0, %v2804
        %v2806 = vpop.f32.mrb[0].mxu0
        %v2807 = vpop.f32.mrb[0].mxu0
        %v2808 = vadd.f32 0.0, %v2807
        %v2809 = vpop.f32.mrb[0].mxu0
        %2810 = vmatprep.mubr.bf16.mxu0 0
        %2811 = vmatmul.mubr.bf16.gmra.mrb[0].mxu0 %v2715
        %v2812 = vpop.f32.mrb[0].mxu0
        %v2813 = vadd.f32 0.0, %v2812
        %v2814 = vpop.f32.mrb[0].mxu0
        %v2815 = vpop.f32.mrb[0].mxu0
        %v2816 = vadd.f32 0.0, %v2815
        %v2817 = vpop.f32.mrb[0].mxu0
        %2818 = vmatprep.mubr.bf16.mxu0 0
        %2819 = vmatmul.mubr.bf16.gmra.mrb[0].mxu0 %v2716
        %v2820 = vpop.f32.mrb[0].mxu0
        %v2821 = vadd.f32 0.0, %v2820
        %v2822 = vpop.f32.mrb[0].mxu0
        %v2823 = vpop.f32.mrb[0].mxu0
        %v2824 = vadd.f32 0.0, %v2823
        %v2825 = vpop.f32.mrb[0].mxu0
        %2826 = vmatprep.mubr.bf16.mxu0 0
        %2827 = vmatmul.mubr.bf16.gmra.mrb[0].mxu0 %v2717
        %v2828 = vpop.f32.mrb[0].mxu0
        %v2829 = vadd.f32 0.0, %v2828
        %v2830 = vpop.f32.mrb[0].mxu0
        %v2831 = vpop.f32.mrb[0].mxu0
        %v2832 = vadd.f32 0.0, %v2831
        %v2833 = vpop.f32.mrb[0].mxu0
        %2834 = vdwg.mxu0
        %v2835 = vadd.f32 %v2638, %v2805
        %v2836 = vadd.f32 %v2639, %v2808
        %v2837 = vadd.f32 %v2640, %v2813
        %v2838 = vadd.f32 %v2641, %v2816
        %v2839 = vadd.f32 %v2642, %v2821
        %v2840 = vadd.f32 %v2643, %v2824
        %v2841 = vadd.f32 %v2644, %v2829
        %v2842 = vadd.f32 %v2645, %v2832
        %s2843 = scalar_lea.vmem %s916, 192 [#allocation4]
        %v2844 = vld [vmem:[%s2843] sm:$0xf]
        %v2845 = vld [vmem:[%s2843 + $0x4] sm:$0xf]
        %v2846 = vld [vmem:[%s2843 + $0x8] sm:$0xf]
        %v2847 = vld [vmem:[%s2843 + $0xc] sm:$0xf]
        %v2848 = vld [vmem:[%s2843 + $0x10] sm:$0xf]
        %v2849 = vld [vmem:[%s2843 + $0x14] sm:$0xf]
        %v2850 = vld [vmem:[%s2843 + $0x18] sm:$0xf]
        %v2851 = vld [vmem:[%s2843 + $0x1c] sm:$0xf]
        %v2852 = vld [vmem:[%s2843 + $0x20] sm:$0xf]
        %v2853 = vld [vmem:[%s2843 + $0x24] sm:$0xf]
        %v2854 = vld [vmem:[%s2843 + $0x28] sm:$0xf]
        %v2855 = vld [vmem:[%s2843 + $0x2c] sm:$0xf]
        %v2856 = vld [vmem:[%s2843 + $0x30] sm:$0xf]
        %v2857 = vld [vmem:[%s2843 + $0x34] sm:$0xf]
        %v2858 = vld [vmem:[%s2843 + $0x38] sm:$0xf]
        %v2859 = vld [vmem:[%s2843 + $0x3c] sm:$0xf]
        %v2861 = vunpack.c.l.b16 %v2204
        %v2862 = vpack.c.b16 %v2242, %v2241
        %v2863 = vpack.c.b16 %v2244, %v2243
        %v2864 = vpack.c.b16 %v2246, %v2245
        %v2865 = vpack.c.b16 %v2861, %v2247
        %v2886 = vunpack.c.l.b16 %v2844
        %v2887 = vunpack.c.l.b16 %v2845
        %v2888 = vunpack.c.l.b16 %v2846
        %v2889 = vunpack.c.l.b16 %v2847
        %v2890 = vunpack.c.l.b16 %v2848
        %v2891 = vunpack.c.l.b16 %v2849
        %v2892 = vunpack.c.l.b16 %v2850
        %v2893 = vunpack.c.l.b16 %v2851
        %v2894 = vunpack.c.l.b16 %v2852
        %v2895 = vunpack.c.l.b16 %v2853
        %v2896 = vunpack.c.l.b16 %v2854
        %v2897 = vunpack.c.l.b16 %v2855
        %v2898 = vunpack.c.l.b16 %v2856
        %v2899 = vunpack.c.l.b16 %v2857
        %v2900 = vunpack.c.l.b16 %v2858
        %v2901 = vunpack.c.l.b16 %v2859
        %v2902 = vpack.c.b16 %v2887, %v2886
        %v2903 = vpack.c.b16 %v2889, %v2888
        %v2904 = vpack.c.b16 %v2891, %v2890
        %v2905 = vpack.c.b16 %v2893, %v2892
        %v2906 = vpack.c.b16 %v2895, %v2894
        %v2907 = vpack.c.b16 %v2897, %v2896
        %v2908 = vpack.c.b16 %v2899, %v2898
        %v2909 = vpack.c.b16 %v2901, %v2900
        %2918 = vmatprep.subr.bf16.mxu0 0
        %2919 = vmatpush1.bf16.msra.mxu0 %v2902
        %2920 = vmatprep.subr.bf16.mxu0 0
        %2921 = vmatpush1.bf16.msra.mxu0 %v2903
        %2922 = vmatprep.subr.bf16.mxu0 0
        %2923 = vmatpush1.bf16.msra.mxu0 %v2904
        %2924 = vmatprep.subr.bf16.mxu0 0
        %2925 = vmatpush1.bf16.msra.mxu0 %v2905
        %2926 = vmatprep.subr.bf16.mxu0 0
        %2927 = vmatpush1.bf16.msra.mxu0 %v2906
        %2928 = vmatprep.subr.bf16.mxu0 0
        %2929 = vmatpush1.bf16.msra.mxu0 %v2907
        %2930 = vmatprep.subr.bf16.mxu0 0
        %2931 = vmatpush1.bf16.msra.mxu0 %v2908
        %2932 = vmatprep.subr.bf16.mxu0 0
        %2933 = vmatpush1.bf16.msra.mxu0 %v2909
        %2934 = vmatprep.subr.bf16.mxu0 0
        %2935 = vmatpush1.bf16.msra.mxu0 0
        %2936 = vmatprep.subr.bf16.mxu0 0
        %2937 = vmatpush1.bf16.msra.mxu0 0
        %2938 = vmatprep.subr.bf16.mxu0 0
        %2939 = vmatpush1.bf16.msra.mxu0 0
        %2940 = vmatprep.subr.bf16.mxu0 0
        %2941 = vmatpush1.bf16.msra.mxu0 0
        %2942 = vmatprep.subr.bf16.mxu0 0
        %2943 = vmatpush1.bf16.msra.mxu0 0
        %2944 = vmatprep.subr.bf16.mxu0 0
        %2945 = vmatpush1.bf16.msra.mxu0 0
        %2946 = vmatprep.subr.bf16.mxu0 0
        %2947 = vmatpush1.bf16.msra.mxu0 0
        %2948 = vmatprep.subr.bf16.mxu0 0
        %2949 = vmatpush1.bf16.msra.mxu0 0
        %2950 = vmatprep.mubr.bf16.mxu0 0
        %2951 = vmatmul.mubr.bf16.gmra.mrb[0].mxu0 %v2862
        %v2952 = vpop.f32.mrb[0].mxu0
        %v2953 = vadd.f32 0.0, %v2952
        %v2954 = vpop.f32.mrb[0].mxu0
        %v2955 = vpop.f32.mrb[0].mxu0
        %v2956 = vadd.f32 0.0, %v2955
        %v2957 = vpop.f32.mrb[0].mxu0
        %2958 = vmatprep.mubr.bf16.mxu0 0
        %2959 = vmatmul.mubr.bf16.gmra.mrb[0].mxu0 %v2863
        %v2960 = vpop.f32.mrb[0].mxu0
        %v2961 = vadd.f32 0.0, %v2960
        %v2962 = vpop.f32.mrb[0].mxu0
        %v2963 = vpop.f32.mrb[0].mxu0
        %v2964 = vadd.f32 0.0, %v2963
        %v2965 = vpop.f32.mrb[0].mxu0
        %2966 = vmatprep.mubr.bf16.mxu0 0
        %2967 = vmatmul.mubr.bf16.gmra.mrb[0].mxu0 %v2864
        %v2968 = vpop.f32.mrb[0].mxu0
        %v2969 = vadd.f32 0.0, %v2968
        %v2970 = vpop.f32.mrb[0].mxu0
        %v2971 = vpop.f32.mrb[0].mxu0
        %v2972 = vadd.f32 0.0, %v2971
        %v2973 = vpop.f32.mrb[0].mxu0
        %2974 = vmatprep.mubr.bf16.mxu0 0
        %2975 = vmatmul.mubr.bf16.gmra.mrb[0].mxu0 %v2865
        %v2976 = vpop.f32.mrb[0].mxu0
        %v2977 = vadd.f32 0.0, %v2976
        %v2978 = vpop.f32.mrb[0].mxu0
        %v2979 = vpop.f32.mrb[0].mxu0
        %v2980 = vadd.f32 0.0, %v2979
        %v2981 = vpop.f32.mrb[0].mxu0
        %2982 = vdwg.mxu0
        %v2983 = vadd.f32 %v2835, %v2953
        %v2984 = vadd.f32 %v2836, %v2956
        %v2985 = vadd.f32 %v2837, %v2961
        %v2986 = vadd.f32 %v2838, %v2964
        %v2987 = vadd.f32 %v2839, %v2969
        %v2988 = vadd.f32 %v2840, %v2972
        %v2989 = vadd.f32 %v2841, %v2977
        %v2990 = vadd.f32 %v2842, %v2980
        %v2992 = vshrl.u32 %v2204, 16
        %v2994 = vrot.slane %v2992, 4
        %v2995 = vshll.u32 %v2204, 16
        %v2997 = vrot.slane %v2995, 5
        %v2998 = vor.u32 %v2994, %v2997
        %v2999 = vrot.slane %v2998, 4
        %v3001 = vshll.u32 %v2205, 16
        %v3003 = vrot.slane %v3001, 5
        %v3004 = vsel %vm2379, %v2999, %v3003
        %s3005 = scalar_lea.vmem %s916, 256 [#allocation4]
        %v3006 = vld [vmem:[%s3005] sm:$0xf]
        %v3007 = vld [vmem:[%s3005 + $0x4] sm:$0xf]
        %v3008 = vld [vmem:[%s3005 + $0x8] sm:$0xf]
        %v3009 = vld [vmem:[%s3005 + $0xc] sm:$0xf]
        %v3010 = vld [vmem:[%s3005 + $0x10] sm:$0xf]
        %v3011 = vld [vmem:[%s3005 + $0x14] sm:$0xf]
        %v3012 = vld [vmem:[%s3005 + $0x18] sm:$0xf]
        %v3013 = vld [vmem:[%s3005 + $0x1c] sm:$0xf]
        %v3014 = vld [vmem:[%s3005 + $0x20] sm:$0xf]
        %v3015 = vld [vmem:[%s3005 + $0x24] sm:$0xf]
        %v3016 = vld [vmem:[%s3005 + $0x28] sm:$0xf]
        %v3017 = vld [vmem:[%s3005 + $0x2c] sm:$0xf]
        %v3018 = vld [vmem:[%s3005 + $0x30] sm:$0xf]
        %v3019 = vld [vmem:[%s3005 + $0x34] sm:$0xf]
        %v3020 = vld [vmem:[%s3005 + $0x38] sm:$0xf]
        %v3021 = vld [vmem:[%s3005 + $0x3c] sm:$0xf]
        %v3022 = vunpack.c.l.b16 %v3004
        %v3023 = vpack.c.b16 %v2511, %v2510
        %v3024 = vpack.c.b16 %v2513, %v2512
        %v3025 = vpack.c.b16 %v2515, %v2514
        %v3026 = vpack.c.b16 %v3022, %v2516
        %v3047 = vunpack.c.l.b16 %v3006
        %v3048 = vunpack.c.l.b16 %v3007
        %v3049 = vunpack.c.l.b16 %v3008
        %v3050 = vunpack.c.l.b16 %v3009
        %v3051 = vunpack.c.l.b16 %v3010
        %v3052 = vunpack.c.l.b16 %v3011
        %v3053 = vunpack.c.l.b16 %v3012
        %v3054 = vunpack.c.l.b16 %v3013
        %v3055 = vunpack.c.l.b16 %v3014
        %v3056 = vunpack.c.l.b16 %v3015
        %v3057 = vunpack.c.l.b16 %v3016
        %v3058 = vunpack.c.l.b16 %v3017
        %v3059 = vunpack.c.l.b16 %v3018
        %v3060 = vunpack.c.l.b16 %v3019
        %v3061 = vunpack.c.l.b16 %v3020
        %v3062 = vunpack.c.l.b16 %v3021
        %v3063 = vpack.c.b16 %v3048, %v3047
        %v3064 = vpack.c.b16 %v3050, %v3049
        %v3065 = vpack.c.b16 %v3052, %v3051
        %v3066 = vpack.c.b16 %v3054, %v3053
        %v3067 = vpack.c.b16 %v3056, %v3055
        %v3068 = vpack.c.b16 %v3058, %v3057
        %v3069 = vpack.c.b16 %v3060, %v3059
        %v3070 = vpack.c.b16 %v3062, %v3061
        %3079 = vmatprep.subr.bf16.mxu0 0
        %3080 = vmatpush1.bf16.msra.mxu0 %v3063
        %3081 = vmatprep.subr.bf16.mxu0 0
        %3082 = vmatpush1.bf16.msra.mxu0 %v3064
        %3083 = vmatprep.subr.bf16.mxu0 0
        %3084 = vmatpush1.bf16.msra.mxu0 %v3065
        %3085 = vmatprep.subr.bf16.mxu0 0
        %3086 = vmatpush1.bf16.msra.mxu0 %v3066
        %3087 = vmatprep.subr.bf16.mxu0 0
        %3088 = vmatpush1.bf16.msra.mxu0 %v3067
        %3089 = vmatprep.subr.bf16.mxu0 0
        %3090 = vmatpush1.bf16.msra.mxu0 %v3068
        %3091 = vmatprep.subr.bf16.mxu0 0
        %3092 = vmatpush1.bf16.msra.mxu0 %v3069
        %3093 = vmatprep.subr.bf16.mxu0 0
        %3094 = vmatpush1.bf16.msra.mxu0 %v3070
        %3095 = vmatprep.subr.bf16.mxu0 0
        %3096 = vmatpush1.bf16.msra.mxu0 0
        %3097 = vmatprep.subr.bf16.mxu0 0
        %3098 = vmatpush1.bf16.msra.mxu0 0
        %3099 = vmatprep.subr.bf16.mxu0 0
        %3100 = vmatpush1.bf16.msra.mxu0 0
        %3101 = vmatprep.subr.bf16.mxu0 0
        %3102 = vmatpush1.bf16.msra.mxu0 0
        %3103 = vmatprep.subr.bf16.mxu0 0
        %3104 = vmatpush1.bf16.msra.mxu0 0
        %3105 = vmatprep.subr.bf16.mxu0 0
        %3106 = vmatpush1.bf16.msra.mxu0 0
        %3107 = vmatprep.subr.bf16.mxu0 0
        %3108 = vmatpush1.bf16.msra.mxu0 0
        %3109 = vmatprep.subr.bf16.mxu0 0
        %3110 = vmatpush1.bf16.msra.mxu0 0
        %3111 = vmatprep.mubr.bf16.mxu0 0
        %3112 = vmatmul.mubr.bf16.gmra.mrb[0].mxu0 %v3023
        %v3113 = vpop.f32.mrb[0].mxu0
        %v3114 = vadd.f32 0.0, %v3113
        %v3115 = vpop.f32.mrb[0].mxu0
        %v3116 = vpop.f32.mrb[0].mxu0
        %v3117 = vadd.f32 0.0, %v3116
        %v3118 = vpop.f32.mrb[0].mxu0
        %3119 = vmatprep.mubr.bf16.mxu0 0
        %3120 = vmatmul.mubr.bf16.gmra.mrb[0].mxu0 %v3024
        %v3121 = vpop.f32.mrb[0].mxu0
        %v3122 = vadd.f32 0.0, %v3121
        %v3123 = vpop.f32.mrb[0].mxu0
        %v3124 = vpop.f32.mrb[0].mxu0
        %v3125 = vadd.f32 0.0, %v3124
        %v3126 = vpop.f32.mrb[0].mxu0
        %3127 = vmatprep.mubr.bf16.mxu0 0
        %3128 = vmatmul.mubr.bf16.gmra.mrb[0].mxu0 %v3025
        %v3129 = vpop.f32.mrb[0].mxu0
        %v3130 = vadd.f32 0.0, %v3129
        %v3131 = vpop.f32.mrb[0].mxu0
        %v3132 = vpop.f32.mrb[0].mxu0
        %v3133 = vadd.f32 0.0, %v3132
        %v3134 = vpop.f32.mrb[0].mxu0
        %3135 = vmatprep.mubr.bf16.mxu0 0
        %3136 = vmatmul.mubr.bf16.gmra.mrb[0].mxu0 %v3026
        %v3137 = vpop.f32.mrb[0].mxu0
        %v3138 = vadd.f32 0.0, %v3137
        %v3139 = vpop.f32.mrb[0].mxu0
        %v3140 = vpop.f32.mrb[0].mxu0
        %v3141 = vadd.f32 0.0, %v3140
        %v3142 = vpop.f32.mrb[0].mxu0
        %3143 = vdwg.mxu0
        %v3144 = vadd.f32 %v2983, %v3114
        %v3145 = vadd.f32 %v2984, %v3117
        %v3146 = vadd.f32 %v2985, %v3122
        %v3147 = vadd.f32 %v2986, %v3125
        %v3148 = vadd.f32 %v2987, %v3130
        %v3149 = vadd.f32 %v2988, %v3133
        %v3150 = vadd.f32 %v2989, %v3138
        %v3151 = vadd.f32 %v2990, %v3141
        %v3153 = vrot.slane %v2204, 5
        %v3154 = vrot.slane %v3153, 4
        %v3155 = vrot.slane %v2205, 5
        %v3156 = vsel %vm2656, %v3154, %v3155
        %s3157 = scalar_lea.vmem %s916, 320 [#allocation4]
        %v3158 = vld [vmem:[%s3157] sm:$0xf]
        %v3159 = vld [vmem:[%s3157 + $0x4] sm:$0xf]
        %v3160 = vld [vmem:[%s3157 + $0x8] sm:$0xf]
        %v3161 = vld [vmem:[%s3157 + $0xc] sm:$0xf]
        %v3162 = vld [vmem:[%s3157 + $0x10] sm:$0xf]
        %v3163 = vld [vmem:[%s3157 + $0x14] sm:$0xf]
        %v3164 = vld [vmem:[%s3157 + $0x18] sm:$0xf]
        %v3165 = vld [vmem:[%s3157 + $0x1c] sm:$0xf]
        %v3166 = vld [vmem:[%s3157 + $0x20] sm:$0xf]
        %v3167 = vld [vmem:[%s3157 + $0x24] sm:$0xf]
        %v3168 = vld [vmem:[%s3157 + $0x28] sm:$0xf]
        %v3169 = vld [vmem:[%s3157 + $0x2c] sm:$0xf]
        %v3170 = vld [vmem:[%s3157 + $0x30] sm:$0xf]
        %v3171 = vld [vmem:[%s3157 + $0x34] sm:$0xf]
        %v3172 = vld [vmem:[%s3157 + $0x38] sm:$0xf]
        %v3173 = vld [vmem:[%s3157 + $0x3c] sm:$0xf]
        %v3174 = vunpack.c.l.b16 %v3156
        %v3175 = vpack.c.b16 %v2708, %v2707
        %v3176 = vpack.c.b16 %v2710, %v2709
        %v3177 = vpack.c.b16 %v2712, %v2711
        %v3178 = vpack.c.b16 %v3174, %v2713
        %v3199 = vunpack.c.l.b16 %v3158
        %v3200 = vunpack.c.l.b16 %v3159
        %v3201 = vunpack.c.l.b16 %v3160
        %v3202 = vunpack.c.l.b16 %v3161
        %v3203 = vunpack.c.l.b16 %v3162
        %v3204 = vunpack.c.l.b16 %v3163
        %v3205 = vunpack.c.l.b16 %v3164
        %v3206 = vunpack.c.l.b16 %v3165
        %v3207 = vunpack.c.l.b16 %v3166
        %v3208 = vunpack.c.l.b16 %v3167
        %v3209 = vunpack.c.l.b16 %v3168
        %v3210 = vunpack.c.l.b16 %v3169
        %v3211 = vunpack.c.l.b16 %v3170
        %v3212 = vunpack.c.l.b16 %v3171
        %v3213 = vunpack.c.l.b16 %v3172
        %v3214 = vunpack.c.l.b16 %v3173
        %v3215 = vpack.c.b16 %v3200, %v3199
        %v3216 = vpack.c.b16 %v3202, %v3201
        %v3217 = vpack.c.b16 %v3204, %v3203
        %v3218 = vpack.c.b16 %v3206, %v3205
        %v3219 = vpack.c.b16 %v3208, %v3207
        %v3220 = vpack.c.b16 %v3210, %v3209
        %v3221 = vpack.c.b16 %v3212, %v3211
        %v3222 = vpack.c.b16 %v3214, %v3213
        %3231 = vmatprep.subr.bf16.mxu0 0
        %3232 = vmatpush1.bf16.msra.mxu0 %v3215
        %3233 = vmatprep.subr.bf16.mxu0 0
        %3234 = vmatpush1.bf16.msra.mxu0 %v3216
        %3235 = vmatprep.subr.bf16.mxu0 0
        %3236 = vmatpush1.bf16.msra.mxu0 %v3217
        %3237 = vmatprep.subr.bf16.mxu0 0
        %3238 = vmatpush1.bf16.msra.mxu0 %v3218
        %3239 = vmatprep.subr.bf16.mxu0 0
        %3240 = vmatpush1.bf16.msra.mxu0 %v3219
        %3241 = vmatprep.subr.bf16.mxu0 0
        %3242 = vmatpush1.bf16.msra.mxu0 %v3220
        %3243 = vmatprep.subr.bf16.mxu0 0
        %3244 = vmatpush1.bf16.msra.mxu0 %v3221
        %3245 = vmatprep.subr.bf16.mxu0 0
        %3246 = vmatpush1.bf16.msra.mxu0 %v3222
        %3247 = vmatprep.subr.bf16.mxu0 0
        %3248 = vmatpush1.bf16.msra.mxu0 0
        %3249 = vmatprep.subr.bf16.mxu0 0
        %3250 = vmatpush1.bf16.msra.mxu0 0
        %3251 = vmatprep.subr.bf16.mxu0 0
        %3252 = vmatpush1.bf16.msra.mxu0 0
        %3253 = vmatprep.subr.bf16.mxu0 0
        %3254 = vmatpush1.bf16.msra.mxu0 0
        %3255 = vmatprep.subr.bf16.mxu0 0
        %3256 = vmatpush1.bf16.msra.mxu0 0
        %3257 = vmatprep.subr.bf16.mxu0 0
        %3258 = vmatpush1.bf16.msra.mxu0 0
        %3259 = vmatprep.subr.bf16.mxu0 0
        %3260 = vmatpush1.bf16.msra.mxu0 0
        %3261 = vmatprep.subr.bf16.mxu0 0
        %3262 = vmatpush1.bf16.msra.mxu0 0
        %3263 = vmatprep.mubr.bf16.mxu0 0
        %3264 = vmatmul.mubr.bf16.gmra.mrb[0].mxu0 %v3175
        %v3265 = vpop.f32.mrb[0].mxu0
        %v3266 = vadd.f32 0.0, %v3265
        %v3267 = vpop.f32.mrb[0].mxu0
        %v3268 = vpop.f32.mrb[0].mxu0
        %v3269 = vadd.f32 0.0, %v3268
        %v3270 = vpop.f32.mrb[0].mxu0
        %3271 = vmatprep.mubr.bf16.mxu0 0
        %3272 = vmatmul.mubr.bf16.gmra.mrb[0].mxu0 %v3176
        %v3273 = vpop.f32.mrb[0].mxu0
        %v3274 = vadd.f32 0.0, %v3273
        %v3275 = vpop.f32.mrb[0].mxu0
        %v3276 = vpop.f32.mrb[0].mxu0
        %v3277 = vadd.f32 0.0, %v3276
        %v3278 = vpop.f32.mrb[0].mxu0
        %3279 = vmatprep.mubr.bf16.mxu0 0
        %3280 = vmatmul.mubr.bf16.gmra.mrb[0].mxu0 %v3177
        %v3281 = vpop.f32.mrb[0].mxu0
        %v3282 = vadd.f32 0.0, %v3281
        %v3283 = vpop.f32.mrb[0].mxu0
        %v3284 = vpop.f32.mrb[0].mxu0
        %v3285 = vadd.f32 0.0, %v3284
        %v3286 = vpop.f32.mrb[0].mxu0
        %3287 = vmatprep.mubr.bf16.mxu0 0
        %3288 = vmatmul.mubr.bf16.gmra.mrb[0].mxu0 %v3178
        %v3289 = vpop.f32.mrb[0].mxu0
        %v3290 = vadd.f32 0.0, %v3289
        %v3291 = vpop.f32.mrb[0].mxu0
        %v3292 = vpop.f32.mrb[0].mxu0
        %v3293 = vadd.f32 0.0, %v3292
        %v3294 = vpop.f32.mrb[0].mxu0
        %3295 = vdwg.mxu0
        %v3296 = vadd.f32 %v3144, %v3266
        %v3297 = vadd.f32 %v3145, %v3269
        %v3298 = vadd.f32 %v3146, %v3274
        %v3299 = vadd.f32 %v3147, %v3277
        %v3300 = vadd.f32 %v3148, %v3282
        %v3301 = vadd.f32 %v3149, %v3285
        %v3302 = vadd.f32 %v3150, %v3290
        %v3303 = vadd.f32 %v3151, %v3293
        %s3304 = scalar_lea.vmem %s916, 384 [#allocation4]
        %v3305 = vld [vmem:[%s3304] sm:$0xf]
        %v3306 = vld [vmem:[%s3304 + $0x4] sm:$0xf]
        %v3307 = vld [vmem:[%s3304 + $0x8] sm:$0xf]
        %v3308 = vld [vmem:[%s3304 + $0xc] sm:$0xf]
        %v3309 = vld [vmem:[%s3304 + $0x10] sm:$0xf]
        %v3310 = vld [vmem:[%s3304 + $0x14] sm:$0xf]
        %v3311 = vld [vmem:[%s3304 + $0x18] sm:$0xf]
        %v3312 = vld [vmem:[%s3304 + $0x1c] sm:$0xf]
        %v3313 = vld [vmem:[%s3304 + $0x20] sm:$0xf]
        %v3314 = vld [vmem:[%s3304 + $0x24] sm:$0xf]
        %v3315 = vld [vmem:[%s3304 + $0x28] sm:$0xf]
        %v3316 = vld [vmem:[%s3304 + $0x2c] sm:$0xf]
        %v3317 = vld [vmem:[%s3304 + $0x30] sm:$0xf]
        %v3318 = vld [vmem:[%s3304 + $0x34] sm:$0xf]
        %v3319 = vld [vmem:[%s3304 + $0x38] sm:$0xf]
        %v3320 = vld [vmem:[%s3304 + $0x3c] sm:$0xf]
        %v3322 = vunpack.c.l.b16 %v2206
        %v3323 = vpack.c.b16 %v3322, %v2861
        %v3341 = vunpack.c.l.b16 %v3305
        %v3342 = vunpack.c.l.b16 %v3306
        %v3343 = vunpack.c.l.b16 %v3307
        %v3344 = vunpack.c.l.b16 %v3308
        %v3345 = vunpack.c.l.b16 %v3309
        %v3346 = vunpack.c.l.b16 %v3310
        %v3347 = vunpack.c.l.b16 %v3311
        %v3348 = vunpack.c.l.b16 %v3312
        %v3349 = vunpack.c.l.b16 %v3313
        %v3350 = vunpack.c.l.b16 %v3314
        %v3351 = vunpack.c.l.b16 %v3315
        %v3352 = vunpack.c.l.b16 %v3316
        %v3353 = vunpack.c.l.b16 %v3317
        %v3354 = vunpack.c.l.b16 %v3318
        %v3355 = vunpack.c.l.b16 %v3319
        %v3356 = vunpack.c.l.b16 %v3320
        %v3357 = vpack.c.b16 %v3342, %v3341
        %v3358 = vpack.c.b16 %v3344, %v3343
        %v3359 = vpack.c.b16 %v3346, %v3345
        %v3360 = vpack.c.b16 %v3348, %v3347
        %v3361 = vpack.c.b16 %v3350, %v3349
        %v3362 = vpack.c.b16 %v3352, %v3351
        %v3363 = vpack.c.b16 %v3354, %v3353
        %v3364 = vpack.c.b16 %v3356, %v3355
        %3373 = vmatprep.subr.bf16.mxu0 0
        %3374 = vmatpush1.bf16.msra.mxu0 %v3357
        %3375 = vmatprep.subr.bf16.mxu0 0
        %3376 = vmatpush1.bf16.msra.mxu0 %v3358
        %3377 = vmatprep.subr.bf16.mxu0 0
        %3378 = vmatpush1.bf16.msra.mxu0 %v3359
        %3379 = vmatprep.subr.bf16.mxu0 0
        %3380 = vmatpush1.bf16.msra.mxu0 %v3360
        %3381 = vmatprep.subr.bf16.mxu0 0
        %3382 = vmatpush1.bf16.msra.mxu0 %v3361
        %3383 = vmatprep.subr.bf16.mxu0 0
        %3384 = vmatpush1.bf16.msra.mxu0 %v3362
        %3385 = vmatprep.subr.bf16.mxu0 0
        %3386 = vmatpush1.bf16.msra.mxu0 %v3363
        %3387 = vmatprep.subr.bf16.mxu0 0
        %3388 = vmatpush1.bf16.msra.mxu0 %v3364
        %3389 = vmatprep.subr.bf16.mxu0 0
        %3390 = vmatpush1.bf16.msra.mxu0 0
        %3391 = vmatprep.subr.bf16.mxu0 0
        %3392 = vmatpush1.bf16.msra.mxu0 0
        %3393 = vmatprep.subr.bf16.mxu0 0
        %3394 = vmatpush1.bf16.msra.mxu0 0
        %3395 = vmatprep.subr.bf16.mxu0 0
        %3396 = vmatpush1.bf16.msra.mxu0 0
        %3397 = vmatprep.subr.bf16.mxu0 0
        %3398 = vmatpush1.bf16.msra.mxu0 0
        %3399 = vmatprep.subr.bf16.mxu0 0
        %3400 = vmatpush1.bf16.msra.mxu0 0
        %3401 = vmatprep.subr.bf16.mxu0 0
        %3402 = vmatpush1.bf16.msra.mxu0 0
        %3403 = vmatprep.subr.bf16.mxu0 0
        %3404 = vmatpush1.bf16.msra.mxu0 0
        %3405 = vmatprep.mubr.bf16.mxu0 0
        %3406 = vmatmul.mubr.bf16.gmra.mrb[0].mxu0 %v2249
        %v3407 = vpop.f32.mrb[0].mxu0
        %v3408 = vadd.f32 0.0, %v3407
        %v3409 = vpop.f32.mrb[0].mxu0
        %v3410 = vpop.f32.mrb[0].mxu0
        %v3411 = vadd.f32 0.0, %v3410
        %v3412 = vpop.f32.mrb[0].mxu0
        %3413 = vmatprep.mubr.bf16.mxu0 0
        %3414 = vmatmul.mubr.bf16.gmra.mrb[0].mxu0 %v2250
        %v3415 = vpop.f32.mrb[0].mxu0
        %v3416 = vadd.f32 0.0, %v3415
        %v3417 = vpop.f32.mrb[0].mxu0
        %v3418 = vpop.f32.mrb[0].mxu0
        %v3419 = vadd.f32 0.0, %v3418
        %v3420 = vpop.f32.mrb[0].mxu0
        %3421 = vmatprep.mubr.bf16.mxu0 0
        %3422 = vmatmul.mubr.bf16.gmra.mrb[0].mxu0 %v2251
        %v3423 = vpop.f32.mrb[0].mxu0
        %v3424 = vadd.f32 0.0, %v3423
        %v3425 = vpop.f32.mrb[0].mxu0
        %v3426 = vpop.f32.mrb[0].mxu0
        %v3427 = vadd.f32 0.0, %v3426
        %v3428 = vpop.f32.mrb[0].mxu0
        %3429 = vmatprep.mubr.bf16.mxu0 0
        %3430 = vmatmul.mubr.bf16.gmra.mrb[0].mxu0 %v3323
        %v3431 = vpop.f32.mrb[0].mxu0
        %v3432 = vadd.f32 0.0, %v3431
        %v3433 = vpop.f32.mrb[0].mxu0
        %v3434 = vpop.f32.mrb[0].mxu0
        %v3435 = vadd.f32 0.0, %v3434
        %v3436 = vpop.f32.mrb[0].mxu0
        %3437 = vdwg.mxu0
        %v3438 = vadd.f32 %v3296, %v3408
        %v3439 = vadd.f32 %v3297, %v3411
        %v3440 = vadd.f32 %v3298, %v3416
        %v3441 = vadd.f32 %v3299, %v3419
        %v3442 = vadd.f32 %v3300, %v3424
        %v3443 = vadd.f32 %v3301, %v3427
        %v3444 = vadd.f32 %v3302, %v3432
        %v3445 = vadd.f32 %v3303, %v3435
        %v3447 = vshrl.u32 %v2206, 16
        %v3449 = vrot.slane %v3447, 4
        %v3450 = vshll.u32 %v2206, 16
        %v3452 = vrot.slane %v3450, 5
        %v3453 = vor.u32 %v3449, %v3452
        %v3454 = vrot.slane %v3453, 4
        %v3456 = vshll.u32 %v2207, 16
        %v3458 = vrot.slane %v3456, 5
        %v3459 = vsel %vm2379, %v3454, %v3458
        %s3460 = scalar_lea.vmem %s916, 448 [#allocation4]
        %v3461 = vld [vmem:[%s3460] sm:$0xf]
        %v3462 = vld [vmem:[%s3460 + $0x4] sm:$0xf]
        %v3463 = vld [vmem:[%s3460 + $0x8] sm:$0xf]
        %v3464 = vld [vmem:[%s3460 + $0xc] sm:$0xf]
        %v3465 = vld [vmem:[%s3460 + $0x10] sm:$0xf]
        %v3466 = vld [vmem:[%s3460 + $0x14] sm:$0xf]
        %v3467 = vld [vmem:[%s3460 + $0x18] sm:$0xf]
        %v3468 = vld [vmem:[%s3460 + $0x1c] sm:$0xf]
        %v3469 = vld [vmem:[%s3460 + $0x20] sm:$0xf]
        %v3470 = vld [vmem:[%s3460 + $0x24] sm:$0xf]
        %v3471 = vld [vmem:[%s3460 + $0x28] sm:$0xf]
        %v3472 = vld [vmem:[%s3460 + $0x2c] sm:$0xf]
        %v3473 = vld [vmem:[%s3460 + $0x30] sm:$0xf]
        %v3474 = vld [vmem:[%s3460 + $0x34] sm:$0xf]
        %v3475 = vld [vmem:[%s3460 + $0x38] sm:$0xf]
        %v3476 = vld [vmem:[%s3460 + $0x3c] sm:$0xf]
        %v3477 = vunpack.c.l.b16 %v3459
        %v3478 = vpack.c.b16 %v3477, %v3022
        %v3496 = vunpack.c.l.b16 %v3461
        %v3497 = vunpack.c.l.b16 %v3462
        %v3498 = vunpack.c.l.b16 %v3463
        %v3499 = vunpack.c.l.b16 %v3464
        %v3500 = vunpack.c.l.b16 %v3465
        %v3501 = vunpack.c.l.b16 %v3466
        %v3502 = vunpack.c.l.b16 %v3467
        %v3503 = vunpack.c.l.b16 %v3468
        %v3504 = vunpack.c.l.b16 %v3469
        %v3505 = vunpack.c.l.b16 %v3470
        %v3506 = vunpack.c.l.b16 %v3471
        %v3507 = vunpack.c.l.b16 %v3472
        %v3508 = vunpack.c.l.b16 %v3473
        %v3509 = vunpack.c.l.b16 %v3474
        %v3510 = vunpack.c.l.b16 %v3475
        %v3511 = vunpack.c.l.b16 %v3476
        %v3512 = vpack.c.b16 %v3497, %v3496
        %v3513 = vpack.c.b16 %v3499, %v3498
        %v3514 = vpack.c.b16 %v3501, %v3500
        %v3515 = vpack.c.b16 %v3503, %v3502
        %v3516 = vpack.c.b16 %v3505, %v3504
        %v3517 = vpack.c.b16 %v3507, %v3506
        %v3518 = vpack.c.b16 %v3509, %v3508
        %v3519 = vpack.c.b16 %v3511, %v3510
        %3528 = vmatprep.subr.bf16.mxu0 0
        %3529 = vmatpush1.bf16.msra.mxu0 %v3512
        %3530 = vmatprep.subr.bf16.mxu0 0
        %3531 = vmatpush1.bf16.msra.mxu0 %v3513
        %3532 = vmatprep.subr.bf16.mxu0 0
        %3533 = vmatpush1.bf16.msra.mxu0 %v3514
        %3534 = vmatprep.subr.bf16.mxu0 0
        %3535 = vmatpush1.bf16.msra.mxu0 %v3515
        %3536 = vmatprep.subr.bf16.mxu0 0
        %3537 = vmatpush1.bf16.msra.mxu0 %v3516
        %3538 = vmatprep.subr.bf16.mxu0 0
        %3539 = vmatpush1.bf16.msra.mxu0 %v3517
        %3540 = vmatprep.subr.bf16.mxu0 0
        %3541 = vmatpush1.bf16.msra.mxu0 %v3518
        %3542 = vmatprep.subr.bf16.mxu0 0
        %3543 = vmatpush1.bf16.msra.mxu0 %v3519
        %3544 = vmatprep.subr.bf16.mxu0 0
        %3545 = vmatpush1.bf16.msra.mxu0 0
        %3546 = vmatprep.subr.bf16.mxu0 0
        %3547 = vmatpush1.bf16.msra.mxu0 0
        %3548 = vmatprep.subr.bf16.mxu0 0
        %3549 = vmatpush1.bf16.msra.mxu0 0
        %3550 = vmatprep.subr.bf16.mxu0 0
        %3551 = vmatpush1.bf16.msra.mxu0 0
        %3552 = vmatprep.subr.bf16.mxu0 0
        %3553 = vmatpush1.bf16.msra.mxu0 0
        %3554 = vmatprep.subr.bf16.mxu0 0
        %3555 = vmatpush1.bf16.msra.mxu0 0
        %3556 = vmatprep.subr.bf16.mxu0 0
        %3557 = vmatpush1.bf16.msra.mxu0 0
        %3558 = vmatprep.subr.bf16.mxu0 0
        %3559 = vmatpush1.bf16.msra.mxu0 0
        %3560 = vmatprep.mubr.bf16.mxu0 0
        %3561 = vmatmul.mubr.bf16.gmra.mrb[0].mxu0 %v2518
        %v3562 = vpop.f32.mrb[0].mxu0
        %v3563 = vadd.f32 0.0, %v3562
        %v3564 = vpop.f32.mrb[0].mxu0
        %v3565 = vpop.f32.mrb[0].mxu0
        %v3566 = vadd.f32 0.0, %v3565
        %v3567 = vpop.f32.mrb[0].mxu0
        %3568 = vmatprep.mubr.bf16.mxu0 0
        %3569 = vmatmul.mubr.bf16.gmra.mrb[0].mxu0 %v2519
        %v3570 = vpop.f32.mrb[0].mxu0
        %v3571 = vadd.f32 0.0, %v3570
        %v3572 = vpop.f32.mrb[0].mxu0
        %v3573 = vpop.f32.mrb[0].mxu0
        %v3574 = vadd.f32 0.0, %v3573
        %v3575 = vpop.f32.mrb[0].mxu0
        %3576 = vmatprep.mubr.bf16.mxu0 0
        %3577 = vmatmul.mubr.bf16.gmra.mrb[0].mxu0 %v2520
        %v3578 = vpop.f32.mrb[0].mxu0
        %v3579 = vadd.f32 0.0, %v3578
        %v3580 = vpop.f32.mrb[0].mxu0
        %v3581 = vpop.f32.mrb[0].mxu0
        %v3582 = vadd.f32 0.0, %v3581
        %v3583 = vpop.f32.mrb[0].mxu0
        %3584 = vmatprep.mubr.bf16.mxu0 0
        %3585 = vmatmul.mubr.bf16.gmra.mrb[0].mxu0 %v3478
        %v3586 = vpop.f32.mrb[0].mxu0
        %v3587 = vadd.f32 0.0, %v3586
        %v3588 = vpop.f32.mrb[0].mxu0
        %v3589 = vpop.f32.mrb[0].mxu0
        %v3590 = vadd.f32 0.0, %v3589
        %v3591 = vpop.f32.mrb[0].mxu0
        %3592 = vdwg.mxu0
        %v3593 = vadd.f32 %v3438, %v3563
        %v3594 = vadd.f32 %v3439, %v3566
        %v3595 = vadd.f32 %v3440, %v3571
        %v3596 = vadd.f32 %v3441, %v3574
        %v3597 = vadd.f32 %v3442, %v3579
        %v3598 = vadd.f32 %v3443, %v3582
        %v3599 = vadd.f32 %v3444, %v3587
        %v3600 = vadd.f32 %v3445, %v3590
        %v3602 = vrot.slane %v2206, 5
        %v3603 = vrot.slane %v3602, 4
        %v3604 = vrot.slane %v2207, 5
        %v3605 = vsel %vm2656, %v3603, %v3604
        %s3606 = scalar_lea.vmem %s916, 512 [#allocation4]
        %v3607 = vld [vmem:[%s3606] sm:$0xf]
        %v3608 = vld [vmem:[%s3606 + $0x4] sm:$0xf]
        %v3609 = vld [vmem:[%s3606 + $0x8] sm:$0xf]
        %v3610 = vld [vmem:[%s3606 + $0xc] sm:$0xf]
        %v3611 = vld [vmem:[%s3606 + $0x10] sm:$0xf]
        %v3612 = vld [vmem:[%s3606 + $0x14] sm:$0xf]
        %v3613 = vld [vmem:[%s3606 + $0x18] sm:$0xf]
        %v3614 = vld [vmem:[%s3606 + $0x1c] sm:$0xf]
        %v3615 = vld [vmem:[%s3606 + $0x20] sm:$0xf]
        %v3616 = vld [vmem:[%s3606 + $0x24] sm:$0xf]
        %v3617 = vld [vmem:[%s3606 + $0x28] sm:$0xf]
        %v3618 = vld [vmem:[%s3606 + $0x2c] sm:$0xf]
        %v3619 = vld [vmem:[%s3606 + $0x30] sm:$0xf]
        %v3620 = vld [vmem:[%s3606 + $0x34] sm:$0xf]
        %v3621 = vld [vmem:[%s3606 + $0x38] sm:$0xf]
        %v3622 = vld [vmem:[%s3606 + $0x3c] sm:$0xf]
        %v3623 = vunpack.c.l.b16 %v3605
        %v3624 = vpack.c.b16 %v3623, %v3174
        %v3642 = vunpack.c.l.b16 %v3607
        %v3643 = vunpack.c.l.b16 %v3608
        %v3644 = vunpack.c.l.b16 %v3609
        %v3645 = vunpack.c.l.b16 %v3610
        %v3646 = vunpack.c.l.b16 %v3611
        %v3647 = vunpack.c.l.b16 %v3612
        %v3648 = vunpack.c.l.b16 %v3613
        %v3649 = vunpack.c.l.b16 %v3614
        %v3650 = vunpack.c.l.b16 %v3615
        %v3651 = vunpack.c.l.b16 %v3616
        %v3652 = vunpack.c.l.b16 %v3617
        %v3653 = vunpack.c.l.b16 %v3618
        %v3654 = vunpack.c.l.b16 %v3619
        %v3655 = vunpack.c.l.b16 %v3620
        %v3656 = vunpack.c.l.b16 %v3621
        %v3657 = vunpack.c.l.b16 %v3622
        %v3658 = vpack.c.b16 %v3643, %v3642
        %v3659 = vpack.c.b16 %v3645, %v3644
        %v3660 = vpack.c.b16 %v3647, %v3646
        %v3661 = vpack.c.b16 %v3649, %v3648
        %v3662 = vpack.c.b16 %v3651, %v3650
        %v3663 = vpack.c.b16 %v3653, %v3652
        %v3664 = vpack.c.b16 %v3655, %v3654
        %v3665 = vpack.c.b16 %v3657, %v3656
        %3674 = vmatprep.subr.bf16.mxu0 0
        %3675 = vmatpush1.bf16.msra.mxu0 %v3658
        %3676 = vmatprep.subr.bf16.mxu0 0
        %3677 = vmatpush1.bf16.msra.mxu0 %v3659
        %3678 = vmatprep.subr.bf16.mxu0 0
        %3679 = vmatpush1.bf16.msra.mxu0 %v3660
        %3680 = vmatprep.subr.bf16.mxu0 0
        %3681 = vmatpush1.bf16.msra.mxu0 %v3661
        %3682 = vmatprep.subr.bf16.mxu0 0
        %3683 = vmatpush1.bf16.msra.mxu0 %v3662
        %3684 = vmatprep.subr.bf16.mxu0 0
        %3685 = vmatpush1.bf16.msra.mxu0 %v3663
        %3686 = vmatprep.subr.bf16.mxu0 0
        %3687 = vmatpush1.bf16.msra.mxu0 %v3664
        %3688 = vmatprep.subr.bf16.mxu0 0
        %3689 = vmatpush1.bf16.msra.mxu0 %v3665
        %3690 = vmatprep.subr.bf16.mxu0 0
        %3691 = vmatpush1.bf16.msra.mxu0 0
        %3692 = vmatprep.subr.bf16.mxu0 0
        %3693 = vmatpush1.bf16.msra.mxu0 0
        %3694 = vmatprep.subr.bf16.mxu0 0
        %3695 = vmatpush1.bf16.msra.mxu0 0
        %3696 = vmatprep.subr.bf16.mxu0 0
        %3697 = vmatpush1.bf16.msra.mxu0 0
        %3698 = vmatprep.subr.bf16.mxu0 0
        %3699 = vmatpush1.bf16.msra.mxu0 0
        %3700 = vmatprep.subr.bf16.mxu0 0
        %3701 = vmatpush1.bf16.msra.mxu0 0
        %3702 = vmatprep.subr.bf16.mxu0 0
        %3703 = vmatpush1.bf16.msra.mxu0 0
        %3704 = vmatprep.subr.bf16.mxu0 0
        %3705 = vmatpush1.bf16.msra.mxu0 0
        %3706 = vmatprep.mubr.bf16.mxu0 0
        %3707 = vmatmul.mubr.bf16.gmra.mrb[0].mxu0 %v2715
        %v3708 = vpop.f32.mrb[0].mxu0
        %v3709 = vadd.f32 0.0, %v3708
        %v3710 = vpop.f32.mrb[0].mxu0
        %v3711 = vpop.f32.mrb[0].mxu0
        %v3712 = vadd.f32 0.0, %v3711
        %v3713 = vpop.f32.mrb[0].mxu0
        %3714 = vmatprep.mubr.bf16.mxu0 0
        %3715 = vmatmul.mubr.bf16.gmra.mrb[0].mxu0 %v2716
        %v3716 = vpop.f32.mrb[0].mxu0
        %v3717 = vadd.f32 0.0, %v3716
        %v3718 = vpop.f32.mrb[0].mxu0
        %v3719 = vpop.f32.mrb[0].mxu0
        %v3720 = vadd.f32 0.0, %v3719
        %v3721 = vpop.f32.mrb[0].mxu0
        %3722 = vmatprep.mubr.bf16.mxu0 0
        %3723 = vmatmul.mubr.bf16.gmra.mrb[0].mxu0 %v2717
        %v3724 = vpop.f32.mrb[0].mxu0
        %v3725 = vadd.f32 0.0, %v3724
        %v3726 = vpop.f32.mrb[0].mxu0
        %v3727 = vpop.f32.mrb[0].mxu0
        %v3728 = vadd.f32 0.0, %v3727
        %v3729 = vpop.f32.mrb[0].mxu0
        %3730 = vmatprep.mubr.bf16.mxu0 0
        %3731 = vmatmul.mubr.bf16.gmra.mrb[0].mxu0 %v3624
        %v3732 = vpop.f32.mrb[0].mxu0
        %v3733 = vadd.f32 0.0, %v3732
        %v3734 = vpop.f32.mrb[0].mxu0
        %v3735 = vpop.f32.mrb[0].mxu0
        %v3736 = vadd.f32 0.0, %v3735
        %v3737 = vpop.f32.mrb[0].mxu0
        %3738 = vdwg.mxu0
        %v3739 = vadd.f32 %v3593, %v3709
        %v3740 = vadd.f32 %v3594, %v3712
        %v3741 = vadd.f32 %v3595, %v3717
        %v3742 = vadd.f32 %v3596, %v3720
        %v3743 = vadd.f32 %v3597, %v3725
        %v3744 = vadd.f32 %v3598, %v3728
        %v3745 = vadd.f32 %v3599, %v3733
        %v3746 = vadd.f32 %v3600, %v3736
        %3747 = vst [vmem:[#allocation3] sm:$0xff] %v3739
        %3748 = vst [vmem:[#allocation3 + $0x8] sm:$0xff] %v3740
        %3749 = vst [vmem:[#allocation3 + $0x10] sm:$0xff] %v3741
        %3750 = vst [vmem:[#allocation3 + $0x18] sm:$0xff] %v3742
        %3751 = vst [vmem:[#allocation3 + $0x20] sm:$0xff] %v3743
        %3752 = vst [vmem:[#allocation3 + $0x28] sm:$0xff] %v3744
        %3753 = vst [vmem:[#allocation3 + $0x30] sm:$0xff] %v3745
        %3754 = vst [vmem:[#allocation3 + $0x38] sm:$0xff] %v3746
        %p3755 = scmp.eq.s32.totalorder %s24, 3
        // Predicated region
        $region98: #{psa_head_forward.5} parent=88 // pred_check
          %p3756 = pneg %p3755
        $region99: #{psa_head_forward.5} parent=88 // pred_check_branch
          %3758 = sbr.rel (%p3756) target = $region101
        $region100: #{psa_head_forward.5} parent=88 // pred_region
          %v3759 = vld [vmem:[#allocation3] sm:$0xff]
          %v3760 = vld [vmem:[#allocation3 + $0x8] sm:$0xff]
          %v3761 = vld [vmem:[#allocation3 + $0x10] sm:$0xff]
          %v3762 = vld [vmem:[#allocation3 + $0x18] sm:$0xff]
          %v3763 = vld [vmem:[#allocation3 + $0x20] sm:$0xff]
          %v3764 = vld [vmem:[#allocation3 + $0x28] sm:$0xff]
          %v3765 = vld [vmem:[#allocation3 + $0x30] sm:$0xff]
          %v3766 = vld [vmem:[#allocation3 + $0x38] sm:$0xff]
          %v3767 = vld [vmem:[%s5] sm:$0x1]
          %v3769 = vlaneseq
          %v3770 = vshrl.u32 %v3769, 7
          %v3771 = vsub.s32 0, %v3770
          %v3772 = vrot.slane %v3767, %v3771
          %v3774 = vadd.f32 %v3759, %v3772
          %v3775 = vadd.f32 %v3760, %v3772
          %v3776 = vadd.f32 %v3761, %v3772
          %v3777 = vadd.f32 %v3762, %v3772
          %v3778 = vadd.f32 %v3763, %v3772
          %v3779 = vadd.f32 %v3764, %v3772
          %v3780 = vadd.f32 %v3765, %v3772
          %v3781 = vadd.f32 %v3766, %v3772
          %v3782 = vmax.f32 %v3774, 0.0
          %v3783 = vmax.f32 %v3775, 0.0
          %v3784 = vmax.f32 %v3776, 0.0
          %v3785 = vmax.f32 %v3777, 0.0
          %v3786 = vmax.f32 %v3778, 0.0
          %v3787 = vmax.f32 %v3779, 0.0
          %v3788 = vmax.f32 %v3780, 0.0
          %v3789 = vmax.f32 %v3781, 0.0
          %v3790 = vpack.c.bf16 %v3783, %v3782
          %v3791 = vpack.c.bf16 %v3785, %v3784
          %v3792 = vpack.c.bf16 %v3787, %v3786
          %v3793 = vpack.c.bf16 %v3789, %v3788
          %v3794 = vld [vmem:[%s6] sm:$0xf]
          %v3795 = vld [vmem:[%s6 + $0x4] sm:$0xf]
          %v3796 = vld [vmem:[%s6 + $0x8] sm:$0xf]
          %v3797 = vld [vmem:[%s6 + $0xc] sm:$0xf]
          %v3798 = vld [vmem:[%s6 + $0x10] sm:$0xf]
          %v3799 = vld [vmem:[%s6 + $0x14] sm:$0xf]
          %v3800 = vld [vmem:[%s6 + $0x18] sm:$0xf]
          %v3801 = vld [vmem:[%s6 + $0x1c] sm:$0xf]
          %v3802 = vld [vmem:[%s6 + $0x20] sm:$0xf]
          %v3803 = vld [vmem:[%s6 + $0x24] sm:$0xf]
          %v3804 = vld [vmem:[%s6 + $0x28] sm:$0xf]
          %v3805 = vld [vmem:[%s6 + $0x2c] sm:$0xf]
          %v3806 = vld [vmem:[%s6 + $0x30] sm:$0xf]
          %v3807 = vld [vmem:[%s6 + $0x34] sm:$0xf]
          %v3808 = vld [vmem:[%s6 + $0x38] sm:$0xf]
          %v3809 = vld [vmem:[%s6 + $0x3c] sm:$0xf]
          %v3810 = vld [vmem:[%s7] sm:$0x1]
          %v3812 = vlaneseq
          %v3813 = vshrl.u32 %v3812, 7
          %v3814 = vsub.s32 0, %v3813
          %v3815 = vrot.slane %v3810, %v3814
          %v3833 = vunpack.c.l.b16 %v3794
          %v3834 = vunpack.c.l.b16 %v3795
          %v3835 = vunpack.c.l.b16 %v3796
          %v3836 = vunpack.c.l.b16 %v3797
          %v3837 = vunpack.c.l.b16 %v3798
          %v3838 = vunpack.c.l.b16 %v3799
          %v3839 = vunpack.c.l.b16 %v3800
          %v3840 = vunpack.c.l.b16 %v3801
          %v3841 = vunpack.c.l.b16 %v3802
          %v3842 = vunpack.c.l.b16 %v3803
          %v3843 = vunpack.c.l.b16 %v3804
          %v3844 = vunpack.c.l.b16 %v3805
          %v3845 = vunpack.c.l.b16 %v3806
          %v3846 = vunpack.c.l.b16 %v3807
          %v3847 = vunpack.c.l.b16 %v3808
          %v3848 = vunpack.c.l.b16 %v3809
          %v3849 = vpack.c.b16 %v3834, %v3833
          %v3850 = vpack.c.b16 %v3836, %v3835
          %v3851 = vpack.c.b16 %v3838, %v3837
          %v3852 = vpack.c.b16 %v3840, %v3839
          %v3853 = vpack.c.b16 %v3842, %v3841
          %v3854 = vpack.c.b16 %v3844, %v3843
          %v3855 = vpack.c.b16 %v3846, %v3845
          %v3856 = vpack.c.b16 %v3848, %v3847
          %3865 = vmatprep.subr.bf16.mxu0 0
          %3866 = vmatpush1.bf16.msra.mxu0 %v3849
          %3867 = vmatprep.subr.bf16.mxu0 0
          %3868 = vmatpush1.bf16.msra.mxu0 %v3850
          %3869 = vmatprep.subr.bf16.mxu0 0
          %3870 = vmatpush1.bf16.msra.mxu0 %v3851
          %3871 = vmatprep.subr.bf16.mxu0 0
          %3872 = vmatpush1.bf16.msra.mxu0 %v3852
          %3873 = vmatprep.subr.bf16.mxu0 0
          %3874 = vmatpush1.bf16.msra.mxu0 %v3853
          %3875 = vmatprep.subr.bf16.mxu0 0
          %3876 = vmatpush1.bf16.msra.mxu0 %v3854
          %3877 = vmatprep.subr.bf16.mxu0 0
          %3878 = vmatpush1.bf16.msra.mxu0 %v3855
          %3879 = vmatprep.subr.bf16.mxu0 0
          %3880 = vmatpush1.bf16.msra.mxu0 %v3856
          %3881 = vmatprep.subr.bf16.mxu0 0
          %3882 = vmatpush1.bf16.msra.mxu0 0
          %3883 = vmatprep.subr.bf16.mxu0 0
          %3884 = vmatpush1.bf16.msra.mxu0 0
          %3885 = vmatprep.subr.bf16.mxu0 0
          %3886 = vmatpush1.bf16.msra.mxu0 0
          %3887 = vmatprep.subr.bf16.mxu0 0
          %3888 = vmatpush1.bf16.msra.mxu0 0
          %3889 = vmatprep.subr.bf16.mxu0 0
          %3890 = vmatpush1.bf16.msra.mxu0 0
          %3891 = vmatprep.subr.bf16.mxu0 0
          %3892 = vmatpush1.bf16.msra.mxu0 0
          %3893 = vmatprep.subr.bf16.mxu0 0
          %3894 = vmatpush1.bf16.msra.mxu0 0
          %3895 = vmatprep.subr.bf16.mxu0 0
          %3896 = vmatpush1.bf16.msra.mxu0 0
          %3897 = vmatprep.mubr.bf16.mxu0 0
          %3898 = vmatmul.mubr.bf16.gmra.mrb[0].mxu0 %v3790
          %v3899 = vpop.f32.mrb[0].mxu0
          %v3900 = vadd.f32 %v3815, %v3899
          %v3901 = vpop.f32.mrb[0].mxu0
          %v3902 = vpop.f32.mrb[0].mxu0
          %v3903 = vadd.f32 %v3815, %v3902
          %v3904 = vpop.f32.mrb[0].mxu0
          %3905 = vmatprep.mubr.bf16.mxu0 0
          %3906 = vmatmul.mubr.bf16.gmra.mrb[0].mxu0 %v3791
          %v3907 = vpop.f32.mrb[0].mxu0
          %v3908 = vadd.f32 %v3815, %v3907
          %v3909 = vpop.f32.mrb[0].mxu0
          %v3910 = vpop.f32.mrb[0].mxu0
          %v3911 = vadd.f32 %v3815, %v3910
          %v3912 = vpop.f32.mrb[0].mxu0
          %3913 = vmatprep.mubr.bf16.mxu0 0
          %3914 = vmatmul.mubr.bf16.gmra.mrb[0].mxu0 %v3792
          %v3915 = vpop.f32.mrb[0].mxu0
          %v3916 = vadd.f32 %v3815, %v3915
          %v3917 = vpop.f32.mrb[0].mxu0
          %v3918 = vpop.f32.mrb[0].mxu0
          %v3919 = vadd.f32 %v3815, %v3918
          %v3920 = vpop.f32.mrb[0].mxu0
          %3921 = vmatprep.mubr.bf16.mxu0 0
          %3922 = vmatmul.mubr.bf16.gmra.mrb[0].mxu0 %v3793
          %v3923 = vpop.f32.mrb[0].mxu0
          %v3924 = vadd.f32 %v3815, %v3923
          %v3925 = vpop.f32.mrb[0].mxu0
          %v3926 = vpop.f32.mrb[0].mxu0
          %v3927 = vadd.f32 %v3815, %v3926
          %v3928 = vpop.f32.mrb[0].mxu0
          %3929 = vdwg.mxu0
          %3930 = vst [vmem:[%s972] sm:$0xff] %v3900
          %3931 = vst [vmem:[%s972 + $0x8] sm:$0xff] %v3903
          %3932 = vst [vmem:[%s972 + $0x10] sm:$0xff] %v3908
          %3933 = vst [vmem:[%s972 + $0x18] sm:$0xff] %v3911
          %3934 = vst [vmem:[%s972 + $0x20] sm:$0xff] %v3916
          %3935 = vst [vmem:[%s972 + $0x28] sm:$0xff] %v3919
          %3936 = vst [vmem:[%s972 + $0x30] sm:$0xff] %v3924
          %3937 = vst [vmem:[%s972 + $0x38] sm:$0xff] %v3927
        $region101: #{psa_head_forward.5} parent=88 // pred_fallthru
          _
        %p3938 = scmp.lt.s32.totalorder %s23, 1
        %s3939 = scalar_select %p3938, %s23, 1
        %s3940 = smul.addr %s3939, 8
        %s3941 = smul.addr %s3940, 8
        %s3942 = scalar_lea.vmem %s8, %s3941
        // Predicated region
        $region102: #{psa_head_forward.5} parent=88 // pred_check
          %p3943 = pneg %p232
        $region103: #{psa_head_forward.5} parent=88 // pred_check_branch
          %3945 = sbr.rel (%p3943) target = $region105
        $region104: #{psa_head_forward.5} parent=88 // pred_region
          _
        $region105: #{psa_head_forward.5} parent=88 // pred_fallthru
          _
      $region89: #{psa_head_forward.5} parent=5 // pred_fallthru
        _
      %p3946 = scmp.le.s32.totalorder 2, %s14
      // Predicated region
      $region106: #{psa_head_forward.5} parent=5 // pred_check
        %p3947 = pneg %p3946
      $region107: #{psa_head_forward.5} parent=5 // pred_check_branch
        %3949 = sbr.rel (%p3947) target = $region109
      $region108: #{psa_head_forward.5} parent=5 // pred_region
        %s3950 = ssub.s32 %s14, 2
        // Predicated region
        $region110: #{psa_head_forward.5} parent=108 // pred_check
          %p3951 = pneg %p238
        $region111: #{psa_head_forward.5} parent=108 // pred_check_branch
          %3953 = sbr.rel (%p3951) target = $region113
        $region112: #{psa_head_forward.5} parent=108 // pred_region
          %p3954 = scmp.lt.s32.totalorder %s25, 1
          %s3955 = scalar_select %p3954, %s25, 1
          %s3956 = smul.addr %s3955, 8
          %s3957 = smul.addr %s3956, 8
          %s3958 = scalar_lea.vmem %s8, %s3957
        $region113: #{psa_head_forward.5} parent=108 // pred_fallthru
          _
      $region109: #{psa_head_forward.5} parent=5 // pred_fallthru
        _
    $region6: #{psa_head_forward.5} parent=1 // loop_footer
      %s18 = sadd.s32 1, %s14
    $region7: #{psa_head_forward.5} parent=1 // loop_footer_branch
      %13 = sbr.rel target = $region3
    $region8: #{psa_head_forward.5} parent=1 // loop_exit
      _

</llo_original>
